<compile_context>
chip_gen: v6e
topology: v6e:2x2x1
jax: 0.10.0
libtpu: 0.0.40
codegen_flags: <defaults>
</compile_context>

<pallas_src>
import functools
import math

import jax
import jax.numpy as jnp
from jax.experimental import pallas as pl
from jax.experimental.pallas import tpu as pltpu


# ----------------------------------------------------------------------------
# Model config (small synthetic BERT — from_pretrained is not loadable here)
# ----------------------------------------------------------------------------

CFG = dict(
    vocab_size=100,
    max_pos=16,
    bert_hidden=32,      # bert_out_dim
    bert_layers=2,
    num_heads=2,
    intermediate=64,
    hidden_dim=32,       # LSTM output width (bidirectional -> 16 per dir)
    lstm_layers=2,
    output_dim=5,
    seq=8,
    batch=2,
)


# ----------------------------------------------------------------------------
# Parameter slab layout (one [rows, 128] f32 slab holding every weight/bias)
# ----------------------------------------------------------------------------

def _slab_layout(cfg):
    Hb, dI = cfg["bert_hidden"], cfg["intermediate"]
    V, P = cfg["vocab_size"], cfg["max_pos"]
    H = cfg["hidden_dim"] // 2
    off, r = {}, 0

    def take(name, n):
        nonlocal r
        off[name] = r
        r += n

    take("word_emb", V)
    take("pos_tok", P)                       # pos_emb + token_type_emb[0]
    take("emb_ln_g", 1)
    take("emb_ln_b", 1)
    for l in range(cfg["bert_layers"]):
        take(f"w_qkv_{l}", Hb)               # [Hb, 3Hb] in cols 0:3Hb
        take(f"wo_{l}", Hb)                  # [Hb, Hb]
        take(f"wi_{l}", Hb)                  # [Hb, I]
        take(f"wout_{l}", dI)                # [I, Hb]
        for nm in ("b_qkv", "bo", "ln1g", "ln1b", "bi", "bout", "ln2g", "ln2b"):
            take(f"{nm}_{l}", 1)
    din = Hb
    for l in range(cfg["lstm_layers"]):
        take(f"wih_{l}", din)                # [din, 8H]
        take(f"whh_{l}", 2 * H)              # [2H, 8H] block-diagonal
        take(f"lb_{l}", 1)                   # [1, 8H]
        din = 2 * H
    take("wfc", 2 * H)                       # [2H, out] lane-padded to 128
    take("bfc", 1)
    rows = (r + 7) // 8 * 8                  # sublane-align the slab
    return off, rows


def pack_params(params, cfg):
    off, rows = _slab_layout(cfg)
    slab = jnp.zeros((rows, 128), jnp.float32)

    def put(s, name, arr):
        arr = jnp.asarray(arr, jnp.float32)
        if arr.ndim == 1:
            arr = arr[None, :]
        r, c = arr.shape
        return s.at[off[name]:off[name] + r, 0:c].set(arr)

    slab = put(slab, "word_emb", params["word_emb"])
    # token_type_ids default to 0 -> fold tok_emb[0] into the position rows.
    slab = put(slab, "pos_tok", params["pos_emb"] + params["tok_emb"][0][None, :])
    slab = put(slab, "emb_ln_g", params["emb_ln_g"])
    slab = put(slab, "emb_ln_b", params["emb_ln_b"])
    for l, lp in enumerate(params["bert_layers"]):
        slab = put(slab, f"w_qkv_{l}", lp["w_qkv"])
        slab = put(slab, f"wo_{l}", lp["wo"])
        slab = put(slab, f"wi_{l}", lp["wi"])
        slab = put(slab, f"wout_{l}", lp["wout"])
        slab = put(slab, f"b_qkv_{l}", lp["b_qkv"])
        slab = put(slab, f"bo_{l}", lp["bo"])
        slab = put(slab, f"ln1g_{l}", lp["ln1_g"])
        slab = put(slab, f"ln1b_{l}", lp["ln1_b"])
        slab = put(slab, f"bi_{l}", lp["bi"])
        slab = put(slab, f"bout_{l}", lp["bout"])
        slab = put(slab, f"ln2g_{l}", lp["ln2_g"])
        slab = put(slab, f"ln2b_{l}", lp["ln2_b"])
    for l, lp in enumerate(params["lstm"]):
        slab = put(slab, f"wih_{l}", lp["wih"])
        slab = put(slab, f"whh_{l}", lp["whh"])
        slab = put(slab, f"lb_{l}", lp["b"])
    slab = put(slab, "wfc", params["wfc"])
    slab = put(slab, "bfc", params["bfc"])
    return slab


# ----------------------------------------------------------------------------
# The fused kernel: embeddings + BERT encoder + BiLSTM + FC
# ----------------------------------------------------------------------------

def _bert_lstm_kernel(ids_ref,            # SMEM [B*T] int32 (scalar prefetch)
                      slab_ref,           # VMEM [rows, 128] f32 parameter slab
                      mask_ref,           # VMEM [B, T] f32 additive key mask
                      out_ref,            # VMEM [T*B, 128] f32 (lane-padded FC out)
                      buf_ref,            # VMEM scratch [B*T, Hb] (emb / attn ctx)
                      xg_ref,             # VMEM scratch [B*T, 8H] (LSTM input proj)
                      y_ref,              # VMEM scratch [B*T, 2H] (time-major LSTM out)
                      *, off, B, T, Hb, nH, dI, H, n_bert, n_lstm, eps):
    f32 = jnp.float32
    dh = Hb // nH
    scale = 1.0 / math.sqrt(dh)
    G = 8 * H

    def rowv(name, w):
        r = off[name]
        return slab_ref[r:r + 1, 0:w]

    def blockv(name, nr, w):
        r = off[name]
        return slab_ref[r:r + nr, 0:w]

    def layernorm(v, g, b):
        mu = jnp.mean(v, axis=-1, keepdims=True)
        var = jnp.mean((v - mu) ** 2, axis=-1, keepdims=True)
        return (v - mu) * jax.lax.rsqrt(var + eps) * g + b

    def gelu(v):
        # TODO(synk): HF BERT default is exact erf-GELU; tanh approximation is
        #             kept because it maps onto Mosaic-supported EUP ops.
        c = math.sqrt(2.0 / math.pi)
        return 0.5 * v * (1.0 + jnp.tanh(c * (v + 0.044715 * v * v * v)))

    # ---- embeddings: word-id gather (ids in SMEM) + position/token-type ----
    we0, pt0 = off["word_emb"], off["pos_tok"]
    for b in range(B):
        for t in range(T):
            i = b * T + t
            tok = ids_ref[i]
            buf_ref[i:i + 1, :] = (slab_ref[pl.ds(we0 + tok, 1), 0:Hb]
                                   + slab_ref[pt0 + t:pt0 + t + 1, 0:Hb])

    x = layernorm(buf_ref[...], rowv("emb_ln_g", Hb), rowv("emb_ln_b", Hb))
    mask = mask_ref[...]                                   # [B, T]

    # ---- transformer encoder layers (rows are batch-major: b*T + t) ----
    for l in range(n_bert):
        qkv = (jnp.dot(x, blockv(f"w_qkv_{l}", Hb, 3 * Hb),
                       preferred_element_type=f32)
               + rowv(f"b_qkv_{l}", 3 * Hb))
        # Self-attention: per-head contexts stored straight into buf_ref.
        for b in range(B):
            r0 = b * T
            mrow = mask[b:b + 1, :]
            for hd in range(nH):
                c0 = hd * dh
                q = qkv[r0:r0 + T, c0:c0 + dh]
                k = qkv[r0:r0 + T, Hb + c0:Hb + c0 + dh]
                v = qkv[r0:r0 + T, 2 * Hb + c0:2 * Hb + c0 + dh]
                scores = jax.lax.dot_general(q, k, (((1,), (1,)), ((), ())),
                                             preferred_element_type=f32)
                # No max-subtraction: logits are tiny at this scale, and
                # exp(-1e9) underflows to exactly 0 for masked keys.
                e = jnp.exp(scores * scale + mrow)
                p = e * pl.reciprocal(jnp.sum(e, axis=-1, keepdims=True),
                                      approx=True)
                buf_ref[r0:r0 + T, c0:c0 + dh] = jnp.dot(
                    p, v, preferred_element_type=f32)
        attn = (jnp.dot(buf_ref[...], blockv(f"wo_{l}", Hb, Hb),
                        preferred_element_type=f32) + rowv(f"bo_{l}", Hb))
        x = layernorm(attn + x, rowv(f"ln1g_{l}", Hb), rowv(f"ln1b_{l}", Hb))
        inter = gelu(jnp.dot(x, blockv(f"wi_{l}", Hb, dI),
                             preferred_element_type=f32) + rowv(f"bi_{l}", dI))
        ffn = (jnp.dot(inter, blockv(f"wout_{l}", dI, Hb),
                       preferred_element_type=f32) + rowv(f"bout_{l}", Hb))
        x = layernorm(ffn + x, rowv(f"ln2g_{l}", Hb), rowv(f"ln2b_{l}", Hb))

    # ---- fused bidirectional LSTM (gate layout: [i_f i_b|f_f f_b|g_f g_b|o_f o_b]) ----
    lane = jax.lax.broadcasted_iota(jnp.int32, (B, G), 1)
    fwd_lane = (lane % (2 * H)) < H                      # fwd half of every gate
    g_lane = (lane >= 4 * H) & (lane < 6 * H)            # tanh (cell-candidate) gate
    half = jnp.where(g_lane, 1.0, 0.5).astype(f32)       # pre-scale for 1-tanh trick

    y_in = x                     # layer-0 input: encoder output (batch-major)
    din = Hb
    for l in range(n_lstm):
        xg_ref[...] = (jnp.dot(y_in, blockv(f"wih_{l}", din, G),
                               preferred_element_type=f32) + rowv(f"lb_{l}", G))
        whh = blockv(f"whh_{l}", 2 * H, G)
        h = jnp.zeros((B, 2 * H), f32)                   # [h_fwd | h_bwd]
        c = jnp.zeros((B, 2 * H), f32)
        for s in range(T):
            rs = T - 1 - s
            if l == 0:
                # Batch-major input: rows {b*T + t} -> strided sublane reads.
                gxf = xg_ref[pl.ds(s, B, stride=T), :]
                gxb = xg_ref[pl.ds(rs, B, stride=T), :]
            else:
                # Time-major input: contiguous per-timestep slabs.
                gxf = xg_ref[s * B:(s + 1) * B, :]
                gxb = xg_ref[rs * B:(rs + 1) * B, :]
            gx = jnp.where(fwd_lane, gxf, gxb)
            gates = gx + jnp.dot(h, whh, preferred_element_type=f32)
            # One EUP tanh for all 4 gates: sigmoid(z) = 0.5*(tanh(z/2)+1).
            tt = jnp.tanh(gates * half)
            act = jnp.where(g_lane, tt, 0.5 * tt + 0.5)
            i_g = act[:, 0:2 * H]
            f_g = act[:, 2 * H:4 * H]
            g_g = act[:, 4 * H:6 * H]
            o_g = act[:, 6 * H:8 * H]
            c = f_g * c + i_g * g_g
            h = o_g * jnp.tanh(c)
            y_ref[s * B:(s + 1) * B, 0:H] = h[:, 0:H]            # fwd @ step s
            y_ref[rs * B:(rs + 1) * B, H:2 * H] = h[:, H:2 * H]  # bwd @ step rs
        y_in = y_ref[...]                         # time-major [T*B, 2H]
        din = 2 * H

    # ---- final Linear (dropout p=0 -> identity); lane-padded 128-wide write ----
    out = (jnp.dot(y_ref[...], blockv("wfc", 2 * H, 128),
                   preferred_element_type=f32) + rowv("bfc", 128))
    out_ref[...] = out.astype(out_ref.dtype)


# ----------------------------------------------------------------------------
# Forward pass (mirrors BertLSTM.forward) — one pallas_call
# ----------------------------------------------------------------------------

def bert_lstm_forward(slab, sent, masks=None, cfg=CFG):
    """sent: [seq, batch] int32 token ids (PyTorch forward convention)."""
    ids_bt = sent.transpose(1, 0)                       # sent.permute(1, 0)
    B, T = ids_bt.shape
    Hb, dI = cfg["bert_hidden"], cfg["intermediate"]
    H = cfg["hidden_dim"] // 2
    out_dim = cfg["output_dim"]
    off, rows = _slab_layout(cfg)

    if masks is None:
        mask_add = jnp.zeros((B, T), jnp.float32)
    else:
        mask_add = (1.0 - masks.astype(jnp.float32).reshape(B, T)) * -1e9

    ids = ids_bt.reshape(-1).astype(jnp.int32)          # [B*T] -> SMEM prefetch

    kern = functools.partial(
        _bert_lstm_kernel, off=off, B=B, T=T, Hb=Hb, nH=cfg["num_heads"],
        dI=dI, H=H, n_bert=cfg["bert_layers"], n_lstm=cfg["lstm_layers"],
        eps=1e-12)

    out = pl.pallas_call(
        kern,
        out_shape=jax.ShapeDtypeStruct((T * B, 128), jnp.float32),
        grid_spec=pltpu.PrefetchScalarGridSpec(
            num_scalar_prefetch=1,
            grid=(1,),
            in_specs=[pl.BlockSpec((rows, 128), lambda i, _ids: (0, 0)),
                      pl.BlockSpec((B, T), lambda i, _ids: (0, 0))],
            out_specs=pl.BlockSpec((T * B, 128), lambda i, _ids: (0, 0)),
            scratch_shapes=[pltpu.VMEM((B * T, Hb), jnp.float32),
                            pltpu.VMEM((B * T, 8 * H), jnp.float32),
                            pltpu.VMEM((B * T, 2 * H), jnp.float32)]),
        compiler_params=pltpu.CompilerParams(
            dimension_semantics=("arbitrary",)),
    )(ids, slab, mask_add)

    # Rows are already time-major (permute(1,0,2) + dropout(p=0) + fc folded
    # into the kernel); drop the 128-lane padding of the FC output.
    return out[:, :out_dim].reshape(T, B, out_dim)


# ----------------------------------------------------------------------------
# Parameter construction (deterministic, synthetic) + BiLSTM weight fusion
# ----------------------------------------------------------------------------

def _fuse_bilstm_weights(wih_f, whh_f, b_f, wih_b, whh_b, b_b, H):
    """Pack fwd/bwd LSTM weights into the gate-interleaved 8H-lane layout.

    NOTE: if real PyTorch weights are ever loaded, b must be b_ih + b_hh.
    """
    din = wih_f.shape[0]
    wih = jnp.zeros((din, 8 * H), jnp.float32)
    whh = jnp.zeros((2 * H, 8 * H), jnp.float32)   # block-diagonal per direction
    b = jnp.zeros((8 * H,), jnp.float32)
    for k in range(4):                              # gate order i, f, g, o
        cf = slice(k * 2 * H, k * 2 * H + H)        # fwd lanes of gate k
        cb = slice(k * 2 * H + H, (k + 1) * 2 * H)  # bwd lanes of gate k
        src = slice(k * H, (k + 1) * H)
        wih = wih.at[:, cf].set(wih_f[:, src])
        wih = wih.at[:, cb].set(wih_b[:, src])
        whh = whh.at[0:H, cf].set(whh_f[:, src])
        whh = whh.at[H:2 * H, cb].set(whh_b[:, src])
        b = b.at[cf].set(b_f[src])
        b = b.at[cb].set(b_b[src])
    return wih, whh, b.reshape(1, 8 * H)


def init_params(key, cfg):
    keys = iter(jax.random.split(key, 256))

    def nrm(shape, scale=0.02):
        return scale * jax.random.normal(next(keys), shape, jnp.float32)

    Hb, dI = cfg["bert_hidden"], cfg["intermediate"]
    p = {
        "word_emb": nrm((cfg["vocab_size"], Hb)),
        "pos_emb": nrm((cfg["max_pos"], Hb)),
        "tok_emb": nrm((2, Hb)),
        "emb_ln_g": jnp.ones((1, Hb), jnp.float32),
        "emb_ln_b": jnp.zeros((1, Hb), jnp.float32),
        "bert_layers": [],
        "lstm": [],
    }
    for _ in range(cfg["bert_layers"]):
        wq, wk, wv = nrm((Hb, Hb)), nrm((Hb, Hb)), nrm((Hb, Hb))
        bq, bk, bv = nrm((Hb,)), nrm((Hb,)), nrm((Hb,))
        p["bert_layers"].append(dict(
            w_qkv=jnp.concatenate([wq, wk, wv], axis=1),            # [Hb, 3Hb]
            b_qkv=jnp.concatenate([bq, bk, bv]).reshape(1, 3 * Hb),
            wo=nrm((Hb, Hb)), bo=nrm((Hb,)).reshape(1, Hb),
            ln1_g=jnp.ones((1, Hb), jnp.float32),
            ln1_b=jnp.zeros((1, Hb), jnp.float32),
            wi=nrm((Hb, dI)), bi=nrm((dI,)).reshape(1, dI),
            wout=nrm((dI, Hb)), bout=nrm((Hb,)).reshape(1, Hb),
            ln2_g=jnp.ones((1, Hb), jnp.float32),
            ln2_b=jnp.zeros((1, Hb), jnp.float32),
        ))

    H = cfg["hidden_dim"] // 2     # per-direction hidden (bidirectional=True)
    din = Hb
    for _ in range(cfg["lstm_layers"]):
        wih_f, whh_f, b_f = nrm((din, 4 * H), 0.1), nrm((H, 4 * H), 0.1), nrm((4 * H,), 0.1)
        wih_b, whh_b, b_b = nrm((din, 4 * H), 0.1), nrm((H, 4 * H), 0.1), nrm((4 * H,), 0.1)
        wih, whh, b = _fuse_bilstm_weights(wih_f, whh_f, b_f, wih_b, whh_b, b_b, H)
        p["lstm"].append(dict(wih=wih, whh=whh, b=b))
        din = 2 * H

    p["wfc"] = nrm((cfg["hidden_dim"], cfg["output_dim"]), 0.1)
    p["bfc"] = jnp.zeros((1, cfg["output_dim"]), jnp.float32)
    return p


# ----------------------------------------------------------------------------

if __name__ == "__main__":
    key = jax.random.PRNGKey(0)
    kp, kd = jax.random.split(key)
    params = init_params(kp, CFG)
    slab = pack_params(params, CFG)          # one 128-lane weight slab

    # sent: [seq, batch] int32 token ids (as the PyTorch forward expects).
    sent = jax.random.randint(kd, (CFG["seq"], CFG["batch"]), 0,
                              CFG["vocab_size"], dtype=jnp.int32)

    fwd = jax.jit(lambda w, s: bert_lstm_forward(w, s, None, CFG))
    out = jax.block_until_ready(fwd(slab, sent))

    assert out.shape == (CFG["seq"], CFG["batch"], CFG["output_dim"]), out.shape
    assert bool(jnp.all(jnp.isfinite(out)))
    print("KERNEL_OK")
</pallas_src>

<mosaic_0001>
module attributes {stable_mosaic.version = 11 : i64} {
  func.func @_bert_lstm_kernel(%arg0: i32, %arg1: memref<16xi32, #tpu.memory_space<smem>>, %arg2: memref<624x128xf32, #tpu.memory_space<vmem>>, %arg3: memref<2x8xf32, #tpu.memory_space<vmem>>, %arg4: memref<16x128xf32, #tpu.memory_space<vmem>>, %arg5: memref<16x32xf32, #tpu.memory_space<vmem>>, %arg6: memref<16x128xf32, #tpu.memory_space<vmem>>, %arg7: memref<16x32xf32, #tpu.memory_space<vmem>>) attributes {dimension_semantics = [#tpu.dimension_semantics<arbitrary>], iteration_bounds = array<i64: 1>, scalar_prefetch = 1 : i64, scratch_operands = 3 : i64, tpu.core_type = #tpu.core_type<tc>, window_params = [{pipeline_mode = #tpu.pipeline_mode<synchronous>, transform_indices = @transform_0, window_bounds = array<i64: 624, 128>}, {pipeline_mode = #tpu.pipeline_mode<synchronous>, transform_indices = @transform_1, window_bounds = array<i64: 2, 8>}, {pipeline_mode = #tpu.pipeline_mode<synchronous>, transform_indices = @transform_2, window_bounds = array<i64: 16, 128>}]} {
    %c0 = arith.constant 0 : index
    %0 = memref.load %arg1[%c0] : memref<16xi32, #tpu.memory_space<smem>>
    %c0_i32 = arith.constant 0 : i32
    %1 = arith.addi %c0_i32, %0 : i32
    %2 = arith.index_cast %1 : i32 to index
    %c0_0 = arith.constant 0 : index
    %3 = vector.load %arg2[%2, %c0_0] : memref<624x128xf32, #tpu.memory_space<vmem>>, vector<1x32xf32>
    %c100 = arith.constant 100 : index
    %c0_1 = arith.constant 0 : index
    %4 = vector.load %arg2[%c100, %c0_1] : memref<624x128xf32, #tpu.memory_space<vmem>>, vector<1x32xf32>
    %5 = arith.addf %3, %4 : vector<1x32xf32>
    %c0_2 = arith.constant 0 : index
    %c0_3 = arith.constant 0 : index
    %6 = vector.load %arg5[%c0_2, %c0_3] : memref<16x32xf32, #tpu.memory_space<vmem>>, vector<1x32xf32>
    tpu.vector_store %arg5[%c0_2, %c0_3], %5 {strides = array<i32>} : memref<16x32xf32, #tpu.memory_space<vmem>>, vector<1x32xf32>,
    %c1 = arith.constant 1 : index
    %7 = memref.load %arg1[%c1] : memref<16xi32, #tpu.memory_space<smem>>
    %c0_i32_4 = arith.constant 0 : i32
    %8 = arith.addi %c0_i32_4, %7 : i32
    %9 = arith.index_cast %8 : i32 to index
    %c0_5 = arith.constant 0 : index
    %10 = vector.load %arg2[%9, %c0_5] : memref<624x128xf32, #tpu.memory_space<vmem>>, vector<1x32xf32>
    %c101 = arith.constant 101 : index
    %c0_6 = arith.constant 0 : index
    %11 = vector.load %arg2[%c101, %c0_6] : memref<624x128xf32, #tpu.memory_space<vmem>>, vector<1x32xf32>
    %12 = arith.addf %10, %11 : vector<1x32xf32>
    %c1_7 = arith.constant 1 : index
    %c0_8 = arith.constant 0 : index
    %13 = vector.load %arg5[%c1_7, %c0_8] : memref<16x32xf32, #tpu.memory_space<vmem>>, vector<1x32xf32>
    tpu.vector_store %arg5[%c1_7, %c0_8], %12 {strides = array<i32>} : memref<16x32xf32, #tpu.memory_space<vmem>>, vector<1x32xf32>,
    %c2 = arith.constant 2 : index
    %14 = memref.load %arg1[%c2] : memref<16xi32, #tpu.memory_space<smem>>
    %c0_i32_9 = arith.constant 0 : i32
    %15 = arith.addi %c0_i32_9, %14 : i32
    %16 = arith.index_cast %15 : i32 to index
    %c0_10 = arith.constant 0 : index
    %17 = vector.load %arg2[%16, %c0_10] : memref<624x128xf32, #tpu.memory_space<vmem>>, vector<1x32xf32>
    %c102 = arith.constant 102 : index
    %c0_11 = arith.constant 0 : index
    %18 = vector.load %arg2[%c102, %c0_11] : memref<624x128xf32, #tpu.memory_space<vmem>>, vector<1x32xf32>
    %19 = arith.addf %17, %18 : vector<1x32xf32>
    %c2_12 = arith.constant 2 : index
    %c0_13 = arith.constant 0 : index
    %20 = vector.load %arg5[%c2_12, %c0_13] : memref<16x32xf32, #tpu.memory_space<vmem>>, vector<1x32xf32>
    tpu.vector_store %arg5[%c2_12, %c0_13], %19 {strides = array<i32>} : memref<16x32xf32, #tpu.memory_space<vmem>>, vector<1x32xf32>,
    %c3 = arith.constant 3 : index
    %21 = memref.load %arg1[%c3] : memref<16xi32, #tpu.memory_space<smem>>
    %c0_i32_14 = arith.constant 0 : i32
    %22 = arith.addi %c0_i32_14, %21 : i32
    %23 = arith.index_cast %22 : i32 to index
    %c0_15 = arith.constant 0 : index
    %24 = vector.load %arg2[%23, %c0_15] : memref<624x128xf32, #tpu.memory_space<vmem>>, vector<1x32xf32>
    %c103 = arith.constant 103 : index
    %c0_16 = arith.constant 0 : index
    %25 = vector.load %arg2[%c103, %c0_16] : memref<624x128xf32, #tpu.memory_space<vmem>>, vector<1x32xf32>
    %26 = arith.addf %24, %25 : vector<1x32xf32>
    %c3_17 = arith.constant 3 : index
    %c0_18 = arith.constant 0 : index
    %27 = vector.load %arg5[%c3_17, %c0_18] : memref<16x32xf32, #tpu.memory_space<vmem>>, vector<1x32xf32>
    tpu.vector_store %arg5[%c3_17, %c0_18], %26 {strides = array<i32>} : memref<16x32xf32, #tpu.memory_space<vmem>>, vector<1x32xf32>,
    %c4 = arith.constant 4 : index
    %28 = memref.load %arg1[%c4] : memref<16xi32, #tpu.memory_space<smem>>
    %c0_i32_19 = arith.constant 0 : i32
    %29 = arith.addi %c0_i32_19, %28 : i32
    %30 = arith.index_cast %29 : i32 to index
    %c0_20 = arith.constant 0 : index
    %31 = vector.load %arg2[%30, %c0_20] : memref<624x128xf32, #tpu.memory_space<vmem>>, vector<1x32xf32>
    %c104 = arith.constant 104 : index
    %c0_21 = arith.constant 0 : index
    %32 = vector.load %arg2[%c104, %c0_21] : memref<624x128xf32, #tpu.memory_space<vmem>>, vector<1x32xf32>
    %33 = arith.addf %31, %32 : vector<1x32xf32>
    %c4_22 = arith.constant 4 : index
    %c0_23 = arith.constant 0 : index
    %34 = vector.load %arg5[%c4_22, %c0_23] : memref<16x32xf32, #tpu.memory_space<vmem>>, vector<1x32xf32>
    tpu.vector_store %arg5[%c4_22, %c0_23], %33 {strides = array<i32>} : memref<16x32xf32, #tpu.memory_space<vmem>>, vector<1x32xf32>,
    %c5 = arith.constant 5 : index
    %35 = memref.load %arg1[%c5] : memref<16xi32, #tpu.memory_space<smem>>
    %c0_i32_24 = arith.constant 0 : i32
    %36 = arith.addi %c0_i32_24, %35 : i32
    %37 = arith.index_cast %36 : i32 to index
    %c0_25 = arith.constant 0 : index
    %38 = vector.load %arg2[%37, %c0_25] : memref<624x128xf32, #tpu.memory_space<vmem>>, vector<1x32xf32>
    %c105 = arith.constant 105 : index
    %c0_26 = arith.constant 0 : index
    %39 = vector.load %arg2[%c105, %c0_26] : memref<624x128xf32, #tpu.memory_space<vmem>>, vector<1x32xf32>
    %40 = arith.addf %38, %39 : vector<1x32xf32>
    %c5_27 = arith.constant 5 : index
    %c0_28 = arith.constant 0 : index
    %41 = vector.load %arg5[%c5_27, %c0_28] : memref<16x32xf32, #tpu.memory_space<vmem>>, vector<1x32xf32>
    tpu.vector_store %arg5[%c5_27, %c0_28], %40 {strides = array<i32>} : memref<16x32xf32, #tpu.memory_space<vmem>>, vector<1x32xf32>,
    %c6 = arith.constant 6 : index
    %42 = memref.load %arg1[%c6] : memref<16xi32, #tpu.memory_space<smem>>
    %c0_i32_29 = arith.constant 0 : i32
    %43 = arith.addi %c0_i32_29, %42 : i32
    %44 = arith.index_cast %43 : i32 to index
    %c0_30 = arith.constant 0 : index
    %45 = vector.load %arg2[%44, %c0_30] : memref<624x128xf32, #tpu.memory_space<vmem>>, vector<1x32xf32>
    %c106 = arith.constant 106 : index
    %c0_31 = arith.constant 0 : index
    %46 = vector.load %arg2[%c106, %c0_31] : memref<624x128xf32, #tpu.memory_space<vmem>>, vector<1x32xf32>
    %47 = arith.addf %45, %46 : vector<1x32xf32>
    %c6_32 = arith.constant 6 : index
    %c0_33 = arith.constant 0 : index
    %48 = vector.load %arg5[%c6_32, %c0_33] : memref<16x32xf32, #tpu.memory_space<vmem>>, vector<1x32xf32>
    tpu.vector_store %arg5[%c6_32, %c0_33], %47 {strides = array<i32>} : memref<16x32xf32, #tpu.memory_space<vmem>>, vector<1x32xf32>,
    %c7 = arith.constant 7 : index
    %49 = memref.load %arg1[%c7] : memref<16xi32, #tpu.memory_space<smem>>
    %c0_i32_34 = arith.constant 0 : i32
    %50 = arith.addi %c0_i32_34, %49 : i32
    %51 = arith.index_cast %50 : i32 to index
    %c0_35 = arith.constant 0 : index
    %52 = vector.load %arg2[%51, %c0_35] : memref<624x128xf32, #tpu.memory_space<vmem>>, vector<1x32xf32>
    %c107 = arith.constant 107 : index
    %c0_36 = arith.constant 0 : index
    %53 = vector.load %arg2[%c107, %c0_36] : memref<624x128xf32, #tpu.memory_space<vmem>>, vector<1x32xf32>
    %54 = arith.addf %52, %53 : vector<1x32xf32>
    %c7_37 = arith.constant 7 : index
    %c0_38 = arith.constant 0 : index
    %55 = vector.load %arg5[%c7_37, %c0_38] : memref<16x32xf32, #tpu.memory_space<vmem>>, vector<1x32xf32>
    tpu.vector_store %arg5[%c7_37, %c0_38], %54 {strides = array<i32>} : memref<16x32xf32, #tpu.memory_space<vmem>>, vector<1x32xf32>,
    %c8 = arith.constant 8 : index
    %56 = memref.load %arg1[%c8] : memref<16xi32, #tpu.memory_space<smem>>
    %c0_i32_39 = arith.constant 0 : i32
    %57 = arith.addi %c0_i32_39, %56 : i32
    %58 = arith.index_cast %57 : i32 to index
    %c0_40 = arith.constant 0 : index
    %59 = vector.load %arg2[%58, %c0_40] : memref<624x128xf32, #tpu.memory_space<vmem>>, vector<1x32xf32>
    %c100_41 = arith.constant 100 : index
    %c0_42 = arith.constant 0 : index
    %60 = vector.load %arg2[%c100_41, %c0_42] : memref<624x128xf32, #tpu.memory_space<vmem>>, vector<1x32xf32>
    %61 = arith.addf %59, %60 : vector<1x32xf32>
    %c8_43 = arith.constant 8 : index
    %c0_44 = arith.constant 0 : index
    %62 = vector.load %arg5[%c8_43, %c0_44] : memref<16x32xf32, #tpu.memory_space<vmem>>, vector<1x32xf32>
    tpu.vector_store %arg5[%c8_43, %c0_44], %61 {strides = array<i32>} : memref<16x32xf32, #tpu.memory_space<vmem>>, vector<1x32xf32>,
    %c9 = arith.constant 9 : index
    %63 = memref.load %arg1[%c9] : memref<16xi32, #tpu.memory_space<smem>>
    %c0_i32_45 = arith.constant 0 : i32
    %64 = arith.addi %c0_i32_45, %63 : i32
    %65 = arith.index_cast %64 : i32 to index
    %c0_46 = arith.constant 0 : index
    %66 = vector.load %arg2[%65, %c0_46] : memref<624x128xf32, #tpu.memory_space<vmem>>, vector<1x32xf32>
    %c101_47 = arith.constant 101 : index
    %c0_48 = arith.constant 0 : index
    %67 = vector.load %arg2[%c101_47, %c0_48] : memref<624x128xf32, #tpu.memory_space<vmem>>, vector<1x32xf32>
    %68 = arith.addf %66, %67 : vector<1x32xf32>
    %c9_49 = arith.constant 9 : index
    %c0_50 = arith.constant 0 : index
    %69 = vector.load %arg5[%c9_49, %c0_50] : memref<16x32xf32, #tpu.memory_space<vmem>>, vector<1x32xf32>
    tpu.vector_store %arg5[%c9_49, %c0_50], %68 {strides = array<i32>} : memref<16x32xf32, #tpu.memory_space<vmem>>, vector<1x32xf32>,
    %c10 = arith.constant 10 : index
    %70 = memref.load %arg1[%c10] : memref<16xi32, #tpu.memory_space<smem>>
    %c0_i32_51 = arith.constant 0 : i32
    %71 = arith.addi %c0_i32_51, %70 : i32
    %72 = arith.index_cast %71 : i32 to index
    %c0_52 = arith.constant 0 : index
    %73 = vector.load %arg2[%72, %c0_52] : memref<624x128xf32, #tpu.memory_space<vmem>>, vector<1x32xf32>
    %c102_53 = arith.constant 102 : index
    %c0_54 = arith.constant 0 : index
    %74 = vector.load %arg2[%c102_53, %c0_54] : memref<624x128xf32, #tpu.memory_space<vmem>>, vector<1x32xf32>
    %75 = arith.addf %73, %74 : vector<1x32xf32>
    %c10_55 = arith.constant 10 : index
    %c0_56 = arith.constant 0 : index
    %76 = vector.load %arg5[%c10_55, %c0_56] : memref<16x32xf32, #tpu.memory_space<vmem>>, vector<1x32xf32>
    tpu.vector_store %arg5[%c10_55, %c0_56], %75 {strides = array<i32>} : memref<16x32xf32, #tpu.memory_space<vmem>>, vector<1x32xf32>,
    %c11 = arith.constant 11 : index
    %77 = memref.load %arg1[%c11] : memref<16xi32, #tpu.memory_space<smem>>
    %c0_i32_57 = arith.constant 0 : i32
    %78 = arith.addi %c0_i32_57, %77 : i32
    %79 = arith.index_cast %78 : i32 to index
    %c0_58 = arith.constant 0 : index
    %80 = vector.load %arg2[%79, %c0_58] : memref<624x128xf32, #tpu.memory_space<vmem>>, vector<1x32xf32>
    %c103_59 = arith.constant 103 : index
    %c0_60 = arith.constant 0 : index
    %81 = vector.load %arg2[%c103_59, %c0_60] : memref<624x128xf32, #tpu.memory_space<vmem>>, vector<1x32xf32>
    %82 = arith.addf %80, %81 : vector<1x32xf32>
    %c11_61 = arith.constant 11 : index
    %c0_62 = arith.constant 0 : index
    %83 = vector.load %arg5[%c11_61, %c0_62] : memref<16x32xf32, #tpu.memory_space<vmem>>, vector<1x32xf32>
    tpu.vector_store %arg5[%c11_61, %c0_62], %82 {strides = array<i32>} : memref<16x32xf32, #tpu.memory_space<vmem>>, vector<1x32xf32>,
    %c12 = arith.constant 12 : index
    %84 = memref.load %arg1[%c12] : memref<16xi32, #tpu.memory_space<smem>>
    %c0_i32_63 = arith.constant 0 : i32
    %85 = arith.addi %c0_i32_63, %84 : i32
    %86 = arith.index_cast %85 : i32 to index
    %c0_64 = arith.constant 0 : index
    %87 = vector.load %arg2[%86, %c0_64] : memref<624x128xf32, #tpu.memory_space<vmem>>, vector<1x32xf32>
    %c104_65 = arith.constant 104 : index
    %c0_66 = arith.constant 0 : index
    %88 = vector.load %arg2[%c104_65, %c0_66] : memref<624x128xf32, #tpu.memory_space<vmem>>, vector<1x32xf32>
    %89 = arith.addf %87, %88 : vector<1x32xf32>
    %c12_67 = arith.constant 12 : index
    %c0_68 = arith.constant 0 : index
    %90 = vector.load %arg5[%c12_67, %c0_68] : memref<16x32xf32, #tpu.memory_space<vmem>>, vector<1x32xf32>
    tpu.vector_store %arg5[%c12_67, %c0_68], %89 {strides = array<i32>} : memref<16x32xf32, #tpu.memory_space<vmem>>, vector<1x32xf32>,
    %c13 = arith.constant 13 : index
    %91 = memref.load %arg1[%c13] : memref<16xi32, #tpu.memory_space<smem>>
    %c0_i32_69 = arith.constant 0 : i32
    %92 = arith.addi %c0_i32_69, %91 : i32
    %93 = arith.index_cast %92 : i32 to index
    %c0_70 = arith.constant 0 : index
    %94 = vector.load %arg2[%93, %c0_70] : memref<624x128xf32, #tpu.memory_space<vmem>>, vector<1x32xf32>
    %c105_71 = arith.constant 105 : index
    %c0_72 = arith.constant 0 : index
    %95 = vector.load %arg2[%c105_71, %c0_72] : memref<624x128xf32, #tpu.memory_space<vmem>>, vector<1x32xf32>
    %96 = arith.addf %94, %95 : vector<1x32xf32>
    %c13_73 = arith.constant 13 : index
    %c0_74 = arith.constant 0 : index
    %97 = vector.load %arg5[%c13_73, %c0_74] : memref<16x32xf32, #tpu.memory_space<vmem>>, vector<1x32xf32>
    tpu.vector_store %arg5[%c13_73, %c0_74], %96 {strides = array<i32>} : memref<16x32xf32, #tpu.memory_space<vmem>>, vector<1x32xf32>,
    %c14 = arith.constant 14 : index
    %98 = memref.load %arg1[%c14] : memref<16xi32, #tpu.memory_space<smem>>
    %c0_i32_75 = arith.constant 0 : i32
    %99 = arith.addi %c0_i32_75, %98 : i32
    %100 = arith.index_cast %99 : i32 to index
    %c0_76 = arith.constant 0 : index
    %101 = vector.load %arg2[%100, %c0_76] : memref<624x128xf32, #tpu.memory_space<vmem>>, vector<1x32xf32>
    %c106_77 = arith.constant 106 : index
    %c0_78 = arith.constant 0 : index
    %102 = vector.load %arg2[%c106_77, %c0_78] : memref<624x128xf32, #tpu.memory_space<vmem>>, vector<1x32xf32>
    %103 = arith.addf %101, %102 : vector<1x32xf32>
    %c14_79 = arith.constant 14 : index
    %c0_80 = arith.constant 0 : index
    %104 = vector.load %arg5[%c14_79, %c0_80] : memref<16x32xf32, #tpu.memory_space<vmem>>, vector<1x32xf32>
    tpu.vector_store %arg5[%c14_79, %c0_80], %103 {strides = array<i32>} : memref<16x32xf32, #tpu.memory_space<vmem>>, vector<1x32xf32>,
    %c15 = arith.constant 15 : index
    %105 = memref.load %arg1[%c15] : memref<16xi32, #tpu.memory_space<smem>>
    %c0_i32_81 = arith.constant 0 : i32
    %106 = arith.addi %c0_i32_81, %105 : i32
    %107 = arith.index_cast %106 : i32 to index
    %c0_82 = arith.constant 0 : index
    %108 = vector.load %arg2[%107, %c0_82] : memref<624x128xf32, #tpu.memory_space<vmem>>, vector<1x32xf32>
    %c107_83 = arith.constant 107 : index
    %c0_84 = arith.constant 0 : index
    %109 = vector.load %arg2[%c107_83, %c0_84] : memref<624x128xf32, #tpu.memory_space<vmem>>, vector<1x32xf32>
    %110 = arith.addf %108, %109 : vector<1x32xf32>
    %c15_85 = arith.constant 15 : index
    %c0_86 = arith.constant 0 : index
    %111 = vector.load %arg5[%c15_85, %c0_86] : memref<16x32xf32, #tpu.memory_space<vmem>>, vector<1x32xf32>
    tpu.vector_store %arg5[%c15_85, %c0_86], %110 {strides = array<i32>} : memref<16x32xf32, #tpu.memory_space<vmem>>, vector<1x32xf32>,
    %c0_87 = arith.constant 0 : index
    %c0_88 = arith.constant 0 : index
    %112 = vector.load %arg5[%c0_87, %c0_88] : memref<16x32xf32, #tpu.memory_space<vmem>>, vector<16x32xf32>
    %c116 = arith.constant 116 : index
    %c0_89 = arith.constant 0 : index
    %113 = vector.load %arg2[%c116, %c0_89] : memref<624x128xf32, #tpu.memory_space<vmem>>, vector<1x32xf32>
    %c117 = arith.constant 117 : index
    %c0_90 = arith.constant 0 : index
    %114 = vector.load %arg2[%c117, %c0_90] : memref<624x128xf32, #tpu.memory_space<vmem>>, vector<1x32xf32>
    %cst = arith.constant dense<0.000000e+00> : vector<16xf32>
    %115 = vector.multi_reduction <add>, %112, %cst [1] : vector<16x32xf32> to vector<16xf32>
    %116 = vector.shape_cast %115 : vector<16xf32> to vector<16x1xf32>
    %cst_91 = arith.constant 3.200000e+01 : f32
    %117 = vector.broadcast %cst_91 : f32 to vector<16x1xf32>
    %118 = arith.divf %116, %117 : vector<16x1xf32>
    %119 = vector.broadcast %118 : vector<16x1xf32> to vector<16x32xf32>
    %120 = arith.subf %112, %119 : vector<16x32xf32>
    %121 = arith.mulf %120, %120 : vector<16x32xf32>
    %cst_92 = arith.constant dense<0.000000e+00> : vector<16xf32>
    %122 = vector.multi_reduction <add>, %121, %cst_92 [1] : vector<16x32xf32> to vector<16xf32>
    %123 = vector.shape_cast %122 : vector<16xf32> to vector<16x1xf32>
    %cst_93 = arith.constant 3.200000e+01 : f32
    %124 = vector.broadcast %cst_93 : f32 to vector<16x1xf32>
    %125 = arith.divf %123, %124 : vector<16x1xf32>
    %126 = vector.broadcast %118 : vector<16x1xf32> to vector<16x32xf32>
    %127 = arith.subf %112, %126 : vector<16x32xf32>
    %cst_94 = arith.constant 9.99999996E-13 : f32
    %128 = vector.broadcast %cst_94 : f32 to vector<16x1xf32>
    %129 = arith.addf %125, %128 : vector<16x1xf32>
    %130 = math.rsqrt %129 : vector<16x1xf32>
    %131 = vector.broadcast %130 : vector<16x1xf32> to vector<16x32xf32>
    %132 = arith.mulf %127, %131 : vector<16x32xf32>
    %133 = vector.broadcast %113 : vector<1x32xf32> to vector<16x32xf32>
    %134 = arith.mulf %132, %133 : vector<16x32xf32>
    %135 = vector.broadcast %114 : vector<1x32xf32> to vector<16x32xf32>
    %136 = arith.addf %134, %135 : vector<16x32xf32>
    %c0_95 = arith.constant 0 : index
    %c0_96 = arith.constant 0 : index
    %137 = vector.load %arg3[%c0_95, %c0_96] : memref<2x8xf32, #tpu.memory_space<vmem>>, vector<2x8xf32>
    %c118 = arith.constant 118 : index
    %c0_97 = arith.constant 0 : index
    %138 = vector.load %arg2[%c118, %c0_97] : memref<624x128xf32, #tpu.memory_space<vmem>>, vector<32x96xf32>
    %cst_98 = arith.constant dense<0.000000e+00> : vector<16x96xf32>
    %139 = tpu.matmul %136, %138, %cst_98 {dimension_numbers = #tpu.dot_dimension_numbers<[1], [0], [0], [1], [0, 0, 1, 1], [], []>} : vector<16x32xf32>, vector<32x96xf32>, vector<16x96xf32> -> vector<16x96xf32>
    %c278 = arith.constant 278 : index
    %c0_99 = arith.constant 0 : index
    %140 = vector.load %arg2[%c278, %c0_99] : memref<624x128xf32, #tpu.memory_space<vmem>>, vector<1x96xf32>
    %141 = vector.broadcast %140 : vector<1x96xf32> to vector<16x96xf32>
    %142 = arith.addf %139, %141 : vector<16x96xf32>
    %143 = vector.extract_strided_slice %137 {offsets = [0, 0], sizes = [1, 8], strides = [1, 1]} : vector<2x8xf32> to vector<1x8xf32>
    %144 = vector.extract_strided_slice %142 {offsets = [0, 0], sizes = [8, 16], strides = [1, 1]} : vector<16x96xf32> to vector<8x16xf32>
    %145 = vector.extract_strided_slice %142 {offsets = [0, 32], sizes = [8, 16], strides = [1, 1]} : vector<16x96xf32> to vector<8x16xf32>
    %146 = vector.extract_strided_slice %142 {offsets = [0, 64], sizes = [8, 16], strides = [1, 1]} : vector<16x96xf32> to vector<8x16xf32>
    %cst_100 = arith.constant dense<0.000000e+00> : vector<8x8xf32>
    %147 = tpu.matmul %144, %145, %cst_100 {dimension_numbers = #tpu.dot_dimension_numbers<[1], [1], [0], [0], [0, 0, 1, 0], [], []>} : vector<8x16xf32>, vector<8x16xf32>, vector<8x8xf32> -> vector<8x8xf32>
    %cst_101 = arith.constant 2.500000e-01 : f32
    %148 = vector.broadcast %cst_101 : f32 to vector<8x8xf32>
    %149 = arith.mulf %147, %148 : vector<8x8xf32>
    %150 = vector.broadcast %143 : vector<1x8xf32> to vector<8x8xf32>
    %151 = arith.addf %149, %150 : vector<8x8xf32>
    %152 = math.exp %151 : vector<8x8xf32>
    %cst_102 = arith.constant dense<0.000000e+00> : vector<8xf32>
    %153 = vector.multi_reduction <add>, %152, %cst_102 [1] : vector<8x8xf32> to vector<8xf32>
    %154 = vector.shape_cast %153 : vector<8xf32> to vector<8x1xf32>
    %155 = tpu.reciprocal %154 {approx = true} : vector<8x1xf32> -> vector<8x1xf32>
    %156 = vector.broadcast %155 : vector<8x1xf32> to vector<8x8xf32>
    %157 = arith.mulf %152, %156 : vector<8x8xf32>
    %cst_103 = arith.constant dense<0.000000e+00> : vector<8x16xf32>
    %158 = tpu.matmul %157, %146, %cst_103 {dimension_numbers = #tpu.dot_dimension_numbers<[1], [0], [0], [1], [0, 0, 1, 1], [], []>} : vector<8x8xf32>, vector<8x16xf32>, vector<8x16xf32> -> vector<8x16xf32>
    %c0_104 = arith.constant 0 : index
    %c0_105 = arith.constant 0 : index
    %159 = vector.load %arg5[%c0_104, %c0_105] : memref<16x32xf32, #tpu.memory_space<vmem>>, vector<8x16xf32>
    tpu.vector_store %arg5[%c0_104, %c0_105], %158 {strides = array<i32>} : memref<16x32xf32, #tpu.memory_space<vmem>>, vector<8x16xf32>,
    %160 = vector.extract_strided_slice %142 {offsets = [0, 16], sizes = [8, 16], strides = [1, 1]} : vector<16x96xf32> to vector<8x16xf32>
    %161 = vector.extract_strided_slice %142 {offsets = [0, 48], sizes = [8, 16], strides = [1, 1]} : vector<16x96xf32> to vector<8x16xf32>
    %162 = vector.extract_strided_slice %142 {offsets = [0, 80], sizes = [8, 16], strides = [1, 1]} : vector<16x96xf32> to vector<8x16xf32>
    %cst_106 = arith.constant dense<0.000000e+00> : vector<8x8xf32>
    %163 = tpu.matmul %160, %161, %cst_106 {dimension_numbers = #tpu.dot_dimension_numbers<[1], [1], [0], [0], [0, 0, 1, 0], [], []>} : vector<8x16xf32>, vector<8x16xf32>, vector<8x8xf32> -> vector<8x8xf32>
    %cst_107 = arith.constant 2.500000e-01 : f32
    %164 = vector.broadcast %cst_107 : f32 to vector<8x8xf32>
    %165 = arith.mulf %163, %164 : vector<8x8xf32>
    %166 = vector.broadcast %143 : vector<1x8xf32> to vector<8x8xf32>
    %167 = arith.addf %165, %166 : vector<8x8xf32>
    %168 = math.exp %167 : vector<8x8xf32>
    %cst_108 = arith.constant dense<0.000000e+00> : vector<8xf32>
    %169 = vector.multi_reduction <add>, %168, %cst_108 [1] : vector<8x8xf32> to vector<8xf32>
    %170 = vector.shape_cast %169 : vector<8xf32> to vector<8x1xf32>
    %171 = tpu.reciprocal %170 {approx = true} : vector<8x1xf32> -> vector<8x1xf32>
    %172 = vector.broadcast %171 : vector<8x1xf32> to vector<8x8xf32>
    %173 = arith.mulf %168, %172 : vector<8x8xf32>
    %cst_109 = arith.constant dense<0.000000e+00> : vector<8x16xf32>
    %174 = tpu.matmul %173, %162, %cst_109 {dimension_numbers = #tpu.dot_dimension_numbers<[1], [0], [0], [1], [0, 0, 1, 1], [], []>} : vector<8x8xf32>, vector<8x16xf32>, vector<8x16xf32> -> vector<8x16xf32>
    %c0_110 = arith.constant 0 : index
    %c16 = arith.constant 16 : index
    %175 = vector.load %arg5[%c0_110, %c16] : memref<16x32xf32, #tpu.memory_space<vmem>>, vector<8x16xf32>
    tpu.vector_store %arg5[%c0_110, %c16], %174 {strides = array<i32>} : memref<16x32xf32, #tpu.memory_space<vmem>>, vector<8x16xf32>,
    %176 = vector.extract_strided_slice %137 {offsets = [1, 0], sizes = [1, 8], strides = [1, 1]} : vector<2x8xf32> to vector<1x8xf32>
    %177 = vector.extract_strided_slice %142 {offsets = [8, 0], sizes = [8, 16], strides = [1, 1]} : vector<16x96xf32> to vector<8x16xf32>
    %178 = vector.extract_strided_slice %142 {offsets = [8, 32], sizes = [8, 16], strides = [1, 1]} : vector<16x96xf32> to vector<8x16xf32>
    %179 = vector.extract_strided_slice %142 {offsets = [8, 64], sizes = [8, 16], strides = [1, 1]} : vector<16x96xf32> to vector<8x16xf32>
    %cst_111 = arith.constant dense<0.000000e+00> : vector<8x8xf32>
    %180 = tpu.matmul %177, %178, %cst_111 {dimension_numbers = #tpu.dot_dimension_numbers<[1], [1], [0], [0], [0, 0, 1, 0], [], []>} : vector<8x16xf32>, vector<8x16xf32>, vector<8x8xf32> -> vector<8x8xf32>
    %cst_112 = arith.constant 2.500000e-01 : f32
    %181 = vector.broadcast %cst_112 : f32 to vector<8x8xf32>
    %182 = arith.mulf %180, %181 : vector<8x8xf32>
    %183 = vector.broadcast %176 : vector<1x8xf32> to vector<8x8xf32>
    %184 = arith.addf %182, %183 : vector<8x8xf32>
    %185 = math.exp %184 : vector<8x8xf32>
    %cst_113 = arith.constant dense<0.000000e+00> : vector<8xf32>
    %186 = vector.multi_reduction <add>, %185, %cst_113 [1] : vector<8x8xf32> to vector<8xf32>
    %187 = vector.shape_cast %186 : vector<8xf32> to vector<8x1xf32>
    %188 = tpu.reciprocal %187 {approx = true} : vector<8x1xf32> -> vector<8x1xf32>
    %189 = vector.broadcast %188 : vector<8x1xf32> to vector<8x8xf32>
    %190 = arith.mulf %185, %189 : vector<8x8xf32>
    %cst_114 = arith.constant dense<0.000000e+00> : vector<8x16xf32>
    %191 = tpu.matmul %190, %179, %cst_114 {dimension_numbers = #tpu.dot_dimension_numbers<[1], [0], [0], [1], [0, 0, 1, 1], [], []>} : vector<8x8xf32>, vector<8x16xf32>, vector<8x16xf32> -> vector<8x16xf32>
    %c8_115 = arith.constant 8 : index
    %c0_116 = arith.constant 0 : index
    %192 = vector.load %arg5[%c8_115, %c0_116] : memref<16x32xf32, #tpu.memory_space<vmem>>, vector<8x16xf32>
    tpu.vector_store %arg5[%c8_115, %c0_116], %191 {strides = array<i32>} : memref<16x32xf32, #tpu.memory_space<vmem>>, vector<8x16xf32>,
    %193 = vector.extract_strided_slice %142 {offsets = [8, 16], sizes = [8, 16], strides = [1, 1]} : vector<16x96xf32> to vector<8x16xf32>
    %194 = vector.extract_strided_slice %142 {offsets = [8, 48], sizes = [8, 16], strides = [1, 1]} : vector<16x96xf32> to vector<8x16xf32>
    %195 = vector.extract_strided_slice %142 {offsets = [8, 80], sizes = [8, 16], strides = [1, 1]} : vector<16x96xf32> to vector<8x16xf32>
    %cst_117 = arith.constant dense<0.000000e+00> : vector<8x8xf32>
    %196 = tpu.matmul %193, %194, %cst_117 {dimension_numbers = #tpu.dot_dimension_numbers<[1], [1], [0], [0], [0, 0, 1, 0], [], []>} : vector<8x16xf32>, vector<8x16xf32>, vector<8x8xf32> -> vector<8x8xf32>
    %cst_118 = arith.constant 2.500000e-01 : f32
    %197 = vector.broadcast %cst_118 : f32 to vector<8x8xf32>
    %198 = arith.mulf %196, %197 : vector<8x8xf32>
    %199 = vector.broadcast %176 : vector<1x8xf32> to vector<8x8xf32>
    %200 = arith.addf %198, %199 : vector<8x8xf32>
    %201 = math.exp %200 : vector<8x8xf32>
    %cst_119 = arith.constant dense<0.000000e+00> : vector<8xf32>
    %202 = vector.multi_reduction <add>, %201, %cst_119 [1] : vector<8x8xf32> to vector<8xf32>
    %203 = vector.shape_cast %202 : vector<8xf32> to vector<8x1xf32>
    %204 = tpu.reciprocal %203 {approx = true} : vector<8x1xf32> -> vector<8x1xf32>
    %205 = vector.broadcast %204 : vector<8x1xf32> to vector<8x8xf32>
    %206 = arith.mulf %201, %205 : vector<8x8xf32>
    %cst_120 = arith.constant dense<0.000000e+00> : vector<8x16xf32>
    %207 = tpu.matmul %206, %195, %cst_120 {dimension_numbers = #tpu.dot_dimension_numbers<[1], [0], [0], [1], [0, 0, 1, 1], [], []>} : vector<8x8xf32>, vector<8x16xf32>, vector<8x16xf32> -> vector<8x16xf32>
    %c8_121 = arith.constant 8 : index
    %c16_122 = arith.constant 16 : index
    %208 = vector.load %arg5[%c8_121, %c16_122] : memref<16x32xf32, #tpu.memory_space<vmem>>, vector<8x16xf32>
    tpu.vector_store %arg5[%c8_121, %c16_122], %207 {strides = array<i32>} : memref<16x32xf32, #tpu.memory_space<vmem>>, vector<8x16xf32>,
    %c0_123 = arith.constant 0 : index
    %c0_124 = arith.constant 0 : index
    %209 = vector.load %arg5[%c0_123, %c0_124] : memref<16x32xf32, #tpu.memory_space<vmem>>, vector<16x32xf32>
    %c150 = arith.constant 150 : index
    %c0_125 = arith.constant 0 : index
    %210 = vector.load %arg2[%c150, %c0_125] : memref<624x128xf32, #tpu.memory_space<vmem>>, vector<32x32xf32>
    %cst_126 = arith.constant dense<0.000000e+00> : vector<16x32xf32>
    %211 = tpu.matmul %209, %210, %cst_126 {dimension_numbers = #tpu.dot_dimension_numbers<[1], [0], [0], [1], [0, 0, 1, 1], [], []>} : vector<16x32xf32>, vector<32x32xf32>, vector<16x32xf32> -> vector<16x32xf32>
    %c279 = arith.constant 279 : index
    %c0_127 = arith.constant 0 : index
    %212 = vector.load %arg2[%c279, %c0_127] : memref<624x128xf32, #tpu.memory_space<vmem>>, vector<1x32xf32>
    %213 = vector.broadcast %212 : vector<1x32xf32> to vector<16x32xf32>
    %214 = arith.addf %211, %213 : vector<16x32xf32>
    %215 = arith.addf %214, %136 : vector<16x32xf32>
    %c280 = arith.constant 280 : index
    %c0_128 = arith.constant 0 : index
    %216 = vector.load %arg2[%c280, %c0_128] : memref<624x128xf32, #tpu.memory_space<vmem>>, vector<1x32xf32>
    %c281 = arith.constant 281 : index
    %c0_129 = arith.constant 0 : index
    %217 = vector.load %arg2[%c281, %c0_129] : memref<624x128xf32, #tpu.memory_space<vmem>>, vector<1x32xf32>
    %cst_130 = arith.constant dense<0.000000e+00> : vector<16xf32>
    %218 = vector.multi_reduction <add>, %215, %cst_130 [1] : vector<16x32xf32> to vector<16xf32>
    %219 = vector.shape_cast %218 : vector<16xf32> to vector<16x1xf32>
    %cst_131 = arith.constant 3.200000e+01 : f32
    %220 = vector.broadcast %cst_131 : f32 to vector<16x1xf32>
    %221 = arith.divf %219, %220 : vector<16x1xf32>
    %222 = vector.broadcast %221 : vector<16x1xf32> to vector<16x32xf32>
    %223 = arith.subf %215, %222 : vector<16x32xf32>
    %224 = arith.mulf %223, %223 : vector<16x32xf32>
    %cst_132 = arith.constant dense<0.000000e+00> : vector<16xf32>
    %225 = vector.multi_reduction <add>, %224, %cst_132 [1] : vector<16x32xf32> to vector<16xf32>
    %226 = vector.shape_cast %225 : vector<16xf32> to vector<16x1xf32>
    %cst_133 = arith.constant 3.200000e+01 : f32
    %227 = vector.broadcast %cst_133 : f32 to vector<16x1xf32>
    %228 = arith.divf %226, %227 : vector<16x1xf32>
    %229 = vector.broadcast %221 : vector<16x1xf32> to vector<16x32xf32>
    %230 = arith.subf %215, %229 : vector<16x32xf32>
    %cst_134 = arith.constant 9.99999996E-13 : f32
    %231 = vector.broadcast %cst_134 : f32 to vector<16x1xf32>
    %232 = arith.addf %228, %231 : vector<16x1xf32>
    %233 = math.rsqrt %232 : vector<16x1xf32>
    %234 = vector.broadcast %233 : vector<16x1xf32> to vector<16x32xf32>
    %235 = arith.mulf %230, %234 : vector<16x32xf32>
    %236 = vector.broadcast %216 : vector<1x32xf32> to vector<16x32xf32>
    %237 = arith.mulf %235, %236 : vector<16x32xf32>
    %238 = vector.broadcast %217 : vector<1x32xf32> to vector<16x32xf32>
    %239 = arith.addf %237, %238 : vector<16x32xf32>
    %c182 = arith.constant 182 : index
    %c0_135 = arith.constant 0 : index
    %240 = vector.load %arg2[%c182, %c0_135] : memref<624x128xf32, #tpu.memory_space<vmem>>, vector<32x64xf32>
    %cst_136 = arith.constant dense<0.000000e+00> : vector<16x64xf32>
    %241 = tpu.matmul %239, %240, %cst_136 {dimension_numbers = #tpu.dot_dimension_numbers<[1], [0], [0], [1], [0, 0, 1, 1], [], []>} : vector<16x32xf32>, vector<32x64xf32>, vector<16x64xf32> -> vector<16x64xf32>
    %c282 = arith.constant 282 : index
    %c0_137 = arith.constant 0 : index
    %242 = vector.load %arg2[%c282, %c0_137] : memref<624x128xf32, #tpu.memory_space<vmem>>, vector<1x64xf32>
    %243 = vector.broadcast %242 : vector<1x64xf32> to vector<16x64xf32>
    %244 = arith.addf %241, %243 : vector<16x64xf32>
    %cst_138 = arith.constant 5.000000e-01 : f32
    %245 = vector.broadcast %cst_138 : f32 to vector<16x64xf32>
    %246 = arith.mulf %245, %244 : vector<16x64xf32>
    %cst_139 = arith.constant 4.471500e-02 : f32
    %247 = vector.broadcast %cst_139 : f32 to vector<16x64xf32>
    %248 = arith.mulf %247, %244 : vector<16x64xf32>
    %249 = arith.mulf %248, %244 : vector<16x64xf32>
    %250 = arith.mulf %249, %244 : vector<16x64xf32>
    %251 = arith.addf %244, %250 : vector<16x64xf32>
    %cst_140 = arith.constant 0.797884583 : f32
    %252 = vector.broadcast %cst_140 : f32 to vector<16x64xf32>
    %253 = arith.mulf %252, %251 : vector<16x64xf32>
    %254 = math.tanh %253 : vector<16x64xf32>
    %cst_141 = arith.constant 1.000000e+00 : f32
    %255 = vector.broadcast %cst_141 : f32 to vector<16x64xf32>
    %256 = arith.addf %255, %254 : vector<16x64xf32>
    %257 = arith.mulf %246, %256 : vector<16x64xf32>
    %c214 = arith.constant 214 : index
    %c0_142 = arith.constant 0 : index
    %258 = vector.load %arg2[%c214, %c0_142] : memref<624x128xf32, #tpu.memory_space<vmem>>, vector<64x32xf32>
    %cst_143 = arith.constant dense<0.000000e+00> : vector<16x32xf32>
    %259 = tpu.matmul %257, %258, %cst_143 {dimension_numbers = #tpu.dot_dimension_numbers<[1], [0], [0], [1], [0, 0, 1, 1], [], []>} : vector<16x64xf32>, vector<64x32xf32>, vector<16x32xf32> -> vector<16x32xf32>
    %c283 = arith.constant 283 : index
    %c0_144 = arith.constant 0 : index
    %260 = vector.load %arg2[%c283, %c0_144] : memref<624x128xf32, #tpu.memory_space<vmem>>, vector<1x32xf32>
    %261 = vector.broadcast %260 : vector<1x32xf32> to vector<16x32xf32>
    %262 = arith.addf %259, %261 : vector<16x32xf32>
    %263 = arith.addf %262, %239 : vector<16x32xf32>
    %c284 = arith.constant 284 : index
    %c0_145 = arith.constant 0 : index
    %264 = vector.load %arg2[%c284, %c0_145] : memref<624x128xf32, #tpu.memory_space<vmem>>, vector<1x32xf32>
    %c285 = arith.constant 285 : index
    %c0_146 = arith.constant 0 : index
    %265 = vector.load %arg2[%c285, %c0_146] : memref<624x128xf32, #tpu.memory_space<vmem>>, vector<1x32xf32>
    %cst_147 = arith.constant dense<0.000000e+00> : vector<16xf32>
    %266 = vector.multi_reduction <add>, %263, %cst_147 [1] : vector<16x32xf32> to vector<16xf32>
    %267 = vector.shape_cast %266 : vector<16xf32> to vector<16x1xf32>
    %cst_148 = arith.constant 3.200000e+01 : f32
    %268 = vector.broadcast %cst_148 : f32 to vector<16x1xf32>
    %269 = arith.divf %267, %268 : vector<16x1xf32>
    %270 = vector.broadcast %269 : vector<16x1xf32> to vector<16x32xf32>
    %271 = arith.subf %263, %270 : vector<16x32xf32>
    %272 = arith.mulf %271, %271 : vector<16x32xf32>
    %cst_149 = arith.constant dense<0.000000e+00> : vector<16xf32>
    %273 = vector.multi_reduction <add>, %272, %cst_149 [1] : vector<16x32xf32> to vector<16xf32>
    %274 = vector.shape_cast %273 : vector<16xf32> to vector<16x1xf32>
    %cst_150 = arith.constant 3.200000e+01 : f32
    %275 = vector.broadcast %cst_150 : f32 to vector<16x1xf32>
    %276 = arith.divf %274, %275 : vector<16x1xf32>
    %277 = vector.broadcast %269 : vector<16x1xf32> to vector<16x32xf32>
    %278 = arith.subf %263, %277 : vector<16x32xf32>
    %cst_151 = arith.constant 9.99999996E-13 : f32
    %279 = vector.broadcast %cst_151 : f32 to vector<16x1xf32>
    %280 = arith.addf %276, %279 : vector<16x1xf32>
    %281 = math.rsqrt %280 : vector<16x1xf32>
    %282 = vector.broadcast %281 : vector<16x1xf32> to vector<16x32xf32>
    %283 = arith.mulf %278, %282 : vector<16x32xf32>
    %284 = vector.broadcast %264 : vector<1x32xf32> to vector<16x32xf32>
    %285 = arith.mulf %283, %284 : vector<16x32xf32>
    %286 = vector.broadcast %265 : vector<1x32xf32> to vector<16x32xf32>
    %287 = arith.addf %285, %286 : vector<16x32xf32>
    %c286 = arith.constant 286 : index
    %c0_152 = arith.constant 0 : index
    %288 = vector.load %arg2[%c286, %c0_152] : memref<624x128xf32, #tpu.memory_space<vmem>>, vector<32x96xf32>
    %cst_153 = arith.constant dense<0.000000e+00> : vector<16x96xf32>
    %289 = tpu.matmul %287, %288, %cst_153 {dimension_numbers = #tpu.dot_dimension_numbers<[1], [0], [0], [1], [0, 0, 1, 1], [], []>} : vector<16x32xf32>, vector<32x96xf32>, vector<16x96xf32> -> vector<16x96xf32>
    %c446 = arith.constant 446 : index
    %c0_154 = arith.constant 0 : index
    %290 = vector.load %arg2[%c446, %c0_154] : memref<624x128xf32, #tpu.memory_space<vmem>>, vector<1x96xf32>
    %291 = vector.broadcast %290 : vector<1x96xf32> to vector<16x96xf32>
    %292 = arith.addf %289, %291 : vector<16x96xf32>
    %293 = vector.extract_strided_slice %137 {offsets = [0, 0], sizes = [1, 8], strides = [1, 1]} : vector<2x8xf32> to vector<1x8xf32>
    %294 = vector.extract_strided_slice %292 {offsets = [0, 0], sizes = [8, 16], strides = [1, 1]} : vector<16x96xf32> to vector<8x16xf32>
    %295 = vector.extract_strided_slice %292 {offsets = [0, 32], sizes = [8, 16], strides = [1, 1]} : vector<16x96xf32> to vector<8x16xf32>
    %296 = vector.extract_strided_slice %292 {offsets = [0, 64], sizes = [8, 16], strides = [1, 1]} : vector<16x96xf32> to vector<8x16xf32>
    %cst_155 = arith.constant dense<0.000000e+00> : vector<8x8xf32>
    %297 = tpu.matmul %294, %295, %cst_155 {dimension_numbers = #tpu.dot_dimension_numbers<[1], [1], [0], [0], [0, 0, 1, 0], [], []>} : vector<8x16xf32>, vector<8x16xf32>, vector<8x8xf32> -> vector<8x8xf32>
    %cst_156 = arith.constant 2.500000e-01 : f32
    %298 = vector.broadcast %cst_156 : f32 to vector<8x8xf32>
    %299 = arith.mulf %297, %298 : vector<8x8xf32>
    %300 = vector.broadcast %293 : vector<1x8xf32> to vector<8x8xf32>
    %301 = arith.addf %299, %300 : vector<8x8xf32>
    %302 = math.exp %301 : vector<8x8xf32>
    %cst_157 = arith.constant dense<0.000000e+00> : vector<8xf32>
    %303 = vector.multi_reduction <add>, %302, %cst_157 [1] : vector<8x8xf32> to vector<8xf32>
    %304 = vector.shape_cast %303 : vector<8xf32> to vector<8x1xf32>
    %305 = tpu.reciprocal %304 {approx = true} : vector<8x1xf32> -> vector<8x1xf32>
    %306 = vector.broadcast %305 : vector<8x1xf32> to vector<8x8xf32>
    %307 = arith.mulf %302, %306 : vector<8x8xf32>
    %cst_158 = arith.constant dense<0.000000e+00> : vector<8x16xf32>
    %308 = tpu.matmul %307, %296, %cst_158 {dimension_numbers = #tpu.dot_dimension_numbers<[1], [0], [0], [1], [0, 0, 1, 1], [], []>} : vector<8x8xf32>, vector<8x16xf32>, vector<8x16xf32> -> vector<8x16xf32>
    %c0_159 = arith.constant 0 : index
    %c0_160 = arith.constant 0 : index
    %309 = vector.load %arg5[%c0_159, %c0_160] : memref<16x32xf32, #tpu.memory_space<vmem>>, vector<8x16xf32>
    tpu.vector_store %arg5[%c0_159, %c0_160], %308 {strides = array<i32>} : memref<16x32xf32, #tpu.memory_space<vmem>>, vector<8x16xf32>,
    %310 = vector.extract_strided_slice %292 {offsets = [0, 16], sizes = [8, 16], strides = [1, 1]} : vector<16x96xf32> to vector<8x16xf32>
    %311 = vector.extract_strided_slice %292 {offsets = [0, 48], sizes = [8, 16], strides = [1, 1]} : vector<16x96xf32> to vector<8x16xf32>
    %312 = vector.extract_strided_slice %292 {offsets = [0, 80], sizes = [8, 16], strides = [1, 1]} : vector<16x96xf32> to vector<8x16xf32>
    %cst_161 = arith.constant dense<0.000000e+00> : vector<8x8xf32>
    %313 = tpu.matmul %310, %311, %cst_161 {dimension_numbers = #tpu.dot_dimension_numbers<[1], [1], [0], [0], [0, 0, 1, 0], [], []>} : vector<8x16xf32>, vector<8x16xf32>, vector<8x8xf32> -> vector<8x8xf32>
    %cst_162 = arith.constant 2.500000e-01 : f32
    %314 = vector.broadcast %cst_162 : f32 to vector<8x8xf32>
    %315 = arith.mulf %313, %314 : vector<8x8xf32>
    %316 = vector.broadcast %293 : vector<1x8xf32> to vector<8x8xf32>
    %317 = arith.addf %315, %316 : vector<8x8xf32>
    %318 = math.exp %317 : vector<8x8xf32>
    %cst_163 = arith.constant dense<0.000000e+00> : vector<8xf32>
    %319 = vector.multi_reduction <add>, %318, %cst_163 [1] : vector<8x8xf32> to vector<8xf32>
    %320 = vector.shape_cast %319 : vector<8xf32> to vector<8x1xf32>
    %321 = tpu.reciprocal %320 {approx = true} : vector<8x1xf32> -> vector<8x1xf32>
    %322 = vector.broadcast %321 : vector<8x1xf32> to vector<8x8xf32>
    %323 = arith.mulf %318, %322 : vector<8x8xf32>
    %cst_164 = arith.constant dense<0.000000e+00> : vector<8x16xf32>
    %324 = tpu.matmul %323, %312, %cst_164 {dimension_numbers = #tpu.dot_dimension_numbers<[1], [0], [0], [1], [0, 0, 1, 1], [], []>} : vector<8x8xf32>, vector<8x16xf32>, vector<8x16xf32> -> vector<8x16xf32>
    %c0_165 = arith.constant 0 : index
    %c16_166 = arith.constant 16 : index
    %325 = vector.load %arg5[%c0_165, %c16_166] : memref<16x32xf32, #tpu.memory_space<vmem>>, vector<8x16xf32>
    tpu.vector_store %arg5[%c0_165, %c16_166], %324 {strides = array<i32>} : memref<16x32xf32, #tpu.memory_space<vmem>>, vector<8x16xf32>,
    %326 = vector.extract_strided_slice %137 {offsets = [1, 0], sizes = [1, 8], strides = [1, 1]} : vector<2x8xf32> to vector<1x8xf32>
    %327 = vector.extract_strided_slice %292 {offsets = [8, 0], sizes = [8, 16], strides = [1, 1]} : vector<16x96xf32> to vector<8x16xf32>
    %328 = vector.extract_strided_slice %292 {offsets = [8, 32], sizes = [8, 16], strides = [1, 1]} : vector<16x96xf32> to vector<8x16xf32>
    %329 = vector.extract_strided_slice %292 {offsets = [8, 64], sizes = [8, 16], strides = [1, 1]} : vector<16x96xf32> to vector<8x16xf32>
    %cst_167 = arith.constant dense<0.000000e+00> : vector<8x8xf32>
    %330 = tpu.matmul %327, %328, %cst_167 {dimension_numbers = #tpu.dot_dimension_numbers<[1], [1], [0], [0], [0, 0, 1, 0], [], []>} : vector<8x16xf32>, vector<8x16xf32>, vector<8x8xf32> -> vector<8x8xf32>
    %cst_168 = arith.constant 2.500000e-01 : f32
    %331 = vector.broadcast %cst_168 : f32 to vector<8x8xf32>
    %332 = arith.mulf %330, %331 : vector<8x8xf32>
    %333 = vector.broadcast %326 : vector<1x8xf32> to vector<8x8xf32>
    %334 = arith.addf %332, %333 : vector<8x8xf32>
    %335 = math.exp %334 : vector<8x8xf32>
    %cst_169 = arith.constant dense<0.000000e+00> : vector<8xf32>
    %336 = vector.multi_reduction <add>, %335, %cst_169 [1] : vector<8x8xf32> to vector<8xf32>
    %337 = vector.shape_cast %336 : vector<8xf32> to vector<8x1xf32>
    %338 = tpu.reciprocal %337 {approx = true} : vector<8x1xf32> -> vector<8x1xf32>
    %339 = vector.broadcast %338 : vector<8x1xf32> to vector<8x8xf32>
    %340 = arith.mulf %335, %339 : vector<8x8xf32>
    %cst_170 = arith.constant dense<0.000000e+00> : vector<8x16xf32>
    %341 = tpu.matmul %340, %329, %cst_170 {dimension_numbers = #tpu.dot_dimension_numbers<[1], [0], [0], [1], [0, 0, 1, 1], [], []>} : vector<8x8xf32>, vector<8x16xf32>, vector<8x16xf32> -> vector<8x16xf32>
    %c8_171 = arith.constant 8 : index
    %c0_172 = arith.constant 0 : index
    %342 = vector.load %arg5[%c8_171, %c0_172] : memref<16x32xf32, #tpu.memory_space<vmem>>, vector<8x16xf32>
    tpu.vector_store %arg5[%c8_171, %c0_172], %341 {strides = array<i32>} : memref<16x32xf32, #tpu.memory_space<vmem>>, vector<8x16xf32>,
    %343 = vector.extract_strided_slice %292 {offsets = [8, 16], sizes = [8, 16], strides = [1, 1]} : vector<16x96xf32> to vector<8x16xf32>
    %344 = vector.extract_strided_slice %292 {offsets = [8, 48], sizes = [8, 16], strides = [1, 1]} : vector<16x96xf32> to vector<8x16xf32>
    %345 = vector.extract_strided_slice %292 {offsets = [8, 80], sizes = [8, 16], strides = [1, 1]} : vector<16x96xf32> to vector<8x16xf32>
    %cst_173 = arith.constant dense<0.000000e+00> : vector<8x8xf32>
    %346 = tpu.matmul %343, %344, %cst_173 {dimension_numbers = #tpu.dot_dimension_numbers<[1], [1], [0], [0], [0, 0, 1, 0], [], []>} : vector<8x16xf32>, vector<8x16xf32>, vector<8x8xf32> -> vector<8x8xf32>
    %cst_174 = arith.constant 2.500000e-01 : f32
    %347 = vector.broadcast %cst_174 : f32 to vector<8x8xf32>
    %348 = arith.mulf %346, %347 : vector<8x8xf32>
    %349 = vector.broadcast %326 : vector<1x8xf32> to vector<8x8xf32>
    %350 = arith.addf %348, %349 : vector<8x8xf32>
    %351 = math.exp %350 : vector<8x8xf32>
    %cst_175 = arith.constant dense<0.000000e+00> : vector<8xf32>
    %352 = vector.multi_reduction <add>, %351, %cst_175 [1] : vector<8x8xf32> to vector<8xf32>
    %353 = vector.shape_cast %352 : vector<8xf32> to vector<8x1xf32>
    %354 = tpu.reciprocal %353 {approx = true} : vector<8x1xf32> -> vector<8x1xf32>
    %355 = vector.broadcast %354 : vector<8x1xf32> to vector<8x8xf32>
    %356 = arith.mulf %351, %355 : vector<8x8xf32>
    %cst_176 = arith.constant dense<0.000000e+00> : vector<8x16xf32>
    %357 = tpu.matmul %356, %345, %cst_176 {dimension_numbers = #tpu.dot_dimension_numbers<[1], [0], [0], [1], [0, 0, 1, 1], [], []>} : vector<8x8xf32>, vector<8x16xf32>, vector<8x16xf32> -> vector<8x16xf32>
    %c8_177 = arith.constant 8 : index
    %c16_178 = arith.constant 16 : index
    %358 = vector.load %arg5[%c8_177, %c16_178] : memref<16x32xf32, #tpu.memory_space<vmem>>, vector<8x16xf32>
    tpu.vector_store %arg5[%c8_177, %c16_178], %357 {strides = array<i32>} : memref<16x32xf32, #tpu.memory_space<vmem>>, vector<8x16xf32>,
    %c0_179 = arith.constant 0 : index
    %c0_180 = arith.constant 0 : index
    %359 = vector.load %arg5[%c0_179, %c0_180] : memref<16x32xf32, #tpu.memory_space<vmem>>, vector<16x32xf32>
    %c318 = arith.constant 318 : index
    %c0_181 = arith.constant 0 : index
    %360 = vector.load %arg2[%c318, %c0_181] : memref<624x128xf32, #tpu.memory_space<vmem>>, vector<32x32xf32>
    %cst_182 = arith.constant dense<0.000000e+00> : vector<16x32xf32>
    %361 = tpu.matmul %359, %360, %cst_182 {dimension_numbers = #tpu.dot_dimension_numbers<[1], [0], [0], [1], [0, 0, 1, 1], [], []>} : vector<16x32xf32>, vector<32x32xf32>, vector<16x32xf32> -> vector<16x32xf32>
    %c447 = arith.constant 447 : index
    %c0_183 = arith.constant 0 : index
    %362 = vector.load %arg2[%c447, %c0_183] : memref<624x128xf32, #tpu.memory_space<vmem>>, vector<1x32xf32>
    %363 = vector.broadcast %362 : vector<1x32xf32> to vector<16x32xf32>
    %364 = arith.addf %361, %363 : vector<16x32xf32>
    %365 = arith.addf %364, %287 : vector<16x32xf32>
    %c448 = arith.constant 448 : index
    %c0_184 = arith.constant 0 : index
    %366 = vector.load %arg2[%c448, %c0_184] : memref<624x128xf32, #tpu.memory_space<vmem>>, vector<1x32xf32>
    %c449 = arith.constant 449 : index
    %c0_185 = arith.constant 0 : index
    %367 = vector.load %arg2[%c449, %c0_185] : memref<624x128xf32, #tpu.memory_space<vmem>>, vector<1x32xf32>
    %cst_186 = arith.constant dense<0.000000e+00> : vector<16xf32>
    %368 = vector.multi_reduction <add>, %365, %cst_186 [1] : vector<16x32xf32> to vector<16xf32>
    %369 = vector.shape_cast %368 : vector<16xf32> to vector<16x1xf32>
    %cst_187 = arith.constant 3.200000e+01 : f32
    %370 = vector.broadcast %cst_187 : f32 to vector<16x1xf32>
    %371 = arith.divf %369, %370 : vector<16x1xf32>
    %372 = vector.broadcast %371 : vector<16x1xf32> to vector<16x32xf32>
    %373 = arith.subf %365, %372 : vector<16x32xf32>
    %374 = arith.mulf %373, %373 : vector<16x32xf32>
    %cst_188 = arith.constant dense<0.000000e+00> : vector<16xf32>
    %375 = vector.multi_reduction <add>, %374, %cst_188 [1] : vector<16x32xf32> to vector<16xf32>
    %376 = vector.shape_cast %375 : vector<16xf32> to vector<16x1xf32>
    %cst_189 = arith.constant 3.200000e+01 : f32
    %377 = vector.broadcast %cst_189 : f32 to vector<16x1xf32>
    %378 = arith.divf %376, %377 : vector<16x1xf32>
    %379 = vector.broadcast %371 : vector<16x1xf32> to vector<16x32xf32>
    %380 = arith.subf %365, %379 : vector<16x32xf32>
    %cst_190 = arith.constant 9.99999996E-13 : f32
    %381 = vector.broadcast %cst_190 : f32 to vector<16x1xf32>
    %382 = arith.addf %378, %381 : vector<16x1xf32>
    %383 = math.rsqrt %382 : vector<16x1xf32>
    %384 = vector.broadcast %383 : vector<16x1xf32> to vector<16x32xf32>
    %385 = arith.mulf %380, %384 : vector<16x32xf32>
    %386 = vector.broadcast %366 : vector<1x32xf32> to vector<16x32xf32>
    %387 = arith.mulf %385, %386 : vector<16x32xf32>
    %388 = vector.broadcast %367 : vector<1x32xf32> to vector<16x32xf32>
    %389 = arith.addf %387, %388 : vector<16x32xf32>
    %c350 = arith.constant 350 : index
    %c0_191 = arith.constant 0 : index
    %390 = vector.load %arg2[%c350, %c0_191] : memref<624x128xf32, #tpu.memory_space<vmem>>, vector<32x64xf32>
    %cst_192 = arith.constant dense<0.000000e+00> : vector<16x64xf32>
    %391 = tpu.matmul %389, %390, %cst_192 {dimension_numbers = #tpu.dot_dimension_numbers<[1], [0], [0], [1], [0, 0, 1, 1], [], []>} : vector<16x32xf32>, vector<32x64xf32>, vector<16x64xf32> -> vector<16x64xf32>
    %c450 = arith.constant 450 : index
    %c0_193 = arith.constant 0 : index
    %392 = vector.load %arg2[%c450, %c0_193] : memref<624x128xf32, #tpu.memory_space<vmem>>, vector<1x64xf32>
    %393 = vector.broadcast %392 : vector<1x64xf32> to vector<16x64xf32>
    %394 = arith.addf %391, %393 : vector<16x64xf32>
    %cst_194 = arith.constant 5.000000e-01 : f32
    %395 = vector.broadcast %cst_194 : f32 to vector<16x64xf32>
    %396 = arith.mulf %395, %394 : vector<16x64xf32>
    %cst_195 = arith.constant 4.471500e-02 : f32
    %397 = vector.broadcast %cst_195 : f32 to vector<16x64xf32>
    %398 = arith.mulf %397, %394 : vector<16x64xf32>
    %399 = arith.mulf %398, %394 : vector<16x64xf32>
    %400 = arith.mulf %399, %394 : vector<16x64xf32>
    %401 = arith.addf %394, %400 : vector<16x64xf32>
    %cst_196 = arith.constant 0.797884583 : f32
    %402 = vector.broadcast %cst_196 : f32 to vector<16x64xf32>
    %403 = arith.mulf %402, %401 : vector<16x64xf32>
    %404 = math.tanh %403 : vector<16x64xf32>
    %cst_197 = arith.constant 1.000000e+00 : f32
    %405 = vector.broadcast %cst_197 : f32 to vector<16x64xf32>
    %406 = arith.addf %405, %404 : vector<16x64xf32>
    %407 = arith.mulf %396, %406 : vector<16x64xf32>
    %c382 = arith.constant 382 : index
    %c0_198 = arith.constant 0 : index
    %408 = vector.load %arg2[%c382, %c0_198] : memref<624x128xf32, #tpu.memory_space<vmem>>, vector<64x32xf32>
    %cst_199 = arith.constant dense<0.000000e+00> : vector<16x32xf32>
    %409 = tpu.matmul %407, %408, %cst_199 {dimension_numbers = #tpu.dot_dimension_numbers<[1], [0], [0], [1], [0, 0, 1, 1], [], []>} : vector<16x64xf32>, vector<64x32xf32>, vector<16x32xf32> -> vector<16x32xf32>
    %c451 = arith.constant 451 : index
    %c0_200 = arith.constant 0 : index
    %410 = vector.load %arg2[%c451, %c0_200] : memref<624x128xf32, #tpu.memory_space<vmem>>, vector<1x32xf32>
    %411 = vector.broadcast %410 : vector<1x32xf32> to vector<16x32xf32>
    %412 = arith.addf %409, %411 : vector<16x32xf32>
    %413 = arith.addf %412, %389 : vector<16x32xf32>
    %c452 = arith.constant 452 : index
    %c0_201 = arith.constant 0 : index
    %414 = vector.load %arg2[%c452, %c0_201] : memref<624x128xf32, #tpu.memory_space<vmem>>, vector<1x32xf32>
    %c453 = arith.constant 453 : index
    %c0_202 = arith.constant 0 : index
    %415 = vector.load %arg2[%c453, %c0_202] : memref<624x128xf32, #tpu.memory_space<vmem>>, vector<1x32xf32>
    %cst_203 = arith.constant dense<0.000000e+00> : vector<16xf32>
    %416 = vector.multi_reduction <add>, %413, %cst_203 [1] : vector<16x32xf32> to vector<16xf32>
    %417 = vector.shape_cast %416 : vector<16xf32> to vector<16x1xf32>
    %cst_204 = arith.constant 3.200000e+01 : f32
    %418 = vector.broadcast %cst_204 : f32 to vector<16x1xf32>
    %419 = arith.divf %417, %418 : vector<16x1xf32>
    %420 = vector.broadcast %419 : vector<16x1xf32> to vector<16x32xf32>
    %421 = arith.subf %413, %420 : vector<16x32xf32>
    %422 = arith.mulf %421, %421 : vector<16x32xf32>
    %cst_205 = arith.constant dense<0.000000e+00> : vector<16xf32>
    %423 = vector.multi_reduction <add>, %422, %cst_205 [1] : vector<16x32xf32> to vector<16xf32>
    %424 = vector.shape_cast %423 : vector<16xf32> to vector<16x1xf32>
    %cst_206 = arith.constant 3.200000e+01 : f32
    %425 = vector.broadcast %cst_206 : f32 to vector<16x1xf32>
    %426 = arith.divf %424, %425 : vector<16x1xf32>
    %427 = vector.broadcast %419 : vector<16x1xf32> to vector<16x32xf32>
    %428 = arith.subf %413, %427 : vector<16x32xf32>
    %cst_207 = arith.constant 9.99999996E-13 : f32
    %429 = vector.broadcast %cst_207 : f32 to vector<16x1xf32>
    %430 = arith.addf %426, %429 : vector<16x1xf32>
    %431 = math.rsqrt %430 : vector<16x1xf32>
    %432 = vector.broadcast %431 : vector<16x1xf32> to vector<16x32xf32>
    %433 = arith.mulf %428, %432 : vector<16x32xf32>
    %434 = vector.broadcast %414 : vector<1x32xf32> to vector<16x32xf32>
    %435 = arith.mulf %433, %434 : vector<16x32xf32>
    %436 = vector.broadcast %415 : vector<1x32xf32> to vector<16x32xf32>
    %437 = arith.addf %435, %436 : vector<16x32xf32>
    %438 = tpu.iota {dimensions = array<i32: 1>} : vector<2x128xi32>
    %c32_i32 = arith.constant 32 : i32
    %c0_i32_208 = arith.constant 0 : i32
    %439 = arith.cmpi eq, %c32_i32, %c0_i32_208 : i32
    %c1_i32 = arith.constant 1 : i32
    %440 = arith.select %439, %c1_i32, %c32_i32 : i32
    %441 = vector.broadcast %440 : i32 to vector<2x128xi32>
    %442 = arith.remsi %438, %441 : vector<2x128xi32>
    %c0_i32_209 = arith.constant 0 : i32
    %443 = vector.broadcast %c0_i32_209 : i32 to vector<2x128xi32>
    %444 = arith.cmpi ne, %442, %443 : vector<2x128xi32>
    %c0_i32_210 = arith.constant 0 : i32
    %445 = vector.broadcast %c0_i32_210 : i32 to vector<2x128xi32>
    %446 = arith.cmpi slt, %442, %445 : vector<2x128xi32>
    %c0_i32_211 = arith.constant 0 : i32
    %447 = arith.cmpi slt, %440, %c0_i32_211 : i32
    %448 = vector.broadcast %447 : i1 to vector<2x128xi1>
    %449 = vector.broadcast %448 : vector<2x128xi1> to vector<2x128xi1>
    %450 = arith.xori %446, %449 : vector<2x128xi1>
    %451 = arith.andi %450, %444 : vector<2x128xi1>
    %452 = vector.broadcast %440 : i32 to vector<2x128xi32>
    %453 = arith.addi %442, %452 : vector<2x128xi32>
    %454 = arith.select %451, %453, %442 : vector<2x128xi1>, vector<2x128xi32>
    %c16_i32 = arith.constant 16 : i32
    %455 = vector.broadcast %c16_i32 : i32 to vector<2x128xi32>
    %456 = arith.cmpi slt, %454, %455 : vector<2x128xi32>
    %c64_i32 = arith.constant 64 : i32
    %457 = vector.broadcast %c64_i32 : i32 to vector<2x128xi32>
    %458 = arith.cmpi sge, %438, %457 : vector<2x128xi32>
    %c96_i32 = arith.constant 96 : i32
    %459 = vector.broadcast %c96_i32 : i32 to vector<2x128xi32>
    %460 = arith.cmpi slt, %438, %459 : vector<2x128xi32>
    %461 = arith.andi %458, %460 : vector<2x128xi1>
    %cst_212 = arith.constant 1.000000e+00 : f32
    %cst_213 = arith.constant 5.000000e-01 : f32
    %462 = vector.broadcast %cst_212 : f32 to vector<2x128xf32>
    %463 = vector.broadcast %cst_213 : f32 to vector<2x128xf32>
    %464 = arith.select %461, %462, %463 : vector<2x128xi1>, vector<2x128xf32>
    %c454 = arith.constant 454 : index
    %c0_214 = arith.constant 0 : index
    %465 = vector.load %arg2[%c454, %c0_214] : memref<624x128xf32, #tpu.memory_space<vmem>>, vector<32x128xf32>
    %cst_215 = arith.constant dense<0.000000e+00> : vector<16x128xf32>
    %466 = tpu.matmul %437, %465, %cst_215 {dimension_numbers = #tpu.dot_dimension_numbers<[1], [0], [0], [1], [0, 0, 1, 1], [], []>} : vector<16x32xf32>, vector<32x128xf32>, vector<16x128xf32> -> vector<16x128xf32>
    %c518 = arith.constant 518 : index
    %c0_216 = arith.constant 0 : index
    %467 = vector.load %arg2[%c518, %c0_216] : memref<624x128xf32, #tpu.memory_space<vmem>>, vector<1x128xf32>
    %468 = vector.broadcast %467 : vector<1x128xf32> to vector<16x128xf32>
    %469 = arith.addf %466, %468 : vector<16x128xf32>
    %c0_217 = arith.constant 0 : index
    %c0_218 = arith.constant 0 : index
    %470 = vector.load %arg6[%c0_217, %c0_218] : memref<16x128xf32, #tpu.memory_space<vmem>>, vector<16x128xf32>
    tpu.vector_store %arg6[%c0_217, %c0_218], %469 {strides = array<i32>} : memref<16x128xf32, #tpu.memory_space<vmem>>, vector<16x128xf32>,
    %c486 = arith.constant 486 : index
    %c0_219 = arith.constant 0 : index
    %471 = vector.load %arg2[%c486, %c0_219] : memref<624x128xf32, #tpu.memory_space<vmem>>, vector<32x128xf32>
    %cst_220 = arith.constant 0.000000e+00 : f32
    %472 = vector.broadcast %cst_220 : f32 to vector<2x32xf32>
    %cst_221 = arith.constant 0.000000e+00 : f32
    %473 = vector.broadcast %cst_221 : f32 to vector<2x32xf32>
    %c0_222 = arith.constant 0 : index
    %c0_223 = arith.constant 0 : index
    %474 = tpu.strided_load %arg6[%c0_222, %c0_223] {strides = array<i32: 8, 1>} : memref<16x128xf32, #tpu.memory_space<vmem>>, vector<2x128xf32>
    %c7_224 = arith.constant 7 : index
    %c0_225 = arith.constant 0 : index
    %475 = tpu.strided_load %arg6[%c7_224, %c0_225] {strides = array<i32: 8, 1>} : memref<16x128xf32, #tpu.memory_space<vmem>>, vector<2x128xf32>
    %476 = arith.select %456, %474, %475 : vector<2x128xi1>, vector<2x128xf32>
    %cst_226 = arith.constant dense<0.000000e+00> : vector<2x128xf32>
    %477 = tpu.matmul %472, %471, %cst_226 {dimension_numbers = #tpu.dot_dimension_numbers<[1], [0], [0], [1], [0, 0, 1, 1], [], []>} : vector<2x32xf32>, vector<32x128xf32>, vector<2x128xf32> -> vector<2x128xf32>
    %478 = arith.addf %476, %477 : vector<2x128xf32>
    %479 = arith.mulf %478, %464 : vector<2x128xf32>
    %480 = math.tanh %479 : vector<2x128xf32>
    %cst_227 = arith.constant 5.000000e-01 : f32
    %481 = vector.broadcast %cst_227 : f32 to vector<2x128xf32>
    %482 = arith.mulf %481, %480 : vector<2x128xf32>
    %cst_228 = arith.constant 5.000000e-01 : f32
    %483 = vector.broadcast %cst_228 : f32 to vector<2x128xf32>
    %484 = arith.addf %482, %483 : vector<2x128xf32>
    %485 = arith.select %461, %480, %484 : vector<2x128xi1>, vector<2x128xf32>
    %486 = vector.extract_strided_slice %485 {offsets = [0, 0], sizes = [2, 32], strides = [1, 1]} : vector<2x128xf32> to vector<2x32xf32>
    %487 = vector.extract_strided_slice %485 {offsets = [0, 32], sizes = [2, 32], strides = [1, 1]} : vector<2x128xf32> to vector<2x32xf32>
    %488 = vector.extract_strided_slice %485 {offsets = [0, 64], sizes = [2, 32], strides = [1, 1]} : vector<2x128xf32> to vector<2x32xf32>
    %489 = vector.extract_strided_slice %485 {offsets = [0, 96], sizes = [2, 32], strides = [1, 1]} : vector<2x128xf32> to vector<2x32xf32>
    %490 = arith.mulf %487, %473 : vector<2x32xf32>
    %491 = arith.mulf %486, %488 : vector<2x32xf32>
    %492 = arith.addf %490, %491 : vector<2x32xf32>
    %493 = math.tanh %492 : vector<2x32xf32>
    %494 = arith.mulf %489, %493 : vector<2x32xf32>
    %495 = vector.extract_strided_slice %494 {offsets = [0, 0], sizes = [2, 16], strides = [1, 1]} : vector<2x32xf32> to vector<2x16xf32>
    %c0_229 = arith.constant 0 : index
    %c0_230 = arith.constant 0 : index
    %496 = vector.load %arg7[%c0_229, %c0_230] : memref<16x32xf32, #tpu.memory_space<vmem>>, vector<2x16xf32>
    tpu.vector_store %arg7[%c0_229, %c0_230], %495 {strides = array<i32>} : memref<16x32xf32, #tpu.memory_space<vmem>>, vector<2x16xf32>,
    %497 = vector.extract_strided_slice %494 {offsets = [0, 16], sizes = [2, 16], strides = [1, 1]} : vector<2x32xf32> to vector<2x16xf32>
    %c14_231 = arith.constant 14 : index
    %c16_232 = arith.constant 16 : index
    %498 = vector.load %arg7[%c14_231, %c16_232] : memref<16x32xf32, #tpu.memory_space<vmem>>, vector<2x16xf32>
    tpu.vector_store %arg7[%c14_231, %c16_232], %497 {strides = array<i32>} : memref<16x32xf32, #tpu.memory_space<vmem>>, vector<2x16xf32>,
    %c1_233 = arith.constant 1 : index
    %c0_234 = arith.constant 0 : index
    %499 = tpu.strided_load %arg6[%c1_233, %c0_234] {strides = array<i32: 8, 1>} : memref<16x128xf32, #tpu.memory_space<vmem>>, vector<2x128xf32>
    %c6_235 = arith.constant 6 : index
    %c0_236 = arith.constant 0 : index
    %500 = tpu.strided_load %arg6[%c6_235, %c0_236] {strides = array<i32: 8, 1>} : memref<16x128xf32, #tpu.memory_space<vmem>>, vector<2x128xf32>
    %501 = arith.select %456, %499, %500 : vector<2x128xi1>, vector<2x128xf32>
    %cst_237 = arith.constant dense<0.000000e+00> : vector<2x128xf32>
    %502 = tpu.matmul %494, %471, %cst_237 {dimension_numbers = #tpu.dot_dimension_numbers<[1], [0], [0], [1], [0, 0, 1, 1], [], []>} : vector<2x32xf32>, vector<32x128xf32>, vector<2x128xf32> -> vector<2x128xf32>
    %503 = arith.addf %501, %502 : vector<2x128xf32>
    %504 = arith.mulf %503, %464 : vector<2x128xf32>
    %505 = math.tanh %504 : vector<2x128xf32>
    %cst_238 = arith.constant 5.000000e-01 : f32
    %506 = vector.broadcast %cst_238 : f32 to vector<2x128xf32>
    %507 = arith.mulf %506, %505 : vector<2x128xf32>
    %cst_239 = arith.constant 5.000000e-01 : f32
    %508 = vector.broadcast %cst_239 : f32 to vector<2x128xf32>
    %509 = arith.addf %507, %508 : vector<2x128xf32>
    %510 = arith.select %461, %505, %509 : vector<2x128xi1>, vector<2x128xf32>
    %511 = vector.extract_strided_slice %510 {offsets = [0, 0], sizes = [2, 32], strides = [1, 1]} : vector<2x128xf32> to vector<2x32xf32>
    %512 = vector.extract_strided_slice %510 {offsets = [0, 32], sizes = [2, 32], strides = [1, 1]} : vector<2x128xf32> to vector<2x32xf32>
    %513 = vector.extract_strided_slice %510 {offsets = [0, 64], sizes = [2, 32], strides = [1, 1]} : vector<2x128xf32> to vector<2x32xf32>
    %514 = vector.extract_strided_slice %510 {offsets = [0, 96], sizes = [2, 32], strides = [1, 1]} : vector<2x128xf32> to vector<2x32xf32>
    %515 = arith.mulf %512, %492 : vector<2x32xf32>
    %516 = arith.mulf %511, %513 : vector<2x32xf32>
    %517 = arith.addf %515, %516 : vector<2x32xf32>
    %518 = math.tanh %517 : vector<2x32xf32>
    %519 = arith.mulf %514, %518 : vector<2x32xf32>
    %520 = vector.extract_strided_slice %519 {offsets = [0, 0], sizes = [2, 16], strides = [1, 1]} : vector<2x32xf32> to vector<2x16xf32>
    %c2_240 = arith.constant 2 : index
    %c0_241 = arith.constant 0 : index
    %521 = vector.load %arg7[%c2_240, %c0_241] : memref<16x32xf32, #tpu.memory_space<vmem>>, vector<2x16xf32>
    tpu.vector_store %arg7[%c2_240, %c0_241], %520 {strides = array<i32>} : memref<16x32xf32, #tpu.memory_space<vmem>>, vector<2x16xf32>,
    %522 = vector.extract_strided_slice %519 {offsets = [0, 16], sizes = [2, 16], strides = [1, 1]} : vector<2x32xf32> to vector<2x16xf32>
    %c12_242 = arith.constant 12 : index
    %c16_243 = arith.constant 16 : index
    %523 = vector.load %arg7[%c12_242, %c16_243] : memref<16x32xf32, #tpu.memory_space<vmem>>, vector<2x16xf32>
    tpu.vector_store %arg7[%c12_242, %c16_243], %522 {strides = array<i32>} : memref<16x32xf32, #tpu.memory_space<vmem>>, vector<2x16xf32>,
    %c2_244 = arith.constant 2 : index
    %c0_245 = arith.constant 0 : index
    %524 = tpu.strided_load %arg6[%c2_244, %c0_245] {strides = array<i32: 8, 1>} : memref<16x128xf32, #tpu.memory_space<vmem>>, vector<2x128xf32>
    %c5_246 = arith.constant 5 : index
    %c0_247 = arith.constant 0 : index
    %525 = tpu.strided_load %arg6[%c5_246, %c0_247] {strides = array<i32: 8, 1>} : memref<16x128xf32, #tpu.memory_space<vmem>>, vector<2x128xf32>
    %526 = arith.select %456, %524, %525 : vector<2x128xi1>, vector<2x128xf32>
    %cst_248 = arith.constant dense<0.000000e+00> : vector<2x128xf32>
    %527 = tpu.matmul %519, %471, %cst_248 {dimension_numbers = #tpu.dot_dimension_numbers<[1], [0], [0], [1], [0, 0, 1, 1], [], []>} : vector<2x32xf32>, vector<32x128xf32>, vector<2x128xf32> -> vector<2x128xf32>
    %528 = arith.addf %526, %527 : vector<2x128xf32>
    %529 = arith.mulf %528, %464 : vector<2x128xf32>
    %530 = math.tanh %529 : vector<2x128xf32>
    %cst_249 = arith.constant 5.000000e-01 : f32
    %531 = vector.broadcast %cst_249 : f32 to vector<2x128xf32>
    %532 = arith.mulf %531, %530 : vector<2x128xf32>
    %cst_250 = arith.constant 5.000000e-01 : f32
    %533 = vector.broadcast %cst_250 : f32 to vector<2x128xf32>
    %534 = arith.addf %532, %533 : vector<2x128xf32>
    %535 = arith.select %461, %530, %534 : vector<2x128xi1>, vector<2x128xf32>
    %536 = vector.extract_strided_slice %535 {offsets = [0, 0], sizes = [2, 32], strides = [1, 1]} : vector<2x128xf32> to vector<2x32xf32>
    %537 = vector.extract_strided_slice %535 {offsets = [0, 32], sizes = [2, 32], strides = [1, 1]} : vector<2x128xf32> to vector<2x32xf32>
    %538 = vector.extract_strided_slice %535 {offsets = [0, 64], sizes = [2, 32], strides = [1, 1]} : vector<2x128xf32> to vector<2x32xf32>
    %539 = vector.extract_strided_slice %535 {offsets = [0, 96], sizes = [2, 32], strides = [1, 1]} : vector<2x128xf32> to vector<2x32xf32>
    %540 = arith.mulf %537, %517 : vector<2x32xf32>
    %541 = arith.mulf %536, %538 : vector<2x32xf32>
    %542 = arith.addf %540, %541 : vector<2x32xf32>
    %543 = math.tanh %542 : vector<2x32xf32>
    %544 = arith.mulf %539, %543 : vector<2x32xf32>
    %545 = vector.extract_strided_slice %544 {offsets = [0, 0], sizes = [2, 16], strides = [1, 1]} : vector<2x32xf32> to vector<2x16xf32>
    %c4_251 = arith.constant 4 : index
    %c0_252 = arith.constant 0 : index
    %546 = vector.load %arg7[%c4_251, %c0_252] : memref<16x32xf32, #tpu.memory_space<vmem>>, vector<2x16xf32>
    tpu.vector_store %arg7[%c4_251, %c0_252], %545 {strides = array<i32>} : memref<16x32xf32, #tpu.memory_space<vmem>>, vector<2x16xf32>,
    %547 = vector.extract_strided_slice %544 {offsets = [0, 16], sizes = [2, 16], strides = [1, 1]} : vector<2x32xf32> to vector<2x16xf32>
    %c10_253 = arith.constant 10 : index
    %c16_254 = arith.constant 16 : index
    %548 = vector.load %arg7[%c10_253, %c16_254] : memref<16x32xf32, #tpu.memory_space<vmem>>, vector<2x16xf32>
    tpu.vector_store %arg7[%c10_253, %c16_254], %547 {strides = array<i32>} : memref<16x32xf32, #tpu.memory_space<vmem>>, vector<2x16xf32>,
    %c3_255 = arith.constant 3 : index
    %c0_256 = arith.constant 0 : index
    %549 = tpu.strided_load %arg6[%c3_255, %c0_256] {strides = array<i32: 8, 1>} : memref<16x128xf32, #tpu.memory_space<vmem>>, vector<2x128xf32>
    %c4_257 = arith.constant 4 : index
    %c0_258 = arith.constant 0 : index
    %550 = tpu.strided_load %arg6[%c4_257, %c0_258] {strides = array<i32: 8, 1>} : memref<16x128xf32, #tpu.memory_space<vmem>>, vector<2x128xf32>
    %551 = arith.select %456, %549, %550 : vector<2x128xi1>, vector<2x128xf32>
    %cst_259 = arith.constant dense<0.000000e+00> : vector<2x128xf32>
    %552 = tpu.matmul %544, %471, %cst_259 {dimension_numbers = #tpu.dot_dimension_numbers<[1], [0], [0], [1], [0, 0, 1, 1], [], []>} : vector<2x32xf32>, vector<32x128xf32>, vector<2x128xf32> -> vector<2x128xf32>
    %553 = arith.addf %551, %552 : vector<2x128xf32>
    %554 = arith.mulf %553, %464 : vector<2x128xf32>
    %555 = math.tanh %554 : vector<2x128xf32>
    %cst_260 = arith.constant 5.000000e-01 : f32
    %556 = vector.broadcast %cst_260 : f32 to vector<2x128xf32>
    %557 = arith.mulf %556, %555 : vector<2x128xf32>
    %cst_261 = arith.constant 5.000000e-01 : f32
    %558 = vector.broadcast %cst_261 : f32 to vector<2x128xf32>
    %559 = arith.addf %557, %558 : vector<2x128xf32>
    %560 = arith.select %461, %555, %559 : vector<2x128xi1>, vector<2x128xf32>
    %561 = vector.extract_strided_slice %560 {offsets = [0, 0], sizes = [2, 32], strides = [1, 1]} : vector<2x128xf32> to vector<2x32xf32>
    %562 = vector.extract_strided_slice %560 {offsets = [0, 32], sizes = [2, 32], strides = [1, 1]} : vector<2x128xf32> to vector<2x32xf32>
    %563 = vector.extract_strided_slice %560 {offsets = [0, 64], sizes = [2, 32], strides = [1, 1]} : vector<2x128xf32> to vector<2x32xf32>
    %564 = vector.extract_strided_slice %560 {offsets = [0, 96], sizes = [2, 32], strides = [1, 1]} : vector<2x128xf32> to vector<2x32xf32>
    %565 = arith.mulf %562, %542 : vector<2x32xf32>
    %566 = arith.mulf %561, %563 : vector<2x32xf32>
    %567 = arith.addf %565, %566 : vector<2x32xf32>
    %568 = math.tanh %567 : vector<2x32xf32>
    %569 = arith.mulf %564, %568 : vector<2x32xf32>
    %570 = vector.extract_strided_slice %569 {offsets = [0, 0], sizes = [2, 16], strides = [1, 1]} : vector<2x32xf32> to vector<2x16xf32>
    %c6_262 = arith.constant 6 : index
    %c0_263 = arith.constant 0 : index
    %571 = vector.load %arg7[%c6_262, %c0_263] : memref<16x32xf32, #tpu.memory_space<vmem>>, vector<2x16xf32>
    tpu.vector_store %arg7[%c6_262, %c0_263], %570 {strides = array<i32>} : memref<16x32xf32, #tpu.memory_space<vmem>>, vector<2x16xf32>,
    %572 = vector.extract_strided_slice %569 {offsets = [0, 16], sizes = [2, 16], strides = [1, 1]} : vector<2x32xf32> to vector<2x16xf32>
    %c8_264 = arith.constant 8 : index
    %c16_265 = arith.constant 16 : index
    %573 = vector.load %arg7[%c8_264, %c16_265] : memref<16x32xf32, #tpu.memory_space<vmem>>, vector<2x16xf32>
    tpu.vector_store %arg7[%c8_264, %c16_265], %572 {strides = array<i32>} : memref<16x32xf32, #tpu.memory_space<vmem>>, vector<2x16xf32>,
    %c4_266 = arith.constant 4 : index
    %c0_267 = arith.constant 0 : index
    %574 = tpu.strided_load %arg6[%c4_266, %c0_267] {strides = array<i32: 8, 1>} : memref<16x128xf32, #tpu.memory_space<vmem>>, vector<2x128xf32>
    %c3_268 = arith.constant 3 : index
    %c0_269 = arith.constant 0 : index
    %575 = tpu.strided_load %arg6[%c3_268, %c0_269] {strides = array<i32: 8, 1>} : memref<16x128xf32, #tpu.memory_space<vmem>>, vector<2x128xf32>
    %576 = arith.select %456, %574, %575 : vector<2x128xi1>, vector<2x128xf32>
    %cst_270 = arith.constant dense<0.000000e+00> : vector<2x128xf32>
    %577 = tpu.matmul %569, %471, %cst_270 {dimension_numbers = #tpu.dot_dimension_numbers<[1], [0], [0], [1], [0, 0, 1, 1], [], []>} : vector<2x32xf32>, vector<32x128xf32>, vector<2x128xf32> -> vector<2x128xf32>
    %578 = arith.addf %576, %577 : vector<2x128xf32>
    %579 = arith.mulf %578, %464 : vector<2x128xf32>
    %580 = math.tanh %579 : vector<2x128xf32>
    %cst_271 = arith.constant 5.000000e-01 : f32
    %581 = vector.broadcast %cst_271 : f32 to vector<2x128xf32>
    %582 = arith.mulf %581, %580 : vector<2x128xf32>
    %cst_272 = arith.constant 5.000000e-01 : f32
    %583 = vector.broadcast %cst_272 : f32 to vector<2x128xf32>
    %584 = arith.addf %582, %583 : vector<2x128xf32>
    %585 = arith.select %461, %580, %584 : vector<2x128xi1>, vector<2x128xf32>
    %586 = vector.extract_strided_slice %585 {offsets = [0, 0], sizes = [2, 32], strides = [1, 1]} : vector<2x128xf32> to vector<2x32xf32>
    %587 = vector.extract_strided_slice %585 {offsets = [0, 32], sizes = [2, 32], strides = [1, 1]} : vector<2x128xf32> to vector<2x32xf32>
    %588 = vector.extract_strided_slice %585 {offsets = [0, 64], sizes = [2, 32], strides = [1, 1]} : vector<2x128xf32> to vector<2x32xf32>
    %589 = vector.extract_strided_slice %585 {offsets = [0, 96], sizes = [2, 32], strides = [1, 1]} : vector<2x128xf32> to vector<2x32xf32>
    %590 = arith.mulf %587, %567 : vector<2x32xf32>
    %591 = arith.mulf %586, %588 : vector<2x32xf32>
    %592 = arith.addf %590, %591 : vector<2x32xf32>
    %593 = math.tanh %592 : vector<2x32xf32>
    %594 = arith.mulf %589, %593 : vector<2x32xf32>
    %595 = vector.extract_strided_slice %594 {offsets = [0, 0], sizes = [2, 16], strides = [1, 1]} : vector<2x32xf32> to vector<2x16xf32>
    %c8_273 = arith.constant 8 : index
    %c0_274 = arith.constant 0 : index
    %596 = vector.load %arg7[%c8_273, %c0_274] : memref<16x32xf32, #tpu.memory_space<vmem>>, vector<2x16xf32>
    tpu.vector_store %arg7[%c8_273, %c0_274], %595 {strides = array<i32>} : memref<16x32xf32, #tpu.memory_space<vmem>>, vector<2x16xf32>,
    %597 = vector.extract_strided_slice %594 {offsets = [0, 16], sizes = [2, 16], strides = [1, 1]} : vector<2x32xf32> to vector<2x16xf32>
    %c6_275 = arith.constant 6 : index
    %c16_276 = arith.constant 16 : index
    %598 = vector.load %arg7[%c6_275, %c16_276] : memref<16x32xf32, #tpu.memory_space<vmem>>, vector<2x16xf32>
    tpu.vector_store %arg7[%c6_275, %c16_276], %597 {strides = array<i32>} : memref<16x32xf32, #tpu.memory_space<vmem>>, vector<2x16xf32>,
    %c5_277 = arith.constant 5 : index
    %c0_278 = arith.constant 0 : index
    %599 = tpu.strided_load %arg6[%c5_277, %c0_278] {strides = array<i32: 8, 1>} : memref<16x128xf32, #tpu.memory_space<vmem>>, vector<2x128xf32>
    %c2_279 = arith.constant 2 : index
    %c0_280 = arith.constant 0 : index
    %600 = tpu.strided_load %arg6[%c2_279, %c0_280] {strides = array<i32: 8, 1>} : memref<16x128xf32, #tpu.memory_space<vmem>>, vector<2x128xf32>
    %601 = arith.select %456, %599, %600 : vector<2x128xi1>, vector<2x128xf32>
    %cst_281 = arith.constant dense<0.000000e+00> : vector<2x128xf32>
    %602 = tpu.matmul %594, %471, %cst_281 {dimension_numbers = #tpu.dot_dimension_numbers<[1], [0], [0], [1], [0, 0, 1, 1], [], []>} : vector<2x32xf32>, vector<32x128xf32>, vector<2x128xf32> -> vector<2x128xf32>
    %603 = arith.addf %601, %602 : vector<2x128xf32>
    %604 = arith.mulf %603, %464 : vector<2x128xf32>
    %605 = math.tanh %604 : vector<2x128xf32>
    %cst_282 = arith.constant 5.000000e-01 : f32
    %606 = vector.broadcast %cst_282 : f32 to vector<2x128xf32>
    %607 = arith.mulf %606, %605 : vector<2x128xf32>
    %cst_283 = arith.constant 5.000000e-01 : f32
    %608 = vector.broadcast %cst_283 : f32 to vector<2x128xf32>
    %609 = arith.addf %607, %608 : vector<2x128xf32>
    %610 = arith.select %461, %605, %609 : vector<2x128xi1>, vector<2x128xf32>
    %611 = vector.extract_strided_slice %610 {offsets = [0, 0], sizes = [2, 32], strides = [1, 1]} : vector<2x128xf32> to vector<2x32xf32>
    %612 = vector.extract_strided_slice %610 {offsets = [0, 32], sizes = [2, 32], strides = [1, 1]} : vector<2x128xf32> to vector<2x32xf32>
    %613 = vector.extract_strided_slice %610 {offsets = [0, 64], sizes = [2, 32], strides = [1, 1]} : vector<2x128xf32> to vector<2x32xf32>
    %614 = vector.extract_strided_slice %610 {offsets = [0, 96], sizes = [2, 32], strides = [1, 1]} : vector<2x128xf32> to vector<2x32xf32>
    %615 = arith.mulf %612, %592 : vector<2x32xf32>
    %616 = arith.mulf %611, %613 : vector<2x32xf32>
    %617 = arith.addf %615, %616 : vector<2x32xf32>
    %618 = math.tanh %617 : vector<2x32xf32>
    %619 = arith.mulf %614, %618 : vector<2x32xf32>
    %620 = vector.extract_strided_slice %619 {offsets = [0, 0], sizes = [2, 16], strides = [1, 1]} : vector<2x32xf32> to vector<2x16xf32>
    %c10_284 = arith.constant 10 : index
    %c0_285 = arith.constant 0 : index
    %621 = vector.load %arg7[%c10_284, %c0_285] : memref<16x32xf32, #tpu.memory_space<vmem>>, vector<2x16xf32>
    tpu.vector_store %arg7[%c10_284, %c0_285], %620 {strides = array<i32>} : memref<16x32xf32, #tpu.memory_space<vmem>>, vector<2x16xf32>,
    %622 = vector.extract_strided_slice %619 {offsets = [0, 16], sizes = [2, 16], strides = [1, 1]} : vector<2x32xf32> to vector<2x16xf32>
    %c4_286 = arith.constant 4 : index
    %c16_287 = arith.constant 16 : index
    %623 = vector.load %arg7[%c4_286, %c16_287] : memref<16x32xf32, #tpu.memory_space<vmem>>, vector<2x16xf32>
    tpu.vector_store %arg7[%c4_286, %c16_287], %622 {strides = array<i32>} : memref<16x32xf32, #tpu.memory_space<vmem>>, vector<2x16xf32>,
    %c6_288 = arith.constant 6 : index
    %c0_289 = arith.constant 0 : index
    %624 = tpu.strided_load %arg6[%c6_288, %c0_289] {strides = array<i32: 8, 1>} : memref<16x128xf32, #tpu.memory_space<vmem>>, vector<2x128xf32>
    %c1_290 = arith.constant 1 : index
    %c0_291 = arith.constant 0 : index
    %625 = tpu.strided_load %arg6[%c1_290, %c0_291] {strides = array<i32: 8, 1>} : memref<16x128xf32, #tpu.memory_space<vmem>>, vector<2x128xf32>
    %626 = arith.select %456, %624, %625 : vector<2x128xi1>, vector<2x128xf32>
    %cst_292 = arith.constant dense<0.000000e+00> : vector<2x128xf32>
    %627 = tpu.matmul %619, %471, %cst_292 {dimension_numbers = #tpu.dot_dimension_numbers<[1], [0], [0], [1], [0, 0, 1, 1], [], []>} : vector<2x32xf32>, vector<32x128xf32>, vector<2x128xf32> -> vector<2x128xf32>
    %628 = arith.addf %626, %627 : vector<2x128xf32>
    %629 = arith.mulf %628, %464 : vector<2x128xf32>
    %630 = math.tanh %629 : vector<2x128xf32>
    %cst_293 = arith.constant 5.000000e-01 : f32
    %631 = vector.broadcast %cst_293 : f32 to vector<2x128xf32>
    %632 = arith.mulf %631, %630 : vector<2x128xf32>
    %cst_294 = arith.constant 5.000000e-01 : f32
    %633 = vector.broadcast %cst_294 : f32 to vector<2x128xf32>
    %634 = arith.addf %632, %633 : vector<2x128xf32>
    %635 = arith.select %461, %630, %634 : vector<2x128xi1>, vector<2x128xf32>
    %636 = vector.extract_strided_slice %635 {offsets = [0, 0], sizes = [2, 32], strides = [1, 1]} : vector<2x128xf32> to vector<2x32xf32>
    %637 = vector.extract_strided_slice %635 {offsets = [0, 32], sizes = [2, 32], strides = [1, 1]} : vector<2x128xf32> to vector<2x32xf32>
    %638 = vector.extract_strided_slice %635 {offsets = [0, 64], sizes = [2, 32], strides = [1, 1]} : vector<2x128xf32> to vector<2x32xf32>
    %639 = vector.extract_strided_slice %635 {offsets = [0, 96], sizes = [2, 32], strides = [1, 1]} : vector<2x128xf32> to vector<2x32xf32>
    %640 = arith.mulf %637, %617 : vector<2x32xf32>
    %641 = arith.mulf %636, %638 : vector<2x32xf32>
    %642 = arith.addf %640, %641 : vector<2x32xf32>
    %643 = math.tanh %642 : vector<2x32xf32>
    %644 = arith.mulf %639, %643 : vector<2x32xf32>
    %645 = vector.extract_strided_slice %644 {offsets = [0, 0], sizes = [2, 16], strides = [1, 1]} : vector<2x32xf32> to vector<2x16xf32>
    %c12_295 = arith.constant 12 : index
    %c0_296 = arith.constant 0 : index
    %646 = vector.load %arg7[%c12_295, %c0_296] : memref<16x32xf32, #tpu.memory_space<vmem>>, vector<2x16xf32>
    tpu.vector_store %arg7[%c12_295, %c0_296], %645 {strides = array<i32>} : memref<16x32xf32, #tpu.memory_space<vmem>>, vector<2x16xf32>,
    %647 = vector.extract_strided_slice %644 {offsets = [0, 16], sizes = [2, 16], strides = [1, 1]} : vector<2x32xf32> to vector<2x16xf32>
    %c2_297 = arith.constant 2 : index
    %c16_298 = arith.constant 16 : index
    %648 = vector.load %arg7[%c2_297, %c16_298] : memref<16x32xf32, #tpu.memory_space<vmem>>, vector<2x16xf32>
    tpu.vector_store %arg7[%c2_297, %c16_298], %647 {strides = array<i32>} : memref<16x32xf32, #tpu.memory_space<vmem>>, vector<2x16xf32>,
    %c7_299 = arith.constant 7 : index
    %c0_300 = arith.constant 0 : index
    %649 = tpu.strided_load %arg6[%c7_299, %c0_300] {strides = array<i32: 8, 1>} : memref<16x128xf32, #tpu.memory_space<vmem>>, vector<2x128xf32>
    %c0_301 = arith.constant 0 : index
    %c0_302 = arith.constant 0 : index
    %650 = tpu.strided_load %arg6[%c0_301, %c0_302] {strides = array<i32: 8, 1>} : memref<16x128xf32, #tpu.memory_space<vmem>>, vector<2x128xf32>
    %651 = arith.select %456, %649, %650 : vector<2x128xi1>, vector<2x128xf32>
    %cst_303 = arith.constant dense<0.000000e+00> : vector<2x128xf32>
    %652 = tpu.matmul %644, %471, %cst_303 {dimension_numbers = #tpu.dot_dimension_numbers<[1], [0], [0], [1], [0, 0, 1, 1], [], []>} : vector<2x32xf32>, vector<32x128xf32>, vector<2x128xf32> -> vector<2x128xf32>
    %653 = arith.addf %651, %652 : vector<2x128xf32>
    %654 = arith.mulf %653, %464 : vector<2x128xf32>
    %655 = math.tanh %654 : vector<2x128xf32>
    %cst_304 = arith.constant 5.000000e-01 : f32
    %656 = vector.broadcast %cst_304 : f32 to vector<2x128xf32>
    %657 = arith.mulf %656, %655 : vector<2x128xf32>
    %cst_305 = arith.constant 5.000000e-01 : f32
    %658 = vector.broadcast %cst_305 : f32 to vector<2x128xf32>
    %659 = arith.addf %657, %658 : vector<2x128xf32>
    %660 = arith.select %461, %655, %659 : vector<2x128xi1>, vector<2x128xf32>
    %661 = vector.extract_strided_slice %660 {offsets = [0, 0], sizes = [2, 32], strides = [1, 1]} : vector<2x128xf32> to vector<2x32xf32>
    %662 = vector.extract_strided_slice %660 {offsets = [0, 32], sizes = [2, 32], strides = [1, 1]} : vector<2x128xf32> to vector<2x32xf32>
    %663 = vector.extract_strided_slice %660 {offsets = [0, 64], sizes = [2, 32], strides = [1, 1]} : vector<2x128xf32> to vector<2x32xf32>
    %664 = vector.extract_strided_slice %660 {offsets = [0, 96], sizes = [2, 32], strides = [1, 1]} : vector<2x128xf32> to vector<2x32xf32>
    %665 = arith.mulf %662, %642 : vector<2x32xf32>
    %666 = arith.mulf %661, %663 : vector<2x32xf32>
    %667 = arith.addf %665, %666 : vector<2x32xf32>
    %668 = math.tanh %667 : vector<2x32xf32>
    %669 = arith.mulf %664, %668 : vector<2x32xf32>
    %670 = vector.extract_strided_slice %669 {offsets = [0, 0], sizes = [2, 16], strides = [1, 1]} : vector<2x32xf32> to vector<2x16xf32>
    %c14_306 = arith.constant 14 : index
    %c0_307 = arith.constant 0 : index
    %671 = vector.load %arg7[%c14_306, %c0_307] : memref<16x32xf32, #tpu.memory_space<vmem>>, vector<2x16xf32>
    tpu.vector_store %arg7[%c14_306, %c0_307], %670 {strides = array<i32>} : memref<16x32xf32, #tpu.memory_space<vmem>>, vector<2x16xf32>,
    %672 = vector.extract_strided_slice %669 {offsets = [0, 16], sizes = [2, 16], strides = [1, 1]} : vector<2x32xf32> to vector<2x16xf32>
    %c0_308 = arith.constant 0 : index
    %c16_309 = arith.constant 16 : index
    %673 = vector.load %arg7[%c0_308, %c16_309] : memref<16x32xf32, #tpu.memory_space<vmem>>, vector<2x16xf32>
    tpu.vector_store %arg7[%c0_308, %c16_309], %672 {strides = array<i32>} : memref<16x32xf32, #tpu.memory_space<vmem>>, vector<2x16xf32>,
    %c0_310 = arith.constant 0 : index
    %c0_311 = arith.constant 0 : index
    %674 = vector.load %arg7[%c0_310, %c0_311] : memref<16x32xf32, #tpu.memory_space<vmem>>, vector<16x32xf32>
    %c519 = arith.constant 519 : index
    %c0_312 = arith.constant 0 : index
    %675 = vector.load %arg2[%c519, %c0_312] : memref<624x128xf32, #tpu.memory_space<vmem>>, vector<32x128xf32>
    %cst_313 = arith.constant dense<0.000000e+00> : vector<16x128xf32>
    %676 = tpu.matmul %674, %675, %cst_313 {dimension_numbers = #tpu.dot_dimension_numbers<[1], [0], [0], [1], [0, 0, 1, 1], [], []>} : vector<16x32xf32>, vector<32x128xf32>, vector<16x128xf32> -> vector<16x128xf32>
    %c583 = arith.constant 583 : index
    %c0_314 = arith.constant 0 : index
    %677 = vector.load %arg2[%c583, %c0_314] : memref<624x128xf32, #tpu.memory_space<vmem>>, vector<1x128xf32>
    %678 = vector.broadcast %677 : vector<1x128xf32> to vector<16x128xf32>
    %679 = arith.addf %676, %678 : vector<16x128xf32>
    %c0_315 = arith.constant 0 : index
    %c0_316 = arith.constant 0 : index
    %680 = vector.load %arg6[%c0_315, %c0_316] : memref<16x128xf32, #tpu.memory_space<vmem>>, vector<16x128xf32>
    tpu.vector_store %arg6[%c0_315, %c0_316], %679 {strides = array<i32>} : memref<16x128xf32, #tpu.memory_space<vmem>>, vector<16x128xf32>,
    %c551 = arith.constant 551 : index
    %c0_317 = arith.constant 0 : index
    %681 = vector.load %arg2[%c551, %c0_317] : memref<624x128xf32, #tpu.memory_space<vmem>>, vector<32x128xf32>
    %cst_318 = arith.constant 0.000000e+00 : f32
    %682 = vector.broadcast %cst_318 : f32 to vector<2x32xf32>
    %cst_319 = arith.constant 0.000000e+00 : f32
    %683 = vector.broadcast %cst_319 : f32 to vector<2x32xf32>
    %c0_320 = arith.constant 0 : index
    %c0_321 = arith.constant 0 : index
    %684 = vector.load %arg6[%c0_320, %c0_321] : memref<16x128xf32, #tpu.memory_space<vmem>>, vector<2x128xf32>
    %c14_322 = arith.constant 14 : index
    %c0_323 = arith.constant 0 : index
    %685 = vector.load %arg6[%c14_322, %c0_323] : memref<16x128xf32, #tpu.memory_space<vmem>>, vector<2x128xf32>
    %686 = arith.select %456, %684, %685 : vector<2x128xi1>, vector<2x128xf32>
    %cst_324 = arith.constant dense<0.000000e+00> : vector<2x128xf32>
    %687 = tpu.matmul %682, %681, %cst_324 {dimension_numbers = #tpu.dot_dimension_numbers<[1], [0], [0], [1], [0, 0, 1, 1], [], []>} : vector<2x32xf32>, vector<32x128xf32>, vector<2x128xf32> -> vector<2x128xf32>
    %688 = arith.addf %686, %687 : vector<2x128xf32>
    %689 = arith.mulf %688, %464 : vector<2x128xf32>
    %690 = math.tanh %689 : vector<2x128xf32>
    %cst_325 = arith.constant 5.000000e-01 : f32
    %691 = vector.broadcast %cst_325 : f32 to vector<2x128xf32>
    %692 = arith.mulf %691, %690 : vector<2x128xf32>
    %cst_326 = arith.constant 5.000000e-01 : f32
    %693 = vector.broadcast %cst_326 : f32 to vector<2x128xf32>
    %694 = arith.addf %692, %693 : vector<2x128xf32>
    %695 = arith.select %461, %690, %694 : vector<2x128xi1>, vector<2x128xf32>
    %696 = vector.extract_strided_slice %695 {offsets = [0, 0], sizes = [2, 32], strides = [1, 1]} : vector<2x128xf32> to vector<2x32xf32>
    %697 = vector.extract_strided_slice %695 {offsets = [0, 32], sizes = [2, 32], strides = [1, 1]} : vector<2x128xf32> to vector<2x32xf32>
    %698 = vector.extract_strided_slice %695 {offsets = [0, 64], sizes = [2, 32], strides = [1, 1]} : vector<2x128xf32> to vector<2x32xf32>
    %699 = vector.extract_strided_slice %695 {offsets = [0, 96], sizes = [2, 32], strides = [1, 1]} : vector<2x128xf32> to vector<2x32xf32>
    %700 = arith.mulf %697, %683 : vector<2x32xf32>
    %701 = arith.mulf %696, %698 : vector<2x32xf32>
    %702 = arith.addf %700, %701 : vector<2x32xf32>
    %703 = math.tanh %702 : vector<2x32xf32>
    %704 = arith.mulf %699, %703 : vector<2x32xf32>
    %705 = vector.extract_strided_slice %704 {offsets = [0, 0], sizes = [2, 16], strides = [1, 1]} : vector<2x32xf32> to vector<2x16xf32>
    %c0_327 = arith.constant 0 : index
    %c0_328 = arith.constant 0 : index
    %706 = vector.load %arg7[%c0_327, %c0_328] : memref<16x32xf32, #tpu.memory_space<vmem>>, vector<2x16xf32>
    tpu.vector_store %arg7[%c0_327, %c0_328], %705 {strides = array<i32>} : memref<16x32xf32, #tpu.memory_space<vmem>>, vector<2x16xf32>,
    %707 = vector.extract_strided_slice %704 {offsets = [0, 16], sizes = [2, 16], strides = [1, 1]} : vector<2x32xf32> to vector<2x16xf32>
    %c14_329 = arith.constant 14 : index
    %c16_330 = arith.constant 16 : index
    %708 = vector.load %arg7[%c14_329, %c16_330] : memref<16x32xf32, #tpu.memory_space<vmem>>, vector<2x16xf32>
    tpu.vector_store %arg7[%c14_329, %c16_330], %707 {strides = array<i32>} : memref<16x32xf32, #tpu.memory_space<vmem>>, vector<2x16xf32>,
    %c2_331 = arith.constant 2 : index
    %c0_332 = arith.constant 0 : index
    %709 = vector.load %arg6[%c2_331, %c0_332] : memref<16x128xf32, #tpu.memory_space<vmem>>, vector<2x128xf32>
    %c12_333 = arith.constant 12 : index
    %c0_334 = arith.constant 0 : index
    %710 = vector.load %arg6[%c12_333, %c0_334] : memref<16x128xf32, #tpu.memory_space<vmem>>, vector<2x128xf32>
    %711 = arith.select %456, %709, %710 : vector<2x128xi1>, vector<2x128xf32>
    %cst_335 = arith.constant dense<0.000000e+00> : vector<2x128xf32>
    %712 = tpu.matmul %704, %681, %cst_335 {dimension_numbers = #tpu.dot_dimension_numbers<[1], [0], [0], [1], [0, 0, 1, 1], [], []>} : vector<2x32xf32>, vector<32x128xf32>, vector<2x128xf32> -> vector<2x128xf32>
    %713 = arith.addf %711, %712 : vector<2x128xf32>
    %714 = arith.mulf %713, %464 : vector<2x128xf32>
    %715 = math.tanh %714 : vector<2x128xf32>
    %cst_336 = arith.constant 5.000000e-01 : f32
    %716 = vector.broadcast %cst_336 : f32 to vector<2x128xf32>
    %717 = arith.mulf %716, %715 : vector<2x128xf32>
    %cst_337 = arith.constant 5.000000e-01 : f32
    %718 = vector.broadcast %cst_337 : f32 to vector<2x128xf32>
    %719 = arith.addf %717, %718 : vector<2x128xf32>
    %720 = arith.select %461, %715, %719 : vector<2x128xi1>, vector<2x128xf32>
    %721 = vector.extract_strided_slice %720 {offsets = [0, 0], sizes = [2, 32], strides = [1, 1]} : vector<2x128xf32> to vector<2x32xf32>
    %722 = vector.extract_strided_slice %720 {offsets = [0, 32], sizes = [2, 32], strides = [1, 1]} : vector<2x128xf32> to vector<2x32xf32>
    %723 = vector.extract_strided_slice %720 {offsets = [0, 64], sizes = [2, 32], strides = [1, 1]} : vector<2x128xf32> to vector<2x32xf32>
    %724 = vector.extract_strided_slice %720 {offsets = [0, 96], sizes = [2, 32], strides = [1, 1]} : vector<2x128xf32> to vector<2x32xf32>
    %725 = arith.mulf %722, %702 : vector<2x32xf32>
    %726 = arith.mulf %721, %723 : vector<2x32xf32>
    %727 = arith.addf %725, %726 : vector<2x32xf32>
    %728 = math.tanh %727 : vector<2x32xf32>
    %729 = arith.mulf %724, %728 : vector<2x32xf32>
    %730 = vector.extract_strided_slice %729 {offsets = [0, 0], sizes = [2, 16], strides = [1, 1]} : vector<2x32xf32> to vector<2x16xf32>
    %c2_338 = arith.constant 2 : index
    %c0_339 = arith.constant 0 : index
    %731 = vector.load %arg7[%c2_338, %c0_339] : memref<16x32xf32, #tpu.memory_space<vmem>>, vector<2x16xf32>
    tpu.vector_store %arg7[%c2_338, %c0_339], %730 {strides = array<i32>} : memref<16x32xf32, #tpu.memory_space<vmem>>, vector<2x16xf32>,
    %732 = vector.extract_strided_slice %729 {offsets = [0, 16], sizes = [2, 16], strides = [1, 1]} : vector<2x32xf32> to vector<2x16xf32>
    %c12_340 = arith.constant 12 : index
    %c16_341 = arith.constant 16 : index
    %733 = vector.load %arg7[%c12_340, %c16_341] : memref<16x32xf32, #tpu.memory_space<vmem>>, vector<2x16xf32>
    tpu.vector_store %arg7[%c12_340, %c16_341], %732 {strides = array<i32>} : memref<16x32xf32, #tpu.memory_space<vmem>>, vector<2x16xf32>,
    %c4_342 = arith.constant 4 : index
    %c0_343 = arith.constant 0 : index
    %734 = vector.load %arg6[%c4_342, %c0_343] : memref<16x128xf32, #tpu.memory_space<vmem>>, vector<2x128xf32>
    %c10_344 = arith.constant 10 : index
    %c0_345 = arith.constant 0 : index
    %735 = vector.load %arg6[%c10_344, %c0_345] : memref<16x128xf32, #tpu.memory_space<vmem>>, vector<2x128xf32>
    %736 = arith.select %456, %734, %735 : vector<2x128xi1>, vector<2x128xf32>
    %cst_346 = arith.constant dense<0.000000e+00> : vector<2x128xf32>
    %737 = tpu.matmul %729, %681, %cst_346 {dimension_numbers = #tpu.dot_dimension_numbers<[1], [0], [0], [1], [0, 0, 1, 1], [], []>} : vector<2x32xf32>, vector<32x128xf32>, vector<2x128xf32> -> vector<2x128xf32>
    %738 = arith.addf %736, %737 : vector<2x128xf32>
    %739 = arith.mulf %738, %464 : vector<2x128xf32>
    %740 = math.tanh %739 : vector<2x128xf32>
    %cst_347 = arith.constant 5.000000e-01 : f32
    %741 = vector.broadcast %cst_347 : f32 to vector<2x128xf32>
    %742 = arith.mulf %741, %740 : vector<2x128xf32>
    %cst_348 = arith.constant 5.000000e-01 : f32
    %743 = vector.broadcast %cst_348 : f32 to vector<2x128xf32>
    %744 = arith.addf %742, %743 : vector<2x128xf32>
    %745 = arith.select %461, %740, %744 : vector<2x128xi1>, vector<2x128xf32>
    %746 = vector.extract_strided_slice %745 {offsets = [0, 0], sizes = [2, 32], strides = [1, 1]} : vector<2x128xf32> to vector<2x32xf32>
    %747 = vector.extract_strided_slice %745 {offsets = [0, 32], sizes = [2, 32], strides = [1, 1]} : vector<2x128xf32> to vector<2x32xf32>
    %748 = vector.extract_strided_slice %745 {offsets = [0, 64], sizes = [2, 32], strides = [1, 1]} : vector<2x128xf32> to vector<2x32xf32>
    %749 = vector.extract_strided_slice %745 {offsets = [0, 96], sizes = [2, 32], strides = [1, 1]} : vector<2x128xf32> to vector<2x32xf32>
    %750 = arith.mulf %747, %727 : vector<2x32xf32>
    %751 = arith.mulf %746, %748 : vector<2x32xf32>
    %752 = arith.addf %750, %751 : vector<2x32xf32>
    %753 = math.tanh %752 : vector<2x32xf32>
    %754 = arith.mulf %749, %753 : vector<2x32xf32>
    %755 = vector.extract_strided_slice %754 {offsets = [0, 0], sizes = [2, 16], strides = [1, 1]} : vector<2x32xf32> to vector<2x16xf32>
    %c4_349 = arith.constant 4 : index
    %c0_350 = arith.constant 0 : index
    %756 = vector.load %arg7[%c4_349, %c0_350] : memref<16x32xf32, #tpu.memory_space<vmem>>, vector<2x16xf32>
    tpu.vector_store %arg7[%c4_349, %c0_350], %755 {strides = array<i32>} : memref<16x32xf32, #tpu.memory_space<vmem>>, vector<2x16xf32>,
    %757 = vector.extract_strided_slice %754 {offsets = [0, 16], sizes = [2, 16], strides = [1, 1]} : vector<2x32xf32> to vector<2x16xf32>
    %c10_351 = arith.constant 10 : index
    %c16_352 = arith.constant 16 : index
    %758 = vector.load %arg7[%c10_351, %c16_352] : memref<16x32xf32, #tpu.memory_space<vmem>>, vector<2x16xf32>
    tpu.vector_store %arg7[%c10_351, %c16_352], %757 {strides = array<i32>} : memref<16x32xf32, #tpu.memory_space<vmem>>, vector<2x16xf32>,
    %c6_353 = arith.constant 6 : index
    %c0_354 = arith.constant 0 : index
    %759 = vector.load %arg6[%c6_353, %c0_354] : memref<16x128xf32, #tpu.memory_space<vmem>>, vector<2x128xf32>
    %c8_355 = arith.constant 8 : index
    %c0_356 = arith.constant 0 : index
    %760 = vector.load %arg6[%c8_355, %c0_356] : memref<16x128xf32, #tpu.memory_space<vmem>>, vector<2x128xf32>
    %761 = arith.select %456, %759, %760 : vector<2x128xi1>, vector<2x128xf32>
    %cst_357 = arith.constant dense<0.000000e+00> : vector<2x128xf32>
    %762 = tpu.matmul %754, %681, %cst_357 {dimension_numbers = #tpu.dot_dimension_numbers<[1], [0], [0], [1], [0, 0, 1, 1], [], []>} : vector<2x32xf32>, vector<32x128xf32>, vector<2x128xf32> -> vector<2x128xf32>
    %763 = arith.addf %761, %762 : vector<2x128xf32>
    %764 = arith.mulf %763, %464 : vector<2x128xf32>
    %765 = math.tanh %764 : vector<2x128xf32>
    %cst_358 = arith.constant 5.000000e-01 : f32
    %766 = vector.broadcast %cst_358 : f32 to vector<2x128xf32>
    %767 = arith.mulf %766, %765 : vector<2x128xf32>
    %cst_359 = arith.constant 5.000000e-01 : f32
    %768 = vector.broadcast %cst_359 : f32 to vector<2x128xf32>
    %769 = arith.addf %767, %768 : vector<2x128xf32>
    %770 = arith.select %461, %765, %769 : vector<2x128xi1>, vector<2x128xf32>
    %771 = vector.extract_strided_slice %770 {offsets = [0, 0], sizes = [2, 32], strides = [1, 1]} : vector<2x128xf32> to vector<2x32xf32>
    %772 = vector.extract_strided_slice %770 {offsets = [0, 32], sizes = [2, 32], strides = [1, 1]} : vector<2x128xf32> to vector<2x32xf32>
    %773 = vector.extract_strided_slice %770 {offsets = [0, 64], sizes = [2, 32], strides = [1, 1]} : vector<2x128xf32> to vector<2x32xf32>
    %774 = vector.extract_strided_slice %770 {offsets = [0, 96], sizes = [2, 32], strides = [1, 1]} : vector<2x128xf32> to vector<2x32xf32>
    %775 = arith.mulf %772, %752 : vector<2x32xf32>
    %776 = arith.mulf %771, %773 : vector<2x32xf32>
    %777 = arith.addf %775, %776 : vector<2x32xf32>
    %778 = math.tanh %777 : vector<2x32xf32>
    %779 = arith.mulf %774, %778 : vector<2x32xf32>
    %780 = vector.extract_strided_slice %779 {offsets = [0, 0], sizes = [2, 16], strides = [1, 1]} : vector<2x32xf32> to vector<2x16xf32>
    %c6_360 = arith.constant 6 : index
    %c0_361 = arith.constant 0 : index
    %781 = vector.load %arg7[%c6_360, %c0_361] : memref<16x32xf32, #tpu.memory_space<vmem>>, vector<2x16xf32>
    tpu.vector_store %arg7[%c6_360, %c0_361], %780 {strides = array<i32>} : memref<16x32xf32, #tpu.memory_space<vmem>>, vector<2x16xf32>,
    %782 = vector.extract_strided_slice %779 {offsets = [0, 16], sizes = [2, 16], strides = [1, 1]} : vector<2x32xf32> to vector<2x16xf32>
    %c8_362 = arith.constant 8 : index
    %c16_363 = arith.constant 16 : index
    %783 = vector.load %arg7[%c8_362, %c16_363] : memref<16x32xf32, #tpu.memory_space<vmem>>, vector<2x16xf32>
    tpu.vector_store %arg7[%c8_362, %c16_363], %782 {strides = array<i32>} : memref<16x32xf32, #tpu.memory_space<vmem>>, vector<2x16xf32>,
    %c8_364 = arith.constant 8 : index
    %c0_365 = arith.constant 0 : index
    %784 = vector.load %arg6[%c8_364, %c0_365] : memref<16x128xf32, #tpu.memory_space<vmem>>, vector<2x128xf32>
    %c6_366 = arith.constant 6 : index
    %c0_367 = arith.constant 0 : index
    %785 = vector.load %arg6[%c6_366, %c0_367] : memref<16x128xf32, #tpu.memory_space<vmem>>, vector<2x128xf32>
    %786 = arith.select %456, %784, %785 : vector<2x128xi1>, vector<2x128xf32>
    %cst_368 = arith.constant dense<0.000000e+00> : vector<2x128xf32>
    %787 = tpu.matmul %779, %681, %cst_368 {dimension_numbers = #tpu.dot_dimension_numbers<[1], [0], [0], [1], [0, 0, 1, 1], [], []>} : vector<2x32xf32>, vector<32x128xf32>, vector<2x128xf32> -> vector<2x128xf32>
    %788 = arith.addf %786, %787 : vector<2x128xf32>
    %789 = arith.mulf %788, %464 : vector<2x128xf32>
    %790 = math.tanh %789 : vector<2x128xf32>
    %cst_369 = arith.constant 5.000000e-01 : f32
    %791 = vector.broadcast %cst_369 : f32 to vector<2x128xf32>
    %792 = arith.mulf %791, %790 : vector<2x128xf32>
    %cst_370 = arith.constant 5.000000e-01 : f32
    %793 = vector.broadcast %cst_370 : f32 to vector<2x128xf32>
    %794 = arith.addf %792, %793 : vector<2x128xf32>
    %795 = arith.select %461, %790, %794 : vector<2x128xi1>, vector<2x128xf32>
    %796 = vector.extract_strided_slice %795 {offsets = [0, 0], sizes = [2, 32], strides = [1, 1]} : vector<2x128xf32> to vector<2x32xf32>
    %797 = vector.extract_strided_slice %795 {offsets = [0, 32], sizes = [2, 32], strides = [1, 1]} : vector<2x128xf32> to vector<2x32xf32>
    %798 = vector.extract_strided_slice %795 {offsets = [0, 64], sizes = [2, 32], strides = [1, 1]} : vector<2x128xf32> to vector<2x32xf32>
    %799 = vector.extract_strided_slice %795 {offsets = [0, 96], sizes = [2, 32], strides = [1, 1]} : vector<2x128xf32> to vector<2x32xf32>
    %800 = arith.mulf %797, %777 : vector<2x32xf32>
    %801 = arith.mulf %796, %798 : vector<2x32xf32>
    %802 = arith.addf %800, %801 : vector<2x32xf32>
    %803 = math.tanh %802 : vector<2x32xf32>
    %804 = arith.mulf %799, %803 : vector<2x32xf32>
    %805 = vector.extract_strided_slice %804 {offsets = [0, 0], sizes = [2, 16], strides = [1, 1]} : vector<2x32xf32> to vector<2x16xf32>
    %c8_371 = arith.constant 8 : index
    %c0_372 = arith.constant 0 : index
    %806 = vector.load %arg7[%c8_371, %c0_372] : memref<16x32xf32, #tpu.memory_space<vmem>>, vector<2x16xf32>
    tpu.vector_store %arg7[%c8_371, %c0_372], %805 {strides = array<i32>} : memref<16x32xf32, #tpu.memory_space<vmem>>, vector<2x16xf32>,
    %807 = vector.extract_strided_slice %804 {offsets = [0, 16], sizes = [2, 16], strides = [1, 1]} : vector<2x32xf32> to vector<2x16xf32>
    %c6_373 = arith.constant 6 : index
    %c16_374 = arith.constant 16 : index
    %808 = vector.load %arg7[%c6_373, %c16_374] : memref<16x32xf32, #tpu.memory_space<vmem>>, vector<2x16xf32>
    tpu.vector_store %arg7[%c6_373, %c16_374], %807 {strides = array<i32>} : memref<16x32xf32, #tpu.memory_space<vmem>>, vector<2x16xf32>,
    %c10_375 = arith.constant 10 : index
    %c0_376 = arith.constant 0 : index
    %809 = vector.load %arg6[%c10_375, %c0_376] : memref<16x128xf32, #tpu.memory_space<vmem>>, vector<2x128xf32>
    %c4_377 = arith.constant 4 : index
    %c0_378 = arith.constant 0 : index
    %810 = vector.load %arg6[%c4_377, %c0_378] : memref<16x128xf32, #tpu.memory_space<vmem>>, vector<2x128xf32>
    %811 = arith.select %456, %809, %810 : vector<2x128xi1>, vector<2x128xf32>
    %cst_379 = arith.constant dense<0.000000e+00> : vector<2x128xf32>
    %812 = tpu.matmul %804, %681, %cst_379 {dimension_numbers = #tpu.dot_dimension_numbers<[1], [0], [0], [1], [0, 0, 1, 1], [], []>} : vector<2x32xf32>, vector<32x128xf32>, vector<2x128xf32> -> vector<2x128xf32>
    %813 = arith.addf %811, %812 : vector<2x128xf32>
    %814 = arith.mulf %813, %464 : vector<2x128xf32>
    %815 = math.tanh %814 : vector<2x128xf32>
    %cst_380 = arith.constant 5.000000e-01 : f32
    %816 = vector.broadcast %cst_380 : f32 to vector<2x128xf32>
    %817 = arith.mulf %816, %815 : vector<2x128xf32>
    %cst_381 = arith.constant 5.000000e-01 : f32
    %818 = vector.broadcast %cst_381 : f32 to vector<2x128xf32>
    %819 = arith.addf %817, %818 : vector<2x128xf32>
    %820 = arith.select %461, %815, %819 : vector<2x128xi1>, vector<2x128xf32>
    %821 = vector.extract_strided_slice %820 {offsets = [0, 0], sizes = [2, 32], strides = [1, 1]} : vector<2x128xf32> to vector<2x32xf32>
    %822 = vector.extract_strided_slice %820 {offsets = [0, 32], sizes = [2, 32], strides = [1, 1]} : vector<2x128xf32> to vector<2x32xf32>
    %823 = vector.extract_strided_slice %820 {offsets = [0, 64], sizes = [2, 32], strides = [1, 1]} : vector<2x128xf32> to vector<2x32xf32>
    %824 = vector.extract_strided_slice %820 {offsets = [0, 96], sizes = [2, 32], strides = [1, 1]} : vector<2x128xf32> to vector<2x32xf32>
    %825 = arith.mulf %822, %802 : vector<2x32xf32>
    %826 = arith.mulf %821, %823 : vector<2x32xf32>
    %827 = arith.addf %825, %826 : vector<2x32xf32>
    %828 = math.tanh %827 : vector<2x32xf32>
    %829 = arith.mulf %824, %828 : vector<2x32xf32>
    %830 = vector.extract_strided_slice %829 {offsets = [0, 0], sizes = [2, 16], strides = [1, 1]} : vector<2x32xf32> to vector<2x16xf32>
    %c10_382 = arith.constant 10 : index
    %c0_383 = arith.constant 0 : index
    %831 = vector.load %arg7[%c10_382, %c0_383] : memref<16x32xf32, #tpu.memory_space<vmem>>, vector<2x16xf32>
    tpu.vector_store %arg7[%c10_382, %c0_383], %830 {strides = array<i32>} : memref<16x32xf32, #tpu.memory_space<vmem>>, vector<2x16xf32>,
    %832 = vector.extract_strided_slice %829 {offsets = [0, 16], sizes = [2, 16], strides = [1, 1]} : vector<2x32xf32> to vector<2x16xf32>
    %c4_384 = arith.constant 4 : index
    %c16_385 = arith.constant 16 : index
    %833 = vector.load %arg7[%c4_384, %c16_385] : memref<16x32xf32, #tpu.memory_space<vmem>>, vector<2x16xf32>
    tpu.vector_store %arg7[%c4_384, %c16_385], %832 {strides = array<i32>} : memref<16x32xf32, #tpu.memory_space<vmem>>, vector<2x16xf32>,
    %c12_386 = arith.constant 12 : index
    %c0_387 = arith.constant 0 : index
    %834 = vector.load %arg6[%c12_386, %c0_387] : memref<16x128xf32, #tpu.memory_space<vmem>>, vector<2x128xf32>
    %c2_388 = arith.constant 2 : index
    %c0_389 = arith.constant 0 : index
    %835 = vector.load %arg6[%c2_388, %c0_389] : memref<16x128xf32, #tpu.memory_space<vmem>>, vector<2x128xf32>
    %836 = arith.select %456, %834, %835 : vector<2x128xi1>, vector<2x128xf32>
    %cst_390 = arith.constant dense<0.000000e+00> : vector<2x128xf32>
    %837 = tpu.matmul %829, %681, %cst_390 {dimension_numbers = #tpu.dot_dimension_numbers<[1], [0], [0], [1], [0, 0, 1, 1], [], []>} : vector<2x32xf32>, vector<32x128xf32>, vector<2x128xf32> -> vector<2x128xf32>
    %838 = arith.addf %836, %837 : vector<2x128xf32>
    %839 = arith.mulf %838, %464 : vector<2x128xf32>
    %840 = math.tanh %839 : vector<2x128xf32>
    %cst_391 = arith.constant 5.000000e-01 : f32
    %841 = vector.broadcast %cst_391 : f32 to vector<2x128xf32>
    %842 = arith.mulf %841, %840 : vector<2x128xf32>
    %cst_392 = arith.constant 5.000000e-01 : f32
    %843 = vector.broadcast %cst_392 : f32 to vector<2x128xf32>
    %844 = arith.addf %842, %843 : vector<2x128xf32>
    %845 = arith.select %461, %840, %844 : vector<2x128xi1>, vector<2x128xf32>
    %846 = vector.extract_strided_slice %845 {offsets = [0, 0], sizes = [2, 32], strides = [1, 1]} : vector<2x128xf32> to vector<2x32xf32>
    %847 = vector.extract_strided_slice %845 {offsets = [0, 32], sizes = [2, 32], strides = [1, 1]} : vector<2x128xf32> to vector<2x32xf32>
    %848 = vector.extract_strided_slice %845 {offsets = [0, 64], sizes = [2, 32], strides = [1, 1]} : vector<2x128xf32> to vector<2x32xf32>
    %849 = vector.extract_strided_slice %845 {offsets = [0, 96], sizes = [2, 32], strides = [1, 1]} : vector<2x128xf32> to vector<2x32xf32>
    %850 = arith.mulf %847, %827 : vector<2x32xf32>
    %851 = arith.mulf %846, %848 : vector<2x32xf32>
    %852 = arith.addf %850, %851 : vector<2x32xf32>
    %853 = math.tanh %852 : vector<2x32xf32>
    %854 = arith.mulf %849, %853 : vector<2x32xf32>
    %855 = vector.extract_strided_slice %854 {offsets = [0, 0], sizes = [2, 16], strides = [1, 1]} : vector<2x32xf32> to vector<2x16xf32>
    %c12_393 = arith.constant 12 : index
    %c0_394 = arith.constant 0 : index
    %856 = vector.load %arg7[%c12_393, %c0_394] : memref<16x32xf32, #tpu.memory_space<vmem>>, vector<2x16xf32>
    tpu.vector_store %arg7[%c12_393, %c0_394], %855 {strides = array<i32>} : memref<16x32xf32, #tpu.memory_space<vmem>>, vector<2x16xf32>,
    %857 = vector.extract_strided_slice %854 {offsets = [0, 16], sizes = [2, 16], strides = [1, 1]} : vector<2x32xf32> to vector<2x16xf32>
    %c2_395 = arith.constant 2 : index
    %c16_396 = arith.constant 16 : index
    %858 = vector.load %arg7[%c2_395, %c16_396] : memref<16x32xf32, #tpu.memory_space<vmem>>, vector<2x16xf32>
    tpu.vector_store %arg7[%c2_395, %c16_396], %857 {strides = array<i32>} : memref<16x32xf32, #tpu.memory_space<vmem>>, vector<2x16xf32>,
    %c14_397 = arith.constant 14 : index
    %c0_398 = arith.constant 0 : index
    %859 = vector.load %arg6[%c14_397, %c0_398] : memref<16x128xf32, #tpu.memory_space<vmem>>, vector<2x128xf32>
    %c0_399 = arith.constant 0 : index
    %c0_400 = arith.constant 0 : index
    %860 = vector.load %arg6[%c0_399, %c0_400] : memref<16x128xf32, #tpu.memory_space<vmem>>, vector<2x128xf32>
    %861 = arith.select %456, %859, %860 : vector<2x128xi1>, vector<2x128xf32>
    %cst_401 = arith.constant dense<0.000000e+00> : vector<2x128xf32>
    %862 = tpu.matmul %854, %681, %cst_401 {dimension_numbers = #tpu.dot_dimension_numbers<[1], [0], [0], [1], [0, 0, 1, 1], [], []>} : vector<2x32xf32>, vector<32x128xf32>, vector<2x128xf32> -> vector<2x128xf32>
    %863 = arith.addf %861, %862 : vector<2x128xf32>
    %864 = arith.mulf %863, %464 : vector<2x128xf32>
    %865 = math.tanh %864 : vector<2x128xf32>
    %cst_402 = arith.constant 5.000000e-01 : f32
    %866 = vector.broadcast %cst_402 : f32 to vector<2x128xf32>
    %867 = arith.mulf %866, %865 : vector<2x128xf32>
    %cst_403 = arith.constant 5.000000e-01 : f32
    %868 = vector.broadcast %cst_403 : f32 to vector<2x128xf32>
    %869 = arith.addf %867, %868 : vector<2x128xf32>
    %870 = arith.select %461, %865, %869 : vector<2x128xi1>, vector<2x128xf32>
    %871 = vector.extract_strided_slice %870 {offsets = [0, 0], sizes = [2, 32], strides = [1, 1]} : vector<2x128xf32> to vector<2x32xf32>
    %872 = vector.extract_strided_slice %870 {offsets = [0, 32], sizes = [2, 32], strides = [1, 1]} : vector<2x128xf32> to vector<2x32xf32>
    %873 = vector.extract_strided_slice %870 {offsets = [0, 64], sizes = [2, 32], strides = [1, 1]} : vector<2x128xf32> to vector<2x32xf32>
    %874 = vector.extract_strided_slice %870 {offsets = [0, 96], sizes = [2, 32], strides = [1, 1]} : vector<2x128xf32> to vector<2x32xf32>
    %875 = arith.mulf %872, %852 : vector<2x32xf32>
    %876 = arith.mulf %871, %873 : vector<2x32xf32>
    %877 = arith.addf %875, %876 : vector<2x32xf32>
    %878 = math.tanh %877 : vector<2x32xf32>
    %879 = arith.mulf %874, %878 : vector<2x32xf32>
    %880 = vector.extract_strided_slice %879 {offsets = [0, 0], sizes = [2, 16], strides = [1, 1]} : vector<2x32xf32> to vector<2x16xf32>
    %c14_404 = arith.constant 14 : index
    %c0_405 = arith.constant 0 : index
    %881 = vector.load %arg7[%c14_404, %c0_405] : memref<16x32xf32, #tpu.memory_space<vmem>>, vector<2x16xf32>
    tpu.vector_store %arg7[%c14_404, %c0_405], %880 {strides = array<i32>} : memref<16x32xf32, #tpu.memory_space<vmem>>, vector<2x16xf32>,
    %882 = vector.extract_strided_slice %879 {offsets = [0, 16], sizes = [2, 16], strides = [1, 1]} : vector<2x32xf32> to vector<2x16xf32>
    %c0_406 = arith.constant 0 : index
    %c16_407 = arith.constant 16 : index
    %883 = vector.load %arg7[%c0_406, %c16_407] : memref<16x32xf32, #tpu.memory_space<vmem>>, vector<2x16xf32>
    tpu.vector_store %arg7[%c0_406, %c16_407], %882 {strides = array<i32>} : memref<16x32xf32, #tpu.memory_space<vmem>>, vector<2x16xf32>,
    %c0_408 = arith.constant 0 : index
    %c0_409 = arith.constant 0 : index
    %884 = vector.load %arg7[%c0_408, %c0_409] : memref<16x32xf32, #tpu.memory_space<vmem>>, vector<16x32xf32>
    %c584 = arith.constant 584 : index
    %c0_410 = arith.constant 0 : index
    %885 = vector.load %arg2[%c584, %c0_410] : memref<624x128xf32, #tpu.memory_space<vmem>>, vector<32x128xf32>
    %cst_411 = arith.constant dense<0.000000e+00> : vector<16x128xf32>
    %886 = tpu.matmul %884, %885, %cst_411 {dimension_numbers = #tpu.dot_dimension_numbers<[1], [0], [0], [1], [0, 0, 1, 1], [], []>} : vector<16x32xf32>, vector<32x128xf32>, vector<16x128xf32> -> vector<16x128xf32>
    %c616 = arith.constant 616 : index
    %c0_412 = arith.constant 0 : index
    %887 = vector.load %arg2[%c616, %c0_412] : memref<624x128xf32, #tpu.memory_space<vmem>>, vector<1x128xf32>
    %888 = vector.broadcast %887 : vector<1x128xf32> to vector<16x128xf32>
    %889 = arith.addf %886, %888 : vector<16x128xf32>
    %c0_413 = arith.constant 0 : index
    %c0_414 = arith.constant 0 : index
    %890 = vector.load %arg4[%c0_413, %c0_414] : memref<16x128xf32, #tpu.memory_space<vmem>>, vector<16x128xf32>
    tpu.vector_store %arg4[%c0_413, %c0_414], %889 {strides = array<i32>} : memref<16x128xf32, #tpu.memory_space<vmem>>, vector<16x128xf32>,
    return
  }
  func.func @transform_0(%arg0: i32, %arg1: memref<16xi32, #tpu.memory_space<smem>>) -> (i32, i32) {
    %c0_i32 = arith.constant 0 : i32
    %c0_i32_0 = arith.constant 0 : i32
    %c0_i32_1 = arith.constant 0 : i32
    return %c0_i32, %c0_i32_0 : i32, i32
  }
  func.func @transform_1(%arg0: i32, %arg1: memref<16xi32, #tpu.memory_space<smem>>) -> (i32, i32) {
    %c0_i32 = arith.constant 0 : i32
    %c0_i32_0 = arith.constant 0 : i32
    %c0_i32_1 = arith.constant 0 : i32
    return %c0_i32, %c0_i32_0 : i32, i32
  }
  func.func @transform_2(%arg0: i32, %arg1: memref<16xi32, #tpu.memory_space<smem>>) -> (i32, i32) {
    %c0_i32 = arith.constant 0 : i32
    %c0_i32_0 = arith.constant 0 : i32
    %c0_i32_1 = arith.constant 0 : i32
    return %c0_i32, %c0_i32_0 : i32, i32
  }
}

</mosaic_0001>

<llo_original>
// kernel: _lambda_.1
$region0: #{_lambda_.1}
  #allocation0 [shape = 'u32[]', space=smem, size = 0x4, offset = 0x4, fixed_abs, tag = 'smem constant byte address 0x4 - core index']
  #allocation1 [shape = 'u32[144,128]{1,0:T(1,128)}', space=vmem, size = 0x12000, scoped, tag = 'internal scratch']
  #allocation2 [shape = 'f32[16,32]{1,0:T(8,128)}', space=vmem, size = 0x2000, scoped, tag = 'scratch operand']
  #allocation3 [shape = 'f32[16,128]{1,0:T(8,128)}', space=vmem, size = 0x2000, scoped, tag = 'scratch operand']
  #allocation4 [shape = 'f32[16,32]{1,0:T(8,128)}', space=vmem, size = 0x2000, scoped, tag = 'scratch operand']
  #allocation5 [shape = 's32[1]{0}', space=sflag, size = 0x4, scoped, tag = 'scoped memory for _lambda_.1']
  #allocation6 [shape = 'u8[512]{0}', space=smem, size = 0x200, scoped, tag = 'prefetched SMEM operand 0']
  %s0 = inlined_call_operand.vmem [shape: s32[16], index: 0, kind: input, shape index: {}]
  %s1 = inlined_call_operand.hbm [shape: f32[624,128], index: 1, kind: input, shape index: {}]
  %s2 = inlined_call_operand.vmem [shape: f32[2,8], index: 2, kind: input, shape index: {}]
  %s3 = inlined_call_operand.vmem [shape: f32[16,128], index: 3, kind: output, shape index: {}]
  %s4 = sld [smem:[#allocation0]]
  $region22: #{_lambda_.1} parent=0
    _
  %s6 = ssub.s32 1, %s4
  %s7 = scalar_select 0, %s6, %s4
  %s8 = sshll.u32 %s0, 4
  %s9 = int_to_ptr.vmem [resolvable:$true] %s8
  %11 = dma.vmem_to_smem %s9, 16, [#allocation6], [#allocation5]
  %12 = dma.done [#allocation5], 16
  %13 = sfence
  $region1: #{_lambda_.1} parent=0
    #allocation7 [shape = 'u8[319488]{0}', space=vmem, size = 0x4e000, scoped, tag = 'input window, operand 1, single buffered']
    #allocation8 [shape = 's32[1]{0}', space=sflag, size = 0x4, scoped, tag = 'scoped memory for _lambda_.1']
    %14 = vsyncpa [#allocation8], 0
    // Predicated region
    $region2: #{_lambda_.1} parent=1 // pred_check
      _
    $region3: #{_lambda_.1} parent=1 // pred_check_branch
      %16 = sbr.rel (0) target = $region5
    $region4: #{_lambda_.1} parent=1 // pred_region
      %s18 = ssub.s32 9984, 9984
      %19 = vsyncadd [#allocation8], %s18
      %s20 = sshll.u32 [#allocation7], 4
      %s21 = int_to_ptr.vmem [resolvable:$true] %s20
      %26 = dma.hbm_to_vmem [thread:$0]  %s1, 9984, %s21, [#allocation8], 128, 128, 8
    $region5: #{_lambda_.1} parent=1 // pred_fallthru
      _
    // Predicated region
    $region6: #{_lambda_.1} parent=1 // pred_check
      _
    $region7: #{_lambda_.1} parent=1 // pred_check_branch
      %28 = sbr.rel (0) target = $region9
    $region8: #{_lambda_.1} parent=1 // pred_region
      _
    $region9: #{_lambda_.1} parent=1 // pred_fallthru
      _
    // Predicated region
    $region10: #{_lambda_.1} parent=1 // pred_check
      _
    $region11: #{_lambda_.1} parent=1 // pred_check_branch
      %30 = sbr.rel (0) target = $region13
    $region12: #{_lambda_.1} parent=1 // pred_region
      %31 = dma.done [#allocation8], 9984
    $region13: #{_lambda_.1} parent=1 // pred_fallthru
      _
    %s32 = sld [smem:[#allocation6]]
    %s33 = scalar_lea.vmem [#allocation7], %s32
    %v34 = vld [vmem:[%s33] sm:$0x1]
    %v35 = vld [vmem:[#allocation7 + $0x64] sm:$0x1]
    %v36 = vadd.f32 %v34, %v35
    %vm37 = vcmask 253952
    %38 = vst.msk [vmem:[#allocation2] sm:$0x1] %vm37, %v36
    %s39 = sld [smem:[#allocation6 + $0x1]]
    %s40 = scalar_lea.vmem [#allocation7], %s39
    %v41 = vld [vmem:[%s40] sm:$0x1]
    %v42 = vld [vmem:[#allocation7 + $0x65] sm:$0x1]
    %v43 = vadd.f32 %v41, %v42
    %44 = vst.msk [vmem:[#allocation2 + $0x1] sm:$0x1] %vm37, %v43
    %s45 = sld [smem:[#allocation6 + $0x2]]
    %s46 = scalar_lea.vmem [#allocation7], %s45
    %v47 = vld [vmem:[%s46] sm:$0x1]
    %v48 = vld [vmem:[#allocation7 + $0x66] sm:$0x1]
    %v49 = vadd.f32 %v47, %v48
    %50 = vst.msk [vmem:[#allocation2 + $0x2] sm:$0x1] %vm37, %v49
    %s51 = sld [smem:[#allocation6 + $0x3]]
    %s52 = scalar_lea.vmem [#allocation7], %s51
    %v53 = vld [vmem:[%s52] sm:$0x1]
    %v54 = vld [vmem:[#allocation7 + $0x67] sm:$0x1]
    %v55 = vadd.f32 %v53, %v54
    %56 = vst.msk [vmem:[#allocation2 + $0x3] sm:$0x1] %vm37, %v55
    %s57 = sld [smem:[#allocation6 + $0x4]]
    %s58 = scalar_lea.vmem [#allocation7], %s57
    %v59 = vld [vmem:[%s58] sm:$0x1]
    %v60 = vld [vmem:[#allocation7 + $0x68] sm:$0x1]
    %v61 = vadd.f32 %v59, %v60
    %62 = vst.msk [vmem:[#allocation2 + $0x4] sm:$0x1] %vm37, %v61
    %s63 = sld [smem:[#allocation6 + $0x5]]
    %s64 = scalar_lea.vmem [#allocation7], %s63
    %v65 = vld [vmem:[%s64] sm:$0x1]
    %v66 = vld [vmem:[#allocation7 + $0x69] sm:$0x1]
    %v67 = vadd.f32 %v65, %v66
    %68 = vst.msk [vmem:[#allocation2 + $0x5] sm:$0x1] %vm37, %v67
    %s69 = sld [smem:[#allocation6 + $0x6]]
    %s70 = scalar_lea.vmem [#allocation7], %s69
    %v71 = vld [vmem:[%s70] sm:$0x1]
    %v72 = vld [vmem:[#allocation7 + $0x6a] sm:$0x1]
    %v73 = vadd.f32 %v71, %v72
    %74 = vst.msk [vmem:[#allocation2 + $0x6] sm:$0x1] %vm37, %v73
    %s75 = sld [smem:[#allocation6 + $0x7]]
    %s76 = scalar_lea.vmem [#allocation7], %s75
    %v77 = vld [vmem:[%s76] sm:$0x1]
    %v78 = vld [vmem:[#allocation7 + $0x6b] sm:$0x1]
    %v79 = vadd.f32 %v77, %v78
    %80 = vst.msk [vmem:[#allocation2 + $0x7] sm:$0x1] %vm37, %v79
    %s81 = sld [smem:[#allocation6 + $0x8]]
    %s82 = scalar_lea.vmem [#allocation7], %s81
    %v83 = vld [vmem:[%s82] sm:$0x1]
    %v84 = vld [vmem:[#allocation7 + $0x64] sm:$0x1]
    %v85 = vadd.f32 %v83, %v84
    %86 = vst.msk [vmem:[#allocation2 + $0x8] sm:$0x1] %vm37, %v85
    %s87 = sld [smem:[#allocation6 + $0x9]]
    %s88 = scalar_lea.vmem [#allocation7], %s87
    %v89 = vld [vmem:[%s88] sm:$0x1]
    %v90 = vld [vmem:[#allocation7 + $0x65] sm:$0x1]
    %v91 = vadd.f32 %v89, %v90
    %92 = vst.msk [vmem:[#allocation2 + $0x9] sm:$0x1] %vm37, %v91
    %s93 = sld [smem:[#allocation6 + $0xa]]
    %s94 = scalar_lea.vmem [#allocation7], %s93
    %v95 = vld [vmem:[%s94] sm:$0x1]
    %v96 = vld [vmem:[#allocation7 + $0x66] sm:$0x1]
    %v97 = vadd.f32 %v95, %v96
    %98 = vst.msk [vmem:[#allocation2 + $0xa] sm:$0x1] %vm37, %v97
    %s99 = sld [smem:[#allocation6 + $0xb]]
    %s100 = scalar_lea.vmem [#allocation7], %s99
    %v101 = vld [vmem:[%s100] sm:$0x1]
    %v102 = vld [vmem:[#allocation7 + $0x67] sm:$0x1]
    %v103 = vadd.f32 %v101, %v102
    %104 = vst.msk [vmem:[#allocation2 + $0xb] sm:$0x1] %vm37, %v103
    %s105 = sld [smem:[#allocation6 + $0xc]]
    %s106 = scalar_lea.vmem [#allocation7], %s105
    %v107 = vld [vmem:[%s106] sm:$0x1]
    %v108 = vld [vmem:[#allocation7 + $0x68] sm:$0x1]
    %v109 = vadd.f32 %v107, %v108
    %110 = vst.msk [vmem:[#allocation2 + $0xc] sm:$0x1] %vm37, %v109
    %s111 = sld [smem:[#allocation6 + $0xd]]
    %s112 = scalar_lea.vmem [#allocation7], %s111
    %v113 = vld [vmem:[%s112] sm:$0x1]
    %v114 = vld [vmem:[#allocation7 + $0x69] sm:$0x1]
    %v115 = vadd.f32 %v113, %v114
    %116 = vst.msk [vmem:[#allocation2 + $0xd] sm:$0x1] %vm37, %v115
    %s117 = sld [smem:[#allocation6 + $0xe]]
    %s118 = scalar_lea.vmem [#allocation7], %s117
    %v119 = vld [vmem:[%s118] sm:$0x1]
    %v120 = vld [vmem:[#allocation7 + $0x6a] sm:$0x1]
    %v121 = vadd.f32 %v119, %v120
    %122 = vst.msk [vmem:[#allocation2 + $0xe] sm:$0x1] %vm37, %v121
    %s123 = sld [smem:[#allocation6 + $0xf]]
    %s124 = scalar_lea.vmem [#allocation7], %s123
    %v125 = vld [vmem:[%s124] sm:$0x1]
    %v126 = vld [vmem:[#allocation7 + $0x6b] sm:$0x1]
    %v127 = vadd.f32 %v125, %v126
    %128 = vst.msk [vmem:[#allocation2 + $0xf] sm:$0x1] %vm37, %v127
    %v129 = vld [vmem:[#allocation2] sm:$0xff]
    %v130 = vld [vmem:[#allocation2 + $0x8] sm:$0xff]
    %v131 = vld [vmem:[#allocation7 + $0x74] sm:$0x1]
    %v132 = vld [vmem:[#allocation7 + $0x75] sm:$0x1]
    %vm133 = vcmask 261120
    %v134 = vsel %vm133, %v129, 0.0
    %135 = vadd.xlane.f32.xlu0 %v134
    %v136 = vpop.xlane.xlu0 %135
    %v137 = vsel %vm133, %v130, 0.0
    %138 = vadd.xlane.f32.xlu0 %v137
    %v139 = vpop.xlane.xlu0 %138
    %v140 = vrcp.pop 32.0
    %v141 = vmul.f32 %v136, %v140
    %v142 = vmul.f32 %v139, %v140
    %v143 = vsub.f32 %v129, %v141
    %v144 = vsub.f32 %v130, %v142
    %v145 = vmul.f32 %v143, %v143
    %v146 = vmul.f32 %v144, %v144
    %v147 = vsel %vm133, %v145, 0.0
    %148 = vadd.xlane.f32.xlu0 %v147
    %v149 = vpop.xlane.xlu0 %148
    %v150 = vsel %vm133, %v146, 0.0
    %151 = vadd.xlane.f32.xlu0 %v150
    %v152 = vpop.xlane.xlu0 %151
    %v153 = vmul.f32 %v149, %v140
    %v154 = vmul.f32 %v152, %v140
    %v155 = vadd.f32 %v153, 1e-12
    %v156 = vadd.f32 %v154, 1e-12
    %v157 = vrsqrt.pop %v155
    %v158 = vrsqrt.pop %v156
    %v159 = vmul.f32 %v143, %v157
    %v160 = vmul.f32 %v144, %v158
    %v161 = vlaneseq
    %v162 = vshrl.u32 %v161, 7
    %v163 = vsub.s32 0, %v162
    %v164 = vrot.slane %v131, %v163
    %v165 = vmul.f32 %v159, %v164
    %v166 = vmul.f32 %v160, %v164
    %v167 = vlaneseq
    %v168 = vshrl.u32 %v167, 7
    %v169 = vsub.s32 0, %v168
    %v170 = vrot.slane %v132, %v169
    %v171 = vadd.f32 %v165, %v170
    %v172 = vadd.f32 %v166, %v170
    %v173 = vld [vmem:[%s2] sm:$0x3]
    %v174 = vld [vmem:[#allocation7 + $0x76] sm:$0xff]
    %v175 = vld [vmem:[#allocation7 + $0x7e] sm:$0xff]
    %v176 = vld [vmem:[#allocation7 + $0x86] sm:$0xff]
    %v177 = vld [vmem:[#allocation7 + $0x8e] sm:$0xff]
    %v178 = vld [vmem:[#allocation7 + $0x116] sm:$0x1]
    %v179 = vlaneseq
    %v180 = vshrl.u32 %v179, 7
    %v181 = vsub.s32 0, %v180
    %v182 = vrot.slane %v178, %v181
    %v184 = vsel %vm133, %v171, 0
    %v187 = vsel %vm133, %v172, 0
    %189 = vmatprep.subr.mxu0 0.0
    %190 = vmatpush1.msra.mxu0 0.0
    %191 = vmatprep.subr.mxu0 0.0
    %192 = vmatpush1.msra.mxu0 0.0
    %193 = vmatprep.subr.mxu0 0.0
    %194 = vmatpush1.msra.mxu0 0.0
    %195 = vmatprep.subr.mxu0 0.0
    %196 = vmatpush1.msra.mxu0 0.0
    %197 = vmatprep.subr.mxu0 0.0
    %198 = vmatpush1.msra.mxu0 0.0
    %199 = vmatprep.subr.mxu0 0.0
    %200 = vmatpush1.msra.mxu0 0.0
    %201 = vmatprep.subr.mxu0 0.0
    %202 = vmatpush1.msra.mxu0 0.0
    %203 = vmatprep.subr.mxu0 0.0
    %204 = vmatpush1.msra.mxu0 0.0
    %205 = vmatprep.subr.mxu0 0.0
    %206 = vmatpush1.msra.mxu0 0.0
    %207 = vmatprep.subr.mxu0 0.0
    %208 = vmatpush1.msra.mxu0 0.0
    %209 = vmatprep.subr.mxu0 0.0
    %210 = vmatpush1.msra.mxu0 0.0
    %211 = vmatprep.subr.mxu0 0.0
    %212 = vmatpush1.msra.mxu0 0.0
    %213 = vmatprep.subr.mxu0 0.0
    %214 = vmatpush1.msra.mxu0 %v177
    %215 = vmatprep.subr.mxu0 0.0
    %216 = vmatpush1.msra.mxu0 %v176
    %217 = vmatprep.subr.mxu0 0.0
    %218 = vmatpush1.msra.mxu0 %v175
    %219 = vmatprep.subr.mxu0 0.0
    %220 = vmatpush1.msra.mxu0 %v174
    %221 = vmatprep.subr.mxu0 0.0
    %222 = vmatpush2.msra.mxu0 0.0
    %223 = vmatprep.subr.mxu0 0.0
    %224 = vmatpush2.msra.mxu0 0.0
    %225 = vmatprep.subr.mxu0 0.0
    %226 = vmatpush2.msra.mxu0 0.0
    %227 = vmatprep.subr.mxu0 0.0
    %228 = vmatpush2.msra.mxu0 0.0
    %229 = vmatprep.subr.mxu0 0.0
    %230 = vmatpush2.msra.mxu0 0.0
    %231 = vmatprep.subr.mxu0 0.0
    %232 = vmatpush2.msra.mxu0 0.0
    %233 = vmatprep.subr.mxu0 0.0
    %234 = vmatpush2.msra.mxu0 0.0
    %235 = vmatprep.subr.mxu0 0.0
    %236 = vmatpush2.msra.mxu0 0.0
    %237 = vmatprep.subr.mxu0 0.0
    %238 = vmatpush2.msra.mxu0 0.0
    %239 = vmatprep.subr.mxu0 0.0
    %240 = vmatpush2.msra.mxu0 0.0
    %241 = vmatprep.subr.mxu0 0.0
    %242 = vmatpush2.msra.mxu0 0.0
    %243 = vmatprep.subr.mxu0 0.0
    %244 = vmatpush2.msra.mxu0 0.0
    %245 = vmatprep.subr.mxu0 0.0
    %246 = vmatpush2.msra.mxu0 0.0
    %247 = vmatprep.subr.mxu0 0.0
    %248 = vmatpush2.msra.mxu0 0.0
    %249 = vmatprep.subr.mxu0 0.0
    %250 = vmatpush2.msra.mxu0 0.0
    %251 = vmatprep.subr.mxu0 0.0
    %252 = vmatpush2.msra.mxu0 0.0
    %253 = vmatprep.mubr.f32.mxu0 0.0
    %254 = vmatmul.mubr.f32.gmra.mxu0 %v184
    %v255 = vpop.f32.mrf.mxu0
    %v256 = vadd.f32 %v182, %v255
    %v257 = vpop.f32.mrf.mxu0
    %258 = vmatprep.mubr.f32.mxu0 0.0
    %259 = vmatmul.mubr.f32.gmra.mxu0 %v187
    %v260 = vpop.f32.mrf.mxu0
    %v261 = vadd.f32 %v182, %v260
    %v262 = vpop.f32.mrf.mxu0
    %263 = vdwg.mxu0
    %265 = vrot.lane.b32.xlu0 %v256, 96
    %v266 = vpop.permute.xlu0 %265
    %vm267 = vcmask 130048
    %v268 = vsel %vm267, %v256, 0
    %v270 = vsel %vm267, %v266, 0
    %272 = vmatprep.subr.mxu0 0.0
    %273 = vmatpush1.xpose.msra.mxu0 0.0
    %274 = vmatprep.subr.mxu0 0.0
    %275 = vmatpush1.xpose.msra.mxu0 0.0
    %276 = vmatprep.subr.mxu0 0.0
    %277 = vmatpush1.xpose.msra.mxu0 0.0
    %278 = vmatprep.subr.mxu0 0.0
    %279 = vmatpush1.xpose.msra.mxu0 0.0
    %280 = vmatprep.subr.mxu0 0.0
    %281 = vmatpush1.xpose.msra.mxu0 0.0
    %282 = vmatprep.subr.mxu0 0.0
    %283 = vmatpush1.xpose.msra.mxu0 0.0
    %284 = vmatprep.subr.mxu0 0.0
    %285 = vmatpush1.xpose.msra.mxu0 0.0
    %286 = vmatprep.subr.mxu0 0.0
    %287 = vmatpush1.xpose.msra.mxu0 0.0
    %288 = vmatprep.subr.mxu0 0.0
    %289 = vmatpush1.xpose.msra.mxu0 0.0
    %290 = vmatprep.subr.mxu0 0.0
    %291 = vmatpush1.xpose.msra.mxu0 0.0
    %292 = vmatprep.subr.mxu0 0.0
    %293 = vmatpush1.xpose.msra.mxu0 0.0
    %294 = vmatprep.subr.mxu0 0.0
    %295 = vmatpush1.xpose.msra.mxu0 0.0
    %296 = vmatprep.subr.mxu0 0.0
    %297 = vmatpush1.xpose.msra.mxu0 0.0
    %298 = vmatprep.subr.mxu0 0.0
    %299 = vmatpush1.xpose.msra.mxu0 0.0
    %300 = vmatprep.subr.mxu0 0.0
    %301 = vmatpush1.xpose.msra.mxu0 0.0
    %302 = vmatprep.subr.mxu0 0.0
    %303 = vmatpush1.xpose.msra.mxu0 %v270
    %304 = vmatprep.subr.mxu0 0.0
    %305 = vmatpush2.xpose.msra.mxu0 0.0
    %306 = vmatprep.subr.mxu0 0.0
    %307 = vmatpush2.xpose.msra.mxu0 0.0
    %308 = vmatprep.subr.mxu0 0.0
    %309 = vmatpush2.xpose.msra.mxu0 0.0
    %310 = vmatprep.subr.mxu0 0.0
    %311 = vmatpush2.xpose.msra.mxu0 0.0
    %312 = vmatprep.subr.mxu0 0.0
    %313 = vmatpush2.xpose.msra.mxu0 0.0
    %314 = vmatprep.subr.mxu0 0.0
    %315 = vmatpush2.xpose.msra.mxu0 0.0
    %316 = vmatprep.subr.mxu0 0.0
    %317 = vmatpush2.xpose.msra.mxu0 0.0
    %318 = vmatprep.subr.mxu0 0.0
    %319 = vmatpush2.xpose.msra.mxu0 0.0
    %320 = vmatprep.subr.mxu0 0.0
    %321 = vmatpush2.xpose.msra.mxu0 0.0
    %322 = vmatprep.subr.mxu0 0.0
    %323 = vmatpush2.xpose.msra.mxu0 0.0
    %324 = vmatprep.subr.mxu0 0.0
    %325 = vmatpush2.xpose.msra.mxu0 0.0
    %326 = vmatprep.subr.mxu0 0.0
    %327 = vmatpush2.xpose.msra.mxu0 0.0
    %328 = vmatprep.subr.mxu0 0.0
    %329 = vmatpush2.xpose.msra.mxu0 0.0
    %330 = vmatprep.subr.mxu0 0.0
    %331 = vmatpush2.xpose.msra.mxu0 0.0
    %332 = vmatprep.subr.mxu0 0.0
    %333 = vmatpush2.xpose.msra.mxu0 0.0
    %334 = vmatprep.subr.mxu0 0.0
    %335 = vmatpush2.xpose.msra.mxu0 0.0
    %336 = vmatprep.mubr.f32.mxu0 0.0
    %337 = vmatmul.mubr.f32.gmra.mxu0 %v268
    %v338 = vpop.f32.mrf.mxu0
    %v339 = vadd.f32 0.0, %v338
    %v340 = vpop.f32.mrf.mxu0
    %341 = vdwg.mxu0
    %v342 = vmul.f32 %v339, 0.25
    %v343 = vlaneseq
    %v344 = vshrl.u32 %v343, 7
    %v345 = vsub.s32 0, %v344
    %v346 = vrot.slane %v173, %v345
    %v347 = vadd.f32 %v342, %v346
    %v348 = vmul.f32 %v347, 1.442695
    %v349 = vpow.pop %v348
    %vm350 = vcmask 64512
    %v351 = vsel %vm350, %v349, 0.0
    %352 = vadd.xlane.f32.xlu0 %v351
    %v353 = vpop.xlane.xlu0 %352
    %v354 = vrcp.pop %v353
    %v355 = vmul.f32 %v349, %v354
    %356 = vrot.lane.b32.xlu0 %v256, 64
    %v357 = vpop.permute.xlu0 %356
    %v360 = vsel %vm350, %v355, 0
    %362 = vmatprep.subr.mxu0 0.0
    %363 = vmatpush1.msra.mxu0 0.0
    %364 = vmatprep.subr.mxu0 0.0
    %365 = vmatpush1.msra.mxu0 0.0
    %366 = vmatprep.subr.mxu0 0.0
    %367 = vmatpush1.msra.mxu0 0.0
    %368 = vmatprep.subr.mxu0 0.0
    %369 = vmatpush1.msra.mxu0 0.0
    %370 = vmatprep.subr.mxu0 0.0
    %371 = vmatpush1.msra.mxu0 0.0
    %372 = vmatprep.subr.mxu0 0.0
    %373 = vmatpush1.msra.mxu0 0.0
    %374 = vmatprep.subr.mxu0 0.0
    %375 = vmatpush1.msra.mxu0 0.0
    %376 = vmatprep.subr.mxu0 0.0
    %377 = vmatpush1.msra.mxu0 0.0
    %378 = vmatprep.subr.mxu0 0.0
    %379 = vmatpush1.msra.mxu0 0.0
    %380 = vmatprep.subr.mxu0 0.0
    %381 = vmatpush1.msra.mxu0 0.0
    %382 = vmatprep.subr.mxu0 0.0
    %383 = vmatpush1.msra.mxu0 0.0
    %384 = vmatprep.subr.mxu0 0.0
    %385 = vmatpush1.msra.mxu0 0.0
    %386 = vmatprep.subr.mxu0 0.0
    %387 = vmatpush1.msra.mxu0 0.0
    %388 = vmatprep.subr.mxu0 0.0
    %389 = vmatpush1.msra.mxu0 0.0
    %390 = vmatprep.subr.mxu0 0.0
    %391 = vmatpush1.msra.mxu0 0.0
    %392 = vmatprep.subr.mxu0 0.0
    %393 = vmatpush1.msra.mxu0 %v357
    %394 = vmatprep.subr.mxu0 0.0
    %395 = vmatpush2.msra.mxu0 0.0
    %396 = vmatprep.subr.mxu0 0.0
    %397 = vmatpush2.msra.mxu0 0.0
    %398 = vmatprep.subr.mxu0 0.0
    %399 = vmatpush2.msra.mxu0 0.0
    %400 = vmatprep.subr.mxu0 0.0
    %401 = vmatpush2.msra.mxu0 0.0
    %402 = vmatprep.subr.mxu0 0.0
    %403 = vmatpush2.msra.mxu0 0.0
    %404 = vmatprep.subr.mxu0 0.0
    %405 = vmatpush2.msra.mxu0 0.0
    %406 = vmatprep.subr.mxu0 0.0
    %407 = vmatpush2.msra.mxu0 0.0
    %408 = vmatprep.subr.mxu0 0.0
    %409 = vmatpush2.msra.mxu0 0.0
    %410 = vmatprep.subr.mxu0 0.0
    %411 = vmatpush2.msra.mxu0 0.0
    %412 = vmatprep.subr.mxu0 0.0
    %413 = vmatpush2.msra.mxu0 0.0
    %414 = vmatprep.subr.mxu0 0.0
    %415 = vmatpush2.msra.mxu0 0.0
    %416 = vmatprep.subr.mxu0 0.0
    %417 = vmatpush2.msra.mxu0 0.0
    %418 = vmatprep.subr.mxu0 0.0
    %419 = vmatpush2.msra.mxu0 0.0
    %420 = vmatprep.subr.mxu0 0.0
    %421 = vmatpush2.msra.mxu0 0.0
    %422 = vmatprep.subr.mxu0 0.0
    %423 = vmatpush2.msra.mxu0 0.0
    %424 = vmatprep.subr.mxu0 0.0
    %425 = vmatpush2.msra.mxu0 0.0
    %426 = vmatprep.mubr.f32.mxu0 0.0
    %427 = vmatmul.mubr.f32.gmra.mxu0 %v360
    %v428 = vpop.f32.mrf.mxu0
    %v429 = vadd.f32 0.0, %v428
    %v430 = vpop.f32.mrf.mxu0
    %431 = vdwg.mxu0
    %432 = vst.msk [vmem:[#allocation2] sm:$0xff] %vm267, %v429
    %433 = vrot.lane.b32.xlu0 %v256, 112
    %v434 = vpop.permute.xlu0 %433
    %435 = vrot.lane.b32.xlu0 %v256, 80
    %v436 = vpop.permute.xlu0 %435
    %v437 = vsel %vm267, %v434, 0
    %v439 = vsel %vm267, %v436, 0
    %441 = vmatprep.subr.mxu0 0.0
    %442 = vmatpush1.xpose.msra.mxu0 0.0
    %443 = vmatprep.subr.mxu0 0.0
    %444 = vmatpush1.xpose.msra.mxu0 0.0
    %445 = vmatprep.subr.mxu0 0.0
    %446 = vmatpush1.xpose.msra.mxu0 0.0
    %447 = vmatprep.subr.mxu0 0.0
    %448 = vmatpush1.xpose.msra.mxu0 0.0
    %449 = vmatprep.subr.mxu0 0.0
    %450 = vmatpush1.xpose.msra.mxu0 0.0
    %451 = vmatprep.subr.mxu0 0.0
    %452 = vmatpush1.xpose.msra.mxu0 0.0
    %453 = vmatprep.subr.mxu0 0.0
    %454 = vmatpush1.xpose.msra.mxu0 0.0
    %455 = vmatprep.subr.mxu0 0.0
    %456 = vmatpush1.xpose.msra.mxu0 0.0
    %457 = vmatprep.subr.mxu0 0.0
    %458 = vmatpush1.xpose.msra.mxu0 0.0
    %459 = vmatprep.subr.mxu0 0.0
    %460 = vmatpush1.xpose.msra.mxu0 0.0
    %461 = vmatprep.subr.mxu0 0.0
    %462 = vmatpush1.xpose.msra.mxu0 0.0
    %463 = vmatprep.subr.mxu0 0.0
    %464 = vmatpush1.xpose.msra.mxu0 0.0
    %465 = vmatprep.subr.mxu0 0.0
    %466 = vmatpush1.xpose.msra.mxu0 0.0
    %467 = vmatprep.subr.mxu0 0.0
    %468 = vmatpush1.xpose.msra.mxu0 0.0
    %469 = vmatprep.subr.mxu0 0.0
    %470 = vmatpush1.xpose.msra.mxu0 0.0
    %471 = vmatprep.subr.mxu0 0.0
    %472 = vmatpush1.xpose.msra.mxu0 %v439
    %473 = vmatprep.subr.mxu0 0.0
    %474 = vmatpush2.xpose.msra.mxu0 0.0
    %475 = vmatprep.subr.mxu0 0.0
    %476 = vmatpush2.xpose.msra.mxu0 0.0
    %477 = vmatprep.subr.mxu0 0.0
    %478 = vmatpush2.xpose.msra.mxu0 0.0
    %479 = vmatprep.subr.mxu0 0.0
    %480 = vmatpush2.xpose.msra.mxu0 0.0
    %481 = vmatprep.subr.mxu0 0.0
    %482 = vmatpush2.xpose.msra.mxu0 0.0
    %483 = vmatprep.subr.mxu0 0.0
    %484 = vmatpush2.xpose.msra.mxu0 0.0
    %485 = vmatprep.subr.mxu0 0.0
    %486 = vmatpush2.xpose.msra.mxu0 0.0
    %487 = vmatprep.subr.mxu0 0.0
    %488 = vmatpush2.xpose.msra.mxu0 0.0
    %489 = vmatprep.subr.mxu0 0.0
    %490 = vmatpush2.xpose.msra.mxu0 0.0
    %491 = vmatprep.subr.mxu0 0.0
    %492 = vmatpush2.xpose.msra.mxu0 0.0
    %493 = vmatprep.subr.mxu0 0.0
    %494 = vmatpush2.xpose.msra.mxu0 0.0
    %495 = vmatprep.subr.mxu0 0.0
    %496 = vmatpush2.xpose.msra.mxu0 0.0
    %497 = vmatprep.subr.mxu0 0.0
    %498 = vmatpush2.xpose.msra.mxu0 0.0
    %499 = vmatprep.subr.mxu0 0.0
    %500 = vmatpush2.xpose.msra.mxu0 0.0
    %501 = vmatprep.subr.mxu0 0.0
    %502 = vmatpush2.xpose.msra.mxu0 0.0
    %503 = vmatprep.subr.mxu0 0.0
    %504 = vmatpush2.xpose.msra.mxu0 0.0
    %505 = vmatprep.mubr.f32.mxu0 0.0
    %506 = vmatmul.mubr.f32.gmra.mxu0 %v437
    %v507 = vpop.f32.mrf.mxu0
    %v508 = vadd.f32 0.0, %v507
    %v509 = vpop.f32.mrf.mxu0
    %510 = vdwg.mxu0
    %v511 = vmul.f32 %v508, 0.25
    %v512 = vadd.f32 %v511, %v346
    %v513 = vmul.f32 %v512, 1.442695
    %v514 = vpow.pop %v513
    %v515 = vsel %vm350, %v514, 0.0
    %516 = vadd.xlane.f32.xlu0 %v515
    %v517 = vpop.xlane.xlu0 %516
    %v518 = vrcp.pop %v517
    %v519 = vmul.f32 %v514, %v518
    %520 = vrot.lane.b32.xlu0 %v256, 48
    %v521 = vpop.permute.xlu0 %520
    %v524 = vsel %vm350, %v519, 0
    %526 = vmatprep.subr.mxu0 0.0
    %527 = vmatpush1.msra.mxu0 0.0
    %528 = vmatprep.subr.mxu0 0.0
    %529 = vmatpush1.msra.mxu0 0.0
    %530 = vmatprep.subr.mxu0 0.0
    %531 = vmatpush1.msra.mxu0 0.0
    %532 = vmatprep.subr.mxu0 0.0
    %533 = vmatpush1.msra.mxu0 0.0
    %534 = vmatprep.subr.mxu0 0.0
    %535 = vmatpush1.msra.mxu0 0.0
    %536 = vmatprep.subr.mxu0 0.0
    %537 = vmatpush1.msra.mxu0 0.0
    %538 = vmatprep.subr.mxu0 0.0
    %539 = vmatpush1.msra.mxu0 0.0
    %540 = vmatprep.subr.mxu0 0.0
    %541 = vmatpush1.msra.mxu0 0.0
    %542 = vmatprep.subr.mxu0 0.0
    %543 = vmatpush1.msra.mxu0 0.0
    %544 = vmatprep.subr.mxu0 0.0
    %545 = vmatpush1.msra.mxu0 0.0
    %546 = vmatprep.subr.mxu0 0.0
    %547 = vmatpush1.msra.mxu0 0.0
    %548 = vmatprep.subr.mxu0 0.0
    %549 = vmatpush1.msra.mxu0 0.0
    %550 = vmatprep.subr.mxu0 0.0
    %551 = vmatpush1.msra.mxu0 0.0
    %552 = vmatprep.subr.mxu0 0.0
    %553 = vmatpush1.msra.mxu0 0.0
    %554 = vmatprep.subr.mxu0 0.0
    %555 = vmatpush1.msra.mxu0 0.0
    %556 = vmatprep.subr.mxu0 0.0
    %557 = vmatpush1.msra.mxu0 %v521
    %558 = vmatprep.subr.mxu0 0.0
    %559 = vmatpush2.msra.mxu0 0.0
    %560 = vmatprep.subr.mxu0 0.0
    %561 = vmatpush2.msra.mxu0 0.0
    %562 = vmatprep.subr.mxu0 0.0
    %563 = vmatpush2.msra.mxu0 0.0
    %564 = vmatprep.subr.mxu0 0.0
    %565 = vmatpush2.msra.mxu0 0.0
    %566 = vmatprep.subr.mxu0 0.0
    %567 = vmatpush2.msra.mxu0 0.0
    %568 = vmatprep.subr.mxu0 0.0
    %569 = vmatpush2.msra.mxu0 0.0
    %570 = vmatprep.subr.mxu0 0.0
    %571 = vmatpush2.msra.mxu0 0.0
    %572 = vmatprep.subr.mxu0 0.0
    %573 = vmatpush2.msra.mxu0 0.0
    %574 = vmatprep.subr.mxu0 0.0
    %575 = vmatpush2.msra.mxu0 0.0
    %576 = vmatprep.subr.mxu0 0.0
    %577 = vmatpush2.msra.mxu0 0.0
    %578 = vmatprep.subr.mxu0 0.0
    %579 = vmatpush2.msra.mxu0 0.0
    %580 = vmatprep.subr.mxu0 0.0
    %581 = vmatpush2.msra.mxu0 0.0
    %582 = vmatprep.subr.mxu0 0.0
    %583 = vmatpush2.msra.mxu0 0.0
    %584 = vmatprep.subr.mxu0 0.0
    %585 = vmatpush2.msra.mxu0 0.0
    %586 = vmatprep.subr.mxu0 0.0
    %587 = vmatpush2.msra.mxu0 0.0
    %588 = vmatprep.subr.mxu0 0.0
    %589 = vmatpush2.msra.mxu0 0.0
    %590 = vmatprep.mubr.f32.mxu0 0.0
    %591 = vmatmul.mubr.f32.gmra.mxu0 %v524
    %v592 = vpop.f32.mrf.mxu0
    %v593 = vadd.f32 0.0, %v592
    %v594 = vpop.f32.mrf.mxu0
    %595 = vdwg.mxu0
    %597 = vrot.lane.b32.xlu0 %v593, 16
    %v598 = vpop.permute.xlu0 %597
    %vm600 = vcmask 261248
    %601 = vst.msk [vmem:[#allocation2] sm:$0xff] %vm600, %v598
    %603 = vrot.lane.b32.xlu0 %v261, 96
    %v604 = vpop.permute.xlu0 %603
    %v605 = vsel %vm267, %v261, 0
    %v607 = vsel %vm267, %v604, 0
    %609 = vmatprep.subr.mxu0 0.0
    %610 = vmatpush1.xpose.msra.mxu0 0.0
    %611 = vmatprep.subr.mxu0 0.0
    %612 = vmatpush1.xpose.msra.mxu0 0.0
    %613 = vmatprep.subr.mxu0 0.0
    %614 = vmatpush1.xpose.msra.mxu0 0.0
    %615 = vmatprep.subr.mxu0 0.0
    %616 = vmatpush1.xpose.msra.mxu0 0.0
    %617 = vmatprep.subr.mxu0 0.0
    %618 = vmatpush1.xpose.msra.mxu0 0.0
    %619 = vmatprep.subr.mxu0 0.0
    %620 = vmatpush1.xpose.msra.mxu0 0.0
    %621 = vmatprep.subr.mxu0 0.0
    %622 = vmatpush1.xpose.msra.mxu0 0.0
    %623 = vmatprep.subr.mxu0 0.0
    %624 = vmatpush1.xpose.msra.mxu0 0.0
    %625 = vmatprep.subr.mxu0 0.0
    %626 = vmatpush1.xpose.msra.mxu0 0.0
    %627 = vmatprep.subr.mxu0 0.0
    %628 = vmatpush1.xpose.msra.mxu0 0.0
    %629 = vmatprep.subr.mxu0 0.0
    %630 = vmatpush1.xpose.msra.mxu0 0.0
    %631 = vmatprep.subr.mxu0 0.0
    %632 = vmatpush1.xpose.msra.mxu0 0.0
    %633 = vmatprep.subr.mxu0 0.0
    %634 = vmatpush1.xpose.msra.mxu0 0.0
    %635 = vmatprep.subr.mxu0 0.0
    %636 = vmatpush1.xpose.msra.mxu0 0.0
    %637 = vmatprep.subr.mxu0 0.0
    %638 = vmatpush1.xpose.msra.mxu0 0.0
    %639 = vmatprep.subr.mxu0 0.0
    %640 = vmatpush1.xpose.msra.mxu0 %v607
    %641 = vmatprep.subr.mxu0 0.0
    %642 = vmatpush2.xpose.msra.mxu0 0.0
    %643 = vmatprep.subr.mxu0 0.0
    %644 = vmatpush2.xpose.msra.mxu0 0.0
    %645 = vmatprep.subr.mxu0 0.0
    %646 = vmatpush2.xpose.msra.mxu0 0.0
    %647 = vmatprep.subr.mxu0 0.0
    %648 = vmatpush2.xpose.msra.mxu0 0.0
    %649 = vmatprep.subr.mxu0 0.0
    %650 = vmatpush2.xpose.msra.mxu0 0.0
    %651 = vmatprep.subr.mxu0 0.0
    %652 = vmatpush2.xpose.msra.mxu0 0.0
    %653 = vmatprep.subr.mxu0 0.0
    %654 = vmatpush2.xpose.msra.mxu0 0.0
    %655 = vmatprep.subr.mxu0 0.0
    %656 = vmatpush2.xpose.msra.mxu0 0.0
    %657 = vmatprep.subr.mxu0 0.0
    %658 = vmatpush2.xpose.msra.mxu0 0.0
    %659 = vmatprep.subr.mxu0 0.0
    %660 = vmatpush2.xpose.msra.mxu0 0.0
    %661 = vmatprep.subr.mxu0 0.0
    %662 = vmatpush2.xpose.msra.mxu0 0.0
    %663 = vmatprep.subr.mxu0 0.0
    %664 = vmatpush2.xpose.msra.mxu0 0.0
    %665 = vmatprep.subr.mxu0 0.0
    %666 = vmatpush2.xpose.msra.mxu0 0.0
    %667 = vmatprep.subr.mxu0 0.0
    %668 = vmatpush2.xpose.msra.mxu0 0.0
    %669 = vmatprep.subr.mxu0 0.0
    %670 = vmatpush2.xpose.msra.mxu0 0.0
    %671 = vmatprep.subr.mxu0 0.0
    %672 = vmatpush2.xpose.msra.mxu0 0.0
    %673 = vmatprep.mubr.f32.mxu0 0.0
    %674 = vmatmul.mubr.f32.gmra.mxu0 %v605
    %v675 = vpop.f32.mrf.mxu0
    %v676 = vadd.f32 0.0, %v675
    %v677 = vpop.f32.mrf.mxu0
    %678 = vdwg.mxu0
    %v679 = vmul.f32 %v676, 0.25
    %v680 = vlaneseq
    %v681 = vshrl.u32 %v680, 7
    %v682 = vsub.s32 1, %v681
    %v683 = vrot.slane %v173, %v682
    %v684 = vadd.f32 %v679, %v683
    %v685 = vmul.f32 %v684, 1.442695
    %v686 = vpow.pop %v685
    %v687 = vsel %vm350, %v686, 0.0
    %688 = vadd.xlane.f32.xlu0 %v687
    %v689 = vpop.xlane.xlu0 %688
    %v690 = vrcp.pop %v689
    %v691 = vmul.f32 %v686, %v690
    %692 = vrot.lane.b32.xlu0 %v261, 64
    %v693 = vpop.permute.xlu0 %692
    %v696 = vsel %vm350, %v691, 0
    %698 = vmatprep.subr.mxu0 0.0
    %699 = vmatpush1.msra.mxu0 0.0
    %700 = vmatprep.subr.mxu0 0.0
    %701 = vmatpush1.msra.mxu0 0.0
    %702 = vmatprep.subr.mxu0 0.0
    %703 = vmatpush1.msra.mxu0 0.0
    %704 = vmatprep.subr.mxu0 0.0
    %705 = vmatpush1.msra.mxu0 0.0
    %706 = vmatprep.subr.mxu0 0.0
    %707 = vmatpush1.msra.mxu0 0.0
    %708 = vmatprep.subr.mxu0 0.0
    %709 = vmatpush1.msra.mxu0 0.0
    %710 = vmatprep.subr.mxu0 0.0
    %711 = vmatpush1.msra.mxu0 0.0
    %712 = vmatprep.subr.mxu0 0.0
    %713 = vmatpush1.msra.mxu0 0.0
    %714 = vmatprep.subr.mxu0 0.0
    %715 = vmatpush1.msra.mxu0 0.0
    %716 = vmatprep.subr.mxu0 0.0
    %717 = vmatpush1.msra.mxu0 0.0
    %718 = vmatprep.subr.mxu0 0.0
    %719 = vmatpush1.msra.mxu0 0.0
    %720 = vmatprep.subr.mxu0 0.0
    %721 = vmatpush1.msra.mxu0 0.0
    %722 = vmatprep.subr.mxu0 0.0
    %723 = vmatpush1.msra.mxu0 0.0
    %724 = vmatprep.subr.mxu0 0.0
    %725 = vmatpush1.msra.mxu0 0.0
    %726 = vmatprep.subr.mxu0 0.0
    %727 = vmatpush1.msra.mxu0 0.0
    %728 = vmatprep.subr.mxu0 0.0
    %729 = vmatpush1.msra.mxu0 %v693
    %730 = vmatprep.subr.mxu0 0.0
    %731 = vmatpush2.msra.mxu0 0.0
    %732 = vmatprep.subr.mxu0 0.0
    %733 = vmatpush2.msra.mxu0 0.0
    %734 = vmatprep.subr.mxu0 0.0
    %735 = vmatpush2.msra.mxu0 0.0
    %736 = vmatprep.subr.mxu0 0.0
    %737 = vmatpush2.msra.mxu0 0.0
    %738 = vmatprep.subr.mxu0 0.0
    %739 = vmatpush2.msra.mxu0 0.0
    %740 = vmatprep.subr.mxu0 0.0
    %741 = vmatpush2.msra.mxu0 0.0
    %742 = vmatprep.subr.mxu0 0.0
    %743 = vmatpush2.msra.mxu0 0.0
    %744 = vmatprep.subr.mxu0 0.0
    %745 = vmatpush2.msra.mxu0 0.0
    %746 = vmatprep.subr.mxu0 0.0
    %747 = vmatpush2.msra.mxu0 0.0
    %748 = vmatprep.subr.mxu0 0.0
    %749 = vmatpush2.msra.mxu0 0.0
    %750 = vmatprep.subr.mxu0 0.0
    %751 = vmatpush2.msra.mxu0 0.0
    %752 = vmatprep.subr.mxu0 0.0
    %753 = vmatpush2.msra.mxu0 0.0
    %754 = vmatprep.subr.mxu0 0.0
    %755 = vmatpush2.msra.mxu0 0.0
    %756 = vmatprep.subr.mxu0 0.0
    %757 = vmatpush2.msra.mxu0 0.0
    %758 = vmatprep.subr.mxu0 0.0
    %759 = vmatpush2.msra.mxu0 0.0
    %760 = vmatprep.subr.mxu0 0.0
    %761 = vmatpush2.msra.mxu0 0.0
    %762 = vmatprep.mubr.f32.mxu0 0.0
    %763 = vmatmul.mubr.f32.gmra.mxu0 %v696
    %v764 = vpop.f32.mrf.mxu0
    %v765 = vadd.f32 0.0, %v764
    %v766 = vpop.f32.mrf.mxu0
    %767 = vdwg.mxu0
    %768 = vst.msk [vmem:[#allocation2 + $0x8] sm:$0xff] %vm267, %v765
    %769 = vrot.lane.b32.xlu0 %v261, 112
    %v770 = vpop.permute.xlu0 %769
    %771 = vrot.lane.b32.xlu0 %v261, 80
    %v772 = vpop.permute.xlu0 %771
    %v773 = vsel %vm267, %v770, 0
    %v775 = vsel %vm267, %v772, 0
    %777 = vmatprep.subr.mxu0 0.0
    %778 = vmatpush1.xpose.msra.mxu0 0.0
    %779 = vmatprep.subr.mxu0 0.0
    %780 = vmatpush1.xpose.msra.mxu0 0.0
    %781 = vmatprep.subr.mxu0 0.0
    %782 = vmatpush1.xpose.msra.mxu0 0.0
    %783 = vmatprep.subr.mxu0 0.0
    %784 = vmatpush1.xpose.msra.mxu0 0.0
    %785 = vmatprep.subr.mxu0 0.0
    %786 = vmatpush1.xpose.msra.mxu0 0.0
    %787 = vmatprep.subr.mxu0 0.0
    %788 = vmatpush1.xpose.msra.mxu0 0.0
    %789 = vmatprep.subr.mxu0 0.0
    %790 = vmatpush1.xpose.msra.mxu0 0.0
    %791 = vmatprep.subr.mxu0 0.0
    %792 = vmatpush1.xpose.msra.mxu0 0.0
    %793 = vmatprep.subr.mxu0 0.0
    %794 = vmatpush1.xpose.msra.mxu0 0.0
    %795 = vmatprep.subr.mxu0 0.0
    %796 = vmatpush1.xpose.msra.mxu0 0.0
    %797 = vmatprep.subr.mxu0 0.0
    %798 = vmatpush1.xpose.msra.mxu0 0.0
    %799 = vmatprep.subr.mxu0 0.0
    %800 = vmatpush1.xpose.msra.mxu0 0.0
    %801 = vmatprep.subr.mxu0 0.0
    %802 = vmatpush1.xpose.msra.mxu0 0.0
    %803 = vmatprep.subr.mxu0 0.0
    %804 = vmatpush1.xpose.msra.mxu0 0.0
    %805 = vmatprep.subr.mxu0 0.0
    %806 = vmatpush1.xpose.msra.mxu0 0.0
    %807 = vmatprep.subr.mxu0 0.0
    %808 = vmatpush1.xpose.msra.mxu0 %v775
    %809 = vmatprep.subr.mxu0 0.0
    %810 = vmatpush2.xpose.msra.mxu0 0.0
    %811 = vmatprep.subr.mxu0 0.0
    %812 = vmatpush2.xpose.msra.mxu0 0.0
    %813 = vmatprep.subr.mxu0 0.0
    %814 = vmatpush2.xpose.msra.mxu0 0.0
    %815 = vmatprep.subr.mxu0 0.0
    %816 = vmatpush2.xpose.msra.mxu0 0.0
    %817 = vmatprep.subr.mxu0 0.0
    %818 = vmatpush2.xpose.msra.mxu0 0.0
    %819 = vmatprep.subr.mxu0 0.0
    %820 = vmatpush2.xpose.msra.mxu0 0.0
    %821 = vmatprep.subr.mxu0 0.0
    %822 = vmatpush2.xpose.msra.mxu0 0.0
    %823 = vmatprep.subr.mxu0 0.0
    %824 = vmatpush2.xpose.msra.mxu0 0.0
    %825 = vmatprep.subr.mxu0 0.0
    %826 = vmatpush2.xpose.msra.mxu0 0.0
    %827 = vmatprep.subr.mxu0 0.0
    %828 = vmatpush2.xpose.msra.mxu0 0.0
    %829 = vmatprep.subr.mxu0 0.0
    %830 = vmatpush2.xpose.msra.mxu0 0.0
    %831 = vmatprep.subr.mxu0 0.0
    %832 = vmatpush2.xpose.msra.mxu0 0.0
    %833 = vmatprep.subr.mxu0 0.0
    %834 = vmatpush2.xpose.msra.mxu0 0.0
    %835 = vmatprep.subr.mxu0 0.0
    %836 = vmatpush2.xpose.msra.mxu0 0.0
    %837 = vmatprep.subr.mxu0 0.0
    %838 = vmatpush2.xpose.msra.mxu0 0.0
    %839 = vmatprep.subr.mxu0 0.0
    %840 = vmatpush2.xpose.msra.mxu0 0.0
    %841 = vmatprep.mubr.f32.mxu0 0.0
    %842 = vmatmul.mubr.f32.gmra.mxu0 %v773
    %v843 = vpop.f32.mrf.mxu0
    %v844 = vadd.f32 0.0, %v843
    %v845 = vpop.f32.mrf.mxu0
    %846 = vdwg.mxu0
    %v847 = vmul.f32 %v844, 0.25
    %v848 = vadd.f32 %v847, %v683
    %v849 = vmul.f32 %v848, 1.442695
    %v850 = vpow.pop %v849
    %v851 = vsel %vm350, %v850, 0.0
    %852 = vadd.xlane.f32.xlu0 %v851
    %v853 = vpop.xlane.xlu0 %852
    %v854 = vrcp.pop %v853
    %v855 = vmul.f32 %v850, %v854
    %856 = vrot.lane.b32.xlu0 %v261, 48
    %v857 = vpop.permute.xlu0 %856
    %v860 = vsel %vm350, %v855, 0
    %862 = vmatprep.subr.mxu0 0.0
    %863 = vmatpush1.msra.mxu0 0.0
    %864 = vmatprep.subr.mxu0 0.0
    %865 = vmatpush1.msra.mxu0 0.0
    %866 = vmatprep.subr.mxu0 0.0
    %867 = vmatpush1.msra.mxu0 0.0
    %868 = vmatprep.subr.mxu0 0.0
    %869 = vmatpush1.msra.mxu0 0.0
    %870 = vmatprep.subr.mxu0 0.0
    %871 = vmatpush1.msra.mxu0 0.0
    %872 = vmatprep.subr.mxu0 0.0
    %873 = vmatpush1.msra.mxu0 0.0
    %874 = vmatprep.subr.mxu0 0.0
    %875 = vmatpush1.msra.mxu0 0.0
    %876 = vmatprep.subr.mxu0 0.0
    %877 = vmatpush1.msra.mxu0 0.0
    %878 = vmatprep.subr.mxu0 0.0
    %879 = vmatpush1.msra.mxu0 0.0
    %880 = vmatprep.subr.mxu0 0.0
    %881 = vmatpush1.msra.mxu0 0.0
    %882 = vmatprep.subr.mxu0 0.0
    %883 = vmatpush1.msra.mxu0 0.0
    %884 = vmatprep.subr.mxu0 0.0
    %885 = vmatpush1.msra.mxu0 0.0
    %886 = vmatprep.subr.mxu0 0.0
    %887 = vmatpush1.msra.mxu0 0.0
    %888 = vmatprep.subr.mxu0 0.0
    %889 = vmatpush1.msra.mxu0 0.0
    %890 = vmatprep.subr.mxu0 0.0
    %891 = vmatpush1.msra.mxu0 0.0
    %892 = vmatprep.subr.mxu0 0.0
    %893 = vmatpush1.msra.mxu0 %v857
    %894 = vmatprep.subr.mxu0 0.0
    %895 = vmatpush2.msra.mxu0 0.0
    %896 = vmatprep.subr.mxu0 0.0
    %897 = vmatpush2.msra.mxu0 0.0
    %898 = vmatprep.subr.mxu0 0.0
    %899 = vmatpush2.msra.mxu0 0.0
    %900 = vmatprep.subr.mxu0 0.0
    %901 = vmatpush2.msra.mxu0 0.0
    %902 = vmatprep.subr.mxu0 0.0
    %903 = vmatpush2.msra.mxu0 0.0
    %904 = vmatprep.subr.mxu0 0.0
    %905 = vmatpush2.msra.mxu0 0.0
    %906 = vmatprep.subr.mxu0 0.0
    %907 = vmatpush2.msra.mxu0 0.0
    %908 = vmatprep.subr.mxu0 0.0
    %909 = vmatpush2.msra.mxu0 0.0
    %910 = vmatprep.subr.mxu0 0.0
    %911 = vmatpush2.msra.mxu0 0.0
    %912 = vmatprep.subr.mxu0 0.0
    %913 = vmatpush2.msra.mxu0 0.0
    %914 = vmatprep.subr.mxu0 0.0
    %915 = vmatpush2.msra.mxu0 0.0
    %916 = vmatprep.subr.mxu0 0.0
    %917 = vmatpush2.msra.mxu0 0.0
    %918 = vmatprep.subr.mxu0 0.0
    %919 = vmatpush2.msra.mxu0 0.0
    %920 = vmatprep.subr.mxu0 0.0
    %921 = vmatpush2.msra.mxu0 0.0
    %922 = vmatprep.subr.mxu0 0.0
    %923 = vmatpush2.msra.mxu0 0.0
    %924 = vmatprep.subr.mxu0 0.0
    %925 = vmatpush2.msra.mxu0 0.0
    %926 = vmatprep.mubr.f32.mxu0 0.0
    %927 = vmatmul.mubr.f32.gmra.mxu0 %v860
    %v928 = vpop.f32.mrf.mxu0
    %v929 = vadd.f32 0.0, %v928
    %v930 = vpop.f32.mrf.mxu0
    %931 = vdwg.mxu0
    %933 = vrot.lane.b32.xlu0 %v929, 16
    %v934 = vpop.permute.xlu0 %933
    %936 = vst.msk [vmem:[#allocation2 + $0x8] sm:$0xff] %vm600, %v934
    %v937 = vld [vmem:[#allocation2] sm:$0xff]
    %v938 = vld [vmem:[#allocation2 + $0x8] sm:$0xff]
    %v939 = vld [vmem:[#allocation7 + $0x96] sm:$0xff]
    %v940 = vld [vmem:[#allocation7 + $0x9e] sm:$0xff]
    %v941 = vld [vmem:[#allocation7 + $0xa6] sm:$0xff]
    %v942 = vld [vmem:[#allocation7 + $0xae] sm:$0xff]
    %v943 = vld [vmem:[#allocation7 + $0x117] sm:$0x1]
    %v944 = vlaneseq
    %v945 = vshrl.u32 %v944, 7
    %v946 = vsub.s32 0, %v945
    %v947 = vrot.slane %v943, %v946
    %v949 = vsel %vm133, %v937, 0
    %v952 = vsel %vm133, %v938, 0
    %954 = vmatprep.subr.mxu0 0.0
    %955 = vmatpush1.msra.mxu0 0.0
    %956 = vmatprep.subr.mxu0 0.0
    %957 = vmatpush1.msra.mxu0 0.0
    %958 = vmatprep.subr.mxu0 0.0
    %959 = vmatpush1.msra.mxu0 0.0
    %960 = vmatprep.subr.mxu0 0.0
    %961 = vmatpush1.msra.mxu0 0.0
    %962 = vmatprep.subr.mxu0 0.0
    %963 = vmatpush1.msra.mxu0 0.0
    %964 = vmatprep.subr.mxu0 0.0
    %965 = vmatpush1.msra.mxu0 0.0
    %966 = vmatprep.subr.mxu0 0.0
    %967 = vmatpush1.msra.mxu0 0.0
    %968 = vmatprep.subr.mxu0 0.0
    %969 = vmatpush1.msra.mxu0 0.0
    %970 = vmatprep.subr.mxu0 0.0
    %971 = vmatpush1.msra.mxu0 0.0
    %972 = vmatprep.subr.mxu0 0.0
    %973 = vmatpush1.msra.mxu0 0.0
    %974 = vmatprep.subr.mxu0 0.0
    %975 = vmatpush1.msra.mxu0 0.0
    %976 = vmatprep.subr.mxu0 0.0
    %977 = vmatpush1.msra.mxu0 0.0
    %978 = vmatprep.subr.mxu0 0.0
    %979 = vmatpush1.msra.mxu0 %v942
    %980 = vmatprep.subr.mxu0 0.0
    %981 = vmatpush1.msra.mxu0 %v941
    %982 = vmatprep.subr.mxu0 0.0
    %983 = vmatpush1.msra.mxu0 %v940
    %984 = vmatprep.subr.mxu0 0.0
    %985 = vmatpush1.msra.mxu0 %v939
    %986 = vmatprep.subr.mxu0 0.0
    %987 = vmatpush2.msra.mxu0 0.0
    %988 = vmatprep.subr.mxu0 0.0
    %989 = vmatpush2.msra.mxu0 0.0
    %990 = vmatprep.subr.mxu0 0.0
    %991 = vmatpush2.msra.mxu0 0.0
    %992 = vmatprep.subr.mxu0 0.0
    %993 = vmatpush2.msra.mxu0 0.0
    %994 = vmatprep.subr.mxu0 0.0
    %995 = vmatpush2.msra.mxu0 0.0
    %996 = vmatprep.subr.mxu0 0.0
    %997 = vmatpush2.msra.mxu0 0.0
    %998 = vmatprep.subr.mxu0 0.0
    %999 = vmatpush2.msra.mxu0 0.0
    %1000 = vmatprep.subr.mxu0 0.0
    %1001 = vmatpush2.msra.mxu0 0.0
    %1002 = vmatprep.subr.mxu0 0.0
    %1003 = vmatpush2.msra.mxu0 0.0
    %1004 = vmatprep.subr.mxu0 0.0
    %1005 = vmatpush2.msra.mxu0 0.0
    %1006 = vmatprep.subr.mxu0 0.0
    %1007 = vmatpush2.msra.mxu0 0.0
    %1008 = vmatprep.subr.mxu0 0.0
    %1009 = vmatpush2.msra.mxu0 0.0
    %1010 = vmatprep.subr.mxu0 0.0
    %1011 = vmatpush2.msra.mxu0 0.0
    %1012 = vmatprep.subr.mxu0 0.0
    %1013 = vmatpush2.msra.mxu0 0.0
    %1014 = vmatprep.subr.mxu0 0.0
    %1015 = vmatpush2.msra.mxu0 0.0
    %1016 = vmatprep.subr.mxu0 0.0
    %1017 = vmatpush2.msra.mxu0 0.0
    %1018 = vmatprep.mubr.f32.mxu0 0.0
    %1019 = vmatmul.mubr.f32.gmra.mxu0 %v949
    %v1020 = vpop.f32.mrf.mxu0
    %v1021 = vadd.f32 %v947, %v1020
    %v1022 = vpop.f32.mrf.mxu0
    %1023 = vmatprep.mubr.f32.mxu0 0.0
    %1024 = vmatmul.mubr.f32.gmra.mxu0 %v952
    %v1025 = vpop.f32.mrf.mxu0
    %v1026 = vadd.f32 %v947, %v1025
    %v1027 = vpop.f32.mrf.mxu0
    %1028 = vdwg.mxu0
    %v1029 = vadd.f32 %v1021, %v171
    %v1030 = vadd.f32 %v1026, %v172
    %v1031 = vld [vmem:[#allocation7 + $0x118] sm:$0x1]
    %v1032 = vld [vmem:[#allocation7 + $0x119] sm:$0x1]
    %v1033 = vsel %vm133, %v1029, 0.0
    %1034 = vadd.xlane.f32.xlu0 %v1033
    %v1035 = vpop.xlane.xlu0 %1034
    %v1036 = vsel %vm133, %v1030, 0.0
    %1037 = vadd.xlane.f32.xlu0 %v1036
    %v1038 = vpop.xlane.xlu0 %1037
    %v1039 = vmul.f32 %v1035, %v140
    %v1040 = vmul.f32 %v1038, %v140
    %v1041 = vsub.f32 %v1029, %v1039
    %v1042 = vsub.f32 %v1030, %v1040
    %v1043 = vmul.f32 %v1041, %v1041
    %v1044 = vmul.f32 %v1042, %v1042
    %v1045 = vsel %vm133, %v1043, 0.0
    %1046 = vadd.xlane.f32.xlu0 %v1045
    %v1047 = vpop.xlane.xlu0 %1046
    %v1048 = vsel %vm133, %v1044, 0.0
    %1049 = vadd.xlane.f32.xlu0 %v1048
    %v1050 = vpop.xlane.xlu0 %1049
    %v1051 = vmul.f32 %v1047, %v140
    %v1052 = vmul.f32 %v1050, %v140
    %v1053 = vadd.f32 %v1051, 1e-12
    %v1054 = vadd.f32 %v1052, 1e-12
    %v1055 = vrsqrt.pop %v1053
    %v1056 = vrsqrt.pop %v1054
    %v1057 = vmul.f32 %v1041, %v1055
    %v1058 = vmul.f32 %v1042, %v1056
    %v1059 = vlaneseq
    %v1060 = vshrl.u32 %v1059, 7
    %v1061 = vsub.s32 0, %v1060
    %v1062 = vrot.slane %v1031, %v1061
    %v1063 = vmul.f32 %v1057, %v1062
    %v1064 = vmul.f32 %v1058, %v1062
    %v1065 = vlaneseq
    %v1066 = vshrl.u32 %v1065, 7
    %v1067 = vsub.s32 0, %v1066
    %v1068 = vrot.slane %v1032, %v1067
    %v1069 = vadd.f32 %v1063, %v1068
    %v1070 = vadd.f32 %v1064, %v1068
    %v1071 = vld [vmem:[#allocation7 + $0xb6] sm:$0xff]
    %v1072 = vld [vmem:[#allocation7 + $0xbe] sm:$0xff]
    %v1073 = vld [vmem:[#allocation7 + $0xc6] sm:$0xff]
    %v1074 = vld [vmem:[#allocation7 + $0xce] sm:$0xff]
    %v1075 = vld [vmem:[#allocation7 + $0x11a] sm:$0x1]
    %v1076 = vlaneseq
    %v1077 = vshrl.u32 %v1076, 7
    %v1078 = vsub.s32 0, %v1077
    %v1079 = vrot.slane %v1075, %v1078
    %v1081 = vsel %vm133, %v1069, 0
    %v1084 = vsel %vm133, %v1070, 0
    %1086 = vmatprep.subr.mxu0 0.0
    %1087 = vmatpush1.msra.mxu0 0.0
    %1088 = vmatprep.subr.mxu0 0.0
    %1089 = vmatpush1.msra.mxu0 0.0
    %1090 = vmatprep.subr.mxu0 0.0
    %1091 = vmatpush1.msra.mxu0 0.0
    %1092 = vmatprep.subr.mxu0 0.0
    %1093 = vmatpush1.msra.mxu0 0.0
    %1094 = vmatprep.subr.mxu0 0.0
    %1095 = vmatpush1.msra.mxu0 0.0
    %1096 = vmatprep.subr.mxu0 0.0
    %1097 = vmatpush1.msra.mxu0 0.0
    %1098 = vmatprep.subr.mxu0 0.0
    %1099 = vmatpush1.msra.mxu0 0.0
    %1100 = vmatprep.subr.mxu0 0.0
    %1101 = vmatpush1.msra.mxu0 0.0
    %1102 = vmatprep.subr.mxu0 0.0
    %1103 = vmatpush1.msra.mxu0 0.0
    %1104 = vmatprep.subr.mxu0 0.0
    %1105 = vmatpush1.msra.mxu0 0.0
    %1106 = vmatprep.subr.mxu0 0.0
    %1107 = vmatpush1.msra.mxu0 0.0
    %1108 = vmatprep.subr.mxu0 0.0
    %1109 = vmatpush1.msra.mxu0 0.0
    %1110 = vmatprep.subr.mxu0 0.0
    %1111 = vmatpush1.msra.mxu0 %v1074
    %1112 = vmatprep.subr.mxu0 0.0
    %1113 = vmatpush1.msra.mxu0 %v1073
    %1114 = vmatprep.subr.mxu0 0.0
    %1115 = vmatpush1.msra.mxu0 %v1072
    %1116 = vmatprep.subr.mxu0 0.0
    %1117 = vmatpush1.msra.mxu0 %v1071
    %1118 = vmatprep.subr.mxu0 0.0
    %1119 = vmatpush2.msra.mxu0 0.0
    %1120 = vmatprep.subr.mxu0 0.0
    %1121 = vmatpush2.msra.mxu0 0.0
    %1122 = vmatprep.subr.mxu0 0.0
    %1123 = vmatpush2.msra.mxu0 0.0
    %1124 = vmatprep.subr.mxu0 0.0
    %1125 = vmatpush2.msra.mxu0 0.0
    %1126 = vmatprep.subr.mxu0 0.0
    %1127 = vmatpush2.msra.mxu0 0.0
    %1128 = vmatprep.subr.mxu0 0.0
    %1129 = vmatpush2.msra.mxu0 0.0
    %1130 = vmatprep.subr.mxu0 0.0
    %1131 = vmatpush2.msra.mxu0 0.0
    %1132 = vmatprep.subr.mxu0 0.0
    %1133 = vmatpush2.msra.mxu0 0.0
    %1134 = vmatprep.subr.mxu0 0.0
    %1135 = vmatpush2.msra.mxu0 0.0
    %1136 = vmatprep.subr.mxu0 0.0
    %1137 = vmatpush2.msra.mxu0 0.0
    %1138 = vmatprep.subr.mxu0 0.0
    %1139 = vmatpush2.msra.mxu0 0.0
    %1140 = vmatprep.subr.mxu0 0.0
    %1141 = vmatpush2.msra.mxu0 0.0
    %1142 = vmatprep.subr.mxu0 0.0
    %1143 = vmatpush2.msra.mxu0 0.0
    %1144 = vmatprep.subr.mxu0 0.0
    %1145 = vmatpush2.msra.mxu0 0.0
    %1146 = vmatprep.subr.mxu0 0.0
    %1147 = vmatpush2.msra.mxu0 0.0
    %1148 = vmatprep.subr.mxu0 0.0
    %1149 = vmatpush2.msra.mxu0 0.0
    %1150 = vmatprep.mubr.f32.mxu0 0.0
    %1151 = vmatmul.mubr.f32.gmra.mxu0 %v1081
    %v1152 = vpop.f32.mrf.mxu0
    %v1153 = vadd.f32 %v1079, %v1152
    %v1154 = vpop.f32.mrf.mxu0
    %1155 = vmatprep.mubr.f32.mxu0 0.0
    %1156 = vmatmul.mubr.f32.gmra.mxu0 %v1084
    %v1157 = vpop.f32.mrf.mxu0
    %v1158 = vadd.f32 %v1079, %v1157
    %v1159 = vpop.f32.mrf.mxu0
    %1160 = vdwg.mxu0
    %v1161 = vmul.f32 %v1153, 0.5
    %v1162 = vmul.f32 %v1158, 0.5
    %v1163 = vmul.f32 %v1153, 0.044715
    %v1164 = vmul.f32 %v1158, 0.044715
    %v1165 = vmul.f32 %v1163, %v1153
    %v1166 = vmul.f32 %v1164, %v1158
    %v1167 = vmul.f32 %v1165, %v1153
    %v1168 = vmul.f32 %v1166, %v1158
    %v1169 = vadd.f32 %v1153, %v1167
    %v1170 = vadd.f32 %v1158, %v1168
    %v1171 = vmul.f32 %v1169, 0.7978846
    %v1172 = vmul.f32 %v1170, 0.7978846
    %v1173 = vtanh.pop %v1171
    %v1174 = vtanh.pop %v1172
    %v1175 = vadd.f32 %v1173, 1.0
    %v1176 = vadd.f32 %v1174, 1.0
    %v1177 = vmul.f32 %v1161, %v1175
    %v1178 = vmul.f32 %v1162, %v1176
    %v1179 = vld [vmem:[#allocation7 + $0xd6] sm:$0xff]
    %v1180 = vld [vmem:[#allocation7 + $0xde] sm:$0xff]
    %v1181 = vld [vmem:[#allocation7 + $0xe6] sm:$0xff]
    %v1182 = vld [vmem:[#allocation7 + $0xee] sm:$0xff]
    %v1183 = vld [vmem:[#allocation7 + $0xf6] sm:$0xff]
    %v1184 = vld [vmem:[#allocation7 + $0xfe] sm:$0xff]
    %v1185 = vld [vmem:[#allocation7 + $0x106] sm:$0xff]
    %v1186 = vld [vmem:[#allocation7 + $0x10e] sm:$0xff]
    %v1187 = vld [vmem:[#allocation7 + $0x11b] sm:$0x1]
    %v1188 = vlaneseq
    %v1189 = vshrl.u32 %v1188, 7
    %v1190 = vsub.s32 0, %v1189
    %v1191 = vrot.slane %v1187, %v1190
    %vm1192 = vcmask 523264
    %v1194 = vsel %vm1192, %v1177, 0
    %v1197 = vsel %vm1192, %v1178, 0
    %1199 = vmatprep.subr.mxu0 0.0
    %1200 = vmatpush1.msra.mxu0 0.0
    %1201 = vmatprep.subr.mxu0 0.0
    %1202 = vmatpush1.msra.mxu0 0.0
    %1203 = vmatprep.subr.mxu0 0.0
    %1204 = vmatpush1.msra.mxu0 0.0
    %1205 = vmatprep.subr.mxu0 0.0
    %1206 = vmatpush1.msra.mxu0 0.0
    %1207 = vmatprep.subr.mxu0 0.0
    %1208 = vmatpush1.msra.mxu0 0.0
    %1209 = vmatprep.subr.mxu0 0.0
    %1210 = vmatpush1.msra.mxu0 0.0
    %1211 = vmatprep.subr.mxu0 0.0
    %1212 = vmatpush1.msra.mxu0 0.0
    %1213 = vmatprep.subr.mxu0 0.0
    %1214 = vmatpush1.msra.mxu0 0.0
    %1215 = vmatprep.subr.mxu0 0.0
    %1216 = vmatpush1.msra.mxu0 %v1186
    %1217 = vmatprep.subr.mxu0 0.0
    %1218 = vmatpush1.msra.mxu0 %v1185
    %1219 = vmatprep.subr.mxu0 0.0
    %1220 = vmatpush1.msra.mxu0 %v1184
    %1221 = vmatprep.subr.mxu0 0.0
    %1222 = vmatpush1.msra.mxu0 %v1183
    %1223 = vmatprep.subr.mxu0 0.0
    %1224 = vmatpush1.msra.mxu0 %v1182
    %1225 = vmatprep.subr.mxu0 0.0
    %1226 = vmatpush1.msra.mxu0 %v1181
    %1227 = vmatprep.subr.mxu0 0.0
    %1228 = vmatpush1.msra.mxu0 %v1180
    %1229 = vmatprep.subr.mxu0 0.0
    %1230 = vmatpush1.msra.mxu0 %v1179
    %1231 = vmatprep.subr.mxu0 0.0
    %1232 = vmatpush2.msra.mxu0 0.0
    %1233 = vmatprep.subr.mxu0 0.0
    %1234 = vmatpush2.msra.mxu0 0.0
    %1235 = vmatprep.subr.mxu0 0.0
    %1236 = vmatpush2.msra.mxu0 0.0
    %1237 = vmatprep.subr.mxu0 0.0
    %1238 = vmatpush2.msra.mxu0 0.0
    %1239 = vmatprep.subr.mxu0 0.0
    %1240 = vmatpush2.msra.mxu0 0.0
    %1241 = vmatprep.subr.mxu0 0.0
    %1242 = vmatpush2.msra.mxu0 0.0
    %1243 = vmatprep.subr.mxu0 0.0
    %1244 = vmatpush2.msra.mxu0 0.0
    %1245 = vmatprep.subr.mxu0 0.0
    %1246 = vmatpush2.msra.mxu0 0.0
    %1247 = vmatprep.subr.mxu0 0.0
    %1248 = vmatpush2.msra.mxu0 0.0
    %1249 = vmatprep.subr.mxu0 0.0
    %1250 = vmatpush2.msra.mxu0 0.0
    %1251 = vmatprep.subr.mxu0 0.0
    %1252 = vmatpush2.msra.mxu0 0.0
    %1253 = vmatprep.subr.mxu0 0.0
    %1254 = vmatpush2.msra.mxu0 0.0
    %1255 = vmatprep.subr.mxu0 0.0
    %1256 = vmatpush2.msra.mxu0 0.0
    %1257 = vmatprep.subr.mxu0 0.0
    %1258 = vmatpush2.msra.mxu0 0.0
    %1259 = vmatprep.subr.mxu0 0.0
    %1260 = vmatpush2.msra.mxu0 0.0
    %1261 = vmatprep.subr.mxu0 0.0
    %1262 = vmatpush2.msra.mxu0 0.0
    %1263 = vmatprep.mubr.f32.mxu0 0.0
    %1264 = vmatmul.mubr.f32.gmra.mxu0 %v1194
    %v1265 = vpop.f32.mrf.mxu0
    %v1266 = vadd.f32 %v1191, %v1265
    %v1267 = vpop.f32.mrf.mxu0
    %1268 = vmatprep.mubr.f32.mxu0 0.0
    %1269 = vmatmul.mubr.f32.gmra.mxu0 %v1197
    %v1270 = vpop.f32.mrf.mxu0
    %v1271 = vadd.f32 %v1191, %v1270
    %v1272 = vpop.f32.mrf.mxu0
    %1273 = vdwg.mxu0
    %v1274 = vadd.f32 %v1266, %v1069
    %v1275 = vadd.f32 %v1271, %v1070
    %v1276 = vld [vmem:[#allocation7 + $0x11c] sm:$0x1]
    %v1277 = vld [vmem:[#allocation7 + $0x11d] sm:$0x1]
    %v1278 = vsel %vm133, %v1274, 0.0
    %1279 = vadd.xlane.f32.xlu0 %v1278
    %v1280 = vpop.xlane.xlu0 %1279
    %v1281 = vsel %vm133, %v1275, 0.0
    %1282 = vadd.xlane.f32.xlu0 %v1281
    %v1283 = vpop.xlane.xlu0 %1282
    %v1284 = vmul.f32 %v1280, %v140
    %v1285 = vmul.f32 %v1283, %v140
    %v1286 = vsub.f32 %v1274, %v1284
    %v1287 = vsub.f32 %v1275, %v1285
    %v1288 = vmul.f32 %v1286, %v1286
    %v1289 = vmul.f32 %v1287, %v1287
    %v1290 = vsel %vm133, %v1288, 0.0
    %1291 = vadd.xlane.f32.xlu0 %v1290
    %v1292 = vpop.xlane.xlu0 %1291
    %v1293 = vsel %vm133, %v1289, 0.0
    %1294 = vadd.xlane.f32.xlu0 %v1293
    %v1295 = vpop.xlane.xlu0 %1294
    %v1296 = vmul.f32 %v1292, %v140
    %v1297 = vmul.f32 %v1295, %v140
    %v1298 = vadd.f32 %v1296, 1e-12
    %v1299 = vadd.f32 %v1297, 1e-12
    %v1300 = vrsqrt.pop %v1298
    %v1301 = vrsqrt.pop %v1299
    %v1302 = vmul.f32 %v1286, %v1300
    %v1303 = vmul.f32 %v1287, %v1301
    %v1304 = vlaneseq
    %v1305 = vshrl.u32 %v1304, 7
    %v1306 = vsub.s32 0, %v1305
    %v1307 = vrot.slane %v1276, %v1306
    %v1308 = vmul.f32 %v1302, %v1307
    %v1309 = vmul.f32 %v1303, %v1307
    %v1310 = vlaneseq
    %v1311 = vshrl.u32 %v1310, 7
    %v1312 = vsub.s32 0, %v1311
    %v1313 = vrot.slane %v1277, %v1312
    %v1314 = vadd.f32 %v1308, %v1313
    %v1315 = vadd.f32 %v1309, %v1313
    %v1316 = vld [vmem:[#allocation7 + $0x11e] sm:$0xff]
    %v1317 = vld [vmem:[#allocation7 + $0x126] sm:$0xff]
    %v1318 = vld [vmem:[#allocation7 + $0x12e] sm:$0xff]
    %v1319 = vld [vmem:[#allocation7 + $0x136] sm:$0xff]
    %v1320 = vld [vmem:[#allocation7 + $0x1be] sm:$0x1]
    %v1321 = vlaneseq
    %v1322 = vshrl.u32 %v1321, 7
    %v1323 = vsub.s32 0, %v1322
    %v1324 = vrot.slane %v1320, %v1323
    %v1326 = vsel %vm133, %v1314, 0
    %v1329 = vsel %vm133, %v1315, 0
    %1331 = vmatprep.subr.mxu0 0.0
    %1332 = vmatpush1.msra.mxu0 0.0
    %1333 = vmatprep.subr.mxu0 0.0
    %1334 = vmatpush1.msra.mxu0 0.0
    %1335 = vmatprep.subr.mxu0 0.0
    %1336 = vmatpush1.msra.mxu0 0.0
    %1337 = vmatprep.subr.mxu0 0.0
    %1338 = vmatpush1.msra.mxu0 0.0
    %1339 = vmatprep.subr.mxu0 0.0
    %1340 = vmatpush1.msra.mxu0 0.0
    %1341 = vmatprep.subr.mxu0 0.0
    %1342 = vmatpush1.msra.mxu0 0.0
    %1343 = vmatprep.subr.mxu0 0.0
    %1344 = vmatpush1.msra.mxu0 0.0
    %1345 = vmatprep.subr.mxu0 0.0
    %1346 = vmatpush1.msra.mxu0 0.0
    %1347 = vmatprep.subr.mxu0 0.0
    %1348 = vmatpush1.msra.mxu0 0.0
    %1349 = vmatprep.subr.mxu0 0.0
    %1350 = vmatpush1.msra.mxu0 0.0
    %1351 = vmatprep.subr.mxu0 0.0
    %1352 = vmatpush1.msra.mxu0 0.0
    %1353 = vmatprep.subr.mxu0 0.0
    %1354 = vmatpush1.msra.mxu0 0.0
    %1355 = vmatprep.subr.mxu0 0.0
    %1356 = vmatpush1.msra.mxu0 %v1319
    %1357 = vmatprep.subr.mxu0 0.0
    %1358 = vmatpush1.msra.mxu0 %v1318
    %1359 = vmatprep.subr.mxu0 0.0
    %1360 = vmatpush1.msra.mxu0 %v1317
    %1361 = vmatprep.subr.mxu0 0.0
    %1362 = vmatpush1.msra.mxu0 %v1316
    %1363 = vmatprep.subr.mxu0 0.0
    %1364 = vmatpush2.msra.mxu0 0.0
    %1365 = vmatprep.subr.mxu0 0.0
    %1366 = vmatpush2.msra.mxu0 0.0
    %1367 = vmatprep.subr.mxu0 0.0
    %1368 = vmatpush2.msra.mxu0 0.0
    %1369 = vmatprep.subr.mxu0 0.0
    %1370 = vmatpush2.msra.mxu0 0.0
    %1371 = vmatprep.subr.mxu0 0.0
    %1372 = vmatpush2.msra.mxu0 0.0
    %1373 = vmatprep.subr.mxu0 0.0
    %1374 = vmatpush2.msra.mxu0 0.0
    %1375 = vmatprep.subr.mxu0 0.0
    %1376 = vmatpush2.msra.mxu0 0.0
    %1377 = vmatprep.subr.mxu0 0.0
    %1378 = vmatpush2.msra.mxu0 0.0
    %1379 = vmatprep.subr.mxu0 0.0
    %1380 = vmatpush2.msra.mxu0 0.0
    %1381 = vmatprep.subr.mxu0 0.0
    %1382 = vmatpush2.msra.mxu0 0.0
    %1383 = vmatprep.subr.mxu0 0.0
    %1384 = vmatpush2.msra.mxu0 0.0
    %1385 = vmatprep.subr.mxu0 0.0
    %1386 = vmatpush2.msra.mxu0 0.0
    %1387 = vmatprep.subr.mxu0 0.0
    %1388 = vmatpush2.msra.mxu0 0.0
    %1389 = vmatprep.subr.mxu0 0.0
    %1390 = vmatpush2.msra.mxu0 0.0
    %1391 = vmatprep.subr.mxu0 0.0
    %1392 = vmatpush2.msra.mxu0 0.0
    %1393 = vmatprep.subr.mxu0 0.0
    %1394 = vmatpush2.msra.mxu0 0.0
    %1395 = vmatprep.mubr.f32.mxu0 0.0
    %1396 = vmatmul.mubr.f32.gmra.mxu0 %v1326
    %v1397 = vpop.f32.mrf.mxu0
    %v1398 = vadd.f32 %v1324, %v1397
    %v1399 = vpop.f32.mrf.mxu0
    %1400 = vmatprep.mubr.f32.mxu0 0.0
    %1401 = vmatmul.mubr.f32.gmra.mxu0 %v1329
    %v1402 = vpop.f32.mrf.mxu0
    %v1403 = vadd.f32 %v1324, %v1402
    %v1404 = vpop.f32.mrf.mxu0
    %1405 = vdwg.mxu0
    %1407 = vrot.lane.b32.xlu0 %v1398, 96
    %v1408 = vpop.permute.xlu0 %1407
    %v1409 = vsel %vm267, %v1398, 0
    %v1411 = vsel %vm267, %v1408, 0
    %1413 = vmatprep.subr.mxu0 0.0
    %1414 = vmatpush1.xpose.msra.mxu0 0.0
    %1415 = vmatprep.subr.mxu0 0.0
    %1416 = vmatpush1.xpose.msra.mxu0 0.0
    %1417 = vmatprep.subr.mxu0 0.0
    %1418 = vmatpush1.xpose.msra.mxu0 0.0
    %1419 = vmatprep.subr.mxu0 0.0
    %1420 = vmatpush1.xpose.msra.mxu0 0.0
    %1421 = vmatprep.subr.mxu0 0.0
    %1422 = vmatpush1.xpose.msra.mxu0 0.0
    %1423 = vmatprep.subr.mxu0 0.0
    %1424 = vmatpush1.xpose.msra.mxu0 0.0
    %1425 = vmatprep.subr.mxu0 0.0
    %1426 = vmatpush1.xpose.msra.mxu0 0.0
    %1427 = vmatprep.subr.mxu0 0.0
    %1428 = vmatpush1.xpose.msra.mxu0 0.0
    %1429 = vmatprep.subr.mxu0 0.0
    %1430 = vmatpush1.xpose.msra.mxu0 0.0
    %1431 = vmatprep.subr.mxu0 0.0
    %1432 = vmatpush1.xpose.msra.mxu0 0.0
    %1433 = vmatprep.subr.mxu0 0.0
    %1434 = vmatpush1.xpose.msra.mxu0 0.0
    %1435 = vmatprep.subr.mxu0 0.0
    %1436 = vmatpush1.xpose.msra.mxu0 0.0
    %1437 = vmatprep.subr.mxu0 0.0
    %1438 = vmatpush1.xpose.msra.mxu0 0.0
    %1439 = vmatprep.subr.mxu0 0.0
    %1440 = vmatpush1.xpose.msra.mxu0 0.0
    %1441 = vmatprep.subr.mxu0 0.0
    %1442 = vmatpush1.xpose.msra.mxu0 0.0
    %1443 = vmatprep.subr.mxu0 0.0
    %1444 = vmatpush1.xpose.msra.mxu0 %v1411
    %1445 = vmatprep.subr.mxu0 0.0
    %1446 = vmatpush2.xpose.msra.mxu0 0.0
    %1447 = vmatprep.subr.mxu0 0.0
    %1448 = vmatpush2.xpose.msra.mxu0 0.0
    %1449 = vmatprep.subr.mxu0 0.0
    %1450 = vmatpush2.xpose.msra.mxu0 0.0
    %1451 = vmatprep.subr.mxu0 0.0
    %1452 = vmatpush2.xpose.msra.mxu0 0.0
    %1453 = vmatprep.subr.mxu0 0.0
    %1454 = vmatpush2.xpose.msra.mxu0 0.0
    %1455 = vmatprep.subr.mxu0 0.0
    %1456 = vmatpush2.xpose.msra.mxu0 0.0
    %1457 = vmatprep.subr.mxu0 0.0
    %1458 = vmatpush2.xpose.msra.mxu0 0.0
    %1459 = vmatprep.subr.mxu0 0.0
    %1460 = vmatpush2.xpose.msra.mxu0 0.0
    %1461 = vmatprep.subr.mxu0 0.0
    %1462 = vmatpush2.xpose.msra.mxu0 0.0
    %1463 = vmatprep.subr.mxu0 0.0
    %1464 = vmatpush2.xpose.msra.mxu0 0.0
    %1465 = vmatprep.subr.mxu0 0.0
    %1466 = vmatpush2.xpose.msra.mxu0 0.0
    %1467 = vmatprep.subr.mxu0 0.0
    %1468 = vmatpush2.xpose.msra.mxu0 0.0
    %1469 = vmatprep.subr.mxu0 0.0
    %1470 = vmatpush2.xpose.msra.mxu0 0.0
    %1471 = vmatprep.subr.mxu0 0.0
    %1472 = vmatpush2.xpose.msra.mxu0 0.0
    %1473 = vmatprep.subr.mxu0 0.0
    %1474 = vmatpush2.xpose.msra.mxu0 0.0
    %1475 = vmatprep.subr.mxu0 0.0
    %1476 = vmatpush2.xpose.msra.mxu0 0.0
    %1477 = vmatprep.mubr.f32.mxu0 0.0
    %1478 = vmatmul.mubr.f32.gmra.mxu0 %v1409
    %v1479 = vpop.f32.mrf.mxu0
    %v1480 = vadd.f32 0.0, %v1479
    %v1481 = vpop.f32.mrf.mxu0
    %1482 = vdwg.mxu0
    %v1483 = vmul.f32 %v1480, 0.25
    %v1484 = vadd.f32 %v1483, %v346
    %v1485 = vmul.f32 %v1484, 1.442695
    %v1486 = vpow.pop %v1485
    %v1487 = vsel %vm350, %v1486, 0.0
    %1488 = vadd.xlane.f32.xlu0 %v1487
    %v1489 = vpop.xlane.xlu0 %1488
    %v1490 = vrcp.pop %v1489
    %v1491 = vmul.f32 %v1486, %v1490
    %1492 = vrot.lane.b32.xlu0 %v1398, 64
    %v1493 = vpop.permute.xlu0 %1492
    %v1496 = vsel %vm350, %v1491, 0
    %1498 = vmatprep.subr.mxu0 0.0
    %1499 = vmatpush1.msra.mxu0 0.0
    %1500 = vmatprep.subr.mxu0 0.0
    %1501 = vmatpush1.msra.mxu0 0.0
    %1502 = vmatprep.subr.mxu0 0.0
    %1503 = vmatpush1.msra.mxu0 0.0
    %1504 = vmatprep.subr.mxu0 0.0
    %1505 = vmatpush1.msra.mxu0 0.0
    %1506 = vmatprep.subr.mxu0 0.0
    %1507 = vmatpush1.msra.mxu0 0.0
    %1508 = vmatprep.subr.mxu0 0.0
    %1509 = vmatpush1.msra.mxu0 0.0
    %1510 = vmatprep.subr.mxu0 0.0
    %1511 = vmatpush1.msra.mxu0 0.0
    %1512 = vmatprep.subr.mxu0 0.0
    %1513 = vmatpush1.msra.mxu0 0.0
    %1514 = vmatprep.subr.mxu0 0.0
    %1515 = vmatpush1.msra.mxu0 0.0
    %1516 = vmatprep.subr.mxu0 0.0
    %1517 = vmatpush1.msra.mxu0 0.0
    %1518 = vmatprep.subr.mxu0 0.0
    %1519 = vmatpush1.msra.mxu0 0.0
    %1520 = vmatprep.subr.mxu0 0.0
    %1521 = vmatpush1.msra.mxu0 0.0
    %1522 = vmatprep.subr.mxu0 0.0
    %1523 = vmatpush1.msra.mxu0 0.0
    %1524 = vmatprep.subr.mxu0 0.0
    %1525 = vmatpush1.msra.mxu0 0.0
    %1526 = vmatprep.subr.mxu0 0.0
    %1527 = vmatpush1.msra.mxu0 0.0
    %1528 = vmatprep.subr.mxu0 0.0
    %1529 = vmatpush1.msra.mxu0 %v1493
    %1530 = vmatprep.subr.mxu0 0.0
    %1531 = vmatpush2.msra.mxu0 0.0
    %1532 = vmatprep.subr.mxu0 0.0
    %1533 = vmatpush2.msra.mxu0 0.0
    %1534 = vmatprep.subr.mxu0 0.0
    %1535 = vmatpush2.msra.mxu0 0.0
    %1536 = vmatprep.subr.mxu0 0.0
    %1537 = vmatpush2.msra.mxu0 0.0
    %1538 = vmatprep.subr.mxu0 0.0
    %1539 = vmatpush2.msra.mxu0 0.0
    %1540 = vmatprep.subr.mxu0 0.0
    %1541 = vmatpush2.msra.mxu0 0.0
    %1542 = vmatprep.subr.mxu0 0.0
    %1543 = vmatpush2.msra.mxu0 0.0
    %1544 = vmatprep.subr.mxu0 0.0
    %1545 = vmatpush2.msra.mxu0 0.0
    %1546 = vmatprep.subr.mxu0 0.0
    %1547 = vmatpush2.msra.mxu0 0.0
    %1548 = vmatprep.subr.mxu0 0.0
    %1549 = vmatpush2.msra.mxu0 0.0
    %1550 = vmatprep.subr.mxu0 0.0
    %1551 = vmatpush2.msra.mxu0 0.0
    %1552 = vmatprep.subr.mxu0 0.0
    %1553 = vmatpush2.msra.mxu0 0.0
    %1554 = vmatprep.subr.mxu0 0.0
    %1555 = vmatpush2.msra.mxu0 0.0
    %1556 = vmatprep.subr.mxu0 0.0
    %1557 = vmatpush2.msra.mxu0 0.0
    %1558 = vmatprep.subr.mxu0 0.0
    %1559 = vmatpush2.msra.mxu0 0.0
    %1560 = vmatprep.subr.mxu0 0.0
    %1561 = vmatpush2.msra.mxu0 0.0
    %1562 = vmatprep.mubr.f32.mxu0 0.0
    %1563 = vmatmul.mubr.f32.gmra.mxu0 %v1496
    %v1564 = vpop.f32.mrf.mxu0
    %v1565 = vadd.f32 0.0, %v1564
    %v1566 = vpop.f32.mrf.mxu0
    %1567 = vdwg.mxu0
    %1568 = vst.msk [vmem:[#allocation2] sm:$0xff] %vm267, %v1565
    %1569 = vrot.lane.b32.xlu0 %v1398, 112
    %v1570 = vpop.permute.xlu0 %1569
    %1571 = vrot.lane.b32.xlu0 %v1398, 80
    %v1572 = vpop.permute.xlu0 %1571
    %v1573 = vsel %vm267, %v1570, 0
    %v1575 = vsel %vm267, %v1572, 0
    %1577 = vmatprep.subr.mxu0 0.0
    %1578 = vmatpush1.xpose.msra.mxu0 0.0
    %1579 = vmatprep.subr.mxu0 0.0
    %1580 = vmatpush1.xpose.msra.mxu0 0.0
    %1581 = vmatprep.subr.mxu0 0.0
    %1582 = vmatpush1.xpose.msra.mxu0 0.0
    %1583 = vmatprep.subr.mxu0 0.0
    %1584 = vmatpush1.xpose.msra.mxu0 0.0
    %1585 = vmatprep.subr.mxu0 0.0
    %1586 = vmatpush1.xpose.msra.mxu0 0.0
    %1587 = vmatprep.subr.mxu0 0.0
    %1588 = vmatpush1.xpose.msra.mxu0 0.0
    %1589 = vmatprep.subr.mxu0 0.0
    %1590 = vmatpush1.xpose.msra.mxu0 0.0
    %1591 = vmatprep.subr.mxu0 0.0
    %1592 = vmatpush1.xpose.msra.mxu0 0.0
    %1593 = vmatprep.subr.mxu0 0.0
    %1594 = vmatpush1.xpose.msra.mxu0 0.0
    %1595 = vmatprep.subr.mxu0 0.0
    %1596 = vmatpush1.xpose.msra.mxu0 0.0
    %1597 = vmatprep.subr.mxu0 0.0
    %1598 = vmatpush1.xpose.msra.mxu0 0.0
    %1599 = vmatprep.subr.mxu0 0.0
    %1600 = vmatpush1.xpose.msra.mxu0 0.0
    %1601 = vmatprep.subr.mxu0 0.0
    %1602 = vmatpush1.xpose.msra.mxu0 0.0
    %1603 = vmatprep.subr.mxu0 0.0
    %1604 = vmatpush1.xpose.msra.mxu0 0.0
    %1605 = vmatprep.subr.mxu0 0.0
    %1606 = vmatpush1.xpose.msra.mxu0 0.0
    %1607 = vmatprep.subr.mxu0 0.0
    %1608 = vmatpush1.xpose.msra.mxu0 %v1575
    %1609 = vmatprep.subr.mxu0 0.0
    %1610 = vmatpush2.xpose.msra.mxu0 0.0
    %1611 = vmatprep.subr.mxu0 0.0
    %1612 = vmatpush2.xpose.msra.mxu0 0.0
    %1613 = vmatprep.subr.mxu0 0.0
    %1614 = vmatpush2.xpose.msra.mxu0 0.0
    %1615 = vmatprep.subr.mxu0 0.0
    %1616 = vmatpush2.xpose.msra.mxu0 0.0
    %1617 = vmatprep.subr.mxu0 0.0
    %1618 = vmatpush2.xpose.msra.mxu0 0.0
    %1619 = vmatprep.subr.mxu0 0.0
    %1620 = vmatpush2.xpose.msra.mxu0 0.0
    %1621 = vmatprep.subr.mxu0 0.0
    %1622 = vmatpush2.xpose.msra.mxu0 0.0
    %1623 = vmatprep.subr.mxu0 0.0
    %1624 = vmatpush2.xpose.msra.mxu0 0.0
    %1625 = vmatprep.subr.mxu0 0.0
    %1626 = vmatpush2.xpose.msra.mxu0 0.0
    %1627 = vmatprep.subr.mxu0 0.0
    %1628 = vmatpush2.xpose.msra.mxu0 0.0
    %1629 = vmatprep.subr.mxu0 0.0
    %1630 = vmatpush2.xpose.msra.mxu0 0.0
    %1631 = vmatprep.subr.mxu0 0.0
    %1632 = vmatpush2.xpose.msra.mxu0 0.0
    %1633 = vmatprep.subr.mxu0 0.0
    %1634 = vmatpush2.xpose.msra.mxu0 0.0
    %1635 = vmatprep.subr.mxu0 0.0
    %1636 = vmatpush2.xpose.msra.mxu0 0.0
    %1637 = vmatprep.subr.mxu0 0.0
    %1638 = vmatpush2.xpose.msra.mxu0 0.0
    %1639 = vmatprep.subr.mxu0 0.0
    %1640 = vmatpush2.xpose.msra.mxu0 0.0
    %1641 = vmatprep.mubr.f32.mxu0 0.0
    %1642 = vmatmul.mubr.f32.gmra.mxu0 %v1573
    %v1643 = vpop.f32.mrf.mxu0
    %v1644 = vadd.f32 0.0, %v1643
    %v1645 = vpop.f32.mrf.mxu0
    %1646 = vdwg.mxu0
    %v1647 = vmul.f32 %v1644, 0.25
    %v1648 = vadd.f32 %v1647, %v346
    %v1649 = vmul.f32 %v1648, 1.442695
    %v1650 = vpow.pop %v1649
    %v1651 = vsel %vm350, %v1650, 0.0
    %1652 = vadd.xlane.f32.xlu0 %v1651
    %v1653 = vpop.xlane.xlu0 %1652
    %v1654 = vrcp.pop %v1653
    %v1655 = vmul.f32 %v1650, %v1654
    %1656 = vrot.lane.b32.xlu0 %v1398, 48
    %v1657 = vpop.permute.xlu0 %1656
    %v1660 = vsel %vm350, %v1655, 0
    %1662 = vmatprep.subr.mxu0 0.0
    %1663 = vmatpush1.msra.mxu0 0.0
    %1664 = vmatprep.subr.mxu0 0.0
    %1665 = vmatpush1.msra.mxu0 0.0
    %1666 = vmatprep.subr.mxu0 0.0
    %1667 = vmatpush1.msra.mxu0 0.0
    %1668 = vmatprep.subr.mxu0 0.0
    %1669 = vmatpush1.msra.mxu0 0.0
    %1670 = vmatprep.subr.mxu0 0.0
    %1671 = vmatpush1.msra.mxu0 0.0
    %1672 = vmatprep.subr.mxu0 0.0
    %1673 = vmatpush1.msra.mxu0 0.0
    %1674 = vmatprep.subr.mxu0 0.0
    %1675 = vmatpush1.msra.mxu0 0.0
    %1676 = vmatprep.subr.mxu0 0.0
    %1677 = vmatpush1.msra.mxu0 0.0
    %1678 = vmatprep.subr.mxu0 0.0
    %1679 = vmatpush1.msra.mxu0 0.0
    %1680 = vmatprep.subr.mxu0 0.0
    %1681 = vmatpush1.msra.mxu0 0.0
    %1682 = vmatprep.subr.mxu0 0.0
    %1683 = vmatpush1.msra.mxu0 0.0
    %1684 = vmatprep.subr.mxu0 0.0
    %1685 = vmatpush1.msra.mxu0 0.0
    %1686 = vmatprep.subr.mxu0 0.0
    %1687 = vmatpush1.msra.mxu0 0.0
    %1688 = vmatprep.subr.mxu0 0.0
    %1689 = vmatpush1.msra.mxu0 0.0
    %1690 = vmatprep.subr.mxu0 0.0
    %1691 = vmatpush1.msra.mxu0 0.0
    %1692 = vmatprep.subr.mxu0 0.0
    %1693 = vmatpush1.msra.mxu0 %v1657
    %1694 = vmatprep.subr.mxu0 0.0
    %1695 = vmatpush2.msra.mxu0 0.0
    %1696 = vmatprep.subr.mxu0 0.0
    %1697 = vmatpush2.msra.mxu0 0.0
    %1698 = vmatprep.subr.mxu0 0.0
    %1699 = vmatpush2.msra.mxu0 0.0
    %1700 = vmatprep.subr.mxu0 0.0
    %1701 = vmatpush2.msra.mxu0 0.0
    %1702 = vmatprep.subr.mxu0 0.0
    %1703 = vmatpush2.msra.mxu0 0.0
    %1704 = vmatprep.subr.mxu0 0.0
    %1705 = vmatpush2.msra.mxu0 0.0
    %1706 = vmatprep.subr.mxu0 0.0
    %1707 = vmatpush2.msra.mxu0 0.0
    %1708 = vmatprep.subr.mxu0 0.0
    %1709 = vmatpush2.msra.mxu0 0.0
    %1710 = vmatprep.subr.mxu0 0.0
    %1711 = vmatpush2.msra.mxu0 0.0
    %1712 = vmatprep.subr.mxu0 0.0
    %1713 = vmatpush2.msra.mxu0 0.0
    %1714 = vmatprep.subr.mxu0 0.0
    %1715 = vmatpush2.msra.mxu0 0.0
    %1716 = vmatprep.subr.mxu0 0.0
    %1717 = vmatpush2.msra.mxu0 0.0
    %1718 = vmatprep.subr.mxu0 0.0
    %1719 = vmatpush2.msra.mxu0 0.0
    %1720 = vmatprep.subr.mxu0 0.0
    %1721 = vmatpush2.msra.mxu0 0.0
    %1722 = vmatprep.subr.mxu0 0.0
    %1723 = vmatpush2.msra.mxu0 0.0
    %1724 = vmatprep.subr.mxu0 0.0
    %1725 = vmatpush2.msra.mxu0 0.0
    %1726 = vmatprep.mubr.f32.mxu0 0.0
    %1727 = vmatmul.mubr.f32.gmra.mxu0 %v1660
    %v1728 = vpop.f32.mrf.mxu0
    %v1729 = vadd.f32 0.0, %v1728
    %v1730 = vpop.f32.mrf.mxu0
    %1731 = vdwg.mxu0
    %1733 = vrot.lane.b32.xlu0 %v1729, 16
    %v1734 = vpop.permute.xlu0 %1733
    %1736 = vst.msk [vmem:[#allocation2] sm:$0xff] %vm600, %v1734
    %1738 = vrot.lane.b32.xlu0 %v1403, 96
    %v1739 = vpop.permute.xlu0 %1738
    %v1740 = vsel %vm267, %v1403, 0
    %v1742 = vsel %vm267, %v1739, 0
    %1744 = vmatprep.subr.mxu0 0.0
    %1745 = vmatpush1.xpose.msra.mxu0 0.0
    %1746 = vmatprep.subr.mxu0 0.0
    %1747 = vmatpush1.xpose.msra.mxu0 0.0
    %1748 = vmatprep.subr.mxu0 0.0
    %1749 = vmatpush1.xpose.msra.mxu0 0.0
    %1750 = vmatprep.subr.mxu0 0.0
    %1751 = vmatpush1.xpose.msra.mxu0 0.0
    %1752 = vmatprep.subr.mxu0 0.0
    %1753 = vmatpush1.xpose.msra.mxu0 0.0
    %1754 = vmatprep.subr.mxu0 0.0
    %1755 = vmatpush1.xpose.msra.mxu0 0.0
    %1756 = vmatprep.subr.mxu0 0.0
    %1757 = vmatpush1.xpose.msra.mxu0 0.0
    %1758 = vmatprep.subr.mxu0 0.0
    %1759 = vmatpush1.xpose.msra.mxu0 0.0
    %1760 = vmatprep.subr.mxu0 0.0
    %1761 = vmatpush1.xpose.msra.mxu0 0.0
    %1762 = vmatprep.subr.mxu0 0.0
    %1763 = vmatpush1.xpose.msra.mxu0 0.0
    %1764 = vmatprep.subr.mxu0 0.0
    %1765 = vmatpush1.xpose.msra.mxu0 0.0
    %1766 = vmatprep.subr.mxu0 0.0
    %1767 = vmatpush1.xpose.msra.mxu0 0.0
    %1768 = vmatprep.subr.mxu0 0.0
    %1769 = vmatpush1.xpose.msra.mxu0 0.0
    %1770 = vmatprep.subr.mxu0 0.0
    %1771 = vmatpush1.xpose.msra.mxu0 0.0
    %1772 = vmatprep.subr.mxu0 0.0
    %1773 = vmatpush1.xpose.msra.mxu0 0.0
    %1774 = vmatprep.subr.mxu0 0.0
    %1775 = vmatpush1.xpose.msra.mxu0 %v1742
    %1776 = vmatprep.subr.mxu0 0.0
    %1777 = vmatpush2.xpose.msra.mxu0 0.0
    %1778 = vmatprep.subr.mxu0 0.0
    %1779 = vmatpush2.xpose.msra.mxu0 0.0
    %1780 = vmatprep.subr.mxu0 0.0
    %1781 = vmatpush2.xpose.msra.mxu0 0.0
    %1782 = vmatprep.subr.mxu0 0.0
    %1783 = vmatpush2.xpose.msra.mxu0 0.0
    %1784 = vmatprep.subr.mxu0 0.0
    %1785 = vmatpush2.xpose.msra.mxu0 0.0
    %1786 = vmatprep.subr.mxu0 0.0
    %1787 = vmatpush2.xpose.msra.mxu0 0.0
    %1788 = vmatprep.subr.mxu0 0.0
    %1789 = vmatpush2.xpose.msra.mxu0 0.0
    %1790 = vmatprep.subr.mxu0 0.0
    %1791 = vmatpush2.xpose.msra.mxu0 0.0
    %1792 = vmatprep.subr.mxu0 0.0
    %1793 = vmatpush2.xpose.msra.mxu0 0.0
    %1794 = vmatprep.subr.mxu0 0.0
    %1795 = vmatpush2.xpose.msra.mxu0 0.0
    %1796 = vmatprep.subr.mxu0 0.0
    %1797 = vmatpush2.xpose.msra.mxu0 0.0
    %1798 = vmatprep.subr.mxu0 0.0
    %1799 = vmatpush2.xpose.msra.mxu0 0.0
    %1800 = vmatprep.subr.mxu0 0.0
    %1801 = vmatpush2.xpose.msra.mxu0 0.0
    %1802 = vmatprep.subr.mxu0 0.0
    %1803 = vmatpush2.xpose.msra.mxu0 0.0
    %1804 = vmatprep.subr.mxu0 0.0
    %1805 = vmatpush2.xpose.msra.mxu0 0.0
    %1806 = vmatprep.subr.mxu0 0.0
    %1807 = vmatpush2.xpose.msra.mxu0 0.0
    %1808 = vmatprep.mubr.f32.mxu0 0.0
    %1809 = vmatmul.mubr.f32.gmra.mxu0 %v1740
    %v1810 = vpop.f32.mrf.mxu0
    %v1811 = vadd.f32 0.0, %v1810
    %v1812 = vpop.f32.mrf.mxu0
    %1813 = vdwg.mxu0
    %v1814 = vmul.f32 %v1811, 0.25
    %v1815 = vadd.f32 %v1814, %v683
    %v1816 = vmul.f32 %v1815, 1.442695
    %v1817 = vpow.pop %v1816
    %v1818 = vsel %vm350, %v1817, 0.0
    %1819 = vadd.xlane.f32.xlu0 %v1818
    %v1820 = vpop.xlane.xlu0 %1819
    %v1821 = vrcp.pop %v1820
    %v1822 = vmul.f32 %v1817, %v1821
    %1823 = vrot.lane.b32.xlu0 %v1403, 64
    %v1824 = vpop.permute.xlu0 %1823
    %v1827 = vsel %vm350, %v1822, 0
    %1829 = vmatprep.subr.mxu0 0.0
    %1830 = vmatpush1.msra.mxu0 0.0
    %1831 = vmatprep.subr.mxu0 0.0
    %1832 = vmatpush1.msra.mxu0 0.0
    %1833 = vmatprep.subr.mxu0 0.0
    %1834 = vmatpush1.msra.mxu0 0.0
    %1835 = vmatprep.subr.mxu0 0.0
    %1836 = vmatpush1.msra.mxu0 0.0
    %1837 = vmatprep.subr.mxu0 0.0
    %1838 = vmatpush1.msra.mxu0 0.0
    %1839 = vmatprep.subr.mxu0 0.0
    %1840 = vmatpush1.msra.mxu0 0.0
    %1841 = vmatprep.subr.mxu0 0.0
    %1842 = vmatpush1.msra.mxu0 0.0
    %1843 = vmatprep.subr.mxu0 0.0
    %1844 = vmatpush1.msra.mxu0 0.0
    %1845 = vmatprep.subr.mxu0 0.0
    %1846 = vmatpush1.msra.mxu0 0.0
    %1847 = vmatprep.subr.mxu0 0.0
    %1848 = vmatpush1.msra.mxu0 0.0
    %1849 = vmatprep.subr.mxu0 0.0
    %1850 = vmatpush1.msra.mxu0 0.0
    %1851 = vmatprep.subr.mxu0 0.0
    %1852 = vmatpush1.msra.mxu0 0.0
    %1853 = vmatprep.subr.mxu0 0.0
    %1854 = vmatpush1.msra.mxu0 0.0
    %1855 = vmatprep.subr.mxu0 0.0
    %1856 = vmatpush1.msra.mxu0 0.0
    %1857 = vmatprep.subr.mxu0 0.0
    %1858 = vmatpush1.msra.mxu0 0.0
    %1859 = vmatprep.subr.mxu0 0.0
    %1860 = vmatpush1.msra.mxu0 %v1824
    %1861 = vmatprep.subr.mxu0 0.0
    %1862 = vmatpush2.msra.mxu0 0.0
    %1863 = vmatprep.subr.mxu0 0.0
    %1864 = vmatpush2.msra.mxu0 0.0
    %1865 = vmatprep.subr.mxu0 0.0
    %1866 = vmatpush2.msra.mxu0 0.0
    %1867 = vmatprep.subr.mxu0 0.0
    %1868 = vmatpush2.msra.mxu0 0.0
    %1869 = vmatprep.subr.mxu0 0.0
    %1870 = vmatpush2.msra.mxu0 0.0
    %1871 = vmatprep.subr.mxu0 0.0
    %1872 = vmatpush2.msra.mxu0 0.0
    %1873 = vmatprep.subr.mxu0 0.0
    %1874 = vmatpush2.msra.mxu0 0.0
    %1875 = vmatprep.subr.mxu0 0.0
    %1876 = vmatpush2.msra.mxu0 0.0
    %1877 = vmatprep.subr.mxu0 0.0
    %1878 = vmatpush2.msra.mxu0 0.0
    %1879 = vmatprep.subr.mxu0 0.0
    %1880 = vmatpush2.msra.mxu0 0.0
    %1881 = vmatprep.subr.mxu0 0.0
    %1882 = vmatpush2.msra.mxu0 0.0
    %1883 = vmatprep.subr.mxu0 0.0
    %1884 = vmatpush2.msra.mxu0 0.0
    %1885 = vmatprep.subr.mxu0 0.0
    %1886 = vmatpush2.msra.mxu0 0.0
    %1887 = vmatprep.subr.mxu0 0.0
    %1888 = vmatpush2.msra.mxu0 0.0
    %1889 = vmatprep.subr.mxu0 0.0
    %1890 = vmatpush2.msra.mxu0 0.0
    %1891 = vmatprep.subr.mxu0 0.0
    %1892 = vmatpush2.msra.mxu0 0.0
    %1893 = vmatprep.mubr.f32.mxu0 0.0
    %1894 = vmatmul.mubr.f32.gmra.mxu0 %v1827
    %v1895 = vpop.f32.mrf.mxu0
    %v1896 = vadd.f32 0.0, %v1895
    %v1897 = vpop.f32.mrf.mxu0
    %1898 = vdwg.mxu0
    %1899 = vst.msk [vmem:[#allocation2 + $0x8] sm:$0xff] %vm267, %v1896
    %1900 = vrot.lane.b32.xlu0 %v1403, 112
    %v1901 = vpop.permute.xlu0 %1900
    %1902 = vrot.lane.b32.xlu0 %v1403, 80
    %v1903 = vpop.permute.xlu0 %1902
    %v1904 = vsel %vm267, %v1901, 0
    %v1906 = vsel %vm267, %v1903, 0
    %1908 = vmatprep.subr.mxu0 0.0
    %1909 = vmatpush1.xpose.msra.mxu0 0.0
    %1910 = vmatprep.subr.mxu0 0.0
    %1911 = vmatpush1.xpose.msra.mxu0 0.0
    %1912 = vmatprep.subr.mxu0 0.0
    %1913 = vmatpush1.xpose.msra.mxu0 0.0
    %1914 = vmatprep.subr.mxu0 0.0
    %1915 = vmatpush1.xpose.msra.mxu0 0.0
    %1916 = vmatprep.subr.mxu0 0.0
    %1917 = vmatpush1.xpose.msra.mxu0 0.0
    %1918 = vmatprep.subr.mxu0 0.0
    %1919 = vmatpush1.xpose.msra.mxu0 0.0
    %1920 = vmatprep.subr.mxu0 0.0
    %1921 = vmatpush1.xpose.msra.mxu0 0.0
    %1922 = vmatprep.subr.mxu0 0.0
    %1923 = vmatpush1.xpose.msra.mxu0 0.0
    %1924 = vmatprep.subr.mxu0 0.0
    %1925 = vmatpush1.xpose.msra.mxu0 0.0
    %1926 = vmatprep.subr.mxu0 0.0
    %1927 = vmatpush1.xpose.msra.mxu0 0.0
    %1928 = vmatprep.subr.mxu0 0.0
    %1929 = vmatpush1.xpose.msra.mxu0 0.0
    %1930 = vmatprep.subr.mxu0 0.0
    %1931 = vmatpush1.xpose.msra.mxu0 0.0
    %1932 = vmatprep.subr.mxu0 0.0
    %1933 = vmatpush1.xpose.msra.mxu0 0.0
    %1934 = vmatprep.subr.mxu0 0.0
    %1935 = vmatpush1.xpose.msra.mxu0 0.0
    %1936 = vmatprep.subr.mxu0 0.0
    %1937 = vmatpush1.xpose.msra.mxu0 0.0
    %1938 = vmatprep.subr.mxu0 0.0
    %1939 = vmatpush1.xpose.msra.mxu0 %v1906
    %1940 = vmatprep.subr.mxu0 0.0
    %1941 = vmatpush2.xpose.msra.mxu0 0.0
    %1942 = vmatprep.subr.mxu0 0.0
    %1943 = vmatpush2.xpose.msra.mxu0 0.0
    %1944 = vmatprep.subr.mxu0 0.0
    %1945 = vmatpush2.xpose.msra.mxu0 0.0
    %1946 = vmatprep.subr.mxu0 0.0
    %1947 = vmatpush2.xpose.msra.mxu0 0.0
    %1948 = vmatprep.subr.mxu0 0.0
    %1949 = vmatpush2.xpose.msra.mxu0 0.0
    %1950 = vmatprep.subr.mxu0 0.0
    %1951 = vmatpush2.xpose.msra.mxu0 0.0
    %1952 = vmatprep.subr.mxu0 0.0
    %1953 = vmatpush2.xpose.msra.mxu0 0.0
    %1954 = vmatprep.subr.mxu0 0.0
    %1955 = vmatpush2.xpose.msra.mxu0 0.0
    %1956 = vmatprep.subr.mxu0 0.0
    %1957 = vmatpush2.xpose.msra.mxu0 0.0
    %1958 = vmatprep.subr.mxu0 0.0
    %1959 = vmatpush2.xpose.msra.mxu0 0.0
    %1960 = vmatprep.subr.mxu0 0.0
    %1961 = vmatpush2.xpose.msra.mxu0 0.0
    %1962 = vmatprep.subr.mxu0 0.0
    %1963 = vmatpush2.xpose.msra.mxu0 0.0
    %1964 = vmatprep.subr.mxu0 0.0
    %1965 = vmatpush2.xpose.msra.mxu0 0.0
    %1966 = vmatprep.subr.mxu0 0.0
    %1967 = vmatpush2.xpose.msra.mxu0 0.0
    %1968 = vmatprep.subr.mxu0 0.0
    %1969 = vmatpush2.xpose.msra.mxu0 0.0
    %1970 = vmatprep.subr.mxu0 0.0
    %1971 = vmatpush2.xpose.msra.mxu0 0.0
    %1972 = vmatprep.mubr.f32.mxu0 0.0
    %1973 = vmatmul.mubr.f32.gmra.mxu0 %v1904
    %v1974 = vpop.f32.mrf.mxu0
    %v1975 = vadd.f32 0.0, %v1974
    %v1976 = vpop.f32.mrf.mxu0
    %1977 = vdwg.mxu0
    %v1978 = vmul.f32 %v1975, 0.25
    %v1979 = vadd.f32 %v1978, %v683
    %v1980 = vmul.f32 %v1979, 1.442695
    %v1981 = vpow.pop %v1980
    %v1982 = vsel %vm350, %v1981, 0.0
    %1983 = vadd.xlane.f32.xlu0 %v1982
    %v1984 = vpop.xlane.xlu0 %1983
    %v1985 = vrcp.pop %v1984
    %v1986 = vmul.f32 %v1981, %v1985
    %1987 = vrot.lane.b32.xlu0 %v1403, 48
    %v1988 = vpop.permute.xlu0 %1987
    %v1991 = vsel %vm350, %v1986, 0
    %1993 = vmatprep.subr.mxu0 0.0
    %1994 = vmatpush1.msra.mxu0 0.0
    %1995 = vmatprep.subr.mxu0 0.0
    %1996 = vmatpush1.msra.mxu0 0.0
    %1997 = vmatprep.subr.mxu0 0.0
    %1998 = vmatpush1.msra.mxu0 0.0
    %1999 = vmatprep.subr.mxu0 0.0
    %2000 = vmatpush1.msra.mxu0 0.0
    %2001 = vmatprep.subr.mxu0 0.0
    %2002 = vmatpush1.msra.mxu0 0.0
    %2003 = vmatprep.subr.mxu0 0.0
    %2004 = vmatpush1.msra.mxu0 0.0
    %2005 = vmatprep.subr.mxu0 0.0
    %2006 = vmatpush1.msra.mxu0 0.0
    %2007 = vmatprep.subr.mxu0 0.0
    %2008 = vmatpush1.msra.mxu0 0.0
    %2009 = vmatprep.subr.mxu0 0.0
    %2010 = vmatpush1.msra.mxu0 0.0
    %2011 = vmatprep.subr.mxu0 0.0
    %2012 = vmatpush1.msra.mxu0 0.0
    %2013 = vmatprep.subr.mxu0 0.0
    %2014 = vmatpush1.msra.mxu0 0.0
    %2015 = vmatprep.subr.mxu0 0.0
    %2016 = vmatpush1.msra.mxu0 0.0
    %2017 = vmatprep.subr.mxu0 0.0
    %2018 = vmatpush1.msra.mxu0 0.0
    %2019 = vmatprep.subr.mxu0 0.0
    %2020 = vmatpush1.msra.mxu0 0.0
    %2021 = vmatprep.subr.mxu0 0.0
    %2022 = vmatpush1.msra.mxu0 0.0
    %2023 = vmatprep.subr.mxu0 0.0
    %2024 = vmatpush1.msra.mxu0 %v1988
    %2025 = vmatprep.subr.mxu0 0.0
    %2026 = vmatpush2.msra.mxu0 0.0
    %2027 = vmatprep.subr.mxu0 0.0
    %2028 = vmatpush2.msra.mxu0 0.0
    %2029 = vmatprep.subr.mxu0 0.0
    %2030 = vmatpush2.msra.mxu0 0.0
    %2031 = vmatprep.subr.mxu0 0.0
    %2032 = vmatpush2.msra.mxu0 0.0
    %2033 = vmatprep.subr.mxu0 0.0
    %2034 = vmatpush2.msra.mxu0 0.0
    %2035 = vmatprep.subr.mxu0 0.0
    %2036 = vmatpush2.msra.mxu0 0.0
    %2037 = vmatprep.subr.mxu0 0.0
    %2038 = vmatpush2.msra.mxu0 0.0
    %2039 = vmatprep.subr.mxu0 0.0
    %2040 = vmatpush2.msra.mxu0 0.0
    %2041 = vmatprep.subr.mxu0 0.0
    %2042 = vmatpush2.msra.mxu0 0.0
    %2043 = vmatprep.subr.mxu0 0.0
    %2044 = vmatpush2.msra.mxu0 0.0
    %2045 = vmatprep.subr.mxu0 0.0
    %2046 = vmatpush2.msra.mxu0 0.0
    %2047 = vmatprep.subr.mxu0 0.0
    %2048 = vmatpush2.msra.mxu0 0.0
    %2049 = vmatprep.subr.mxu0 0.0
    %2050 = vmatpush2.msra.mxu0 0.0
    %2051 = vmatprep.subr.mxu0 0.0
    %2052 = vmatpush2.msra.mxu0 0.0
    %2053 = vmatprep.subr.mxu0 0.0
    %2054 = vmatpush2.msra.mxu0 0.0
    %2055 = vmatprep.subr.mxu0 0.0
    %2056 = vmatpush2.msra.mxu0 0.0
    %2057 = vmatprep.mubr.f32.mxu0 0.0
    %2058 = vmatmul.mubr.f32.gmra.mxu0 %v1991
    %v2059 = vpop.f32.mrf.mxu0
    %v2060 = vadd.f32 0.0, %v2059
    %v2061 = vpop.f32.mrf.mxu0
    %2062 = vdwg.mxu0
    %2064 = vrot.lane.b32.xlu0 %v2060, 16
    %v2065 = vpop.permute.xlu0 %2064
    %2067 = vst.msk [vmem:[#allocation2 + $0x8] sm:$0xff] %vm600, %v2065
    %v2068 = vld [vmem:[#allocation2] sm:$0xff]
    %v2069 = vld [vmem:[#allocation2 + $0x8] sm:$0xff]
    %v2070 = vld [vmem:[#allocation7 + $0x13e] sm:$0xff]
    %v2071 = vld [vmem:[#allocation7 + $0x146] sm:$0xff]
    %v2072 = vld [vmem:[#allocation7 + $0x14e] sm:$0xff]
    %v2073 = vld [vmem:[#allocation7 + $0x156] sm:$0xff]
    %v2074 = vld [vmem:[#allocation7 + $0x1bf] sm:$0x1]
    %v2075 = vlaneseq
    %v2076 = vshrl.u32 %v2075, 7
    %v2077 = vsub.s32 0, %v2076
    %v2078 = vrot.slane %v2074, %v2077
    %v2080 = vsel %vm133, %v2068, 0
    %v2083 = vsel %vm133, %v2069, 0
    %2085 = vmatprep.subr.mxu0 0.0
    %2086 = vmatpush1.msra.mxu0 0.0
    %2087 = vmatprep.subr.mxu0 0.0
    %2088 = vmatpush1.msra.mxu0 0.0
    %2089 = vmatprep.subr.mxu0 0.0
    %2090 = vmatpush1.msra.mxu0 0.0
    %2091 = vmatprep.subr.mxu0 0.0
    %2092 = vmatpush1.msra.mxu0 0.0
    %2093 = vmatprep.subr.mxu0 0.0
    %2094 = vmatpush1.msra.mxu0 0.0
    %2095 = vmatprep.subr.mxu0 0.0
    %2096 = vmatpush1.msra.mxu0 0.0
    %2097 = vmatprep.subr.mxu0 0.0
    %2098 = vmatpush1.msra.mxu0 0.0
    %2099 = vmatprep.subr.mxu0 0.0
    %2100 = vmatpush1.msra.mxu0 0.0
    %2101 = vmatprep.subr.mxu0 0.0
    %2102 = vmatpush1.msra.mxu0 0.0
    %2103 = vmatprep.subr.mxu0 0.0
    %2104 = vmatpush1.msra.mxu0 0.0
    %2105 = vmatprep.subr.mxu0 0.0
    %2106 = vmatpush1.msra.mxu0 0.0
    %2107 = vmatprep.subr.mxu0 0.0
    %2108 = vmatpush1.msra.mxu0 0.0
    %2109 = vmatprep.subr.mxu0 0.0
    %2110 = vmatpush1.msra.mxu0 %v2073
    %2111 = vmatprep.subr.mxu0 0.0
    %2112 = vmatpush1.msra.mxu0 %v2072
    %2113 = vmatprep.subr.mxu0 0.0
    %2114 = vmatpush1.msra.mxu0 %v2071
    %2115 = vmatprep.subr.mxu0 0.0
    %2116 = vmatpush1.msra.mxu0 %v2070
    %2117 = vmatprep.subr.mxu0 0.0
    %2118 = vmatpush2.msra.mxu0 0.0
    %2119 = vmatprep.subr.mxu0 0.0
    %2120 = vmatpush2.msra.mxu0 0.0
    %2121 = vmatprep.subr.mxu0 0.0
    %2122 = vmatpush2.msra.mxu0 0.0
    %2123 = vmatprep.subr.mxu0 0.0
    %2124 = vmatpush2.msra.mxu0 0.0
    %2125 = vmatprep.subr.mxu0 0.0
    %2126 = vmatpush2.msra.mxu0 0.0
    %2127 = vmatprep.subr.mxu0 0.0
    %2128 = vmatpush2.msra.mxu0 0.0
    %2129 = vmatprep.subr.mxu0 0.0
    %2130 = vmatpush2.msra.mxu0 0.0
    %2131 = vmatprep.subr.mxu0 0.0
    %2132 = vmatpush2.msra.mxu0 0.0
    %2133 = vmatprep.subr.mxu0 0.0
    %2134 = vmatpush2.msra.mxu0 0.0
    %2135 = vmatprep.subr.mxu0 0.0
    %2136 = vmatpush2.msra.mxu0 0.0
    %2137 = vmatprep.subr.mxu0 0.0
    %2138 = vmatpush2.msra.mxu0 0.0
    %2139 = vmatprep.subr.mxu0 0.0
    %2140 = vmatpush2.msra.mxu0 0.0
    %2141 = vmatprep.subr.mxu0 0.0
    %2142 = vmatpush2.msra.mxu0 0.0
    %2143 = vmatprep.subr.mxu0 0.0
    %2144 = vmatpush2.msra.mxu0 0.0
    %2145 = vmatprep.subr.mxu0 0.0
    %2146 = vmatpush2.msra.mxu0 0.0
    %2147 = vmatprep.subr.mxu0 0.0
    %2148 = vmatpush2.msra.mxu0 0.0
    %2149 = vmatprep.mubr.f32.mxu0 0.0
    %2150 = vmatmul.mubr.f32.gmra.mxu0 %v2080
    %v2151 = vpop.f32.mrf.mxu0
    %v2152 = vadd.f32 %v2078, %v2151
    %v2153 = vpop.f32.mrf.mxu0
    %2154 = vmatprep.mubr.f32.mxu0 0.0
    %2155 = vmatmul.mubr.f32.gmra.mxu0 %v2083
    %v2156 = vpop.f32.mrf.mxu0
    %v2157 = vadd.f32 %v2078, %v2156
    %v2158 = vpop.f32.mrf.mxu0
    %2159 = vdwg.mxu0
    %v2160 = vadd.f32 %v2152, %v1314
    %v2161 = vadd.f32 %v2157, %v1315
    %v2162 = vld [vmem:[#allocation7 + $0x1c0] sm:$0x1]
    %v2163 = vld [vmem:[#allocation7 + $0x1c1] sm:$0x1]
    %v2164 = vsel %vm133, %v2160, 0.0
    %2165 = vadd.xlane.f32.xlu0 %v2164
    %v2166 = vpop.xlane.xlu0 %2165
    %v2167 = vsel %vm133, %v2161, 0.0
    %2168 = vadd.xlane.f32.xlu0 %v2167
    %v2169 = vpop.xlane.xlu0 %2168
    %v2170 = vmul.f32 %v2166, %v140
    %v2171 = vmul.f32 %v2169, %v140
    %v2172 = vsub.f32 %v2160, %v2170
    %v2173 = vsub.f32 %v2161, %v2171
    %v2174 = vmul.f32 %v2172, %v2172
    %v2175 = vmul.f32 %v2173, %v2173
    %v2176 = vsel %vm133, %v2174, 0.0
    %2177 = vadd.xlane.f32.xlu0 %v2176
    %v2178 = vpop.xlane.xlu0 %2177
    %v2179 = vsel %vm133, %v2175, 0.0
    %2180 = vadd.xlane.f32.xlu0 %v2179
    %v2181 = vpop.xlane.xlu0 %2180
    %v2182 = vmul.f32 %v2178, %v140
    %v2183 = vmul.f32 %v2181, %v140
    %v2184 = vadd.f32 %v2182, 1e-12
    %v2185 = vadd.f32 %v2183, 1e-12
    %v2186 = vrsqrt.pop %v2184
    %v2187 = vrsqrt.pop %v2185
    %v2188 = vmul.f32 %v2172, %v2186
    %v2189 = vmul.f32 %v2173, %v2187
    %v2190 = vlaneseq
    %v2191 = vshrl.u32 %v2190, 7
    %v2192 = vsub.s32 0, %v2191
    %v2193 = vrot.slane %v2162, %v2192
    %v2194 = vmul.f32 %v2188, %v2193
    %v2195 = vmul.f32 %v2189, %v2193
    %v2196 = vlaneseq
    %v2197 = vshrl.u32 %v2196, 7
    %v2198 = vsub.s32 0, %v2197
    %v2199 = vrot.slane %v2163, %v2198
    %v2200 = vadd.f32 %v2194, %v2199
    %v2201 = vadd.f32 %v2195, %v2199
    %v2202 = vld [vmem:[#allocation7 + $0x15e] sm:$0xff]
    %v2203 = vld [vmem:[#allocation7 + $0x166] sm:$0xff]
    %v2204 = vld [vmem:[#allocation7 + $0x16e] sm:$0xff]
    %v2205 = vld [vmem:[#allocation7 + $0x176] sm:$0xff]
    %v2206 = vld [vmem:[#allocation7 + $0x1c2] sm:$0x1]
    %v2207 = vlaneseq
    %v2208 = vshrl.u32 %v2207, 7
    %v2209 = vsub.s32 0, %v2208
    %v2210 = vrot.slane %v2206, %v2209
    %v2212 = vsel %vm133, %v2200, 0
    %v2215 = vsel %vm133, %v2201, 0
    %2217 = vmatprep.subr.mxu0 0.0
    %2218 = vmatpush1.msra.mxu0 0.0
    %2219 = vmatprep.subr.mxu0 0.0
    %2220 = vmatpush1.msra.mxu0 0.0
    %2221 = vmatprep.subr.mxu0 0.0
    %2222 = vmatpush1.msra.mxu0 0.0
    %2223 = vmatprep.subr.mxu0 0.0
    %2224 = vmatpush1.msra.mxu0 0.0
    %2225 = vmatprep.subr.mxu0 0.0
    %2226 = vmatpush1.msra.mxu0 0.0
    %2227 = vmatprep.subr.mxu0 0.0
    %2228 = vmatpush1.msra.mxu0 0.0
    %2229 = vmatprep.subr.mxu0 0.0
    %2230 = vmatpush1.msra.mxu0 0.0
    %2231 = vmatprep.subr.mxu0 0.0
    %2232 = vmatpush1.msra.mxu0 0.0
    %2233 = vmatprep.subr.mxu0 0.0
    %2234 = vmatpush1.msra.mxu0 0.0
    %2235 = vmatprep.subr.mxu0 0.0
    %2236 = vmatpush1.msra.mxu0 0.0
    %2237 = vmatprep.subr.mxu0 0.0
    %2238 = vmatpush1.msra.mxu0 0.0
    %2239 = vmatprep.subr.mxu0 0.0
    %2240 = vmatpush1.msra.mxu0 0.0
    %2241 = vmatprep.subr.mxu0 0.0
    %2242 = vmatpush1.msra.mxu0 %v2205
    %2243 = vmatprep.subr.mxu0 0.0
    %2244 = vmatpush1.msra.mxu0 %v2204
    %2245 = vmatprep.subr.mxu0 0.0
    %2246 = vmatpush1.msra.mxu0 %v2203
    %2247 = vmatprep.subr.mxu0 0.0
    %2248 = vmatpush1.msra.mxu0 %v2202
    %2249 = vmatprep.subr.mxu0 0.0
    %2250 = vmatpush2.msra.mxu0 0.0
    %2251 = vmatprep.subr.mxu0 0.0
    %2252 = vmatpush2.msra.mxu0 0.0
    %2253 = vmatprep.subr.mxu0 0.0
    %2254 = vmatpush2.msra.mxu0 0.0
    %2255 = vmatprep.subr.mxu0 0.0
    %2256 = vmatpush2.msra.mxu0 0.0
    %2257 = vmatprep.subr.mxu0 0.0
    %2258 = vmatpush2.msra.mxu0 0.0
    %2259 = vmatprep.subr.mxu0 0.0
    %2260 = vmatpush2.msra.mxu0 0.0
    %2261 = vmatprep.subr.mxu0 0.0
    %2262 = vmatpush2.msra.mxu0 0.0
    %2263 = vmatprep.subr.mxu0 0.0
    %2264 = vmatpush2.msra.mxu0 0.0
    %2265 = vmatprep.subr.mxu0 0.0
    %2266 = vmatpush2.msra.mxu0 0.0
    %2267 = vmatprep.subr.mxu0 0.0
    %2268 = vmatpush2.msra.mxu0 0.0
    %2269 = vmatprep.subr.mxu0 0.0
    %2270 = vmatpush2.msra.mxu0 0.0
    %2271 = vmatprep.subr.mxu0 0.0
    %2272 = vmatpush2.msra.mxu0 0.0
    %2273 = vmatprep.subr.mxu0 0.0
    %2274 = vmatpush2.msra.mxu0 0.0
    %2275 = vmatprep.subr.mxu0 0.0
    %2276 = vmatpush2.msra.mxu0 0.0
    %2277 = vmatprep.subr.mxu0 0.0
    %2278 = vmatpush2.msra.mxu0 0.0
    %2279 = vmatprep.subr.mxu0 0.0
    %2280 = vmatpush2.msra.mxu0 0.0
    %2281 = vmatprep.mubr.f32.mxu0 0.0
    %2282 = vmatmul.mubr.f32.gmra.mxu0 %v2212
    %v2283 = vpop.f32.mrf.mxu0
    %v2284 = vadd.f32 %v2210, %v2283
    %v2285 = vpop.f32.mrf.mxu0
    %2286 = vmatprep.mubr.f32.mxu0 0.0
    %2287 = vmatmul.mubr.f32.gmra.mxu0 %v2215
    %v2288 = vpop.f32.mrf.mxu0
    %v2289 = vadd.f32 %v2210, %v2288
    %v2290 = vpop.f32.mrf.mxu0
    %2291 = vdwg.mxu0
    %v2292 = vmul.f32 %v2284, 0.5
    %v2293 = vmul.f32 %v2289, 0.5
    %v2294 = vmul.f32 %v2284, 0.044715
    %v2295 = vmul.f32 %v2289, 0.044715
    %v2296 = vmul.f32 %v2294, %v2284
    %v2297 = vmul.f32 %v2295, %v2289
    %v2298 = vmul.f32 %v2296, %v2284
    %v2299 = vmul.f32 %v2297, %v2289
    %v2300 = vadd.f32 %v2284, %v2298
    %v2301 = vadd.f32 %v2289, %v2299
    %v2302 = vmul.f32 %v2300, 0.7978846
    %v2303 = vmul.f32 %v2301, 0.7978846
    %v2304 = vtanh.pop %v2302
    %v2305 = vtanh.pop %v2303
    %v2306 = vadd.f32 %v2304, 1.0
    %v2307 = vadd.f32 %v2305, 1.0
    %v2308 = vmul.f32 %v2292, %v2306
    %v2309 = vmul.f32 %v2293, %v2307
    %v2310 = vld [vmem:[#allocation7 + $0x17e] sm:$0xff]
    %v2311 = vld [vmem:[#allocation7 + $0x186] sm:$0xff]
    %v2312 = vld [vmem:[#allocation7 + $0x18e] sm:$0xff]
    %v2313 = vld [vmem:[#allocation7 + $0x196] sm:$0xff]
    %v2314 = vld [vmem:[#allocation7 + $0x19e] sm:$0xff]
    %v2315 = vld [vmem:[#allocation7 + $0x1a6] sm:$0xff]
    %v2316 = vld [vmem:[#allocation7 + $0x1ae] sm:$0xff]
    %v2317 = vld [vmem:[#allocation7 + $0x1b6] sm:$0xff]
    %v2318 = vld [vmem:[#allocation7 + $0x1c3] sm:$0x1]
    %v2319 = vlaneseq
    %v2320 = vshrl.u32 %v2319, 7
    %v2321 = vsub.s32 0, %v2320
    %v2322 = vrot.slane %v2318, %v2321
    %v2324 = vsel %vm1192, %v2308, 0
    %v2327 = vsel %vm1192, %v2309, 0
    %2329 = vmatprep.subr.mxu0 0.0
    %2330 = vmatpush1.msra.mxu0 0.0
    %2331 = vmatprep.subr.mxu0 0.0
    %2332 = vmatpush1.msra.mxu0 0.0
    %2333 = vmatprep.subr.mxu0 0.0
    %2334 = vmatpush1.msra.mxu0 0.0
    %2335 = vmatprep.subr.mxu0 0.0
    %2336 = vmatpush1.msra.mxu0 0.0
    %2337 = vmatprep.subr.mxu0 0.0
    %2338 = vmatpush1.msra.mxu0 0.0
    %2339 = vmatprep.subr.mxu0 0.0
    %2340 = vmatpush1.msra.mxu0 0.0
    %2341 = vmatprep.subr.mxu0 0.0
    %2342 = vmatpush1.msra.mxu0 0.0
    %2343 = vmatprep.subr.mxu0 0.0
    %2344 = vmatpush1.msra.mxu0 0.0
    %2345 = vmatprep.subr.mxu0 0.0
    %2346 = vmatpush1.msra.mxu0 %v2317
    %2347 = vmatprep.subr.mxu0 0.0
    %2348 = vmatpush1.msra.mxu0 %v2316
    %2349 = vmatprep.subr.mxu0 0.0
    %2350 = vmatpush1.msra.mxu0 %v2315
    %2351 = vmatprep.subr.mxu0 0.0
    %2352 = vmatpush1.msra.mxu0 %v2314
    %2353 = vmatprep.subr.mxu0 0.0
    %2354 = vmatpush1.msra.mxu0 %v2313
    %2355 = vmatprep.subr.mxu0 0.0
    %2356 = vmatpush1.msra.mxu0 %v2312
    %2357 = vmatprep.subr.mxu0 0.0
    %2358 = vmatpush1.msra.mxu0 %v2311
    %2359 = vmatprep.subr.mxu0 0.0
    %2360 = vmatpush1.msra.mxu0 %v2310
    %2361 = vmatprep.subr.mxu0 0.0
    %2362 = vmatpush2.msra.mxu0 0.0
    %2363 = vmatprep.subr.mxu0 0.0
    %2364 = vmatpush2.msra.mxu0 0.0
    %2365 = vmatprep.subr.mxu0 0.0
    %2366 = vmatpush2.msra.mxu0 0.0
    %2367 = vmatprep.subr.mxu0 0.0
    %2368 = vmatpush2.msra.mxu0 0.0
    %2369 = vmatprep.subr.mxu0 0.0
    %2370 = vmatpush2.msra.mxu0 0.0
    %2371 = vmatprep.subr.mxu0 0.0
    %2372 = vmatpush2.msra.mxu0 0.0
    %2373 = vmatprep.subr.mxu0 0.0
    %2374 = vmatpush2.msra.mxu0 0.0
    %2375 = vmatprep.subr.mxu0 0.0
    %2376 = vmatpush2.msra.mxu0 0.0
    %2377 = vmatprep.subr.mxu0 0.0
    %2378 = vmatpush2.msra.mxu0 0.0
    %2379 = vmatprep.subr.mxu0 0.0
    %2380 = vmatpush2.msra.mxu0 0.0
    %2381 = vmatprep.subr.mxu0 0.0
    %2382 = vmatpush2.msra.mxu0 0.0
    %2383 = vmatprep.subr.mxu0 0.0
    %2384 = vmatpush2.msra.mxu0 0.0
    %2385 = vmatprep.subr.mxu0 0.0
    %2386 = vmatpush2.msra.mxu0 0.0
    %2387 = vmatprep.subr.mxu0 0.0
    %2388 = vmatpush2.msra.mxu0 0.0
    %2389 = vmatprep.subr.mxu0 0.0
    %2390 = vmatpush2.msra.mxu0 0.0
    %2391 = vmatprep.subr.mxu0 0.0
    %2392 = vmatpush2.msra.mxu0 0.0
    %2393 = vmatprep.mubr.f32.mxu0 0.0
    %2394 = vmatmul.mubr.f32.gmra.mxu0 %v2324
    %v2395 = vpop.f32.mrf.mxu0
    %v2396 = vadd.f32 %v2322, %v2395
    %v2397 = vpop.f32.mrf.mxu0
    %2398 = vmatprep.mubr.f32.mxu0 0.0
    %2399 = vmatmul.mubr.f32.gmra.mxu0 %v2327
    %v2400 = vpop.f32.mrf.mxu0
    %v2401 = vadd.f32 %v2322, %v2400
    %v2402 = vpop.f32.mrf.mxu0
    %2403 = vdwg.mxu0
    %v2404 = vadd.f32 %v2396, %v2200
    %v2405 = vadd.f32 %v2401, %v2201
    %v2406 = vld [vmem:[#allocation7 + $0x1c4] sm:$0x1]
    %v2407 = vld [vmem:[#allocation7 + $0x1c5] sm:$0x1]
    %v2408 = vsel %vm133, %v2404, 0.0
    %2409 = vadd.xlane.f32.xlu0 %v2408
    %v2410 = vpop.xlane.xlu0 %2409
    %v2411 = vsel %vm133, %v2405, 0.0
    %2412 = vadd.xlane.f32.xlu0 %v2411
    %v2413 = vpop.xlane.xlu0 %2412
    %v2414 = vmul.f32 %v2410, %v140
    %v2415 = vmul.f32 %v2413, %v140
    %v2416 = vsub.f32 %v2404, %v2414
    %v2417 = vsub.f32 %v2405, %v2415
    %v2418 = vmul.f32 %v2416, %v2416
    %v2419 = vmul.f32 %v2417, %v2417
    %v2420 = vsel %vm133, %v2418, 0.0
    %2421 = vadd.xlane.f32.xlu0 %v2420
    %v2422 = vpop.xlane.xlu0 %2421
    %v2423 = vsel %vm133, %v2419, 0.0
    %2424 = vadd.xlane.f32.xlu0 %v2423
    %v2425 = vpop.xlane.xlu0 %2424
    %v2426 = vmul.f32 %v2422, %v140
    %v2427 = vmul.f32 %v2425, %v140
    %v2428 = vadd.f32 %v2426, 1e-12
    %v2429 = vadd.f32 %v2427, 1e-12
    %v2430 = vrsqrt.pop %v2428
    %v2431 = vrsqrt.pop %v2429
    %v2432 = vmul.f32 %v2416, %v2430
    %v2433 = vmul.f32 %v2417, %v2431
    %v2434 = vlaneseq
    %v2435 = vshrl.u32 %v2434, 7
    %v2436 = vsub.s32 0, %v2435
    %v2437 = vrot.slane %v2406, %v2436
    %v2438 = vmul.f32 %v2432, %v2437
    %v2439 = vmul.f32 %v2433, %v2437
    %v2440 = vlaneseq
    %v2441 = vshrl.u32 %v2440, 7
    %v2442 = vsub.s32 0, %v2441
    %v2443 = vrot.slane %v2407, %v2442
    %v2444 = vadd.f32 %v2438, %v2443
    %v2445 = vadd.f32 %v2439, %v2443
    %v2446 = vlaneseq
    %v2447 = vand.u32 %v2446, 127
    %vm2448 = vcmp.lt.s32.totalorder %v2447, 0
    %v2449 = vsub.s32 0, %v2447
    %v2450 = vsel %vm2448, %v2449, %v2447
    %v2451 = vshrl.u32 %v2450, 5
    %v2452 = vand.u32 %v2450, 31
    %v2453 = vsub.s32 0, %v2452
    %v2454 = vsel %vm2448, %v2453, %v2452
    %vm2455 = vcmp.ne.s32.totalorder %v2454, 0
    %vm2456 = vcmp.lt.s32.totalorder %v2454, 0
    %vm2457 = vmand %vm2456, %vm2455
    %v2458 = vadd.s32 %v2454, 32
    %v2459 = vsel %vm2457, %v2458, %v2454
    %vm2460 = vcmp.lt.s32.totalorder %v2459, 16
    %vm2461 = vcmp.ge.s32.totalorder %v2447, 64
    %vm2462 = vcmp.lt.s32.totalorder %v2447, 96
    %vm2463 = vmand %vm2461, %vm2462
    %v2464 = vsel %vm2463, 1.0, 0.5
    %v2465 = vld [vmem:[#allocation7 + $0x1c6] sm:$0xff]
    %v2466 = vld [vmem:[#allocation7 + $0x1ce] sm:$0xff]
    %v2467 = vld [vmem:[#allocation7 + $0x1d6] sm:$0xff]
    %v2468 = vld [vmem:[#allocation7 + $0x1de] sm:$0xff]
    %v2469 = vld [vmem:[#allocation7 + $0x206] sm:$0x1]
    %v2470 = vlaneseq
    %v2471 = vshrl.u32 %v2470, 7
    %v2472 = vsub.s32 0, %v2471
    %v2473 = vrot.slane %v2469, %v2472
    %v2475 = vsel %vm133, %v2444, 0
    %v2478 = vsel %vm133, %v2445, 0
    %2480 = vmatprep.subr.mxu0 0.0
    %2481 = vmatpush1.msra.mxu0 0.0
    %2482 = vmatprep.subr.mxu0 0.0
    %2483 = vmatpush1.msra.mxu0 0.0
    %2484 = vmatprep.subr.mxu0 0.0
    %2485 = vmatpush1.msra.mxu0 0.0
    %2486 = vmatprep.subr.mxu0 0.0
    %2487 = vmatpush1.msra.mxu0 0.0
    %2488 = vmatprep.subr.mxu0 0.0
    %2489 = vmatpush1.msra.mxu0 0.0
    %2490 = vmatprep.subr.mxu0 0.0
    %2491 = vmatpush1.msra.mxu0 0.0
    %2492 = vmatprep.subr.mxu0 0.0
    %2493 = vmatpush1.msra.mxu0 0.0
    %2494 = vmatprep.subr.mxu0 0.0
    %2495 = vmatpush1.msra.mxu0 0.0
    %2496 = vmatprep.subr.mxu0 0.0
    %2497 = vmatpush1.msra.mxu0 0.0
    %2498 = vmatprep.subr.mxu0 0.0
    %2499 = vmatpush1.msra.mxu0 0.0
    %2500 = vmatprep.subr.mxu0 0.0
    %2501 = vmatpush1.msra.mxu0 0.0
    %2502 = vmatprep.subr.mxu0 0.0
    %2503 = vmatpush1.msra.mxu0 0.0
    %2504 = vmatprep.subr.mxu0 0.0
    %2505 = vmatpush1.msra.mxu0 %v2468
    %2506 = vmatprep.subr.mxu0 0.0
    %2507 = vmatpush1.msra.mxu0 %v2467
    %2508 = vmatprep.subr.mxu0 0.0
    %2509 = vmatpush1.msra.mxu0 %v2466
    %2510 = vmatprep.subr.mxu0 0.0
    %2511 = vmatpush1.msra.mxu0 %v2465
    %2512 = vmatprep.subr.mxu0 0.0
    %2513 = vmatpush2.msra.mxu0 0.0
    %2514 = vmatprep.subr.mxu0 0.0
    %2515 = vmatpush2.msra.mxu0 0.0
    %2516 = vmatprep.subr.mxu0 0.0
    %2517 = vmatpush2.msra.mxu0 0.0
    %2518 = vmatprep.subr.mxu0 0.0
    %2519 = vmatpush2.msra.mxu0 0.0
    %2520 = vmatprep.subr.mxu0 0.0
    %2521 = vmatpush2.msra.mxu0 0.0
    %2522 = vmatprep.subr.mxu0 0.0
    %2523 = vmatpush2.msra.mxu0 0.0
    %2524 = vmatprep.subr.mxu0 0.0
    %2525 = vmatpush2.msra.mxu0 0.0
    %2526 = vmatprep.subr.mxu0 0.0
    %2527 = vmatpush2.msra.mxu0 0.0
    %2528 = vmatprep.subr.mxu0 0.0
    %2529 = vmatpush2.msra.mxu0 0.0
    %2530 = vmatprep.subr.mxu0 0.0
    %2531 = vmatpush2.msra.mxu0 0.0
    %2532 = vmatprep.subr.mxu0 0.0
    %2533 = vmatpush2.msra.mxu0 0.0
    %2534 = vmatprep.subr.mxu0 0.0
    %2535 = vmatpush2.msra.mxu0 0.0
    %2536 = vmatprep.subr.mxu0 0.0
    %2537 = vmatpush2.msra.mxu0 0.0
    %2538 = vmatprep.subr.mxu0 0.0
    %2539 = vmatpush2.msra.mxu0 0.0
    %2540 = vmatprep.subr.mxu0 0.0
    %2541 = vmatpush2.msra.mxu0 0.0
    %2542 = vmatprep.subr.mxu0 0.0
    %2543 = vmatpush2.msra.mxu0 0.0
    %2544 = vmatprep.mubr.f32.mxu0 0.0
    %2545 = vmatmul.mubr.f32.gmra.mxu0 %v2475
    %v2546 = vpop.f32.mrf.mxu0
    %v2547 = vadd.f32 %v2473, %v2546
    %v2548 = vpop.f32.mrf.mxu0
    %2549 = vmatprep.mubr.f32.mxu0 0.0
    %2550 = vmatmul.mubr.f32.gmra.mxu0 %v2478
    %v2551 = vpop.f32.mrf.mxu0
    %v2552 = vadd.f32 %v2473, %v2551
    %v2553 = vpop.f32.mrf.mxu0
    %2554 = vdwg.mxu0
    %2555 = vst [vmem:[#allocation3] sm:$0xff] %v2547
    %2556 = vst [vmem:[#allocation3 + $0x8] sm:$0xff] %v2552
    %v2557 = vld [vmem:[#allocation7 + $0x1e6] sm:$0xff]
    %v2558 = vld [vmem:[#allocation7 + $0x1ee] sm:$0xff]
    %v2559 = vld [vmem:[#allocation7 + $0x1f6] sm:$0xff]
    %v2560 = vld [vmem:[#allocation7 + $0x1fe] sm:$0xff]
    %v2561 = vld [vmem:[#allocation3] ss:$8 sm:$0x3]
    %s2562 = scalar_lea.vmem [#allocation3], 7
    %v2563 = vld [vmem:[%s2562] ss:$8 sm:$0x3]
    %v2564 = vsel %vm2460, %v2561, %v2563
    %v2566 = vsel %vm133, 0.0, 0
    %2568 = vmatprep.subr.mxu0 0.0
    %2569 = vmatpush1.msra.mxu0 0.0
    %2570 = vmatprep.subr.mxu0 0.0
    %2571 = vmatpush1.msra.mxu0 0.0
    %2572 = vmatprep.subr.mxu0 0.0
    %2573 = vmatpush1.msra.mxu0 0.0
    %2574 = vmatprep.subr.mxu0 0.0
    %2575 = vmatpush1.msra.mxu0 0.0
    %2576 = vmatprep.subr.mxu0 0.0
    %2577 = vmatpush1.msra.mxu0 0.0
    %2578 = vmatprep.subr.mxu0 0.0
    %2579 = vmatpush1.msra.mxu0 0.0
    %2580 = vmatprep.subr.mxu0 0.0
    %2581 = vmatpush1.msra.mxu0 0.0
    %2582 = vmatprep.subr.mxu0 0.0
    %2583 = vmatpush1.msra.mxu0 0.0
    %2584 = vmatprep.subr.mxu0 0.0
    %2585 = vmatpush1.msra.mxu0 0.0
    %2586 = vmatprep.subr.mxu0 0.0
    %2587 = vmatpush1.msra.mxu0 0.0
    %2588 = vmatprep.subr.mxu0 0.0
    %2589 = vmatpush1.msra.mxu0 0.0
    %2590 = vmatprep.subr.mxu0 0.0
    %2591 = vmatpush1.msra.mxu0 0.0
    %2592 = vmatprep.subr.mxu0 0.0
    %2593 = vmatpush1.msra.mxu0 %v2560
    %2594 = vmatprep.subr.mxu0 0.0
    %2595 = vmatpush1.msra.mxu0 %v2559
    %2596 = vmatprep.subr.mxu0 0.0
    %2597 = vmatpush1.msra.mxu0 %v2558
    %2598 = vmatprep.subr.mxu0 0.0
    %2599 = vmatpush1.msra.mxu0 %v2557
    %2600 = vmatprep.subr.mxu0 0.0
    %2601 = vmatpush2.msra.mxu0 0.0
    %2602 = vmatprep.subr.mxu0 0.0
    %2603 = vmatpush2.msra.mxu0 0.0
    %2604 = vmatprep.subr.mxu0 0.0
    %2605 = vmatpush2.msra.mxu0 0.0
    %2606 = vmatprep.subr.mxu0 0.0
    %2607 = vmatpush2.msra.mxu0 0.0
    %2608 = vmatprep.subr.mxu0 0.0
    %2609 = vmatpush2.msra.mxu0 0.0
    %2610 = vmatprep.subr.mxu0 0.0
    %2611 = vmatpush2.msra.mxu0 0.0
    %2612 = vmatprep.subr.mxu0 0.0
    %2613 = vmatpush2.msra.mxu0 0.0
    %2614 = vmatprep.subr.mxu0 0.0
    %2615 = vmatpush2.msra.mxu0 0.0
    %2616 = vmatprep.subr.mxu0 0.0
    %2617 = vmatpush2.msra.mxu0 0.0
    %2618 = vmatprep.subr.mxu0 0.0
    %2619 = vmatpush2.msra.mxu0 0.0
    %2620 = vmatprep.subr.mxu0 0.0
    %2621 = vmatpush2.msra.mxu0 0.0
    %2622 = vmatprep.subr.mxu0 0.0
    %2623 = vmatpush2.msra.mxu0 0.0
    %2624 = vmatprep.subr.mxu0 0.0
    %2625 = vmatpush2.msra.mxu0 0.0
    %2626 = vmatprep.subr.mxu0 0.0
    %2627 = vmatpush2.msra.mxu0 0.0
    %2628 = vmatprep.subr.mxu0 0.0
    %2629 = vmatpush2.msra.mxu0 0.0
    %2630 = vmatprep.subr.mxu0 0.0
    %2631 = vmatpush2.msra.mxu0 0.0
    %2632 = vmatprep.mubr.f32.mxu0 0.0
    %2633 = vmatmul.mubr.f32.gmra.mxu0 %v2566
    %v2634 = vpop.f32.mrf.mxu0
    %v2635 = vadd.f32 0.0, %v2634
    %v2636 = vpop.f32.mrf.mxu0
    %2637 = vdwg.mxu0
    %v2638 = vadd.f32 %v2564, %v2635
    %v2639 = vmul.f32 %v2638, %v2464
    %v2640 = vtanh.pop %v2639
    %v2641 = vmul.f32 %v2640, 0.5
    %v2642 = vadd.f32 %v2641, 0.5
    %v2643 = vsel %vm2463, %v2640, %v2642
    %v2644 = vmul.f32 %v2643, 0.0
    %2646 = vrot.lane.b32.xlu0 %v2643, 64
    %v2647 = vpop.permute.xlu0 %2646
    %v2649 = vmul.f32 %v2643, %v2647
    %2651 = vrot.lane.b32.xlu0 %v2649, 32
    %v2652 = vpop.permute.xlu0 %2651
    %v2654 = vadd.f32 %v2644, %v2652
    %v2655 = vtanh.pop %v2654
    %2657 = vrot.lane.b32.xlu0 %v2655, 64
    %v2658 = vpop.permute.xlu0 %2657
    %v2660 = vmul.f32 %v2643, %v2658
    %2662 = vrot.lane.b32.xlu0 %v2660, 32
    %v2663 = vpop.permute.xlu0 %2662
    %vm2665 = vcmask 123904
    %2666 = vst.msk [vmem:[#allocation4] sm:$0x3] %vm2665, %v2663
    %vm2667 = vcmask 255104
    %2668 = vst.msk [vmem:[#allocation4 + $0xe] sm:$0x3] %vm2667, %v2663
    %s2669 = scalar_lea.vmem [#allocation3], 1
    %v2670 = vld [vmem:[%s2669] ss:$8 sm:$0x3]
    %s2671 = scalar_lea.vmem [#allocation3], 6
    %v2672 = vld [vmem:[%s2671] ss:$8 sm:$0x3]
    %v2673 = vsel %vm2460, %v2670, %v2672
    %v2674 = vsel %vm133, %v2663, 0
    %2676 = vmatprep.subr.mxu0 0.0
    %2677 = vmatpush1.msra.mxu0 0.0
    %2678 = vmatprep.subr.mxu0 0.0
    %2679 = vmatpush1.msra.mxu0 0.0
    %2680 = vmatprep.subr.mxu0 0.0
    %2681 = vmatpush1.msra.mxu0 0.0
    %2682 = vmatprep.subr.mxu0 0.0
    %2683 = vmatpush1.msra.mxu0 0.0
    %2684 = vmatprep.subr.mxu0 0.0
    %2685 = vmatpush1.msra.mxu0 0.0
    %2686 = vmatprep.subr.mxu0 0.0
    %2687 = vmatpush1.msra.mxu0 0.0
    %2688 = vmatprep.subr.mxu0 0.0
    %2689 = vmatpush1.msra.mxu0 0.0
    %2690 = vmatprep.subr.mxu0 0.0
    %2691 = vmatpush1.msra.mxu0 0.0
    %2692 = vmatprep.subr.mxu0 0.0
    %2693 = vmatpush1.msra.mxu0 0.0
    %2694 = vmatprep.subr.mxu0 0.0
    %2695 = vmatpush1.msra.mxu0 0.0
    %2696 = vmatprep.subr.mxu0 0.0
    %2697 = vmatpush1.msra.mxu0 0.0
    %2698 = vmatprep.subr.mxu0 0.0
    %2699 = vmatpush1.msra.mxu0 0.0
    %2700 = vmatprep.subr.mxu0 0.0
    %2701 = vmatpush1.msra.mxu0 %v2560
    %2702 = vmatprep.subr.mxu0 0.0
    %2703 = vmatpush1.msra.mxu0 %v2559
    %2704 = vmatprep.subr.mxu0 0.0
    %2705 = vmatpush1.msra.mxu0 %v2558
    %2706 = vmatprep.subr.mxu0 0.0
    %2707 = vmatpush1.msra.mxu0 %v2557
    %2708 = vmatprep.subr.mxu0 0.0
    %2709 = vmatpush2.msra.mxu0 0.0
    %2710 = vmatprep.subr.mxu0 0.0
    %2711 = vmatpush2.msra.mxu0 0.0
    %2712 = vmatprep.subr.mxu0 0.0
    %2713 = vmatpush2.msra.mxu0 0.0
    %2714 = vmatprep.subr.mxu0 0.0
    %2715 = vmatpush2.msra.mxu0 0.0
    %2716 = vmatprep.subr.mxu0 0.0
    %2717 = vmatpush2.msra.mxu0 0.0
    %2718 = vmatprep.subr.mxu0 0.0
    %2719 = vmatpush2.msra.mxu0 0.0
    %2720 = vmatprep.subr.mxu0 0.0
    %2721 = vmatpush2.msra.mxu0 0.0
    %2722 = vmatprep.subr.mxu0 0.0
    %2723 = vmatpush2.msra.mxu0 0.0
    %2724 = vmatprep.subr.mxu0 0.0
    %2725 = vmatpush2.msra.mxu0 0.0
    %2726 = vmatprep.subr.mxu0 0.0
    %2727 = vmatpush2.msra.mxu0 0.0
    %2728 = vmatprep.subr.mxu0 0.0
    %2729 = vmatpush2.msra.mxu0 0.0
    %2730 = vmatprep.subr.mxu0 0.0
    %2731 = vmatpush2.msra.mxu0 0.0
    %2732 = vmatprep.subr.mxu0 0.0
    %2733 = vmatpush2.msra.mxu0 0.0
    %2734 = vmatprep.subr.mxu0 0.0
    %2735 = vmatpush2.msra.mxu0 0.0
    %2736 = vmatprep.subr.mxu0 0.0
    %2737 = vmatpush2.msra.mxu0 0.0
    %2738 = vmatprep.subr.mxu0 0.0
    %2739 = vmatpush2.msra.mxu0 0.0
    %2740 = vmatprep.mubr.f32.mxu0 0.0
    %2741 = vmatmul.mubr.f32.gmra.mxu0 %v2674
    %v2742 = vpop.f32.mrf.mxu0
    %v2743 = vadd.f32 0.0, %v2742
    %v2744 = vpop.f32.mrf.mxu0
    %2745 = vdwg.mxu0
    %v2746 = vadd.f32 %v2673, %v2743
    %v2747 = vmul.f32 %v2746, %v2464
    %v2748 = vtanh.pop %v2747
    %v2749 = vmul.f32 %v2748, 0.5
    %v2750 = vadd.f32 %v2749, 0.5
    %v2751 = vsel %vm2463, %v2748, %v2750
    %v2752 = vmul.f32 %v2751, %v2654
    %2754 = vrot.lane.b32.xlu0 %v2751, 64
    %v2755 = vpop.permute.xlu0 %2754
    %v2757 = vmul.f32 %v2751, %v2755
    %2759 = vrot.lane.b32.xlu0 %v2757, 32
    %v2760 = vpop.permute.xlu0 %2759
    %v2762 = vadd.f32 %v2752, %v2760
    %v2763 = vtanh.pop %v2762
    %2765 = vrot.lane.b32.xlu0 %v2763, 64
    %v2766 = vpop.permute.xlu0 %2765
    %v2768 = vmul.f32 %v2751, %v2766
    %2770 = vrot.lane.b32.xlu0 %v2768, 32
    %v2771 = vpop.permute.xlu0 %2770
    %2773 = vst.msk [vmem:[#allocation4 + $0x2] sm:$0x3] %vm2665, %v2771
    %2774 = vst.msk [vmem:[#allocation4 + $0xc] sm:$0x3] %vm2667, %v2771
    %s2775 = scalar_lea.vmem [#allocation3], 2
    %v2776 = vld [vmem:[%s2775] ss:$8 sm:$0x3]
    %s2777 = scalar_lea.vmem [#allocation3], 5
    %v2778 = vld [vmem:[%s2777] ss:$8 sm:$0x3]
    %v2779 = vsel %vm2460, %v2776, %v2778
    %v2780 = vsel %vm133, %v2771, 0
    %2782 = vmatprep.subr.mxu0 0.0
    %2783 = vmatpush1.msra.mxu0 0.0
    %2784 = vmatprep.subr.mxu0 0.0
    %2785 = vmatpush1.msra.mxu0 0.0
    %2786 = vmatprep.subr.mxu0 0.0
    %2787 = vmatpush1.msra.mxu0 0.0
    %2788 = vmatprep.subr.mxu0 0.0
    %2789 = vmatpush1.msra.mxu0 0.0
    %2790 = vmatprep.subr.mxu0 0.0
    %2791 = vmatpush1.msra.mxu0 0.0
    %2792 = vmatprep.subr.mxu0 0.0
    %2793 = vmatpush1.msra.mxu0 0.0
    %2794 = vmatprep.subr.mxu0 0.0
    %2795 = vmatpush1.msra.mxu0 0.0
    %2796 = vmatprep.subr.mxu0 0.0
    %2797 = vmatpush1.msra.mxu0 0.0
    %2798 = vmatprep.subr.mxu0 0.0
    %2799 = vmatpush1.msra.mxu0 0.0
    %2800 = vmatprep.subr.mxu0 0.0
    %2801 = vmatpush1.msra.mxu0 0.0
    %2802 = vmatprep.subr.mxu0 0.0
    %2803 = vmatpush1.msra.mxu0 0.0
    %2804 = vmatprep.subr.mxu0 0.0
    %2805 = vmatpush1.msra.mxu0 0.0
    %2806 = vmatprep.subr.mxu0 0.0
    %2807 = vmatpush1.msra.mxu0 %v2560
    %2808 = vmatprep.subr.mxu0 0.0
    %2809 = vmatpush1.msra.mxu0 %v2559
    %2810 = vmatprep.subr.mxu0 0.0
    %2811 = vmatpush1.msra.mxu0 %v2558
    %2812 = vmatprep.subr.mxu0 0.0
    %2813 = vmatpush1.msra.mxu0 %v2557
    %2814 = vmatprep.subr.mxu0 0.0
    %2815 = vmatpush2.msra.mxu0 0.0
    %2816 = vmatprep.subr.mxu0 0.0
    %2817 = vmatpush2.msra.mxu0 0.0
    %2818 = vmatprep.subr.mxu0 0.0
    %2819 = vmatpush2.msra.mxu0 0.0
    %2820 = vmatprep.subr.mxu0 0.0
    %2821 = vmatpush2.msra.mxu0 0.0
    %2822 = vmatprep.subr.mxu0 0.0
    %2823 = vmatpush2.msra.mxu0 0.0
    %2824 = vmatprep.subr.mxu0 0.0
    %2825 = vmatpush2.msra.mxu0 0.0
    %2826 = vmatprep.subr.mxu0 0.0
    %2827 = vmatpush2.msra.mxu0 0.0
    %2828 = vmatprep.subr.mxu0 0.0
    %2829 = vmatpush2.msra.mxu0 0.0
    %2830 = vmatprep.subr.mxu0 0.0
    %2831 = vmatpush2.msra.mxu0 0.0
    %2832 = vmatprep.subr.mxu0 0.0
    %2833 = vmatpush2.msra.mxu0 0.0
    %2834 = vmatprep.subr.mxu0 0.0
    %2835 = vmatpush2.msra.mxu0 0.0
    %2836 = vmatprep.subr.mxu0 0.0
    %2837 = vmatpush2.msra.mxu0 0.0
    %2838 = vmatprep.subr.mxu0 0.0
    %2839 = vmatpush2.msra.mxu0 0.0
    %2840 = vmatprep.subr.mxu0 0.0
    %2841 = vmatpush2.msra.mxu0 0.0
    %2842 = vmatprep.subr.mxu0 0.0
    %2843 = vmatpush2.msra.mxu0 0.0
    %2844 = vmatprep.subr.mxu0 0.0
    %2845 = vmatpush2.msra.mxu0 0.0
    %2846 = vmatprep.mubr.f32.mxu0 0.0
    %2847 = vmatmul.mubr.f32.gmra.mxu0 %v2780
    %v2848 = vpop.f32.mrf.mxu0
    %v2849 = vadd.f32 0.0, %v2848
    %v2850 = vpop.f32.mrf.mxu0
    %2851 = vdwg.mxu0
    %v2852 = vadd.f32 %v2779, %v2849
    %v2853 = vmul.f32 %v2852, %v2464
    %v2854 = vtanh.pop %v2853
    %v2855 = vmul.f32 %v2854, 0.5
    %v2856 = vadd.f32 %v2855, 0.5
    %v2857 = vsel %vm2463, %v2854, %v2856
    %v2858 = vmul.f32 %v2857, %v2762
    %2860 = vrot.lane.b32.xlu0 %v2857, 64
    %v2861 = vpop.permute.xlu0 %2860
    %v2863 = vmul.f32 %v2857, %v2861
    %2865 = vrot.lane.b32.xlu0 %v2863, 32
    %v2866 = vpop.permute.xlu0 %2865
    %v2868 = vadd.f32 %v2858, %v2866
    %v2869 = vtanh.pop %v2868
    %2871 = vrot.lane.b32.xlu0 %v2869, 64
    %v2872 = vpop.permute.xlu0 %2871
    %v2874 = vmul.f32 %v2857, %v2872
    %2876 = vrot.lane.b32.xlu0 %v2874, 32
    %v2877 = vpop.permute.xlu0 %2876
    %2879 = vst.msk [vmem:[#allocation4 + $0x4] sm:$0x3] %vm2665, %v2877
    %2880 = vst.msk [vmem:[#allocation4 + $0xa] sm:$0x3] %vm2667, %v2877
    %s2881 = scalar_lea.vmem [#allocation3], 3
    %v2882 = vld [vmem:[%s2881] ss:$8 sm:$0x3]
    %s2883 = scalar_lea.vmem [#allocation3], 4
    %v2884 = vld [vmem:[%s2883] ss:$8 sm:$0x3]
    %v2885 = vsel %vm2460, %v2882, %v2884
    %v2886 = vsel %vm133, %v2877, 0
    %2888 = vmatprep.subr.mxu0 0.0
    %2889 = vmatpush1.msra.mxu0 0.0
    %2890 = vmatprep.subr.mxu0 0.0
    %2891 = vmatpush1.msra.mxu0 0.0
    %2892 = vmatprep.subr.mxu0 0.0
    %2893 = vmatpush1.msra.mxu0 0.0
    %2894 = vmatprep.subr.mxu0 0.0
    %2895 = vmatpush1.msra.mxu0 0.0
    %2896 = vmatprep.subr.mxu0 0.0
    %2897 = vmatpush1.msra.mxu0 0.0
    %2898 = vmatprep.subr.mxu0 0.0
    %2899 = vmatpush1.msra.mxu0 0.0
    %2900 = vmatprep.subr.mxu0 0.0
    %2901 = vmatpush1.msra.mxu0 0.0
    %2902 = vmatprep.subr.mxu0 0.0
    %2903 = vmatpush1.msra.mxu0 0.0
    %2904 = vmatprep.subr.mxu0 0.0
    %2905 = vmatpush1.msra.mxu0 0.0
    %2906 = vmatprep.subr.mxu0 0.0
    %2907 = vmatpush1.msra.mxu0 0.0
    %2908 = vmatprep.subr.mxu0 0.0
    %2909 = vmatpush1.msra.mxu0 0.0
    %2910 = vmatprep.subr.mxu0 0.0
    %2911 = vmatpush1.msra.mxu0 0.0
    %2912 = vmatprep.subr.mxu0 0.0
    %2913 = vmatpush1.msra.mxu0 %v2560
    %2914 = vmatprep.subr.mxu0 0.0
    %2915 = vmatpush1.msra.mxu0 %v2559
    %2916 = vmatprep.subr.mxu0 0.0
    %2917 = vmatpush1.msra.mxu0 %v2558
    %2918 = vmatprep.subr.mxu0 0.0
    %2919 = vmatpush1.msra.mxu0 %v2557
    %2920 = vmatprep.subr.mxu0 0.0
    %2921 = vmatpush2.msra.mxu0 0.0
    %2922 = vmatprep.subr.mxu0 0.0
    %2923 = vmatpush2.msra.mxu0 0.0
    %2924 = vmatprep.subr.mxu0 0.0
    %2925 = vmatpush2.msra.mxu0 0.0
    %2926 = vmatprep.subr.mxu0 0.0
    %2927 = vmatpush2.msra.mxu0 0.0
    %2928 = vmatprep.subr.mxu0 0.0
    %2929 = vmatpush2.msra.mxu0 0.0
    %2930 = vmatprep.subr.mxu0 0.0
    %2931 = vmatpush2.msra.mxu0 0.0
    %2932 = vmatprep.subr.mxu0 0.0
    %2933 = vmatpush2.msra.mxu0 0.0
    %2934 = vmatprep.subr.mxu0 0.0
    %2935 = vmatpush2.msra.mxu0 0.0
    %2936 = vmatprep.subr.mxu0 0.0
    %2937 = vmatpush2.msra.mxu0 0.0
    %2938 = vmatprep.subr.mxu0 0.0
    %2939 = vmatpush2.msra.mxu0 0.0
    %2940 = vmatprep.subr.mxu0 0.0
    %2941 = vmatpush2.msra.mxu0 0.0
    %2942 = vmatprep.subr.mxu0 0.0
    %2943 = vmatpush2.msra.mxu0 0.0
    %2944 = vmatprep.subr.mxu0 0.0
    %2945 = vmatpush2.msra.mxu0 0.0
    %2946 = vmatprep.subr.mxu0 0.0
    %2947 = vmatpush2.msra.mxu0 0.0
    %2948 = vmatprep.subr.mxu0 0.0
    %2949 = vmatpush2.msra.mxu0 0.0
    %2950 = vmatprep.subr.mxu0 0.0
    %2951 = vmatpush2.msra.mxu0 0.0
    %2952 = vmatprep.mubr.f32.mxu0 0.0
    %2953 = vmatmul.mubr.f32.gmra.mxu0 %v2886
    %v2954 = vpop.f32.mrf.mxu0
    %v2955 = vadd.f32 0.0, %v2954
    %v2956 = vpop.f32.mrf.mxu0
    %2957 = vdwg.mxu0
    %v2958 = vadd.f32 %v2885, %v2955
    %v2959 = vmul.f32 %v2958, %v2464
    %v2960 = vtanh.pop %v2959
    %v2961 = vmul.f32 %v2960, 0.5
    %v2962 = vadd.f32 %v2961, 0.5
    %v2963 = vsel %vm2463, %v2960, %v2962
    %v2964 = vmul.f32 %v2963, %v2868
    %2966 = vrot.lane.b32.xlu0 %v2963, 64
    %v2967 = vpop.permute.xlu0 %2966
    %v2969 = vmul.f32 %v2963, %v2967
    %2971 = vrot.lane.b32.xlu0 %v2969, 32
    %v2972 = vpop.permute.xlu0 %2971
    %v2974 = vadd.f32 %v2964, %v2972
    %v2975 = vtanh.pop %v2974
    %2977 = vrot.lane.b32.xlu0 %v2975, 64
    %v2978 = vpop.permute.xlu0 %2977
    %v2980 = vmul.f32 %v2963, %v2978
    %2982 = vrot.lane.b32.xlu0 %v2980, 32
    %v2983 = vpop.permute.xlu0 %2982
    %2985 = vst.msk [vmem:[#allocation4 + $0x6] sm:$0x3] %vm2665, %v2983
    %2986 = vst.msk [vmem:[#allocation4 + $0x8] sm:$0x3] %vm2667, %v2983
    %v2987 = vld [vmem:[%s2883] ss:$8 sm:$0x3]
    %v2988 = vld [vmem:[%s2881] ss:$8 sm:$0x3]
    %v2989 = vsel %vm2460, %v2987, %v2988
    %v2990 = vsel %vm133, %v2983, 0
    %2992 = vmatprep.subr.mxu0 0.0
    %2993 = vmatpush1.msra.mxu0 0.0
    %2994 = vmatprep.subr.mxu0 0.0
    %2995 = vmatpush1.msra.mxu0 0.0
    %2996 = vmatprep.subr.mxu0 0.0
    %2997 = vmatpush1.msra.mxu0 0.0
    %2998 = vmatprep.subr.mxu0 0.0
    %2999 = vmatpush1.msra.mxu0 0.0
    %3000 = vmatprep.subr.mxu0 0.0
    %3001 = vmatpush1.msra.mxu0 0.0
    %3002 = vmatprep.subr.mxu0 0.0
    %3003 = vmatpush1.msra.mxu0 0.0
    %3004 = vmatprep.subr.mxu0 0.0
    %3005 = vmatpush1.msra.mxu0 0.0
    %3006 = vmatprep.subr.mxu0 0.0
    %3007 = vmatpush1.msra.mxu0 0.0
    %3008 = vmatprep.subr.mxu0 0.0
    %3009 = vmatpush1.msra.mxu0 0.0
    %3010 = vmatprep.subr.mxu0 0.0
    %3011 = vmatpush1.msra.mxu0 0.0
    %3012 = vmatprep.subr.mxu0 0.0
    %3013 = vmatpush1.msra.mxu0 0.0
    %3014 = vmatprep.subr.mxu0 0.0
    %3015 = vmatpush1.msra.mxu0 0.0
    %3016 = vmatprep.subr.mxu0 0.0
    %3017 = vmatpush1.msra.mxu0 %v2560
    %3018 = vmatprep.subr.mxu0 0.0
    %3019 = vmatpush1.msra.mxu0 %v2559
    %3020 = vmatprep.subr.mxu0 0.0
    %3021 = vmatpush1.msra.mxu0 %v2558
    %3022 = vmatprep.subr.mxu0 0.0
    %3023 = vmatpush1.msra.mxu0 %v2557
    %3024 = vmatprep.subr.mxu0 0.0
    %3025 = vmatpush2.msra.mxu0 0.0
    %3026 = vmatprep.subr.mxu0 0.0
    %3027 = vmatpush2.msra.mxu0 0.0
    %3028 = vmatprep.subr.mxu0 0.0
    %3029 = vmatpush2.msra.mxu0 0.0
    %3030 = vmatprep.subr.mxu0 0.0
    %3031 = vmatpush2.msra.mxu0 0.0
    %3032 = vmatprep.subr.mxu0 0.0
    %3033 = vmatpush2.msra.mxu0 0.0
    %3034 = vmatprep.subr.mxu0 0.0
    %3035 = vmatpush2.msra.mxu0 0.0
    %3036 = vmatprep.subr.mxu0 0.0
    %3037 = vmatpush2.msra.mxu0 0.0
    %3038 = vmatprep.subr.mxu0 0.0
    %3039 = vmatpush2.msra.mxu0 0.0
    %3040 = vmatprep.subr.mxu0 0.0
    %3041 = vmatpush2.msra.mxu0 0.0
    %3042 = vmatprep.subr.mxu0 0.0
    %3043 = vmatpush2.msra.mxu0 0.0
    %3044 = vmatprep.subr.mxu0 0.0
    %3045 = vmatpush2.msra.mxu0 0.0
    %3046 = vmatprep.subr.mxu0 0.0
    %3047 = vmatpush2.msra.mxu0 0.0
    %3048 = vmatprep.subr.mxu0 0.0
    %3049 = vmatpush2.msra.mxu0 0.0
    %3050 = vmatprep.subr.mxu0 0.0
    %3051 = vmatpush2.msra.mxu0 0.0
    %3052 = vmatprep.subr.mxu0 0.0
    %3053 = vmatpush2.msra.mxu0 0.0
    %3054 = vmatprep.subr.mxu0 0.0
    %3055 = vmatpush2.msra.mxu0 0.0
    %3056 = vmatprep.mubr.f32.mxu0 0.0
    %3057 = vmatmul.mubr.f32.gmra.mxu0 %v2990
    %v3058 = vpop.f32.mrf.mxu0
    %v3059 = vadd.f32 0.0, %v3058
    %v3060 = vpop.f32.mrf.mxu0
    %3061 = vdwg.mxu0
    %v3062 = vadd.f32 %v2989, %v3059
    %v3063 = vmul.f32 %v3062, %v2464
    %v3064 = vtanh.pop %v3063
    %v3065 = vmul.f32 %v3064, 0.5
    %v3066 = vadd.f32 %v3065, 0.5
    %v3067 = vsel %vm2463, %v3064, %v3066
    %v3068 = vmul.f32 %v3067, %v2974
    %3070 = vrot.lane.b32.xlu0 %v3067, 64
    %v3071 = vpop.permute.xlu0 %3070
    %v3073 = vmul.f32 %v3067, %v3071
    %3075 = vrot.lane.b32.xlu0 %v3073, 32
    %v3076 = vpop.permute.xlu0 %3075
    %v3078 = vadd.f32 %v3068, %v3076
    %v3079 = vtanh.pop %v3078
    %3081 = vrot.lane.b32.xlu0 %v3079, 64
    %v3082 = vpop.permute.xlu0 %3081
    %v3084 = vmul.f32 %v3067, %v3082
    %3086 = vrot.lane.b32.xlu0 %v3084, 32
    %v3087 = vpop.permute.xlu0 %3086
    %3089 = vst.msk [vmem:[#allocation4 + $0x8] sm:$0x3] %vm2665, %v3087
    %3090 = vst.msk [vmem:[#allocation4 + $0x6] sm:$0x3] %vm2667, %v3087
    %v3091 = vld [vmem:[%s2777] ss:$8 sm:$0x3]
    %v3092 = vld [vmem:[%s2775] ss:$8 sm:$0x3]
    %v3093 = vsel %vm2460, %v3091, %v3092
    %v3094 = vsel %vm133, %v3087, 0
    %3096 = vmatprep.subr.mxu0 0.0
    %3097 = vmatpush1.msra.mxu0 0.0
    %3098 = vmatprep.subr.mxu0 0.0
    %3099 = vmatpush1.msra.mxu0 0.0
    %3100 = vmatprep.subr.mxu0 0.0
    %3101 = vmatpush1.msra.mxu0 0.0
    %3102 = vmatprep.subr.mxu0 0.0
    %3103 = vmatpush1.msra.mxu0 0.0
    %3104 = vmatprep.subr.mxu0 0.0
    %3105 = vmatpush1.msra.mxu0 0.0
    %3106 = vmatprep.subr.mxu0 0.0
    %3107 = vmatpush1.msra.mxu0 0.0
    %3108 = vmatprep.subr.mxu0 0.0
    %3109 = vmatpush1.msra.mxu0 0.0
    %3110 = vmatprep.subr.mxu0 0.0
    %3111 = vmatpush1.msra.mxu0 0.0
    %3112 = vmatprep.subr.mxu0 0.0
    %3113 = vmatpush1.msra.mxu0 0.0
    %3114 = vmatprep.subr.mxu0 0.0
    %3115 = vmatpush1.msra.mxu0 0.0
    %3116 = vmatprep.subr.mxu0 0.0
    %3117 = vmatpush1.msra.mxu0 0.0
    %3118 = vmatprep.subr.mxu0 0.0
    %3119 = vmatpush1.msra.mxu0 0.0
    %3120 = vmatprep.subr.mxu0 0.0
    %3121 = vmatpush1.msra.mxu0 %v2560
    %3122 = vmatprep.subr.mxu0 0.0
    %3123 = vmatpush1.msra.mxu0 %v2559
    %3124 = vmatprep.subr.mxu0 0.0
    %3125 = vmatpush1.msra.mxu0 %v2558
    %3126 = vmatprep.subr.mxu0 0.0
    %3127 = vmatpush1.msra.mxu0 %v2557
    %3128 = vmatprep.subr.mxu0 0.0
    %3129 = vmatpush2.msra.mxu0 0.0
    %3130 = vmatprep.subr.mxu0 0.0
    %3131 = vmatpush2.msra.mxu0 0.0
    %3132 = vmatprep.subr.mxu0 0.0
    %3133 = vmatpush2.msra.mxu0 0.0
    %3134 = vmatprep.subr.mxu0 0.0
    %3135 = vmatpush2.msra.mxu0 0.0
    %3136 = vmatprep.subr.mxu0 0.0
    %3137 = vmatpush2.msra.mxu0 0.0
    %3138 = vmatprep.subr.mxu0 0.0
    %3139 = vmatpush2.msra.mxu0 0.0
    %3140 = vmatprep.subr.mxu0 0.0
    %3141 = vmatpush2.msra.mxu0 0.0
    %3142 = vmatprep.subr.mxu0 0.0
    %3143 = vmatpush2.msra.mxu0 0.0
    %3144 = vmatprep.subr.mxu0 0.0
    %3145 = vmatpush2.msra.mxu0 0.0
    %3146 = vmatprep.subr.mxu0 0.0
    %3147 = vmatpush2.msra.mxu0 0.0
    %3148 = vmatprep.subr.mxu0 0.0
    %3149 = vmatpush2.msra.mxu0 0.0
    %3150 = vmatprep.subr.mxu0 0.0
    %3151 = vmatpush2.msra.mxu0 0.0
    %3152 = vmatprep.subr.mxu0 0.0
    %3153 = vmatpush2.msra.mxu0 0.0
    %3154 = vmatprep.subr.mxu0 0.0
    %3155 = vmatpush2.msra.mxu0 0.0
    %3156 = vmatprep.subr.mxu0 0.0
    %3157 = vmatpush2.msra.mxu0 0.0
    %3158 = vmatprep.subr.mxu0 0.0
    %3159 = vmatpush2.msra.mxu0 0.0
    %3160 = vmatprep.mubr.f32.mxu0 0.0
    %3161 = vmatmul.mubr.f32.gmra.mxu0 %v3094
    %v3162 = vpop.f32.mrf.mxu0
    %v3163 = vadd.f32 0.0, %v3162
    %v3164 = vpop.f32.mrf.mxu0
    %3165 = vdwg.mxu0
    %v3166 = vadd.f32 %v3093, %v3163
    %v3167 = vmul.f32 %v3166, %v2464
    %v3168 = vtanh.pop %v3167
    %v3169 = vmul.f32 %v3168, 0.5
    %v3170 = vadd.f32 %v3169, 0.5
    %v3171 = vsel %vm2463, %v3168, %v3170
    %v3172 = vmul.f32 %v3171, %v3078
    %3174 = vrot.lane.b32.xlu0 %v3171, 64
    %v3175 = vpop.permute.xlu0 %3174
    %v3177 = vmul.f32 %v3171, %v3175
    %3179 = vrot.lane.b32.xlu0 %v3177, 32
    %v3180 = vpop.permute.xlu0 %3179
    %v3182 = vadd.f32 %v3172, %v3180
    %v3183 = vtanh.pop %v3182
    %3185 = vrot.lane.b32.xlu0 %v3183, 64
    %v3186 = vpop.permute.xlu0 %3185
    %v3188 = vmul.f32 %v3171, %v3186
    %3190 = vrot.lane.b32.xlu0 %v3188, 32
    %v3191 = vpop.permute.xlu0 %3190
    %3193 = vst.msk [vmem:[#allocation4 + $0xa] sm:$0x3] %vm2665, %v3191
    %3194 = vst.msk [vmem:[#allocation4 + $0x4] sm:$0x3] %vm2667, %v3191
    %v3195 = vld [vmem:[%s2671] ss:$8 sm:$0x3]
    %v3196 = vld [vmem:[%s2669] ss:$8 sm:$0x3]
    %v3197 = vsel %vm2460, %v3195, %v3196
    %v3198 = vsel %vm133, %v3191, 0
    %3200 = vmatprep.subr.mxu0 0.0
    %3201 = vmatpush1.msra.mxu0 0.0
    %3202 = vmatprep.subr.mxu0 0.0
    %3203 = vmatpush1.msra.mxu0 0.0
    %3204 = vmatprep.subr.mxu0 0.0
    %3205 = vmatpush1.msra.mxu0 0.0
    %3206 = vmatprep.subr.mxu0 0.0
    %3207 = vmatpush1.msra.mxu0 0.0
    %3208 = vmatprep.subr.mxu0 0.0
    %3209 = vmatpush1.msra.mxu0 0.0
    %3210 = vmatprep.subr.mxu0 0.0
    %3211 = vmatpush1.msra.mxu0 0.0
    %3212 = vmatprep.subr.mxu0 0.0
    %3213 = vmatpush1.msra.mxu0 0.0
    %3214 = vmatprep.subr.mxu0 0.0
    %3215 = vmatpush1.msra.mxu0 0.0
    %3216 = vmatprep.subr.mxu0 0.0
    %3217 = vmatpush1.msra.mxu0 0.0
    %3218 = vmatprep.subr.mxu0 0.0
    %3219 = vmatpush1.msra.mxu0 0.0
    %3220 = vmatprep.subr.mxu0 0.0
    %3221 = vmatpush1.msra.mxu0 0.0
    %3222 = vmatprep.subr.mxu0 0.0
    %3223 = vmatpush1.msra.mxu0 0.0
    %3224 = vmatprep.subr.mxu0 0.0
    %3225 = vmatpush1.msra.mxu0 %v2560
    %3226 = vmatprep.subr.mxu0 0.0
    %3227 = vmatpush1.msra.mxu0 %v2559
    %3228 = vmatprep.subr.mxu0 0.0
    %3229 = vmatpush1.msra.mxu0 %v2558
    %3230 = vmatprep.subr.mxu0 0.0
    %3231 = vmatpush1.msra.mxu0 %v2557
    %3232 = vmatprep.subr.mxu0 0.0
    %3233 = vmatpush2.msra.mxu0 0.0
    %3234 = vmatprep.subr.mxu0 0.0
    %3235 = vmatpush2.msra.mxu0 0.0
    %3236 = vmatprep.subr.mxu0 0.0
    %3237 = vmatpush2.msra.mxu0 0.0
    %3238 = vmatprep.subr.mxu0 0.0
    %3239 = vmatpush2.msra.mxu0 0.0
    %3240 = vmatprep.subr.mxu0 0.0
    %3241 = vmatpush2.msra.mxu0 0.0
    %3242 = vmatprep.subr.mxu0 0.0
    %3243 = vmatpush2.msra.mxu0 0.0
    %3244 = vmatprep.subr.mxu0 0.0
    %3245 = vmatpush2.msra.mxu0 0.0
    %3246 = vmatprep.subr.mxu0 0.0
    %3247 = vmatpush2.msra.mxu0 0.0
    %3248 = vmatprep.subr.mxu0 0.0
    %3249 = vmatpush2.msra.mxu0 0.0
    %3250 = vmatprep.subr.mxu0 0.0
    %3251 = vmatpush2.msra.mxu0 0.0
    %3252 = vmatprep.subr.mxu0 0.0
    %3253 = vmatpush2.msra.mxu0 0.0
    %3254 = vmatprep.subr.mxu0 0.0
    %3255 = vmatpush2.msra.mxu0 0.0
    %3256 = vmatprep.subr.mxu0 0.0
    %3257 = vmatpush2.msra.mxu0 0.0
    %3258 = vmatprep.subr.mxu0 0.0
    %3259 = vmatpush2.msra.mxu0 0.0
    %3260 = vmatprep.subr.mxu0 0.0
    %3261 = vmatpush2.msra.mxu0 0.0
    %3262 = vmatprep.subr.mxu0 0.0
    %3263 = vmatpush2.msra.mxu0 0.0
    %3264 = vmatprep.mubr.f32.mxu0 0.0
    %3265 = vmatmul.mubr.f32.gmra.mxu0 %v3198
    %v3266 = vpop.f32.mrf.mxu0
    %v3267 = vadd.f32 0.0, %v3266
    %v3268 = vpop.f32.mrf.mxu0
    %3269 = vdwg.mxu0
    %v3270 = vadd.f32 %v3197, %v3267
    %v3271 = vmul.f32 %v3270, %v2464
    %v3272 = vtanh.pop %v3271
    %v3273 = vmul.f32 %v3272, 0.5
    %v3274 = vadd.f32 %v3273, 0.5
    %v3275 = vsel %vm2463, %v3272, %v3274
    %v3276 = vmul.f32 %v3275, %v3182
    %3278 = vrot.lane.b32.xlu0 %v3275, 64
    %v3279 = vpop.permute.xlu0 %3278
    %v3281 = vmul.f32 %v3275, %v3279
    %3283 = vrot.lane.b32.xlu0 %v3281, 32
    %v3284 = vpop.permute.xlu0 %3283
    %v3286 = vadd.f32 %v3276, %v3284
    %v3287 = vtanh.pop %v3286
    %3289 = vrot.lane.b32.xlu0 %v3287, 64
    %v3290 = vpop.permute.xlu0 %3289
    %v3292 = vmul.f32 %v3275, %v3290
    %3294 = vrot.lane.b32.xlu0 %v3292, 32
    %v3295 = vpop.permute.xlu0 %3294
    %3297 = vst.msk [vmem:[#allocation4 + $0xc] sm:$0x3] %vm2665, %v3295
    %3298 = vst.msk [vmem:[#allocation4 + $0x2] sm:$0x3] %vm2667, %v3295
    %v3299 = vld [vmem:[%s2562] ss:$8 sm:$0x3]
    %v3300 = vld [vmem:[#allocation3] ss:$8 sm:$0x3]
    %v3301 = vsel %vm2460, %v3299, %v3300
    %v3302 = vsel %vm133, %v3295, 0
    %3304 = vmatprep.subr.mxu0 0.0
    %3305 = vmatpush1.msra.mxu0 0.0
    %3306 = vmatprep.subr.mxu0 0.0
    %3307 = vmatpush1.msra.mxu0 0.0
    %3308 = vmatprep.subr.mxu0 0.0
    %3309 = vmatpush1.msra.mxu0 0.0
    %3310 = vmatprep.subr.mxu0 0.0
    %3311 = vmatpush1.msra.mxu0 0.0
    %3312 = vmatprep.subr.mxu0 0.0
    %3313 = vmatpush1.msra.mxu0 0.0
    %3314 = vmatprep.subr.mxu0 0.0
    %3315 = vmatpush1.msra.mxu0 0.0
    %3316 = vmatprep.subr.mxu0 0.0
    %3317 = vmatpush1.msra.mxu0 0.0
    %3318 = vmatprep.subr.mxu0 0.0
    %3319 = vmatpush1.msra.mxu0 0.0
    %3320 = vmatprep.subr.mxu0 0.0
    %3321 = vmatpush1.msra.mxu0 0.0
    %3322 = vmatprep.subr.mxu0 0.0
    %3323 = vmatpush1.msra.mxu0 0.0
    %3324 = vmatprep.subr.mxu0 0.0
    %3325 = vmatpush1.msra.mxu0 0.0
    %3326 = vmatprep.subr.mxu0 0.0
    %3327 = vmatpush1.msra.mxu0 0.0
    %3328 = vmatprep.subr.mxu0 0.0
    %3329 = vmatpush1.msra.mxu0 %v2560
    %3330 = vmatprep.subr.mxu0 0.0
    %3331 = vmatpush1.msra.mxu0 %v2559
    %3332 = vmatprep.subr.mxu0 0.0
    %3333 = vmatpush1.msra.mxu0 %v2558
    %3334 = vmatprep.subr.mxu0 0.0
    %3335 = vmatpush1.msra.mxu0 %v2557
    %3336 = vmatprep.subr.mxu0 0.0
    %3337 = vmatpush2.msra.mxu0 0.0
    %3338 = vmatprep.subr.mxu0 0.0
    %3339 = vmatpush2.msra.mxu0 0.0
    %3340 = vmatprep.subr.mxu0 0.0
    %3341 = vmatpush2.msra.mxu0 0.0
    %3342 = vmatprep.subr.mxu0 0.0
    %3343 = vmatpush2.msra.mxu0 0.0
    %3344 = vmatprep.subr.mxu0 0.0
    %3345 = vmatpush2.msra.mxu0 0.0
    %3346 = vmatprep.subr.mxu0 0.0
    %3347 = vmatpush2.msra.mxu0 0.0
    %3348 = vmatprep.subr.mxu0 0.0
    %3349 = vmatpush2.msra.mxu0 0.0
    %3350 = vmatprep.subr.mxu0 0.0
    %3351 = vmatpush2.msra.mxu0 0.0
    %3352 = vmatprep.subr.mxu0 0.0
    %3353 = vmatpush2.msra.mxu0 0.0
    %3354 = vmatprep.subr.mxu0 0.0
    %3355 = vmatpush2.msra.mxu0 0.0
    %3356 = vmatprep.subr.mxu0 0.0
    %3357 = vmatpush2.msra.mxu0 0.0
    %3358 = vmatprep.subr.mxu0 0.0
    %3359 = vmatpush2.msra.mxu0 0.0
    %3360 = vmatprep.subr.mxu0 0.0
    %3361 = vmatpush2.msra.mxu0 0.0
    %3362 = vmatprep.subr.mxu0 0.0
    %3363 = vmatpush2.msra.mxu0 0.0
    %3364 = vmatprep.subr.mxu0 0.0
    %3365 = vmatpush2.msra.mxu0 0.0
    %3366 = vmatprep.subr.mxu0 0.0
    %3367 = vmatpush2.msra.mxu0 0.0
    %3368 = vmatprep.mubr.f32.mxu0 0.0
    %3369 = vmatmul.mubr.f32.gmra.mxu0 %v3302
    %v3370 = vpop.f32.mrf.mxu0
    %v3371 = vadd.f32 0.0, %v3370
    %v3372 = vpop.f32.mrf.mxu0
    %3373 = vdwg.mxu0
    %v3374 = vadd.f32 %v3301, %v3371
    %v3375 = vmul.f32 %v3374, %v2464
    %v3376 = vtanh.pop %v3375
    %v3377 = vmul.f32 %v3376, 0.5
    %v3378 = vadd.f32 %v3377, 0.5
    %v3379 = vsel %vm2463, %v3376, %v3378
    %v3380 = vmul.f32 %v3379, %v3286
    %3382 = vrot.lane.b32.xlu0 %v3379, 64
    %v3383 = vpop.permute.xlu0 %3382
    %v3385 = vmul.f32 %v3379, %v3383
    %3387 = vrot.lane.b32.xlu0 %v3385, 32
    %v3388 = vpop.permute.xlu0 %3387
    %v3390 = vadd.f32 %v3380, %v3388
    %v3391 = vtanh.pop %v3390
    %3393 = vrot.lane.b32.xlu0 %v3391, 64
    %v3394 = vpop.permute.xlu0 %3393
    %v3396 = vmul.f32 %v3379, %v3394
    %3398 = vrot.lane.b32.xlu0 %v3396, 32
    %v3399 = vpop.permute.xlu0 %3398
    %3401 = vst.msk [vmem:[#allocation4 + $0xe] sm:$0x3] %vm2665, %v3399
    %3402 = vst.msk [vmem:[#allocation4] sm:$0x3] %vm2667, %v3399
    %v3403 = vld [vmem:[#allocation4] sm:$0xff]
    %v3404 = vld [vmem:[#allocation4 + $0x8] sm:$0xff]
    %v3405 = vld [vmem:[#allocation7 + $0x207] sm:$0xff]
    %v3406 = vld [vmem:[#allocation7 + $0x20f] sm:$0xff]
    %v3407 = vld [vmem:[#allocation7 + $0x217] sm:$0xff]
    %v3408 = vld [vmem:[#allocation7 + $0x21f] sm:$0xff]
    %v3409 = vld [vmem:[#allocation7 + $0x247] sm:$0x1]
    %v3410 = vlaneseq
    %v3411 = vshrl.u32 %v3410, 7
    %v3412 = vsub.s32 0, %v3411
    %v3413 = vrot.slane %v3409, %v3412
    %v3415 = vsel %vm133, %v3403, 0
    %v3418 = vsel %vm133, %v3404, 0
    %3420 = vmatprep.subr.mxu0 0.0
    %3421 = vmatpush1.msra.mxu0 0.0
    %3422 = vmatprep.subr.mxu0 0.0
    %3423 = vmatpush1.msra.mxu0 0.0
    %3424 = vmatprep.subr.mxu0 0.0
    %3425 = vmatpush1.msra.mxu0 0.0
    %3426 = vmatprep.subr.mxu0 0.0
    %3427 = vmatpush1.msra.mxu0 0.0
    %3428 = vmatprep.subr.mxu0 0.0
    %3429 = vmatpush1.msra.mxu0 0.0
    %3430 = vmatprep.subr.mxu0 0.0
    %3431 = vmatpush1.msra.mxu0 0.0
    %3432 = vmatprep.subr.mxu0 0.0
    %3433 = vmatpush1.msra.mxu0 0.0
    %3434 = vmatprep.subr.mxu0 0.0
    %3435 = vmatpush1.msra.mxu0 0.0
    %3436 = vmatprep.subr.mxu0 0.0
    %3437 = vmatpush1.msra.mxu0 0.0
    %3438 = vmatprep.subr.mxu0 0.0
    %3439 = vmatpush1.msra.mxu0 0.0
    %3440 = vmatprep.subr.mxu0 0.0
    %3441 = vmatpush1.msra.mxu0 0.0
    %3442 = vmatprep.subr.mxu0 0.0
    %3443 = vmatpush1.msra.mxu0 0.0
    %3444 = vmatprep.subr.mxu0 0.0
    %3445 = vmatpush1.msra.mxu0 %v3408
    %3446 = vmatprep.subr.mxu0 0.0
    %3447 = vmatpush1.msra.mxu0 %v3407
    %3448 = vmatprep.subr.mxu0 0.0
    %3449 = vmatpush1.msra.mxu0 %v3406
    %3450 = vmatprep.subr.mxu0 0.0
    %3451 = vmatpush1.msra.mxu0 %v3405
    %3452 = vmatprep.subr.mxu0 0.0
    %3453 = vmatpush2.msra.mxu0 0.0
    %3454 = vmatprep.subr.mxu0 0.0
    %3455 = vmatpush2.msra.mxu0 0.0
    %3456 = vmatprep.subr.mxu0 0.0
    %3457 = vmatpush2.msra.mxu0 0.0
    %3458 = vmatprep.subr.mxu0 0.0
    %3459 = vmatpush2.msra.mxu0 0.0
    %3460 = vmatprep.subr.mxu0 0.0
    %3461 = vmatpush2.msra.mxu0 0.0
    %3462 = vmatprep.subr.mxu0 0.0
    %3463 = vmatpush2.msra.mxu0 0.0
    %3464 = vmatprep.subr.mxu0 0.0
    %3465 = vmatpush2.msra.mxu0 0.0
    %3466 = vmatprep.subr.mxu0 0.0
    %3467 = vmatpush2.msra.mxu0 0.0
    %3468 = vmatprep.subr.mxu0 0.0
    %3469 = vmatpush2.msra.mxu0 0.0
    %3470 = vmatprep.subr.mxu0 0.0
    %3471 = vmatpush2.msra.mxu0 0.0
    %3472 = vmatprep.subr.mxu0 0.0
    %3473 = vmatpush2.msra.mxu0 0.0
    %3474 = vmatprep.subr.mxu0 0.0
    %3475 = vmatpush2.msra.mxu0 0.0
    %3476 = vmatprep.subr.mxu0 0.0
    %3477 = vmatpush2.msra.mxu0 0.0
    %3478 = vmatprep.subr.mxu0 0.0
    %3479 = vmatpush2.msra.mxu0 0.0
    %3480 = vmatprep.subr.mxu0 0.0
    %3481 = vmatpush2.msra.mxu0 0.0
    %3482 = vmatprep.subr.mxu0 0.0
    %3483 = vmatpush2.msra.mxu0 0.0
    %3484 = vmatprep.mubr.f32.mxu0 0.0
    %3485 = vmatmul.mubr.f32.gmra.mxu0 %v3415
    %v3486 = vpop.f32.mrf.mxu0
    %v3487 = vadd.f32 %v3413, %v3486
    %v3488 = vpop.f32.mrf.mxu0
    %3489 = vmatprep.mubr.f32.mxu0 0.0
    %3490 = vmatmul.mubr.f32.gmra.mxu0 %v3418
    %v3491 = vpop.f32.mrf.mxu0
    %v3492 = vadd.f32 %v3413, %v3491
    %v3493 = vpop.f32.mrf.mxu0
    %3494 = vdwg.mxu0
    %3495 = vst [vmem:[#allocation3] sm:$0xff] %v3487
    %3496 = vst [vmem:[#allocation3 + $0x8] sm:$0xff] %v3492
    %v3497 = vld [vmem:[#allocation7 + $0x227] sm:$0xff]
    %v3498 = vld [vmem:[#allocation7 + $0x22f] sm:$0xff]
    %v3499 = vld [vmem:[#allocation7 + $0x237] sm:$0xff]
    %v3500 = vld [vmem:[#allocation7 + $0x23f] sm:$0xff]
    %v3501 = vld [vmem:[#allocation3] sm:$0x3]
    %v3502 = vld [vmem:[#allocation3 + $0xe] sm:$0x3]
    %v3503 = vsel %vm2460, %v3501, %v3502
    %3504 = vmatprep.subr.mxu0 0.0
    %3505 = vmatpush1.msra.mxu0 0.0
    %3506 = vmatprep.subr.mxu0 0.0
    %3507 = vmatpush1.msra.mxu0 0.0
    %3508 = vmatprep.subr.mxu0 0.0
    %3509 = vmatpush1.msra.mxu0 0.0
    %3510 = vmatprep.subr.mxu0 0.0
    %3511 = vmatpush1.msra.mxu0 0.0
    %3512 = vmatprep.subr.mxu0 0.0
    %3513 = vmatpush1.msra.mxu0 0.0
    %3514 = vmatprep.subr.mxu0 0.0
    %3515 = vmatpush1.msra.mxu0 0.0
    %3516 = vmatprep.subr.mxu0 0.0
    %3517 = vmatpush1.msra.mxu0 0.0
    %3518 = vmatprep.subr.mxu0 0.0
    %3519 = vmatpush1.msra.mxu0 0.0
    %3520 = vmatprep.subr.mxu0 0.0
    %3521 = vmatpush1.msra.mxu0 0.0
    %3522 = vmatprep.subr.mxu0 0.0
    %3523 = vmatpush1.msra.mxu0 0.0
    %3524 = vmatprep.subr.mxu0 0.0
    %3525 = vmatpush1.msra.mxu0 0.0
    %3526 = vmatprep.subr.mxu0 0.0
    %3527 = vmatpush1.msra.mxu0 0.0
    %3528 = vmatprep.subr.mxu0 0.0
    %3529 = vmatpush1.msra.mxu0 %v3500
    %3530 = vmatprep.subr.mxu0 0.0
    %3531 = vmatpush1.msra.mxu0 %v3499
    %3532 = vmatprep.subr.mxu0 0.0
    %3533 = vmatpush1.msra.mxu0 %v3498
    %3534 = vmatprep.subr.mxu0 0.0
    %3535 = vmatpush1.msra.mxu0 %v3497
    %3536 = vmatprep.subr.mxu0 0.0
    %3537 = vmatpush2.msra.mxu0 0.0
    %3538 = vmatprep.subr.mxu0 0.0
    %3539 = vmatpush2.msra.mxu0 0.0
    %3540 = vmatprep.subr.mxu0 0.0
    %3541 = vmatpush2.msra.mxu0 0.0
    %3542 = vmatprep.subr.mxu0 0.0
    %3543 = vmatpush2.msra.mxu0 0.0
    %3544 = vmatprep.subr.mxu0 0.0
    %3545 = vmatpush2.msra.mxu0 0.0
    %3546 = vmatprep.subr.mxu0 0.0
    %3547 = vmatpush2.msra.mxu0 0.0
    %3548 = vmatprep.subr.mxu0 0.0
    %3549 = vmatpush2.msra.mxu0 0.0
    %3550 = vmatprep.subr.mxu0 0.0
    %3551 = vmatpush2.msra.mxu0 0.0
    %3552 = vmatprep.subr.mxu0 0.0
    %3553 = vmatpush2.msra.mxu0 0.0
    %3554 = vmatprep.subr.mxu0 0.0
    %3555 = vmatpush2.msra.mxu0 0.0
    %3556 = vmatprep.subr.mxu0 0.0
    %3557 = vmatpush2.msra.mxu0 0.0
    %3558 = vmatprep.subr.mxu0 0.0
    %3559 = vmatpush2.msra.mxu0 0.0
    %3560 = vmatprep.subr.mxu0 0.0
    %3561 = vmatpush2.msra.mxu0 0.0
    %3562 = vmatprep.subr.mxu0 0.0
    %3563 = vmatpush2.msra.mxu0 0.0
    %3564 = vmatprep.subr.mxu0 0.0
    %3565 = vmatpush2.msra.mxu0 0.0
    %3566 = vmatprep.subr.mxu0 0.0
    %3567 = vmatpush2.msra.mxu0 0.0
    %3568 = vmatprep.mubr.f32.mxu0 0.0
    %3569 = vmatmul.mubr.f32.gmra.mxu0 %v2566
    %v3570 = vpop.f32.mrf.mxu0
    %v3571 = vadd.f32 0.0, %v3570
    %v3572 = vpop.f32.mrf.mxu0
    %3573 = vdwg.mxu0
    %v3574 = vadd.f32 %v3503, %v3571
    %v3575 = vmul.f32 %v3574, %v2464
    %v3576 = vtanh.pop %v3575
    %v3577 = vmul.f32 %v3576, 0.5
    %v3578 = vadd.f32 %v3577, 0.5
    %v3579 = vsel %vm2463, %v3576, %v3578
    %v3580 = vmul.f32 %v3579, 0.0
    %3582 = vrot.lane.b32.xlu0 %v3579, 64
    %v3583 = vpop.permute.xlu0 %3582
    %v3585 = vmul.f32 %v3579, %v3583
    %3587 = vrot.lane.b32.xlu0 %v3585, 32
    %v3588 = vpop.permute.xlu0 %3587
    %v3590 = vadd.f32 %v3580, %v3588
    %v3591 = vtanh.pop %v3590
    %3593 = vrot.lane.b32.xlu0 %v3591, 64
    %v3594 = vpop.permute.xlu0 %3593
    %v3596 = vmul.f32 %v3579, %v3594
    %3598 = vrot.lane.b32.xlu0 %v3596, 32
    %v3599 = vpop.permute.xlu0 %3598
    %3601 = vst.msk [vmem:[#allocation4] sm:$0x3] %vm2665, %v3599
    %3602 = vst.msk [vmem:[#allocation4 + $0xe] sm:$0x3] %vm2667, %v3599
    %v3603 = vld [vmem:[#allocation3 + $0x2] sm:$0x3]
    %v3604 = vld [vmem:[#allocation3 + $0xc] sm:$0x3]
    %v3605 = vsel %vm2460, %v3603, %v3604
    %v3606 = vsel %vm133, %v3599, 0
    %3608 = vmatprep.subr.mxu0 0.0
    %3609 = vmatpush1.msra.mxu0 0.0
    %3610 = vmatprep.subr.mxu0 0.0
    %3611 = vmatpush1.msra.mxu0 0.0
    %3612 = vmatprep.subr.mxu0 0.0
    %3613 = vmatpush1.msra.mxu0 0.0
    %3614 = vmatprep.subr.mxu0 0.0
    %3615 = vmatpush1.msra.mxu0 0.0
    %3616 = vmatprep.subr.mxu0 0.0
    %3617 = vmatpush1.msra.mxu0 0.0
    %3618 = vmatprep.subr.mxu0 0.0
    %3619 = vmatpush1.msra.mxu0 0.0
    %3620 = vmatprep.subr.mxu0 0.0
    %3621 = vmatpush1.msra.mxu0 0.0
    %3622 = vmatprep.subr.mxu0 0.0
    %3623 = vmatpush1.msra.mxu0 0.0
    %3624 = vmatprep.subr.mxu0 0.0
    %3625 = vmatpush1.msra.mxu0 0.0
    %3626 = vmatprep.subr.mxu0 0.0
    %3627 = vmatpush1.msra.mxu0 0.0
    %3628 = vmatprep.subr.mxu0 0.0
    %3629 = vmatpush1.msra.mxu0 0.0
    %3630 = vmatprep.subr.mxu0 0.0
    %3631 = vmatpush1.msra.mxu0 0.0
    %3632 = vmatprep.subr.mxu0 0.0
    %3633 = vmatpush1.msra.mxu0 %v3500
    %3634 = vmatprep.subr.mxu0 0.0
    %3635 = vmatpush1.msra.mxu0 %v3499
    %3636 = vmatprep.subr.mxu0 0.0
    %3637 = vmatpush1.msra.mxu0 %v3498
    %3638 = vmatprep.subr.mxu0 0.0
    %3639 = vmatpush1.msra.mxu0 %v3497
    %3640 = vmatprep.subr.mxu0 0.0
    %3641 = vmatpush2.msra.mxu0 0.0
    %3642 = vmatprep.subr.mxu0 0.0
    %3643 = vmatpush2.msra.mxu0 0.0
    %3644 = vmatprep.subr.mxu0 0.0
    %3645 = vmatpush2.msra.mxu0 0.0
    %3646 = vmatprep.subr.mxu0 0.0
    %3647 = vmatpush2.msra.mxu0 0.0
    %3648 = vmatprep.subr.mxu0 0.0
    %3649 = vmatpush2.msra.mxu0 0.0
    %3650 = vmatprep.subr.mxu0 0.0
    %3651 = vmatpush2.msra.mxu0 0.0
    %3652 = vmatprep.subr.mxu0 0.0
    %3653 = vmatpush2.msra.mxu0 0.0
    %3654 = vmatprep.subr.mxu0 0.0
    %3655 = vmatpush2.msra.mxu0 0.0
    %3656 = vmatprep.subr.mxu0 0.0
    %3657 = vmatpush2.msra.mxu0 0.0
    %3658 = vmatprep.subr.mxu0 0.0
    %3659 = vmatpush2.msra.mxu0 0.0
    %3660 = vmatprep.subr.mxu0 0.0
    %3661 = vmatpush2.msra.mxu0 0.0
    %3662 = vmatprep.subr.mxu0 0.0
    %3663 = vmatpush2.msra.mxu0 0.0
    %3664 = vmatprep.subr.mxu0 0.0
    %3665 = vmatpush2.msra.mxu0 0.0
    %3666 = vmatprep.subr.mxu0 0.0
    %3667 = vmatpush2.msra.mxu0 0.0
    %3668 = vmatprep.subr.mxu0 0.0
    %3669 = vmatpush2.msra.mxu0 0.0
    %3670 = vmatprep.subr.mxu0 0.0
    %3671 = vmatpush2.msra.mxu0 0.0
    %3672 = vmatprep.mubr.f32.mxu0 0.0
    %3673 = vmatmul.mubr.f32.gmra.mxu0 %v3606
    %v3674 = vpop.f32.mrf.mxu0
    %v3675 = vadd.f32 0.0, %v3674
    %v3676 = vpop.f32.mrf.mxu0
    %3677 = vdwg.mxu0
    %v3678 = vadd.f32 %v3605, %v3675
    %v3679 = vmul.f32 %v3678, %v2464
    %v3680 = vtanh.pop %v3679
    %v3681 = vmul.f32 %v3680, 0.5
    %v3682 = vadd.f32 %v3681, 0.5
    %v3683 = vsel %vm2463, %v3680, %v3682
    %v3684 = vmul.f32 %v3683, %v3590
    %3686 = vrot.lane.b32.xlu0 %v3683, 64
    %v3687 = vpop.permute.xlu0 %3686
    %v3689 = vmul.f32 %v3683, %v3687
    %3691 = vrot.lane.b32.xlu0 %v3689, 32
    %v3692 = vpop.permute.xlu0 %3691
    %v3694 = vadd.f32 %v3684, %v3692
    %v3695 = vtanh.pop %v3694
    %3697 = vrot.lane.b32.xlu0 %v3695, 64
    %v3698 = vpop.permute.xlu0 %3697
    %v3700 = vmul.f32 %v3683, %v3698
    %3702 = vrot.lane.b32.xlu0 %v3700, 32
    %v3703 = vpop.permute.xlu0 %3702
    %3705 = vst.msk [vmem:[#allocation4 + $0x2] sm:$0x3] %vm2665, %v3703
    %3706 = vst.msk [vmem:[#allocation4 + $0xc] sm:$0x3] %vm2667, %v3703
    %v3707 = vld [vmem:[#allocation3 + $0x4] sm:$0x3]
    %v3708 = vld [vmem:[#allocation3 + $0xa] sm:$0x3]
    %v3709 = vsel %vm2460, %v3707, %v3708
    %v3710 = vsel %vm133, %v3703, 0
    %3712 = vmatprep.subr.mxu0 0.0
    %3713 = vmatpush1.msra.mxu0 0.0
    %3714 = vmatprep.subr.mxu0 0.0
    %3715 = vmatpush1.msra.mxu0 0.0
    %3716 = vmatprep.subr.mxu0 0.0
    %3717 = vmatpush1.msra.mxu0 0.0
    %3718 = vmatprep.subr.mxu0 0.0
    %3719 = vmatpush1.msra.mxu0 0.0
    %3720 = vmatprep.subr.mxu0 0.0
    %3721 = vmatpush1.msra.mxu0 0.0
    %3722 = vmatprep.subr.mxu0 0.0
    %3723 = vmatpush1.msra.mxu0 0.0
    %3724 = vmatprep.subr.mxu0 0.0
    %3725 = vmatpush1.msra.mxu0 0.0
    %3726 = vmatprep.subr.mxu0 0.0
    %3727 = vmatpush1.msra.mxu0 0.0
    %3728 = vmatprep.subr.mxu0 0.0
    %3729 = vmatpush1.msra.mxu0 0.0
    %3730 = vmatprep.subr.mxu0 0.0
    %3731 = vmatpush1.msra.mxu0 0.0
    %3732 = vmatprep.subr.mxu0 0.0
    %3733 = vmatpush1.msra.mxu0 0.0
    %3734 = vmatprep.subr.mxu0 0.0
    %3735 = vmatpush1.msra.mxu0 0.0
    %3736 = vmatprep.subr.mxu0 0.0
    %3737 = vmatpush1.msra.mxu0 %v3500
    %3738 = vmatprep.subr.mxu0 0.0
    %3739 = vmatpush1.msra.mxu0 %v3499
    %3740 = vmatprep.subr.mxu0 0.0
    %3741 = vmatpush1.msra.mxu0 %v3498
    %3742 = vmatprep.subr.mxu0 0.0
    %3743 = vmatpush1.msra.mxu0 %v3497
    %3744 = vmatprep.subr.mxu0 0.0
    %3745 = vmatpush2.msra.mxu0 0.0
    %3746 = vmatprep.subr.mxu0 0.0
    %3747 = vmatpush2.msra.mxu0 0.0
    %3748 = vmatprep.subr.mxu0 0.0
    %3749 = vmatpush2.msra.mxu0 0.0
    %3750 = vmatprep.subr.mxu0 0.0
    %3751 = vmatpush2.msra.mxu0 0.0
    %3752 = vmatprep.subr.mxu0 0.0
    %3753 = vmatpush2.msra.mxu0 0.0
    %3754 = vmatprep.subr.mxu0 0.0
    %3755 = vmatpush2.msra.mxu0 0.0
    %3756 = vmatprep.subr.mxu0 0.0
    %3757 = vmatpush2.msra.mxu0 0.0
    %3758 = vmatprep.subr.mxu0 0.0
    %3759 = vmatpush2.msra.mxu0 0.0
    %3760 = vmatprep.subr.mxu0 0.0
    %3761 = vmatpush2.msra.mxu0 0.0
    %3762 = vmatprep.subr.mxu0 0.0
    %3763 = vmatpush2.msra.mxu0 0.0
    %3764 = vmatprep.subr.mxu0 0.0
    %3765 = vmatpush2.msra.mxu0 0.0
    %3766 = vmatprep.subr.mxu0 0.0
    %3767 = vmatpush2.msra.mxu0 0.0
    %3768 = vmatprep.subr.mxu0 0.0
    %3769 = vmatpush2.msra.mxu0 0.0
    %3770 = vmatprep.subr.mxu0 0.0
    %3771 = vmatpush2.msra.mxu0 0.0
    %3772 = vmatprep.subr.mxu0 0.0
    %3773 = vmatpush2.msra.mxu0 0.0
    %3774 = vmatprep.subr.mxu0 0.0
    %3775 = vmatpush2.msra.mxu0 0.0
    %3776 = vmatprep.mubr.f32.mxu0 0.0
    %3777 = vmatmul.mubr.f32.gmra.mxu0 %v3710
    %v3778 = vpop.f32.mrf.mxu0
    %v3779 = vadd.f32 0.0, %v3778
    %v3780 = vpop.f32.mrf.mxu0
    %3781 = vdwg.mxu0
    %v3782 = vadd.f32 %v3709, %v3779
    %v3783 = vmul.f32 %v3782, %v2464
    %v3784 = vtanh.pop %v3783
    %v3785 = vmul.f32 %v3784, 0.5
    %v3786 = vadd.f32 %v3785, 0.5
    %v3787 = vsel %vm2463, %v3784, %v3786
    %v3788 = vmul.f32 %v3787, %v3694
    %3790 = vrot.lane.b32.xlu0 %v3787, 64
    %v3791 = vpop.permute.xlu0 %3790
    %v3793 = vmul.f32 %v3787, %v3791
    %3795 = vrot.lane.b32.xlu0 %v3793, 32
    %v3796 = vpop.permute.xlu0 %3795
    %v3798 = vadd.f32 %v3788, %v3796
    %v3799 = vtanh.pop %v3798
    %3801 = vrot.lane.b32.xlu0 %v3799, 64
    %v3802 = vpop.permute.xlu0 %3801
    %v3804 = vmul.f32 %v3787, %v3802
    %3806 = vrot.lane.b32.xlu0 %v3804, 32
    %v3807 = vpop.permute.xlu0 %3806
    %3809 = vst.msk [vmem:[#allocation4 + $0x4] sm:$0x3] %vm2665, %v3807
    %3810 = vst.msk [vmem:[#allocation4 + $0xa] sm:$0x3] %vm2667, %v3807
    %v3811 = vld [vmem:[#allocation3 + $0x6] sm:$0x3]
    %v3812 = vld [vmem:[#allocation3 + $0x8] sm:$0x3]
    %v3813 = vsel %vm2460, %v3811, %v3812
    %v3814 = vsel %vm133, %v3807, 0
    %3816 = vmatprep.subr.mxu0 0.0
    %3817 = vmatpush1.msra.mxu0 0.0
    %3818 = vmatprep.subr.mxu0 0.0
    %3819 = vmatpush1.msra.mxu0 0.0
    %3820 = vmatprep.subr.mxu0 0.0
    %3821 = vmatpush1.msra.mxu0 0.0
    %3822 = vmatprep.subr.mxu0 0.0
    %3823 = vmatpush1.msra.mxu0 0.0
    %3824 = vmatprep.subr.mxu0 0.0
    %3825 = vmatpush1.msra.mxu0 0.0
    %3826 = vmatprep.subr.mxu0 0.0
    %3827 = vmatpush1.msra.mxu0 0.0
    %3828 = vmatprep.subr.mxu0 0.0
    %3829 = vmatpush1.msra.mxu0 0.0
    %3830 = vmatprep.subr.mxu0 0.0
    %3831 = vmatpush1.msra.mxu0 0.0
    %3832 = vmatprep.subr.mxu0 0.0
    %3833 = vmatpush1.msra.mxu0 0.0
    %3834 = vmatprep.subr.mxu0 0.0
    %3835 = vmatpush1.msra.mxu0 0.0
    %3836 = vmatprep.subr.mxu0 0.0
    %3837 = vmatpush1.msra.mxu0 0.0
    %3838 = vmatprep.subr.mxu0 0.0
    %3839 = vmatpush1.msra.mxu0 0.0
    %3840 = vmatprep.subr.mxu0 0.0
    %3841 = vmatpush1.msra.mxu0 %v3500
    %3842 = vmatprep.subr.mxu0 0.0
    %3843 = vmatpush1.msra.mxu0 %v3499
    %3844 = vmatprep.subr.mxu0 0.0
    %3845 = vmatpush1.msra.mxu0 %v3498
    %3846 = vmatprep.subr.mxu0 0.0
    %3847 = vmatpush1.msra.mxu0 %v3497
    %3848 = vmatprep.subr.mxu0 0.0
    %3849 = vmatpush2.msra.mxu0 0.0
    %3850 = vmatprep.subr.mxu0 0.0
    %3851 = vmatpush2.msra.mxu0 0.0
    %3852 = vmatprep.subr.mxu0 0.0
    %3853 = vmatpush2.msra.mxu0 0.0
    %3854 = vmatprep.subr.mxu0 0.0
    %3855 = vmatpush2.msra.mxu0 0.0
    %3856 = vmatprep.subr.mxu0 0.0
    %3857 = vmatpush2.msra.mxu0 0.0
    %3858 = vmatprep.subr.mxu0 0.0
    %3859 = vmatpush2.msra.mxu0 0.0
    %3860 = vmatprep.subr.mxu0 0.0
    %3861 = vmatpush2.msra.mxu0 0.0
    %3862 = vmatprep.subr.mxu0 0.0
    %3863 = vmatpush2.msra.mxu0 0.0
    %3864 = vmatprep.subr.mxu0 0.0
    %3865 = vmatpush2.msra.mxu0 0.0
    %3866 = vmatprep.subr.mxu0 0.0
    %3867 = vmatpush2.msra.mxu0 0.0
    %3868 = vmatprep.subr.mxu0 0.0
    %3869 = vmatpush2.msra.mxu0 0.0
    %3870 = vmatprep.subr.mxu0 0.0
    %3871 = vmatpush2.msra.mxu0 0.0
    %3872 = vmatprep.subr.mxu0 0.0
    %3873 = vmatpush2.msra.mxu0 0.0
    %3874 = vmatprep.subr.mxu0 0.0
    %3875 = vmatpush2.msra.mxu0 0.0
    %3876 = vmatprep.subr.mxu0 0.0
    %3877 = vmatpush2.msra.mxu0 0.0
    %3878 = vmatprep.subr.mxu0 0.0
    %3879 = vmatpush2.msra.mxu0 0.0
    %3880 = vmatprep.mubr.f32.mxu0 0.0
    %3881 = vmatmul.mubr.f32.gmra.mxu0 %v3814
    %v3882 = vpop.f32.mrf.mxu0
    %v3883 = vadd.f32 0.0, %v3882
    %v3884 = vpop.f32.mrf.mxu0
    %3885 = vdwg.mxu0
    %v3886 = vadd.f32 %v3813, %v3883
    %v3887 = vmul.f32 %v3886, %v2464
    %v3888 = vtanh.pop %v3887
    %v3889 = vmul.f32 %v3888, 0.5
    %v3890 = vadd.f32 %v3889, 0.5
    %v3891 = vsel %vm2463, %v3888, %v3890
    %v3892 = vmul.f32 %v3891, %v3798
    %3894 = vrot.lane.b32.xlu0 %v3891, 64
    %v3895 = vpop.permute.xlu0 %3894
    %v3897 = vmul.f32 %v3891, %v3895
    %3899 = vrot.lane.b32.xlu0 %v3897, 32
    %v3900 = vpop.permute.xlu0 %3899
    %v3902 = vadd.f32 %v3892, %v3900
    %v3903 = vtanh.pop %v3902
    %3905 = vrot.lane.b32.xlu0 %v3903, 64
    %v3906 = vpop.permute.xlu0 %3905
    %v3908 = vmul.f32 %v3891, %v3906
    %3910 = vrot.lane.b32.xlu0 %v3908, 32
    %v3911 = vpop.permute.xlu0 %3910
    %3913 = vst.msk [vmem:[#allocation4 + $0x6] sm:$0x3] %vm2665, %v3911
    %3914 = vst.msk [vmem:[#allocation4 + $0x8] sm:$0x3] %vm2667, %v3911
    %v3915 = vld [vmem:[#allocation3 + $0x8] sm:$0x3]
    %v3916 = vld [vmem:[#allocation3 + $0x6] sm:$0x3]
    %v3917 = vsel %vm2460, %v3915, %v3916
    %v3918 = vsel %vm133, %v3911, 0
    %3920 = vmatprep.subr.mxu0 0.0
    %3921 = vmatpush1.msra.mxu0 0.0
    %3922 = vmatprep.subr.mxu0 0.0
    %3923 = vmatpush1.msra.mxu0 0.0
    %3924 = vmatprep.subr.mxu0 0.0
    %3925 = vmatpush1.msra.mxu0 0.0
    %3926 = vmatprep.subr.mxu0 0.0
    %3927 = vmatpush1.msra.mxu0 0.0
    %3928 = vmatprep.subr.mxu0 0.0
    %3929 = vmatpush1.msra.mxu0 0.0
    %3930 = vmatprep.subr.mxu0 0.0
    %3931 = vmatpush1.msra.mxu0 0.0
    %3932 = vmatprep.subr.mxu0 0.0
    %3933 = vmatpush1.msra.mxu0 0.0
    %3934 = vmatprep.subr.mxu0 0.0
    %3935 = vmatpush1.msra.mxu0 0.0
    %3936 = vmatprep.subr.mxu0 0.0
    %3937 = vmatpush1.msra.mxu0 0.0
    %3938 = vmatprep.subr.mxu0 0.0
    %3939 = vmatpush1.msra.mxu0 0.0
    %3940 = vmatprep.subr.mxu0 0.0
    %3941 = vmatpush1.msra.mxu0 0.0
    %3942 = vmatprep.subr.mxu0 0.0
    %3943 = vmatpush1.msra.mxu0 0.0
    %3944 = vmatprep.subr.mxu0 0.0
    %3945 = vmatpush1.msra.mxu0 %v3500
    %3946 = vmatprep.subr.mxu0 0.0
    %3947 = vmatpush1.msra.mxu0 %v3499
    %3948 = vmatprep.subr.mxu0 0.0
    %3949 = vmatpush1.msra.mxu0 %v3498
    %3950 = vmatprep.subr.mxu0 0.0
    %3951 = vmatpush1.msra.mxu0 %v3497
    %3952 = vmatprep.subr.mxu0 0.0
    %3953 = vmatpush2.msra.mxu0 0.0
    %3954 = vmatprep.subr.mxu0 0.0
    %3955 = vmatpush2.msra.mxu0 0.0
    %3956 = vmatprep.subr.mxu0 0.0
    %3957 = vmatpush2.msra.mxu0 0.0
    %3958 = vmatprep.subr.mxu0 0.0
    %3959 = vmatpush2.msra.mxu0 0.0
    %3960 = vmatprep.subr.mxu0 0.0
    %3961 = vmatpush2.msra.mxu0 0.0
    %3962 = vmatprep.subr.mxu0 0.0
    %3963 = vmatpush2.msra.mxu0 0.0
    %3964 = vmatprep.subr.mxu0 0.0
    %3965 = vmatpush2.msra.mxu0 0.0
    %3966 = vmatprep.subr.mxu0 0.0
    %3967 = vmatpush2.msra.mxu0 0.0
    %3968 = vmatprep.subr.mxu0 0.0
    %3969 = vmatpush2.msra.mxu0 0.0
    %3970 = vmatprep.subr.mxu0 0.0
    %3971 = vmatpush2.msra.mxu0 0.0
    %3972 = vmatprep.subr.mxu0 0.0
    %3973 = vmatpush2.msra.mxu0 0.0
    %3974 = vmatprep.subr.mxu0 0.0
    %3975 = vmatpush2.msra.mxu0 0.0
    %3976 = vmatprep.subr.mxu0 0.0
    %3977 = vmatpush2.msra.mxu0 0.0
    %3978 = vmatprep.subr.mxu0 0.0
    %3979 = vmatpush2.msra.mxu0 0.0
    %3980 = vmatprep.subr.mxu0 0.0
    %3981 = vmatpush2.msra.mxu0 0.0
    %3982 = vmatprep.subr.mxu0 0.0
    %3983 = vmatpush2.msra.mxu0 0.0
    %3984 = vmatprep.mubr.f32.mxu0 0.0
    %3985 = vmatmul.mubr.f32.gmra.mxu0 %v3918
    %v3986 = vpop.f32.mrf.mxu0
    %v3987 = vadd.f32 0.0, %v3986
    %v3988 = vpop.f32.mrf.mxu0
    %3989 = vdwg.mxu0
    %v3990 = vadd.f32 %v3917, %v3987
    %v3991 = vmul.f32 %v3990, %v2464
    %v3992 = vtanh.pop %v3991
    %v3993 = vmul.f32 %v3992, 0.5
    %v3994 = vadd.f32 %v3993, 0.5
    %v3995 = vsel %vm2463, %v3992, %v3994
    %v3996 = vmul.f32 %v3995, %v3902
    %3998 = vrot.lane.b32.xlu0 %v3995, 64
    %v3999 = vpop.permute.xlu0 %3998
    %v4001 = vmul.f32 %v3995, %v3999
    %4003 = vrot.lane.b32.xlu0 %v4001, 32
    %v4004 = vpop.permute.xlu0 %4003
    %v4006 = vadd.f32 %v3996, %v4004
    %v4007 = vtanh.pop %v4006
    %4009 = vrot.lane.b32.xlu0 %v4007, 64
    %v4010 = vpop.permute.xlu0 %4009
    %v4012 = vmul.f32 %v3995, %v4010
    %4014 = vrot.lane.b32.xlu0 %v4012, 32
    %v4015 = vpop.permute.xlu0 %4014
    %4017 = vst.msk [vmem:[#allocation4 + $0x8] sm:$0x3] %vm2665, %v4015
    %4018 = vst.msk [vmem:[#allocation4 + $0x6] sm:$0x3] %vm2667, %v4015
    %v4019 = vld [vmem:[#allocation3 + $0xa] sm:$0x3]
    %v4020 = vld [vmem:[#allocation3 + $0x4] sm:$0x3]
    %v4021 = vsel %vm2460, %v4019, %v4020
    %v4022 = vsel %vm133, %v4015, 0
    %4024 = vmatprep.subr.mxu0 0.0
    %4025 = vmatpush1.msra.mxu0 0.0
    %4026 = vmatprep.subr.mxu0 0.0
    %4027 = vmatpush1.msra.mxu0 0.0
    %4028 = vmatprep.subr.mxu0 0.0
    %4029 = vmatpush1.msra.mxu0 0.0
    %4030 = vmatprep.subr.mxu0 0.0
    %4031 = vmatpush1.msra.mxu0 0.0
    %4032 = vmatprep.subr.mxu0 0.0
    %4033 = vmatpush1.msra.mxu0 0.0
    %4034 = vmatprep.subr.mxu0 0.0
    %4035 = vmatpush1.msra.mxu0 0.0
    %4036 = vmatprep.subr.mxu0 0.0
    %4037 = vmatpush1.msra.mxu0 0.0
    %4038 = vmatprep.subr.mxu0 0.0
    %4039 = vmatpush1.msra.mxu0 0.0
    %4040 = vmatprep.subr.mxu0 0.0
    %4041 = vmatpush1.msra.mxu0 0.0
    %4042 = vmatprep.subr.mxu0 0.0
    %4043 = vmatpush1.msra.mxu0 0.0
    %4044 = vmatprep.subr.mxu0 0.0
    %4045 = vmatpush1.msra.mxu0 0.0
    %4046 = vmatprep.subr.mxu0 0.0
    %4047 = vmatpush1.msra.mxu0 0.0
    %4048 = vmatprep.subr.mxu0 0.0
    %4049 = vmatpush1.msra.mxu0 %v3500
    %4050 = vmatprep.subr.mxu0 0.0
    %4051 = vmatpush1.msra.mxu0 %v3499
    %4052 = vmatprep.subr.mxu0 0.0
    %4053 = vmatpush1.msra.mxu0 %v3498
    %4054 = vmatprep.subr.mxu0 0.0
    %4055 = vmatpush1.msra.mxu0 %v3497
    %4056 = vmatprep.subr.mxu0 0.0
    %4057 = vmatpush2.msra.mxu0 0.0
    %4058 = vmatprep.subr.mxu0 0.0
    %4059 = vmatpush2.msra.mxu0 0.0
    %4060 = vmatprep.subr.mxu0 0.0
    %4061 = vmatpush2.msra.mxu0 0.0
    %4062 = vmatprep.subr.mxu0 0.0
    %4063 = vmatpush2.msra.mxu0 0.0
    %4064 = vmatprep.subr.mxu0 0.0
    %4065 = vmatpush2.msra.mxu0 0.0
    %4066 = vmatprep.subr.mxu0 0.0
    %4067 = vmatpush2.msra.mxu0 0.0
    %4068 = vmatprep.subr.mxu0 0.0
    %4069 = vmatpush2.msra.mxu0 0.0
    %4070 = vmatprep.subr.mxu0 0.0
    %4071 = vmatpush2.msra.mxu0 0.0
    %4072 = vmatprep.subr.mxu0 0.0
    %4073 = vmatpush2.msra.mxu0 0.0
    %4074 = vmatprep.subr.mxu0 0.0
    %4075 = vmatpush2.msra.mxu0 0.0
    %4076 = vmatprep.subr.mxu0 0.0
    %4077 = vmatpush2.msra.mxu0 0.0
    %4078 = vmatprep.subr.mxu0 0.0
    %4079 = vmatpush2.msra.mxu0 0.0
    %4080 = vmatprep.subr.mxu0 0.0
    %4081 = vmatpush2.msra.mxu0 0.0
    %4082 = vmatprep.subr.mxu0 0.0
    %4083 = vmatpush2.msra.mxu0 0.0
    %4084 = vmatprep.subr.mxu0 0.0
    %4085 = vmatpush2.msra.mxu0 0.0
    %4086 = vmatprep.subr.mxu0 0.0
    %4087 = vmatpush2.msra.mxu0 0.0
    %4088 = vmatprep.mubr.f32.mxu0 0.0
    %4089 = vmatmul.mubr.f32.gmra.mxu0 %v4022
    %v4090 = vpop.f32.mrf.mxu0
    %v4091 = vadd.f32 0.0, %v4090
    %v4092 = vpop.f32.mrf.mxu0
    %4093 = vdwg.mxu0
    %v4094 = vadd.f32 %v4021, %v4091
    %v4095 = vmul.f32 %v4094, %v2464
    %v4096 = vtanh.pop %v4095
    %v4097 = vmul.f32 %v4096, 0.5
    %v4098 = vadd.f32 %v4097, 0.5
    %v4099 = vsel %vm2463, %v4096, %v4098
    %v4100 = vmul.f32 %v4099, %v4006
    %4102 = vrot.lane.b32.xlu0 %v4099, 64
    %v4103 = vpop.permute.xlu0 %4102
    %v4105 = vmul.f32 %v4099, %v4103
    %4107 = vrot.lane.b32.xlu0 %v4105, 32
    %v4108 = vpop.permute.xlu0 %4107
    %v4110 = vadd.f32 %v4100, %v4108
    %v4111 = vtanh.pop %v4110
    %4113 = vrot.lane.b32.xlu0 %v4111, 64
    %v4114 = vpop.permute.xlu0 %4113
    %v4116 = vmul.f32 %v4099, %v4114
    %4118 = vrot.lane.b32.xlu0 %v4116, 32
    %v4119 = vpop.permute.xlu0 %4118
    %4121 = vst.msk [vmem:[#allocation4 + $0xa] sm:$0x3] %vm2665, %v4119
    %4122 = vst.msk [vmem:[#allocation4 + $0x4] sm:$0x3] %vm2667, %v4119
    %v4123 = vld [vmem:[#allocation3 + $0xc] sm:$0x3]
    %v4124 = vld [vmem:[#allocation3 + $0x2] sm:$0x3]
    %v4125 = vsel %vm2460, %v4123, %v4124
    %v4126 = vsel %vm133, %v4119, 0
    %4128 = vmatprep.subr.mxu0 0.0
    %4129 = vmatpush1.msra.mxu0 0.0
    %4130 = vmatprep.subr.mxu0 0.0
    %4131 = vmatpush1.msra.mxu0 0.0
    %4132 = vmatprep.subr.mxu0 0.0
    %4133 = vmatpush1.msra.mxu0 0.0
    %4134 = vmatprep.subr.mxu0 0.0
    %4135 = vmatpush1.msra.mxu0 0.0
    %4136 = vmatprep.subr.mxu0 0.0
    %4137 = vmatpush1.msra.mxu0 0.0
    %4138 = vmatprep.subr.mxu0 0.0
    %4139 = vmatpush1.msra.mxu0 0.0
    %4140 = vmatprep.subr.mxu0 0.0
    %4141 = vmatpush1.msra.mxu0 0.0
    %4142 = vmatprep.subr.mxu0 0.0
    %4143 = vmatpush1.msra.mxu0 0.0
    %4144 = vmatprep.subr.mxu0 0.0
    %4145 = vmatpush1.msra.mxu0 0.0
    %4146 = vmatprep.subr.mxu0 0.0
    %4147 = vmatpush1.msra.mxu0 0.0
    %4148 = vmatprep.subr.mxu0 0.0
    %4149 = vmatpush1.msra.mxu0 0.0
    %4150 = vmatprep.subr.mxu0 0.0
    %4151 = vmatpush1.msra.mxu0 0.0
    %4152 = vmatprep.subr.mxu0 0.0
    %4153 = vmatpush1.msra.mxu0 %v3500
    %4154 = vmatprep.subr.mxu0 0.0
    %4155 = vmatpush1.msra.mxu0 %v3499
    %4156 = vmatprep.subr.mxu0 0.0
    %4157 = vmatpush1.msra.mxu0 %v3498
    %4158 = vmatprep.subr.mxu0 0.0
    %4159 = vmatpush1.msra.mxu0 %v3497
    %4160 = vmatprep.subr.mxu0 0.0
    %4161 = vmatpush2.msra.mxu0 0.0
    %4162 = vmatprep.subr.mxu0 0.0
    %4163 = vmatpush2.msra.mxu0 0.0
    %4164 = vmatprep.subr.mxu0 0.0
    %4165 = vmatpush2.msra.mxu0 0.0
    %4166 = vmatprep.subr.mxu0 0.0
    %4167 = vmatpush2.msra.mxu0 0.0
    %4168 = vmatprep.subr.mxu0 0.0
    %4169 = vmatpush2.msra.mxu0 0.0
    %4170 = vmatprep.subr.mxu0 0.0
    %4171 = vmatpush2.msra.mxu0 0.0
    %4172 = vmatprep.subr.mxu0 0.0
    %4173 = vmatpush2.msra.mxu0 0.0
    %4174 = vmatprep.subr.mxu0 0.0
    %4175 = vmatpush2.msra.mxu0 0.0
    %4176 = vmatprep.subr.mxu0 0.0
    %4177 = vmatpush2.msra.mxu0 0.0
    %4178 = vmatprep.subr.mxu0 0.0
    %4179 = vmatpush2.msra.mxu0 0.0
    %4180 = vmatprep.subr.mxu0 0.0
    %4181 = vmatpush2.msra.mxu0 0.0
    %4182 = vmatprep.subr.mxu0 0.0
    %4183 = vmatpush2.msra.mxu0 0.0
    %4184 = vmatprep.subr.mxu0 0.0
    %4185 = vmatpush2.msra.mxu0 0.0
    %4186 = vmatprep.subr.mxu0 0.0
    %4187 = vmatpush2.msra.mxu0 0.0
    %4188 = vmatprep.subr.mxu0 0.0
    %4189 = vmatpush2.msra.mxu0 0.0
    %4190 = vmatprep.subr.mxu0 0.0
    %4191 = vmatpush2.msra.mxu0 0.0
    %4192 = vmatprep.mubr.f32.mxu0 0.0
    %4193 = vmatmul.mubr.f32.gmra.mxu0 %v4126
    %v4194 = vpop.f32.mrf.mxu0
    %v4195 = vadd.f32 0.0, %v4194
    %v4196 = vpop.f32.mrf.mxu0
    %4197 = vdwg.mxu0
    %v4198 = vadd.f32 %v4125, %v4195
    %v4199 = vmul.f32 %v4198, %v2464
    %v4200 = vtanh.pop %v4199
    %v4201 = vmul.f32 %v4200, 0.5
    %v4202 = vadd.f32 %v4201, 0.5
    %v4203 = vsel %vm2463, %v4200, %v4202
    %v4204 = vmul.f32 %v4203, %v4110
    %4206 = vrot.lane.b32.xlu0 %v4203, 64
    %v4207 = vpop.permute.xlu0 %4206
    %v4209 = vmul.f32 %v4203, %v4207
    %4211 = vrot.lane.b32.xlu0 %v4209, 32
    %v4212 = vpop.permute.xlu0 %4211
    %v4214 = vadd.f32 %v4204, %v4212
    %v4215 = vtanh.pop %v4214
    %4217 = vrot.lane.b32.xlu0 %v4215, 64
    %v4218 = vpop.permute.xlu0 %4217
    %v4220 = vmul.f32 %v4203, %v4218
    %4222 = vrot.lane.b32.xlu0 %v4220, 32
    %v4223 = vpop.permute.xlu0 %4222
    %4225 = vst.msk [vmem:[#allocation4 + $0xc] sm:$0x3] %vm2665, %v4223
    %4226 = vst.msk [vmem:[#allocation4 + $0x2] sm:$0x3] %vm2667, %v4223
    %v4227 = vld [vmem:[#allocation3 + $0xe] sm:$0x3]
    %v4228 = vld [vmem:[#allocation3] sm:$0x3]
    %v4229 = vsel %vm2460, %v4227, %v4228
    %v4230 = vsel %vm133, %v4223, 0
    %4232 = vmatprep.subr.mxu0 0.0
    %4233 = vmatpush1.msra.mxu0 0.0
    %4234 = vmatprep.subr.mxu0 0.0
    %4235 = vmatpush1.msra.mxu0 0.0
    %4236 = vmatprep.subr.mxu0 0.0
    %4237 = vmatpush1.msra.mxu0 0.0
    %4238 = vmatprep.subr.mxu0 0.0
    %4239 = vmatpush1.msra.mxu0 0.0
    %4240 = vmatprep.subr.mxu0 0.0
    %4241 = vmatpush1.msra.mxu0 0.0
    %4242 = vmatprep.subr.mxu0 0.0
    %4243 = vmatpush1.msra.mxu0 0.0
    %4244 = vmatprep.subr.mxu0 0.0
    %4245 = vmatpush1.msra.mxu0 0.0
    %4246 = vmatprep.subr.mxu0 0.0
    %4247 = vmatpush1.msra.mxu0 0.0
    %4248 = vmatprep.subr.mxu0 0.0
    %4249 = vmatpush1.msra.mxu0 0.0
    %4250 = vmatprep.subr.mxu0 0.0
    %4251 = vmatpush1.msra.mxu0 0.0
    %4252 = vmatprep.subr.mxu0 0.0
    %4253 = vmatpush1.msra.mxu0 0.0
    %4254 = vmatprep.subr.mxu0 0.0
    %4255 = vmatpush1.msra.mxu0 0.0
    %4256 = vmatprep.subr.mxu0 0.0
    %4257 = vmatpush1.msra.mxu0 %v3500
    %4258 = vmatprep.subr.mxu0 0.0
    %4259 = vmatpush1.msra.mxu0 %v3499
    %4260 = vmatprep.subr.mxu0 0.0
    %4261 = vmatpush1.msra.mxu0 %v3498
    %4262 = vmatprep.subr.mxu0 0.0
    %4263 = vmatpush1.msra.mxu0 %v3497
    %4264 = vmatprep.subr.mxu0 0.0
    %4265 = vmatpush2.msra.mxu0 0.0
    %4266 = vmatprep.subr.mxu0 0.0
    %4267 = vmatpush2.msra.mxu0 0.0
    %4268 = vmatprep.subr.mxu0 0.0
    %4269 = vmatpush2.msra.mxu0 0.0
    %4270 = vmatprep.subr.mxu0 0.0
    %4271 = vmatpush2.msra.mxu0 0.0
    %4272 = vmatprep.subr.mxu0 0.0
    %4273 = vmatpush2.msra.mxu0 0.0
    %4274 = vmatprep.subr.mxu0 0.0
    %4275 = vmatpush2.msra.mxu0 0.0
    %4276 = vmatprep.subr.mxu0 0.0
    %4277 = vmatpush2.msra.mxu0 0.0
    %4278 = vmatprep.subr.mxu0 0.0
    %4279 = vmatpush2.msra.mxu0 0.0
    %4280 = vmatprep.subr.mxu0 0.0
    %4281 = vmatpush2.msra.mxu0 0.0
    %4282 = vmatprep.subr.mxu0 0.0
    %4283 = vmatpush2.msra.mxu0 0.0
    %4284 = vmatprep.subr.mxu0 0.0
    %4285 = vmatpush2.msra.mxu0 0.0
    %4286 = vmatprep.subr.mxu0 0.0
    %4287 = vmatpush2.msra.mxu0 0.0
    %4288 = vmatprep.subr.mxu0 0.0
    %4289 = vmatpush2.msra.mxu0 0.0
    %4290 = vmatprep.subr.mxu0 0.0
    %4291 = vmatpush2.msra.mxu0 0.0
    %4292 = vmatprep.subr.mxu0 0.0
    %4293 = vmatpush2.msra.mxu0 0.0
    %4294 = vmatprep.subr.mxu0 0.0
    %4295 = vmatpush2.msra.mxu0 0.0
    %4296 = vmatprep.mubr.f32.mxu0 0.0
    %4297 = vmatmul.mubr.f32.gmra.mxu0 %v4230
    %v4298 = vpop.f32.mrf.mxu0
    %v4299 = vadd.f32 0.0, %v4298
    %v4300 = vpop.f32.mrf.mxu0
    %4301 = vdwg.mxu0
    %v4302 = vadd.f32 %v4229, %v4299
    %v4303 = vmul.f32 %v4302, %v2464
    %v4304 = vtanh.pop %v4303
    %v4305 = vmul.f32 %v4304, 0.5
    %v4306 = vadd.f32 %v4305, 0.5
    %v4307 = vsel %vm2463, %v4304, %v4306
    %v4308 = vmul.f32 %v4307, %v4214
    %4310 = vrot.lane.b32.xlu0 %v4307, 64
    %v4311 = vpop.permute.xlu0 %4310
    %v4313 = vmul.f32 %v4307, %v4311
    %4315 = vrot.lane.b32.xlu0 %v4313, 32
    %v4316 = vpop.permute.xlu0 %4315
    %v4318 = vadd.f32 %v4308, %v4316
    %v4319 = vtanh.pop %v4318
    %4321 = vrot.lane.b32.xlu0 %v4319, 64
    %v4322 = vpop.permute.xlu0 %4321
    %v4324 = vmul.f32 %v4307, %v4322
    %4326 = vrot.lane.b32.xlu0 %v4324, 32
    %v4327 = vpop.permute.xlu0 %4326
    %4329 = vst.msk [vmem:[#allocation4 + $0xe] sm:$0x3] %vm2665, %v4327
    %4330 = vst.msk [vmem:[#allocation4] sm:$0x3] %vm2667, %v4327
    %v4331 = vld [vmem:[#allocation4] sm:$0xff]
    %v4332 = vld [vmem:[#allocation4 + $0x8] sm:$0xff]
    %v4333 = vld [vmem:[#allocation7 + $0x248] sm:$0xff]
    %v4334 = vld [vmem:[#allocation7 + $0x250] sm:$0xff]
    %v4335 = vld [vmem:[#allocation7 + $0x258] sm:$0xff]
    %v4336 = vld [vmem:[#allocation7 + $0x260] sm:$0xff]
    %v4337 = vld [vmem:[#allocation7 + $0x268] sm:$0x1]
    %v4338 = vlaneseq
    %v4339 = vshrl.u32 %v4338, 7
    %v4340 = vsub.s32 0, %v4339
    %v4341 = vrot.slane %v4337, %v4340
    %v4343 = vsel %vm133, %v4331, 0
    %v4346 = vsel %vm133, %v4332, 0
    %4348 = vmatprep.subr.mxu0 0.0
    %4349 = vmatpush1.msra.mxu0 0.0
    %4350 = vmatprep.subr.mxu0 0.0
    %4351 = vmatpush1.msra.mxu0 0.0
    %4352 = vmatprep.subr.mxu0 0.0
    %4353 = vmatpush1.msra.mxu0 0.0
    %4354 = vmatprep.subr.mxu0 0.0
    %4355 = vmatpush1.msra.mxu0 0.0
    %4356 = vmatprep.subr.mxu0 0.0
    %4357 = vmatpush1.msra.mxu0 0.0
    %4358 = vmatprep.subr.mxu0 0.0
    %4359 = vmatpush1.msra.mxu0 0.0
    %4360 = vmatprep.subr.mxu0 0.0
    %4361 = vmatpush1.msra.mxu0 0.0
    %4362 = vmatprep.subr.mxu0 0.0
    %4363 = vmatpush1.msra.mxu0 0.0
    %4364 = vmatprep.subr.mxu0 0.0
    %4365 = vmatpush1.msra.mxu0 0.0
    %4366 = vmatprep.subr.mxu0 0.0
    %4367 = vmatpush1.msra.mxu0 0.0
    %4368 = vmatprep.subr.mxu0 0.0
    %4369 = vmatpush1.msra.mxu0 0.0
    %4370 = vmatprep.subr.mxu0 0.0
    %4371 = vmatpush1.msra.mxu0 0.0
    %4372 = vmatprep.subr.mxu0 0.0
    %4373 = vmatpush1.msra.mxu0 %v4336
    %4374 = vmatprep.subr.mxu0 0.0
    %4375 = vmatpush1.msra.mxu0 %v4335
    %4376 = vmatprep.subr.mxu0 0.0
    %4377 = vmatpush1.msra.mxu0 %v4334
    %4378 = vmatprep.subr.mxu0 0.0
    %4379 = vmatpush1.msra.mxu0 %v4333
    %4380 = vmatprep.subr.mxu0 0.0
    %4381 = vmatpush2.msra.mxu0 0.0
    %4382 = vmatprep.subr.mxu0 0.0
    %4383 = vmatpush2.msra.mxu0 0.0
    %4384 = vmatprep.subr.mxu0 0.0
    %4385 = vmatpush2.msra.mxu0 0.0
    %4386 = vmatprep.subr.mxu0 0.0
    %4387 = vmatpush2.msra.mxu0 0.0
    %4388 = vmatprep.subr.mxu0 0.0
    %4389 = vmatpush2.msra.mxu0 0.0
    %4390 = vmatprep.subr.mxu0 0.0
    %4391 = vmatpush2.msra.mxu0 0.0
    %4392 = vmatprep.subr.mxu0 0.0
    %4393 = vmatpush2.msra.mxu0 0.0
    %4394 = vmatprep.subr.mxu0 0.0
    %4395 = vmatpush2.msra.mxu0 0.0
    %4396 = vmatprep.subr.mxu0 0.0
    %4397 = vmatpush2.msra.mxu0 0.0
    %4398 = vmatprep.subr.mxu0 0.0
    %4399 = vmatpush2.msra.mxu0 0.0
    %4400 = vmatprep.subr.mxu0 0.0
    %4401 = vmatpush2.msra.mxu0 0.0
    %4402 = vmatprep.subr.mxu0 0.0
    %4403 = vmatpush2.msra.mxu0 0.0
    %4404 = vmatprep.subr.mxu0 0.0
    %4405 = vmatpush2.msra.mxu0 0.0
    %4406 = vmatprep.subr.mxu0 0.0
    %4407 = vmatpush2.msra.mxu0 0.0
    %4408 = vmatprep.subr.mxu0 0.0
    %4409 = vmatpush2.msra.mxu0 0.0
    %4410 = vmatprep.subr.mxu0 0.0
    %4411 = vmatpush2.msra.mxu0 0.0
    %4412 = vmatprep.mubr.f32.mxu0 0.0
    %4413 = vmatmul.mubr.f32.gmra.mxu0 %v4343
    %v4414 = vpop.f32.mrf.mxu0
    %v4415 = vadd.f32 %v4341, %v4414
    %v4416 = vpop.f32.mrf.mxu0
    %4417 = vmatprep.mubr.f32.mxu0 0.0
    %4418 = vmatmul.mubr.f32.gmra.mxu0 %v4346
    %v4419 = vpop.f32.mrf.mxu0
    %v4420 = vadd.f32 %v4341, %v4419
    %v4421 = vpop.f32.mrf.mxu0
    %4422 = vdwg.mxu0
    %4423 = vst [vmem:[%s3] sm:$0xff] %v4415
    %4424 = vst [vmem:[%s3 + $0x8] sm:$0xff] %v4420
    // Predicated region
    $region14: #{_lambda_.1} parent=1 // pred_check
      _
    $region15: #{_lambda_.1} parent=1 // pred_check_branch
      %4426 = sbr.rel (0) target = $region17
    $region16: #{_lambda_.1} parent=1 // pred_region
      _
    $region17: #{_lambda_.1} parent=1 // pred_fallthru
      _
    // Predicated region
    $region18: #{_lambda_.1} parent=1 // pred_check
      _
    $region19: #{_lambda_.1} parent=1 // pred_check_branch
      %4428 = sbr.rel (0) target = $region21
    $region20: #{_lambda_.1} parent=1 // pred_region
      _
    $region21: #{_lambda_.1} parent=1 // pred_fallthru
      _
    %4429 = vsyncpa [#allocation8], 1

</llo_original>
